<compile_context>
chip_gen: v7x
topology: tpu7x:2x2x1
jax: 0.10.0
libtpu: 0.0.40
codegen_flags: <defaults>
</compile_context>

<pallas_src>
import numpy as np
import jax
import jax.numpy as jnp
from jax.experimental import pallas as pl
from jax.experimental.pallas import tpu as pltpu

F_IN, H1, H2, H3, FC1, FC2 = 10, 128, 64, 32, 16, 1
HP = 128          # padded per-gate width (lane-aligned) for every LSTM layer
GP = 4 * HP       # padded gate-row width
FP = 128          # padded input feature width (lane-aligned)


def _cell(gates, c):
    """LSTM elementwise math on lane-padded 128-wide gate blocks, order [i,f,g,o]."""
    i = jax.nn.sigmoid(gates[:, 0 * HP:1 * HP])
    f = jax.nn.sigmoid(gates[:, 1 * HP:2 * HP])
    g = jnp.tanh(gates[:, 2 * HP:3 * HP])
    o = jax.nn.sigmoid(gates[:, 3 * HP:4 * HP])
    c_new = f * c + i * g          # padded lanes: 0.5*0 + 0.5*0 = 0 (stay exact 0)
    h_new = o * jnp.tanh(c_new)    # padded lanes: 0.5*tanh(0) = 0
    return h_new, c_new


def seq_kernel(x_ref,
               wih1_ref, whh1_ref, b1_ref,
               wih2_ref, whh2_ref, b2_ref,
               wih3_ref, whh3_ref, b3_ref,
               wfc_ref, bfc_ref,
               out_ref,
               xp_ref, ha_ref):
    bp = out_ref.shape[0]               # padded batch (multiple of 8)
    nstep = x_ref.shape[0] // bp        # T + 1 (extra t=4 step appended by wrapper)
    f32 = jnp.float32

    def recur(whh_ref, store_h):
        """Serial recurrence over timesteps; gates come from the dense projection
        already sitting in xp_ref.  Only h @ W_hh is on the serial path."""
        h = jnp.zeros((bp, HP), f32)
        c = jnp.zeros((bp, HP), f32)
        for s in range(nstep):          # static, fully unrolled (9 steps)
            gates = xp_ref[pl.ds(s * bp, bp), :] + jnp.dot(
                h, whh_ref[...], preferred_element_type=f32)
            h, c = _cell(gates, c)
            if store_h:
                ha_ref[pl.ds(s * bp, bp), :] = h
        return h

    # ---------------- layer 1 ----------------
    # Input projection for all timesteps in one dense matmul (off the serial path).
    xp_ref[...] = (jnp.dot(x_ref[...], wih1_ref[...],
                           preferred_element_type=f32) + b1_ref[...])
    recur(whh1_ref, store_h=True)

    # ---------------- layer 2 ----------------
    # TODO(synk): Dropout(p=0.2) between layers implemented as identity (inference mode).
    xp_ref[...] = (jnp.dot(ha_ref[...], wih2_ref[...],
                           preferred_element_type=f32) + b2_ref[...])
    recur(whh2_ref, store_h=True)

    # ---------------- layer 3 ----------------
    xp_ref[...] = (jnp.dot(ha_ref[...], wih3_ref[...],
                           preferred_element_type=f32) + b3_ref[...])
    h = recur(whh3_ref, store_h=False)  # only the final h is needed

    # ---------------- fused fc1∘fc2 epilogue ----------------
    out_ref[...] = (jnp.dot(h, wfc_ref[...],
                            preferred_element_type=f32) + bfc_ref[...])


# ---------------- host-side parameter padding / fusion ----------------

def _pad_gate_cols(w, hdim):
    """(rows, 4*hdim) -> (rows, 4*HP): each gate left-aligned in its own 128-lane slot."""
    if hdim == HP:
        return w
    blocks = [jnp.pad(w[:, k * hdim:(k + 1) * hdim], ((0, 0), (0, HP - hdim)))
              for k in range(4)]
    return jnp.concatenate(blocks, axis=1)


def _pad_rows(w, rows):
    return jnp.pad(w, ((0, rows - w.shape[0]), (0, 0)))


def _prepare_params(params):
    (wih1, whh1, b1, wih2, whh2, b2, wih3, whh3, b3,
     wfc1, bfc1, wfc2, bfc2) = params
    p_wih1 = _pad_rows(wih1, FP)                         # (128, 512) rows padded w/ zeros
    p_whh1 = whh1                                        # (128, 512)
    p_b1 = b1                                            # (1, 512)
    p_wih2 = _pad_gate_cols(wih2, H2)                    # (128, 512)
    p_whh2 = _pad_rows(_pad_gate_cols(whh2, H2), HP)     # (128, 512)
    p_b2 = _pad_gate_cols(b2, H2)                        # (1, 512)  (padded cols == 0)
    p_wih3 = _pad_rows(_pad_gate_cols(wih3, H3), HP)     # (128, 512)
    p_whh3 = _pad_rows(_pad_gate_cols(whh3, H3), HP)     # (128, 512)
    p_b3 = _pad_gate_cols(b3, H3)                        # (1, 512)
    # No nonlinearity between fc1 and fc2 -> fold into a single linear (exact).
    p_wfc = _pad_rows(wfc1 @ wfc2, HP)                   # (128, 1)
    p_bfc = bfc1 @ wfc2 + bfc2                           # (1, 1)
    return (p_wih1, p_whh1, p_b1, p_wih2, p_whh2, p_b2,
            p_wih3, p_whh3, p_b3, p_wfc, p_bfc)


def sequence_forward(x, params):
    """x: (T, B, F_IN) float32 -> (B, 1) float32."""
    T, B, F = x.shape
    assert T >= 5, "module uses input[4] for the extra step"
    Bp = max(8, ((B + 7) // 8) * 8)          # sublane-pad the batch
    NS = T + 1                               # extra t=4 step appended as step T

    x_p = jnp.pad(x, ((0, 0), (0, Bp - B), (0, 0)))
    x_ext = jnp.concatenate([x_p, x_p[4:5]], axis=0).reshape(NS * Bp, F)
    x_ext = jnp.pad(x_ext, ((0, 0), (0, FP - F)))        # lane-align features

    pparams = _prepare_params(params)
    n_in = 1 + len(pparams)

    out_p = pl.pallas_call(
        seq_kernel,
        out_shape=jax.ShapeDtypeStruct((Bp, FC2), jnp.float32),
        in_specs=[pl.BlockSpec(memory_space=pltpu.MemorySpace.VMEM)] * n_in,
        out_specs=pl.BlockSpec(memory_space=pltpu.MemorySpace.VMEM),
        scratch_shapes=[
            pltpu.VMEM((NS * Bp, GP), jnp.float32),   # xp: dense input projections (reused per layer)
            pltpu.VMEM((NS * Bp, HP), jnp.float32),   # ha: per-step hidden states (reused per layer)
        ],
    )(x_ext, *pparams)
    return out_p[:B]


# ---------------- pure-JAX reference (unpadded math) ----------------

def _lstm_step_ref(xt, h, c, w_ih, w_hh, b, hdim):
    gates = (jnp.dot(xt, w_ih) + b) + jnp.dot(h, w_hh)
    i = jax.nn.sigmoid(gates[:, 0 * hdim:1 * hdim])
    f = jax.nn.sigmoid(gates[:, 1 * hdim:2 * hdim])
    g = jnp.tanh(gates[:, 2 * hdim:3 * hdim])
    o = jax.nn.sigmoid(gates[:, 3 * hdim:4 * hdim])
    c_new = f * c + i * g
    h_new = o * jnp.tanh(c_new)
    return h_new, c_new


def reference_forward(x, params):
    (wih1, whh1, b1, wih2, whh2, b2, wih3, whh3, b3,
     wfc1, bfc1, wfc2, bfc2) = params
    T, B, _ = x.shape
    h1 = c1 = jnp.zeros((B, H1), jnp.float32)
    h2 = c2 = jnp.zeros((B, H2), jnp.float32)
    h3 = c3 = jnp.zeros((B, H3), jnp.float32)

    def step(xt, st):
        h1, c1, h2, c2, h3, c3 = st
        h1, c1 = _lstm_step_ref(xt, h1, c1, wih1, whh1, b1, H1)
        h2, c2 = _lstm_step_ref(h1, h2, c2, wih2, whh2, b2, H2)
        h3, c3 = _lstm_step_ref(h2, h3, c3, wih3, whh3, b3, H3)
        return (h1, c1, h2, c2, h3, c3)

    st = (h1, c1, h2, c2, h3, c3)
    for i in range(T):
        st = step(x[i], st)
    st = step(x[4], st)                         # extra step on t=4
    y = st[4] @ wfc1 + bfc1
    y = y @ wfc2 + bfc2
    return y


def make_params(key):
    """Deterministic init mirroring PyTorch default U(-1/sqrt(H), 1/sqrt(H))."""
    keys = iter(jax.random.split(key, 32))

    def u(shape, bound):
        return jax.random.uniform(next(keys), shape, jnp.float32, -bound, bound)

    def lstm(in_dim, hdim):
        k = 1.0 / np.sqrt(hdim)
        w_ih = u((in_dim, 4 * hdim), k)          # already transposed: (in, 4H)
        w_hh = u((hdim, 4 * hdim), k)            # (H, 4H)
        b = u((1, 4 * hdim), k) + u((1, 4 * hdim), k)   # b_ih + b_hh combined
        return w_ih, w_hh, b

    def linear(in_dim, out_dim):
        k = 1.0 / np.sqrt(in_dim)
        w = u((in_dim, out_dim), k)              # (in, out)
        b = u((1, out_dim), k)
        return w, b

    wih1, whh1, b1 = lstm(F_IN, H1)
    wih2, whh2, b2 = lstm(H1, H2)
    wih3, whh3, b3 = lstm(H2, H3)
    wfc1, bfc1 = linear(H3, FC1)
    wfc2, bfc2 = linear(FC1, FC2)
    return (wih1, whh1, b1, wih2, whh2, b2, wih3, whh3, b3,
            wfc1, bfc1, wfc2, bfc2)


if __name__ == "__main__":
    key = jax.random.PRNGKey(0)
    kx, kp = jax.random.split(key)

    T, B = 8, 2                                  # seq=8 (>=5 needed), batch=2
    x = jax.random.normal(kx, (T, B, F_IN), jnp.float32)
    params = make_params(kp)

    out = sequence_forward(x, params)
    out = jax.block_until_ready(out)

    ref = reference_forward(x, params)
    np.testing.assert_allclose(np.asarray(out), np.asarray(ref),
                               rtol=1e-5, atol=1e-5)
    assert out.shape == (B, 1)
    print("KERNEL_OK")
</pallas_src>

<mosaic_0001>
module attributes {stable_mosaic.version = 11 : i64} {
  func.func @seq_kernel(%arg0: memref<72x128xf32, #tpu.memory_space<vmem>>, %arg1: memref<128x512xf32, #tpu.memory_space<vmem>>, %arg2: memref<128x512xf32, #tpu.memory_space<vmem>>, %arg3: memref<1x512xf32, #tpu.memory_space<vmem>>, %arg4: memref<128x512xf32, #tpu.memory_space<vmem>>, %arg5: memref<128x512xf32, #tpu.memory_space<vmem>>, %arg6: memref<1x512xf32, #tpu.memory_space<vmem>>, %arg7: memref<128x512xf32, #tpu.memory_space<vmem>>, %arg8: memref<128x512xf32, #tpu.memory_space<vmem>>, %arg9: memref<1x512xf32, #tpu.memory_space<vmem>>, %arg10: memref<128x1xf32, #tpu.memory_space<vmem>>, %arg11: memref<1x1xf32, #tpu.memory_space<vmem>>, %arg12: memref<8x1xf32, #tpu.memory_space<vmem>>, %arg13: memref<72x512xf32, #tpu.memory_space<vmem>>, %arg14: memref<72x128xf32, #tpu.memory_space<vmem>>) attributes {dimension_semantics = [], scalar_prefetch = 0 : i64, scratch_operands = 2 : i64, tpu.core_type = #tpu.core_type<tc>} {
    %c0 = arith.constant 0 : index
    %c0_0 = arith.constant 0 : index
    %0 = vector.load %arg0[%c0, %c0_0] : memref<72x128xf32, #tpu.memory_space<vmem>>, vector<72x128xf32>
    %c0_1 = arith.constant 0 : index
    %c0_2 = arith.constant 0 : index
    %1 = vector.load %arg1[%c0_1, %c0_2] : memref<128x512xf32, #tpu.memory_space<vmem>>, vector<128x512xf32>
    %cst = arith.constant dense<0.000000e+00> : vector<72x512xf32>
    %2 = tpu.matmul %0, %1, %cst {dimension_numbers = #tpu.dot_dimension_numbers<[1], [0], [0], [1], [0, 0, 1, 1], [], []>} : vector<72x128xf32>, vector<128x512xf32>, vector<72x512xf32> -> vector<72x512xf32>
    %c0_3 = arith.constant 0 : index
    %c0_4 = arith.constant 0 : index
    %3 = vector.load %arg3[%c0_3, %c0_4] : memref<1x512xf32, #tpu.memory_space<vmem>>, vector<1x512xf32>
    %4 = vector.broadcast %3 : vector<1x512xf32> to vector<72x512xf32>
    %5 = arith.addf %2, %4 : vector<72x512xf32>
    %c0_5 = arith.constant 0 : index
    %c0_6 = arith.constant 0 : index
    %6 = vector.load %arg13[%c0_5, %c0_6] : memref<72x512xf32, #tpu.memory_space<vmem>>, vector<72x512xf32>
    tpu.vector_store %arg13[%c0_5, %c0_6], %5 {strides = array<i32>} : memref<72x512xf32, #tpu.memory_space<vmem>>, vector<72x512xf32>,
    %cst_7 = arith.constant 0.000000e+00 : f32
    %7 = vector.broadcast %cst_7 : f32 to vector<8x128xf32>
    %cst_8 = arith.constant 0.000000e+00 : f32
    %8 = vector.broadcast %cst_8 : f32 to vector<8x128xf32>
    %c0_9 = arith.constant 0 : index
    %c0_10 = arith.constant 0 : index
    %9 = vector.load %arg13[%c0_9, %c0_10] : memref<72x512xf32, #tpu.memory_space<vmem>>, vector<8x512xf32>
    %c0_11 = arith.constant 0 : index
    %c0_12 = arith.constant 0 : index
    %10 = vector.load %arg2[%c0_11, %c0_12] : memref<128x512xf32, #tpu.memory_space<vmem>>, vector<128x512xf32>
    %cst_13 = arith.constant dense<0.000000e+00> : vector<8x512xf32>
    %11 = tpu.matmul %7, %10, %cst_13 {dimension_numbers = #tpu.dot_dimension_numbers<[1], [0], [0], [1], [0, 0, 1, 1], [], []>} : vector<8x128xf32>, vector<128x512xf32>, vector<8x512xf32> -> vector<8x512xf32>
    %12 = arith.addf %9, %11 : vector<8x512xf32>
    %13 = vector.extract_strided_slice %12 {offsets = [0, 0], sizes = [8, 128], strides = [1, 1]} : vector<8x512xf32> to vector<8x128xf32>
    %14 = arith.negf %13 : vector<8x128xf32>
    %15 = math.exp %14 : vector<8x128xf32>
    %cst_14 = arith.constant 1.000000e+00 : f32
    %16 = vector.broadcast %cst_14 : f32 to vector<8x128xf32>
    %17 = arith.addf %16, %15 : vector<8x128xf32>
    %18 = arith.divf %16, %17 : vector<8x128xf32>
    %19 = vector.extract_strided_slice %12 {offsets = [0, 128], sizes = [8, 128], strides = [1, 1]} : vector<8x512xf32> to vector<8x128xf32>
    %20 = arith.negf %19 : vector<8x128xf32>
    %21 = math.exp %20 : vector<8x128xf32>
    %cst_15 = arith.constant 1.000000e+00 : f32
    %22 = vector.broadcast %cst_15 : f32 to vector<8x128xf32>
    %23 = arith.addf %22, %21 : vector<8x128xf32>
    %24 = arith.divf %22, %23 : vector<8x128xf32>
    %25 = vector.extract_strided_slice %12 {offsets = [0, 256], sizes = [8, 128], strides = [1, 1]} : vector<8x512xf32> to vector<8x128xf32>
    %26 = math.tanh %25 : vector<8x128xf32>
    %27 = vector.extract_strided_slice %12 {offsets = [0, 384], sizes = [8, 128], strides = [1, 1]} : vector<8x512xf32> to vector<8x128xf32>
    %28 = arith.negf %27 : vector<8x128xf32>
    %29 = math.exp %28 : vector<8x128xf32>
    %cst_16 = arith.constant 1.000000e+00 : f32
    %30 = vector.broadcast %cst_16 : f32 to vector<8x128xf32>
    %31 = arith.addf %30, %29 : vector<8x128xf32>
    %32 = arith.divf %30, %31 : vector<8x128xf32>
    %33 = arith.mulf %24, %8 : vector<8x128xf32>
    %34 = arith.mulf %18, %26 : vector<8x128xf32>
    %35 = arith.addf %33, %34 : vector<8x128xf32>
    %36 = math.tanh %35 : vector<8x128xf32>
    %37 = arith.mulf %32, %36 : vector<8x128xf32>
    %c0_17 = arith.constant 0 : index
    %c0_18 = arith.constant 0 : index
    %38 = vector.load %arg14[%c0_17, %c0_18] : memref<72x128xf32, #tpu.memory_space<vmem>>, vector<8x128xf32>
    tpu.vector_store %arg14[%c0_17, %c0_18], %37 {strides = array<i32>} : memref<72x128xf32, #tpu.memory_space<vmem>>, vector<8x128xf32>,
    %c8 = arith.constant 8 : index
    %c0_19 = arith.constant 0 : index
    %39 = vector.load %arg13[%c8, %c0_19] : memref<72x512xf32, #tpu.memory_space<vmem>>, vector<8x512xf32>
    %c0_20 = arith.constant 0 : index
    %c0_21 = arith.constant 0 : index
    %40 = vector.load %arg2[%c0_20, %c0_21] : memref<128x512xf32, #tpu.memory_space<vmem>>, vector<128x512xf32>
    %cst_22 = arith.constant dense<0.000000e+00> : vector<8x512xf32>
    %41 = tpu.matmul %37, %40, %cst_22 {dimension_numbers = #tpu.dot_dimension_numbers<[1], [0], [0], [1], [0, 0, 1, 1], [], []>} : vector<8x128xf32>, vector<128x512xf32>, vector<8x512xf32> -> vector<8x512xf32>
    %42 = arith.addf %39, %41 : vector<8x512xf32>
    %43 = vector.extract_strided_slice %42 {offsets = [0, 0], sizes = [8, 128], strides = [1, 1]} : vector<8x512xf32> to vector<8x128xf32>
    %44 = arith.negf %43 : vector<8x128xf32>
    %45 = math.exp %44 : vector<8x128xf32>
    %cst_23 = arith.constant 1.000000e+00 : f32
    %46 = vector.broadcast %cst_23 : f32 to vector<8x128xf32>
    %47 = arith.addf %46, %45 : vector<8x128xf32>
    %48 = arith.divf %46, %47 : vector<8x128xf32>
    %49 = vector.extract_strided_slice %42 {offsets = [0, 128], sizes = [8, 128], strides = [1, 1]} : vector<8x512xf32> to vector<8x128xf32>
    %50 = arith.negf %49 : vector<8x128xf32>
    %51 = math.exp %50 : vector<8x128xf32>
    %cst_24 = arith.constant 1.000000e+00 : f32
    %52 = vector.broadcast %cst_24 : f32 to vector<8x128xf32>
    %53 = arith.addf %52, %51 : vector<8x128xf32>
    %54 = arith.divf %52, %53 : vector<8x128xf32>
    %55 = vector.extract_strided_slice %42 {offsets = [0, 256], sizes = [8, 128], strides = [1, 1]} : vector<8x512xf32> to vector<8x128xf32>
    %56 = math.tanh %55 : vector<8x128xf32>
    %57 = vector.extract_strided_slice %42 {offsets = [0, 384], sizes = [8, 128], strides = [1, 1]} : vector<8x512xf32> to vector<8x128xf32>
    %58 = arith.negf %57 : vector<8x128xf32>
    %59 = math.exp %58 : vector<8x128xf32>
    %cst_25 = arith.constant 1.000000e+00 : f32
    %60 = vector.broadcast %cst_25 : f32 to vector<8x128xf32>
    %61 = arith.addf %60, %59 : vector<8x128xf32>
    %62 = arith.divf %60, %61 : vector<8x128xf32>
    %63 = arith.mulf %54, %35 : vector<8x128xf32>
    %64 = arith.mulf %48, %56 : vector<8x128xf32>
    %65 = arith.addf %63, %64 : vector<8x128xf32>
    %66 = math.tanh %65 : vector<8x128xf32>
    %67 = arith.mulf %62, %66 : vector<8x128xf32>
    %c8_26 = arith.constant 8 : index
    %c0_27 = arith.constant 0 : index
    %68 = vector.load %arg14[%c8_26, %c0_27] : memref<72x128xf32, #tpu.memory_space<vmem>>, vector<8x128xf32>
    tpu.vector_store %arg14[%c8_26, %c0_27], %67 {strides = array<i32>} : memref<72x128xf32, #tpu.memory_space<vmem>>, vector<8x128xf32>,
    %c16 = arith.constant 16 : index
    %c0_28 = arith.constant 0 : index
    %69 = vector.load %arg13[%c16, %c0_28] : memref<72x512xf32, #tpu.memory_space<vmem>>, vector<8x512xf32>
    %c0_29 = arith.constant 0 : index
    %c0_30 = arith.constant 0 : index
    %70 = vector.load %arg2[%c0_29, %c0_30] : memref<128x512xf32, #tpu.memory_space<vmem>>, vector<128x512xf32>
    %cst_31 = arith.constant dense<0.000000e+00> : vector<8x512xf32>
    %71 = tpu.matmul %67, %70, %cst_31 {dimension_numbers = #tpu.dot_dimension_numbers<[1], [0], [0], [1], [0, 0, 1, 1], [], []>} : vector<8x128xf32>, vector<128x512xf32>, vector<8x512xf32> -> vector<8x512xf32>
    %72 = arith.addf %69, %71 : vector<8x512xf32>
    %73 = vector.extract_strided_slice %72 {offsets = [0, 0], sizes = [8, 128], strides = [1, 1]} : vector<8x512xf32> to vector<8x128xf32>
    %74 = arith.negf %73 : vector<8x128xf32>
    %75 = math.exp %74 : vector<8x128xf32>
    %cst_32 = arith.constant 1.000000e+00 : f32
    %76 = vector.broadcast %cst_32 : f32 to vector<8x128xf32>
    %77 = arith.addf %76, %75 : vector<8x128xf32>
    %78 = arith.divf %76, %77 : vector<8x128xf32>
    %79 = vector.extract_strided_slice %72 {offsets = [0, 128], sizes = [8, 128], strides = [1, 1]} : vector<8x512xf32> to vector<8x128xf32>
    %80 = arith.negf %79 : vector<8x128xf32>
    %81 = math.exp %80 : vector<8x128xf32>
    %cst_33 = arith.constant 1.000000e+00 : f32
    %82 = vector.broadcast %cst_33 : f32 to vector<8x128xf32>
    %83 = arith.addf %82, %81 : vector<8x128xf32>
    %84 = arith.divf %82, %83 : vector<8x128xf32>
    %85 = vector.extract_strided_slice %72 {offsets = [0, 256], sizes = [8, 128], strides = [1, 1]} : vector<8x512xf32> to vector<8x128xf32>
    %86 = math.tanh %85 : vector<8x128xf32>
    %87 = vector.extract_strided_slice %72 {offsets = [0, 384], sizes = [8, 128], strides = [1, 1]} : vector<8x512xf32> to vector<8x128xf32>
    %88 = arith.negf %87 : vector<8x128xf32>
    %89 = math.exp %88 : vector<8x128xf32>
    %cst_34 = arith.constant 1.000000e+00 : f32
    %90 = vector.broadcast %cst_34 : f32 to vector<8x128xf32>
    %91 = arith.addf %90, %89 : vector<8x128xf32>
    %92 = arith.divf %90, %91 : vector<8x128xf32>
    %93 = arith.mulf %84, %65 : vector<8x128xf32>
    %94 = arith.mulf %78, %86 : vector<8x128xf32>
    %95 = arith.addf %93, %94 : vector<8x128xf32>
    %96 = math.tanh %95 : vector<8x128xf32>
    %97 = arith.mulf %92, %96 : vector<8x128xf32>
    %c16_35 = arith.constant 16 : index
    %c0_36 = arith.constant 0 : index
    %98 = vector.load %arg14[%c16_35, %c0_36] : memref<72x128xf32, #tpu.memory_space<vmem>>, vector<8x128xf32>
    tpu.vector_store %arg14[%c16_35, %c0_36], %97 {strides = array<i32>} : memref<72x128xf32, #tpu.memory_space<vmem>>, vector<8x128xf32>,
    %c24 = arith.constant 24 : index
    %c0_37 = arith.constant 0 : index
    %99 = vector.load %arg13[%c24, %c0_37] : memref<72x512xf32, #tpu.memory_space<vmem>>, vector<8x512xf32>
    %c0_38 = arith.constant 0 : index
    %c0_39 = arith.constant 0 : index
    %100 = vector.load %arg2[%c0_38, %c0_39] : memref<128x512xf32, #tpu.memory_space<vmem>>, vector<128x512xf32>
    %cst_40 = arith.constant dense<0.000000e+00> : vector<8x512xf32>
    %101 = tpu.matmul %97, %100, %cst_40 {dimension_numbers = #tpu.dot_dimension_numbers<[1], [0], [0], [1], [0, 0, 1, 1], [], []>} : vector<8x128xf32>, vector<128x512xf32>, vector<8x512xf32> -> vector<8x512xf32>
    %102 = arith.addf %99, %101 : vector<8x512xf32>
    %103 = vector.extract_strided_slice %102 {offsets = [0, 0], sizes = [8, 128], strides = [1, 1]} : vector<8x512xf32> to vector<8x128xf32>
    %104 = arith.negf %103 : vector<8x128xf32>
    %105 = math.exp %104 : vector<8x128xf32>
    %cst_41 = arith.constant 1.000000e+00 : f32
    %106 = vector.broadcast %cst_41 : f32 to vector<8x128xf32>
    %107 = arith.addf %106, %105 : vector<8x128xf32>
    %108 = arith.divf %106, %107 : vector<8x128xf32>
    %109 = vector.extract_strided_slice %102 {offsets = [0, 128], sizes = [8, 128], strides = [1, 1]} : vector<8x512xf32> to vector<8x128xf32>
    %110 = arith.negf %109 : vector<8x128xf32>
    %111 = math.exp %110 : vector<8x128xf32>
    %cst_42 = arith.constant 1.000000e+00 : f32
    %112 = vector.broadcast %cst_42 : f32 to vector<8x128xf32>
    %113 = arith.addf %112, %111 : vector<8x128xf32>
    %114 = arith.divf %112, %113 : vector<8x128xf32>
    %115 = vector.extract_strided_slice %102 {offsets = [0, 256], sizes = [8, 128], strides = [1, 1]} : vector<8x512xf32> to vector<8x128xf32>
    %116 = math.tanh %115 : vector<8x128xf32>
    %117 = vector.extract_strided_slice %102 {offsets = [0, 384], sizes = [8, 128], strides = [1, 1]} : vector<8x512xf32> to vector<8x128xf32>
    %118 = arith.negf %117 : vector<8x128xf32>
    %119 = math.exp %118 : vector<8x128xf32>
    %cst_43 = arith.constant 1.000000e+00 : f32
    %120 = vector.broadcast %cst_43 : f32 to vector<8x128xf32>
    %121 = arith.addf %120, %119 : vector<8x128xf32>
    %122 = arith.divf %120, %121 : vector<8x128xf32>
    %123 = arith.mulf %114, %95 : vector<8x128xf32>
    %124 = arith.mulf %108, %116 : vector<8x128xf32>
    %125 = arith.addf %123, %124 : vector<8x128xf32>
    %126 = math.tanh %125 : vector<8x128xf32>
    %127 = arith.mulf %122, %126 : vector<8x128xf32>
    %c24_44 = arith.constant 24 : index
    %c0_45 = arith.constant 0 : index
    %128 = vector.load %arg14[%c24_44, %c0_45] : memref<72x128xf32, #tpu.memory_space<vmem>>, vector<8x128xf32>
    tpu.vector_store %arg14[%c24_44, %c0_45], %127 {strides = array<i32>} : memref<72x128xf32, #tpu.memory_space<vmem>>, vector<8x128xf32>,
    %c32 = arith.constant 32 : index
    %c0_46 = arith.constant 0 : index
    %129 = vector.load %arg13[%c32, %c0_46] : memref<72x512xf32, #tpu.memory_space<vmem>>, vector<8x512xf32>
    %c0_47 = arith.constant 0 : index
    %c0_48 = arith.constant 0 : index
    %130 = vector.load %arg2[%c0_47, %c0_48] : memref<128x512xf32, #tpu.memory_space<vmem>>, vector<128x512xf32>
    %cst_49 = arith.constant dense<0.000000e+00> : vector<8x512xf32>
    %131 = tpu.matmul %127, %130, %cst_49 {dimension_numbers = #tpu.dot_dimension_numbers<[1], [0], [0], [1], [0, 0, 1, 1], [], []>} : vector<8x128xf32>, vector<128x512xf32>, vector<8x512xf32> -> vector<8x512xf32>
    %132 = arith.addf %129, %131 : vector<8x512xf32>
    %133 = vector.extract_strided_slice %132 {offsets = [0, 0], sizes = [8, 128], strides = [1, 1]} : vector<8x512xf32> to vector<8x128xf32>
    %134 = arith.negf %133 : vector<8x128xf32>
    %135 = math.exp %134 : vector<8x128xf32>
    %cst_50 = arith.constant 1.000000e+00 : f32
    %136 = vector.broadcast %cst_50 : f32 to vector<8x128xf32>
    %137 = arith.addf %136, %135 : vector<8x128xf32>
    %138 = arith.divf %136, %137 : vector<8x128xf32>
    %139 = vector.extract_strided_slice %132 {offsets = [0, 128], sizes = [8, 128], strides = [1, 1]} : vector<8x512xf32> to vector<8x128xf32>
    %140 = arith.negf %139 : vector<8x128xf32>
    %141 = math.exp %140 : vector<8x128xf32>
    %cst_51 = arith.constant 1.000000e+00 : f32
    %142 = vector.broadcast %cst_51 : f32 to vector<8x128xf32>
    %143 = arith.addf %142, %141 : vector<8x128xf32>
    %144 = arith.divf %142, %143 : vector<8x128xf32>
    %145 = vector.extract_strided_slice %132 {offsets = [0, 256], sizes = [8, 128], strides = [1, 1]} : vector<8x512xf32> to vector<8x128xf32>
    %146 = math.tanh %145 : vector<8x128xf32>
    %147 = vector.extract_strided_slice %132 {offsets = [0, 384], sizes = [8, 128], strides = [1, 1]} : vector<8x512xf32> to vector<8x128xf32>
    %148 = arith.negf %147 : vector<8x128xf32>
    %149 = math.exp %148 : vector<8x128xf32>
    %cst_52 = arith.constant 1.000000e+00 : f32
    %150 = vector.broadcast %cst_52 : f32 to vector<8x128xf32>
    %151 = arith.addf %150, %149 : vector<8x128xf32>
    %152 = arith.divf %150, %151 : vector<8x128xf32>
    %153 = arith.mulf %144, %125 : vector<8x128xf32>
    %154 = arith.mulf %138, %146 : vector<8x128xf32>
    %155 = arith.addf %153, %154 : vector<8x128xf32>
    %156 = math.tanh %155 : vector<8x128xf32>
    %157 = arith.mulf %152, %156 : vector<8x128xf32>
    %c32_53 = arith.constant 32 : index
    %c0_54 = arith.constant 0 : index
    %158 = vector.load %arg14[%c32_53, %c0_54] : memref<72x128xf32, #tpu.memory_space<vmem>>, vector<8x128xf32>
    tpu.vector_store %arg14[%c32_53, %c0_54], %157 {strides = array<i32>} : memref<72x128xf32, #tpu.memory_space<vmem>>, vector<8x128xf32>,
    %c40 = arith.constant 40 : index
    %c0_55 = arith.constant 0 : index
    %159 = vector.load %arg13[%c40, %c0_55] : memref<72x512xf32, #tpu.memory_space<vmem>>, vector<8x512xf32>
    %c0_56 = arith.constant 0 : index
    %c0_57 = arith.constant 0 : index
    %160 = vector.load %arg2[%c0_56, %c0_57] : memref<128x512xf32, #tpu.memory_space<vmem>>, vector<128x512xf32>
    %cst_58 = arith.constant dense<0.000000e+00> : vector<8x512xf32>
    %161 = tpu.matmul %157, %160, %cst_58 {dimension_numbers = #tpu.dot_dimension_numbers<[1], [0], [0], [1], [0, 0, 1, 1], [], []>} : vector<8x128xf32>, vector<128x512xf32>, vector<8x512xf32> -> vector<8x512xf32>
    %162 = arith.addf %159, %161 : vector<8x512xf32>
    %163 = vector.extract_strided_slice %162 {offsets = [0, 0], sizes = [8, 128], strides = [1, 1]} : vector<8x512xf32> to vector<8x128xf32>
    %164 = arith.negf %163 : vector<8x128xf32>
    %165 = math.exp %164 : vector<8x128xf32>
    %cst_59 = arith.constant 1.000000e+00 : f32
    %166 = vector.broadcast %cst_59 : f32 to vector<8x128xf32>
    %167 = arith.addf %166, %165 : vector<8x128xf32>
    %168 = arith.divf %166, %167 : vector<8x128xf32>
    %169 = vector.extract_strided_slice %162 {offsets = [0, 128], sizes = [8, 128], strides = [1, 1]} : vector<8x512xf32> to vector<8x128xf32>
    %170 = arith.negf %169 : vector<8x128xf32>
    %171 = math.exp %170 : vector<8x128xf32>
    %cst_60 = arith.constant 1.000000e+00 : f32
    %172 = vector.broadcast %cst_60 : f32 to vector<8x128xf32>
    %173 = arith.addf %172, %171 : vector<8x128xf32>
    %174 = arith.divf %172, %173 : vector<8x128xf32>
    %175 = vector.extract_strided_slice %162 {offsets = [0, 256], sizes = [8, 128], strides = [1, 1]} : vector<8x512xf32> to vector<8x128xf32>
    %176 = math.tanh %175 : vector<8x128xf32>
    %177 = vector.extract_strided_slice %162 {offsets = [0, 384], sizes = [8, 128], strides = [1, 1]} : vector<8x512xf32> to vector<8x128xf32>
    %178 = arith.negf %177 : vector<8x128xf32>
    %179 = math.exp %178 : vector<8x128xf32>
    %cst_61 = arith.constant 1.000000e+00 : f32
    %180 = vector.broadcast %cst_61 : f32 to vector<8x128xf32>
    %181 = arith.addf %180, %179 : vector<8x128xf32>
    %182 = arith.divf %180, %181 : vector<8x128xf32>
    %183 = arith.mulf %174, %155 : vector<8x128xf32>
    %184 = arith.mulf %168, %176 : vector<8x128xf32>
    %185 = arith.addf %183, %184 : vector<8x128xf32>
    %186 = math.tanh %185 : vector<8x128xf32>
    %187 = arith.mulf %182, %186 : vector<8x128xf32>
    %c40_62 = arith.constant 40 : index
    %c0_63 = arith.constant 0 : index
    %188 = vector.load %arg14[%c40_62, %c0_63] : memref<72x128xf32, #tpu.memory_space<vmem>>, vector<8x128xf32>
    tpu.vector_store %arg14[%c40_62, %c0_63], %187 {strides = array<i32>} : memref<72x128xf32, #tpu.memory_space<vmem>>, vector<8x128xf32>,
    %c48 = arith.constant 48 : index
    %c0_64 = arith.constant 0 : index
    %189 = vector.load %arg13[%c48, %c0_64] : memref<72x512xf32, #tpu.memory_space<vmem>>, vector<8x512xf32>
    %c0_65 = arith.constant 0 : index
    %c0_66 = arith.constant 0 : index
    %190 = vector.load %arg2[%c0_65, %c0_66] : memref<128x512xf32, #tpu.memory_space<vmem>>, vector<128x512xf32>
    %cst_67 = arith.constant dense<0.000000e+00> : vector<8x512xf32>
    %191 = tpu.matmul %187, %190, %cst_67 {dimension_numbers = #tpu.dot_dimension_numbers<[1], [0], [0], [1], [0, 0, 1, 1], [], []>} : vector<8x128xf32>, vector<128x512xf32>, vector<8x512xf32> -> vector<8x512xf32>
    %192 = arith.addf %189, %191 : vector<8x512xf32>
    %193 = vector.extract_strided_slice %192 {offsets = [0, 0], sizes = [8, 128], strides = [1, 1]} : vector<8x512xf32> to vector<8x128xf32>
    %194 = arith.negf %193 : vector<8x128xf32>
    %195 = math.exp %194 : vector<8x128xf32>
    %cst_68 = arith.constant 1.000000e+00 : f32
    %196 = vector.broadcast %cst_68 : f32 to vector<8x128xf32>
    %197 = arith.addf %196, %195 : vector<8x128xf32>
    %198 = arith.divf %196, %197 : vector<8x128xf32>
    %199 = vector.extract_strided_slice %192 {offsets = [0, 128], sizes = [8, 128], strides = [1, 1]} : vector<8x512xf32> to vector<8x128xf32>
    %200 = arith.negf %199 : vector<8x128xf32>
    %201 = math.exp %200 : vector<8x128xf32>
    %cst_69 = arith.constant 1.000000e+00 : f32
    %202 = vector.broadcast %cst_69 : f32 to vector<8x128xf32>
    %203 = arith.addf %202, %201 : vector<8x128xf32>
    %204 = arith.divf %202, %203 : vector<8x128xf32>
    %205 = vector.extract_strided_slice %192 {offsets = [0, 256], sizes = [8, 128], strides = [1, 1]} : vector<8x512xf32> to vector<8x128xf32>
    %206 = math.tanh %205 : vector<8x128xf32>
    %207 = vector.extract_strided_slice %192 {offsets = [0, 384], sizes = [8, 128], strides = [1, 1]} : vector<8x512xf32> to vector<8x128xf32>
    %208 = arith.negf %207 : vector<8x128xf32>
    %209 = math.exp %208 : vector<8x128xf32>
    %cst_70 = arith.constant 1.000000e+00 : f32
    %210 = vector.broadcast %cst_70 : f32 to vector<8x128xf32>
    %211 = arith.addf %210, %209 : vector<8x128xf32>
    %212 = arith.divf %210, %211 : vector<8x128xf32>
    %213 = arith.mulf %204, %185 : vector<8x128xf32>
    %214 = arith.mulf %198, %206 : vector<8x128xf32>
    %215 = arith.addf %213, %214 : vector<8x128xf32>
    %216 = math.tanh %215 : vector<8x128xf32>
    %217 = arith.mulf %212, %216 : vector<8x128xf32>
    %c48_71 = arith.constant 48 : index
    %c0_72 = arith.constant 0 : index
    %218 = vector.load %arg14[%c48_71, %c0_72] : memref<72x128xf32, #tpu.memory_space<vmem>>, vector<8x128xf32>
    tpu.vector_store %arg14[%c48_71, %c0_72], %217 {strides = array<i32>} : memref<72x128xf32, #tpu.memory_space<vmem>>, vector<8x128xf32>,
    %c56 = arith.constant 56 : index
    %c0_73 = arith.constant 0 : index
    %219 = vector.load %arg13[%c56, %c0_73] : memref<72x512xf32, #tpu.memory_space<vmem>>, vector<8x512xf32>
    %c0_74 = arith.constant 0 : index
    %c0_75 = arith.constant 0 : index
    %220 = vector.load %arg2[%c0_74, %c0_75] : memref<128x512xf32, #tpu.memory_space<vmem>>, vector<128x512xf32>
    %cst_76 = arith.constant dense<0.000000e+00> : vector<8x512xf32>
    %221 = tpu.matmul %217, %220, %cst_76 {dimension_numbers = #tpu.dot_dimension_numbers<[1], [0], [0], [1], [0, 0, 1, 1], [], []>} : vector<8x128xf32>, vector<128x512xf32>, vector<8x512xf32> -> vector<8x512xf32>
    %222 = arith.addf %219, %221 : vector<8x512xf32>
    %223 = vector.extract_strided_slice %222 {offsets = [0, 0], sizes = [8, 128], strides = [1, 1]} : vector<8x512xf32> to vector<8x128xf32>
    %224 = arith.negf %223 : vector<8x128xf32>
    %225 = math.exp %224 : vector<8x128xf32>
    %cst_77 = arith.constant 1.000000e+00 : f32
    %226 = vector.broadcast %cst_77 : f32 to vector<8x128xf32>
    %227 = arith.addf %226, %225 : vector<8x128xf32>
    %228 = arith.divf %226, %227 : vector<8x128xf32>
    %229 = vector.extract_strided_slice %222 {offsets = [0, 128], sizes = [8, 128], strides = [1, 1]} : vector<8x512xf32> to vector<8x128xf32>
    %230 = arith.negf %229 : vector<8x128xf32>
    %231 = math.exp %230 : vector<8x128xf32>
    %cst_78 = arith.constant 1.000000e+00 : f32
    %232 = vector.broadcast %cst_78 : f32 to vector<8x128xf32>
    %233 = arith.addf %232, %231 : vector<8x128xf32>
    %234 = arith.divf %232, %233 : vector<8x128xf32>
    %235 = vector.extract_strided_slice %222 {offsets = [0, 256], sizes = [8, 128], strides = [1, 1]} : vector<8x512xf32> to vector<8x128xf32>
    %236 = math.tanh %235 : vector<8x128xf32>
    %237 = vector.extract_strided_slice %222 {offsets = [0, 384], sizes = [8, 128], strides = [1, 1]} : vector<8x512xf32> to vector<8x128xf32>
    %238 = arith.negf %237 : vector<8x128xf32>
    %239 = math.exp %238 : vector<8x128xf32>
    %cst_79 = arith.constant 1.000000e+00 : f32
    %240 = vector.broadcast %cst_79 : f32 to vector<8x128xf32>
    %241 = arith.addf %240, %239 : vector<8x128xf32>
    %242 = arith.divf %240, %241 : vector<8x128xf32>
    %243 = arith.mulf %234, %215 : vector<8x128xf32>
    %244 = arith.mulf %228, %236 : vector<8x128xf32>
    %245 = arith.addf %243, %244 : vector<8x128xf32>
    %246 = math.tanh %245 : vector<8x128xf32>
    %247 = arith.mulf %242, %246 : vector<8x128xf32>
    %c56_80 = arith.constant 56 : index
    %c0_81 = arith.constant 0 : index
    %248 = vector.load %arg14[%c56_80, %c0_81] : memref<72x128xf32, #tpu.memory_space<vmem>>, vector<8x128xf32>
    tpu.vector_store %arg14[%c56_80, %c0_81], %247 {strides = array<i32>} : memref<72x128xf32, #tpu.memory_space<vmem>>, vector<8x128xf32>,
    %c64 = arith.constant 64 : index
    %c0_82 = arith.constant 0 : index
    %249 = vector.load %arg13[%c64, %c0_82] : memref<72x512xf32, #tpu.memory_space<vmem>>, vector<8x512xf32>
    %c0_83 = arith.constant 0 : index
    %c0_84 = arith.constant 0 : index
    %250 = vector.load %arg2[%c0_83, %c0_84] : memref<128x512xf32, #tpu.memory_space<vmem>>, vector<128x512xf32>
    %cst_85 = arith.constant dense<0.000000e+00> : vector<8x512xf32>
    %251 = tpu.matmul %247, %250, %cst_85 {dimension_numbers = #tpu.dot_dimension_numbers<[1], [0], [0], [1], [0, 0, 1, 1], [], []>} : vector<8x128xf32>, vector<128x512xf32>, vector<8x512xf32> -> vector<8x512xf32>
    %252 = arith.addf %249, %251 : vector<8x512xf32>
    %253 = vector.extract_strided_slice %252 {offsets = [0, 0], sizes = [8, 128], strides = [1, 1]} : vector<8x512xf32> to vector<8x128xf32>
    %254 = arith.negf %253 : vector<8x128xf32>
    %255 = math.exp %254 : vector<8x128xf32>
    %cst_86 = arith.constant 1.000000e+00 : f32
    %256 = vector.broadcast %cst_86 : f32 to vector<8x128xf32>
    %257 = arith.addf %256, %255 : vector<8x128xf32>
    %258 = arith.divf %256, %257 : vector<8x128xf32>
    %259 = vector.extract_strided_slice %252 {offsets = [0, 128], sizes = [8, 128], strides = [1, 1]} : vector<8x512xf32> to vector<8x128xf32>
    %260 = arith.negf %259 : vector<8x128xf32>
    %261 = math.exp %260 : vector<8x128xf32>
    %cst_87 = arith.constant 1.000000e+00 : f32
    %262 = vector.broadcast %cst_87 : f32 to vector<8x128xf32>
    %263 = arith.addf %262, %261 : vector<8x128xf32>
    %264 = arith.divf %262, %263 : vector<8x128xf32>
    %265 = vector.extract_strided_slice %252 {offsets = [0, 256], sizes = [8, 128], strides = [1, 1]} : vector<8x512xf32> to vector<8x128xf32>
    %266 = math.tanh %265 : vector<8x128xf32>
    %267 = vector.extract_strided_slice %252 {offsets = [0, 384], sizes = [8, 128], strides = [1, 1]} : vector<8x512xf32> to vector<8x128xf32>
    %268 = arith.negf %267 : vector<8x128xf32>
    %269 = math.exp %268 : vector<8x128xf32>
    %cst_88 = arith.constant 1.000000e+00 : f32
    %270 = vector.broadcast %cst_88 : f32 to vector<8x128xf32>
    %271 = arith.addf %270, %269 : vector<8x128xf32>
    %272 = arith.divf %270, %271 : vector<8x128xf32>
    %273 = arith.mulf %264, %245 : vector<8x128xf32>
    %274 = arith.mulf %258, %266 : vector<8x128xf32>
    %275 = arith.addf %273, %274 : vector<8x128xf32>
    %276 = math.tanh %275 : vector<8x128xf32>
    %277 = arith.mulf %272, %276 : vector<8x128xf32>
    %c64_89 = arith.constant 64 : index
    %c0_90 = arith.constant 0 : index
    %278 = vector.load %arg14[%c64_89, %c0_90] : memref<72x128xf32, #tpu.memory_space<vmem>>, vector<8x128xf32>
    tpu.vector_store %arg14[%c64_89, %c0_90], %277 {strides = array<i32>} : memref<72x128xf32, #tpu.memory_space<vmem>>, vector<8x128xf32>,
    %c0_91 = arith.constant 0 : index
    %c0_92 = arith.constant 0 : index
    %279 = vector.load %arg14[%c0_91, %c0_92] : memref<72x128xf32, #tpu.memory_space<vmem>>, vector<72x128xf32>
    %c0_93 = arith.constant 0 : index
    %c0_94 = arith.constant 0 : index
    %280 = vector.load %arg4[%c0_93, %c0_94] : memref<128x512xf32, #tpu.memory_space<vmem>>, vector<128x512xf32>
    %cst_95 = arith.constant dense<0.000000e+00> : vector<72x512xf32>
    %281 = tpu.matmul %279, %280, %cst_95 {dimension_numbers = #tpu.dot_dimension_numbers<[1], [0], [0], [1], [0, 0, 1, 1], [], []>} : vector<72x128xf32>, vector<128x512xf32>, vector<72x512xf32> -> vector<72x512xf32>
    %c0_96 = arith.constant 0 : index
    %c0_97 = arith.constant 0 : index
    %282 = vector.load %arg6[%c0_96, %c0_97] : memref<1x512xf32, #tpu.memory_space<vmem>>, vector<1x512xf32>
    %283 = vector.broadcast %282 : vector<1x512xf32> to vector<72x512xf32>
    %284 = arith.addf %281, %283 : vector<72x512xf32>
    %c0_98 = arith.constant 0 : index
    %c0_99 = arith.constant 0 : index
    %285 = vector.load %arg13[%c0_98, %c0_99] : memref<72x512xf32, #tpu.memory_space<vmem>>, vector<72x512xf32>
    tpu.vector_store %arg13[%c0_98, %c0_99], %284 {strides = array<i32>} : memref<72x512xf32, #tpu.memory_space<vmem>>, vector<72x512xf32>,
    %cst_100 = arith.constant 0.000000e+00 : f32
    %286 = vector.broadcast %cst_100 : f32 to vector<8x128xf32>
    %cst_101 = arith.constant 0.000000e+00 : f32
    %287 = vector.broadcast %cst_101 : f32 to vector<8x128xf32>
    %c0_102 = arith.constant 0 : index
    %c0_103 = arith.constant 0 : index
    %288 = vector.load %arg13[%c0_102, %c0_103] : memref<72x512xf32, #tpu.memory_space<vmem>>, vector<8x512xf32>
    %c0_104 = arith.constant 0 : index
    %c0_105 = arith.constant 0 : index
    %289 = vector.load %arg5[%c0_104, %c0_105] : memref<128x512xf32, #tpu.memory_space<vmem>>, vector<128x512xf32>
    %cst_106 = arith.constant dense<0.000000e+00> : vector<8x512xf32>
    %290 = tpu.matmul %286, %289, %cst_106 {dimension_numbers = #tpu.dot_dimension_numbers<[1], [0], [0], [1], [0, 0, 1, 1], [], []>} : vector<8x128xf32>, vector<128x512xf32>, vector<8x512xf32> -> vector<8x512xf32>
    %291 = arith.addf %288, %290 : vector<8x512xf32>
    %292 = vector.extract_strided_slice %291 {offsets = [0, 0], sizes = [8, 128], strides = [1, 1]} : vector<8x512xf32> to vector<8x128xf32>
    %293 = arith.negf %292 : vector<8x128xf32>
    %294 = math.exp %293 : vector<8x128xf32>
    %cst_107 = arith.constant 1.000000e+00 : f32
    %295 = vector.broadcast %cst_107 : f32 to vector<8x128xf32>
    %296 = arith.addf %295, %294 : vector<8x128xf32>
    %297 = arith.divf %295, %296 : vector<8x128xf32>
    %298 = vector.extract_strided_slice %291 {offsets = [0, 128], sizes = [8, 128], strides = [1, 1]} : vector<8x512xf32> to vector<8x128xf32>
    %299 = arith.negf %298 : vector<8x128xf32>
    %300 = math.exp %299 : vector<8x128xf32>
    %cst_108 = arith.constant 1.000000e+00 : f32
    %301 = vector.broadcast %cst_108 : f32 to vector<8x128xf32>
    %302 = arith.addf %301, %300 : vector<8x128xf32>
    %303 = arith.divf %301, %302 : vector<8x128xf32>
    %304 = vector.extract_strided_slice %291 {offsets = [0, 256], sizes = [8, 128], strides = [1, 1]} : vector<8x512xf32> to vector<8x128xf32>
    %305 = math.tanh %304 : vector<8x128xf32>
    %306 = vector.extract_strided_slice %291 {offsets = [0, 384], sizes = [8, 128], strides = [1, 1]} : vector<8x512xf32> to vector<8x128xf32>
    %307 = arith.negf %306 : vector<8x128xf32>
    %308 = math.exp %307 : vector<8x128xf32>
    %cst_109 = arith.constant 1.000000e+00 : f32
    %309 = vector.broadcast %cst_109 : f32 to vector<8x128xf32>
    %310 = arith.addf %309, %308 : vector<8x128xf32>
    %311 = arith.divf %309, %310 : vector<8x128xf32>
    %312 = arith.mulf %303, %287 : vector<8x128xf32>
    %313 = arith.mulf %297, %305 : vector<8x128xf32>
    %314 = arith.addf %312, %313 : vector<8x128xf32>
    %315 = math.tanh %314 : vector<8x128xf32>
    %316 = arith.mulf %311, %315 : vector<8x128xf32>
    %c0_110 = arith.constant 0 : index
    %c0_111 = arith.constant 0 : index
    %317 = vector.load %arg14[%c0_110, %c0_111] : memref<72x128xf32, #tpu.memory_space<vmem>>, vector<8x128xf32>
    tpu.vector_store %arg14[%c0_110, %c0_111], %316 {strides = array<i32>} : memref<72x128xf32, #tpu.memory_space<vmem>>, vector<8x128xf32>,
    %c8_112 = arith.constant 8 : index
    %c0_113 = arith.constant 0 : index
    %318 = vector.load %arg13[%c8_112, %c0_113] : memref<72x512xf32, #tpu.memory_space<vmem>>, vector<8x512xf32>
    %c0_114 = arith.constant 0 : index
    %c0_115 = arith.constant 0 : index
    %319 = vector.load %arg5[%c0_114, %c0_115] : memref<128x512xf32, #tpu.memory_space<vmem>>, vector<128x512xf32>
    %cst_116 = arith.constant dense<0.000000e+00> : vector<8x512xf32>
    %320 = tpu.matmul %316, %319, %cst_116 {dimension_numbers = #tpu.dot_dimension_numbers<[1], [0], [0], [1], [0, 0, 1, 1], [], []>} : vector<8x128xf32>, vector<128x512xf32>, vector<8x512xf32> -> vector<8x512xf32>
    %321 = arith.addf %318, %320 : vector<8x512xf32>
    %322 = vector.extract_strided_slice %321 {offsets = [0, 0], sizes = [8, 128], strides = [1, 1]} : vector<8x512xf32> to vector<8x128xf32>
    %323 = arith.negf %322 : vector<8x128xf32>
    %324 = math.exp %323 : vector<8x128xf32>
    %cst_117 = arith.constant 1.000000e+00 : f32
    %325 = vector.broadcast %cst_117 : f32 to vector<8x128xf32>
    %326 = arith.addf %325, %324 : vector<8x128xf32>
    %327 = arith.divf %325, %326 : vector<8x128xf32>
    %328 = vector.extract_strided_slice %321 {offsets = [0, 128], sizes = [8, 128], strides = [1, 1]} : vector<8x512xf32> to vector<8x128xf32>
    %329 = arith.negf %328 : vector<8x128xf32>
    %330 = math.exp %329 : vector<8x128xf32>
    %cst_118 = arith.constant 1.000000e+00 : f32
    %331 = vector.broadcast %cst_118 : f32 to vector<8x128xf32>
    %332 = arith.addf %331, %330 : vector<8x128xf32>
    %333 = arith.divf %331, %332 : vector<8x128xf32>
    %334 = vector.extract_strided_slice %321 {offsets = [0, 256], sizes = [8, 128], strides = [1, 1]} : vector<8x512xf32> to vector<8x128xf32>
    %335 = math.tanh %334 : vector<8x128xf32>
    %336 = vector.extract_strided_slice %321 {offsets = [0, 384], sizes = [8, 128], strides = [1, 1]} : vector<8x512xf32> to vector<8x128xf32>
    %337 = arith.negf %336 : vector<8x128xf32>
    %338 = math.exp %337 : vector<8x128xf32>
    %cst_119 = arith.constant 1.000000e+00 : f32
    %339 = vector.broadcast %cst_119 : f32 to vector<8x128xf32>
    %340 = arith.addf %339, %338 : vector<8x128xf32>
    %341 = arith.divf %339, %340 : vector<8x128xf32>
    %342 = arith.mulf %333, %314 : vector<8x128xf32>
    %343 = arith.mulf %327, %335 : vector<8x128xf32>
    %344 = arith.addf %342, %343 : vector<8x128xf32>
    %345 = math.tanh %344 : vector<8x128xf32>
    %346 = arith.mulf %341, %345 : vector<8x128xf32>
    %c8_120 = arith.constant 8 : index
    %c0_121 = arith.constant 0 : index
    %347 = vector.load %arg14[%c8_120, %c0_121] : memref<72x128xf32, #tpu.memory_space<vmem>>, vector<8x128xf32>
    tpu.vector_store %arg14[%c8_120, %c0_121], %346 {strides = array<i32>} : memref<72x128xf32, #tpu.memory_space<vmem>>, vector<8x128xf32>,
    %c16_122 = arith.constant 16 : index
    %c0_123 = arith.constant 0 : index
    %348 = vector.load %arg13[%c16_122, %c0_123] : memref<72x512xf32, #tpu.memory_space<vmem>>, vector<8x512xf32>
    %c0_124 = arith.constant 0 : index
    %c0_125 = arith.constant 0 : index
    %349 = vector.load %arg5[%c0_124, %c0_125] : memref<128x512xf32, #tpu.memory_space<vmem>>, vector<128x512xf32>
    %cst_126 = arith.constant dense<0.000000e+00> : vector<8x512xf32>
    %350 = tpu.matmul %346, %349, %cst_126 {dimension_numbers = #tpu.dot_dimension_numbers<[1], [0], [0], [1], [0, 0, 1, 1], [], []>} : vector<8x128xf32>, vector<128x512xf32>, vector<8x512xf32> -> vector<8x512xf32>
    %351 = arith.addf %348, %350 : vector<8x512xf32>
    %352 = vector.extract_strided_slice %351 {offsets = [0, 0], sizes = [8, 128], strides = [1, 1]} : vector<8x512xf32> to vector<8x128xf32>
    %353 = arith.negf %352 : vector<8x128xf32>
    %354 = math.exp %353 : vector<8x128xf32>
    %cst_127 = arith.constant 1.000000e+00 : f32
    %355 = vector.broadcast %cst_127 : f32 to vector<8x128xf32>
    %356 = arith.addf %355, %354 : vector<8x128xf32>
    %357 = arith.divf %355, %356 : vector<8x128xf32>
    %358 = vector.extract_strided_slice %351 {offsets = [0, 128], sizes = [8, 128], strides = [1, 1]} : vector<8x512xf32> to vector<8x128xf32>
    %359 = arith.negf %358 : vector<8x128xf32>
    %360 = math.exp %359 : vector<8x128xf32>
    %cst_128 = arith.constant 1.000000e+00 : f32
    %361 = vector.broadcast %cst_128 : f32 to vector<8x128xf32>
    %362 = arith.addf %361, %360 : vector<8x128xf32>
    %363 = arith.divf %361, %362 : vector<8x128xf32>
    %364 = vector.extract_strided_slice %351 {offsets = [0, 256], sizes = [8, 128], strides = [1, 1]} : vector<8x512xf32> to vector<8x128xf32>
    %365 = math.tanh %364 : vector<8x128xf32>
    %366 = vector.extract_strided_slice %351 {offsets = [0, 384], sizes = [8, 128], strides = [1, 1]} : vector<8x512xf32> to vector<8x128xf32>
    %367 = arith.negf %366 : vector<8x128xf32>
    %368 = math.exp %367 : vector<8x128xf32>
    %cst_129 = arith.constant 1.000000e+00 : f32
    %369 = vector.broadcast %cst_129 : f32 to vector<8x128xf32>
    %370 = arith.addf %369, %368 : vector<8x128xf32>
    %371 = arith.divf %369, %370 : vector<8x128xf32>
    %372 = arith.mulf %363, %344 : vector<8x128xf32>
    %373 = arith.mulf %357, %365 : vector<8x128xf32>
    %374 = arith.addf %372, %373 : vector<8x128xf32>
    %375 = math.tanh %374 : vector<8x128xf32>
    %376 = arith.mulf %371, %375 : vector<8x128xf32>
    %c16_130 = arith.constant 16 : index
    %c0_131 = arith.constant 0 : index
    %377 = vector.load %arg14[%c16_130, %c0_131] : memref<72x128xf32, #tpu.memory_space<vmem>>, vector<8x128xf32>
    tpu.vector_store %arg14[%c16_130, %c0_131], %376 {strides = array<i32>} : memref<72x128xf32, #tpu.memory_space<vmem>>, vector<8x128xf32>,
    %c24_132 = arith.constant 24 : index
    %c0_133 = arith.constant 0 : index
    %378 = vector.load %arg13[%c24_132, %c0_133] : memref<72x512xf32, #tpu.memory_space<vmem>>, vector<8x512xf32>
    %c0_134 = arith.constant 0 : index
    %c0_135 = arith.constant 0 : index
    %379 = vector.load %arg5[%c0_134, %c0_135] : memref<128x512xf32, #tpu.memory_space<vmem>>, vector<128x512xf32>
    %cst_136 = arith.constant dense<0.000000e+00> : vector<8x512xf32>
    %380 = tpu.matmul %376, %379, %cst_136 {dimension_numbers = #tpu.dot_dimension_numbers<[1], [0], [0], [1], [0, 0, 1, 1], [], []>} : vector<8x128xf32>, vector<128x512xf32>, vector<8x512xf32> -> vector<8x512xf32>
    %381 = arith.addf %378, %380 : vector<8x512xf32>
    %382 = vector.extract_strided_slice %381 {offsets = [0, 0], sizes = [8, 128], strides = [1, 1]} : vector<8x512xf32> to vector<8x128xf32>
    %383 = arith.negf %382 : vector<8x128xf32>
    %384 = math.exp %383 : vector<8x128xf32>
    %cst_137 = arith.constant 1.000000e+00 : f32
    %385 = vector.broadcast %cst_137 : f32 to vector<8x128xf32>
    %386 = arith.addf %385, %384 : vector<8x128xf32>
    %387 = arith.divf %385, %386 : vector<8x128xf32>
    %388 = vector.extract_strided_slice %381 {offsets = [0, 128], sizes = [8, 128], strides = [1, 1]} : vector<8x512xf32> to vector<8x128xf32>
    %389 = arith.negf %388 : vector<8x128xf32>
    %390 = math.exp %389 : vector<8x128xf32>
    %cst_138 = arith.constant 1.000000e+00 : f32
    %391 = vector.broadcast %cst_138 : f32 to vector<8x128xf32>
    %392 = arith.addf %391, %390 : vector<8x128xf32>
    %393 = arith.divf %391, %392 : vector<8x128xf32>
    %394 = vector.extract_strided_slice %381 {offsets = [0, 256], sizes = [8, 128], strides = [1, 1]} : vector<8x512xf32> to vector<8x128xf32>
    %395 = math.tanh %394 : vector<8x128xf32>
    %396 = vector.extract_strided_slice %381 {offsets = [0, 384], sizes = [8, 128], strides = [1, 1]} : vector<8x512xf32> to vector<8x128xf32>
    %397 = arith.negf %396 : vector<8x128xf32>
    %398 = math.exp %397 : vector<8x128xf32>
    %cst_139 = arith.constant 1.000000e+00 : f32
    %399 = vector.broadcast %cst_139 : f32 to vector<8x128xf32>
    %400 = arith.addf %399, %398 : vector<8x128xf32>
    %401 = arith.divf %399, %400 : vector<8x128xf32>
    %402 = arith.mulf %393, %374 : vector<8x128xf32>
    %403 = arith.mulf %387, %395 : vector<8x128xf32>
    %404 = arith.addf %402, %403 : vector<8x128xf32>
    %405 = math.tanh %404 : vector<8x128xf32>
    %406 = arith.mulf %401, %405 : vector<8x128xf32>
    %c24_140 = arith.constant 24 : index
    %c0_141 = arith.constant 0 : index
    %407 = vector.load %arg14[%c24_140, %c0_141] : memref<72x128xf32, #tpu.memory_space<vmem>>, vector<8x128xf32>
    tpu.vector_store %arg14[%c24_140, %c0_141], %406 {strides = array<i32>} : memref<72x128xf32, #tpu.memory_space<vmem>>, vector<8x128xf32>,
    %c32_142 = arith.constant 32 : index
    %c0_143 = arith.constant 0 : index
    %408 = vector.load %arg13[%c32_142, %c0_143] : memref<72x512xf32, #tpu.memory_space<vmem>>, vector<8x512xf32>
    %c0_144 = arith.constant 0 : index
    %c0_145 = arith.constant 0 : index
    %409 = vector.load %arg5[%c0_144, %c0_145] : memref<128x512xf32, #tpu.memory_space<vmem>>, vector<128x512xf32>
    %cst_146 = arith.constant dense<0.000000e+00> : vector<8x512xf32>
    %410 = tpu.matmul %406, %409, %cst_146 {dimension_numbers = #tpu.dot_dimension_numbers<[1], [0], [0], [1], [0, 0, 1, 1], [], []>} : vector<8x128xf32>, vector<128x512xf32>, vector<8x512xf32> -> vector<8x512xf32>
    %411 = arith.addf %408, %410 : vector<8x512xf32>
    %412 = vector.extract_strided_slice %411 {offsets = [0, 0], sizes = [8, 128], strides = [1, 1]} : vector<8x512xf32> to vector<8x128xf32>
    %413 = arith.negf %412 : vector<8x128xf32>
    %414 = math.exp %413 : vector<8x128xf32>
    %cst_147 = arith.constant 1.000000e+00 : f32
    %415 = vector.broadcast %cst_147 : f32 to vector<8x128xf32>
    %416 = arith.addf %415, %414 : vector<8x128xf32>
    %417 = arith.divf %415, %416 : vector<8x128xf32>
    %418 = vector.extract_strided_slice %411 {offsets = [0, 128], sizes = [8, 128], strides = [1, 1]} : vector<8x512xf32> to vector<8x128xf32>
    %419 = arith.negf %418 : vector<8x128xf32>
    %420 = math.exp %419 : vector<8x128xf32>
    %cst_148 = arith.constant 1.000000e+00 : f32
    %421 = vector.broadcast %cst_148 : f32 to vector<8x128xf32>
    %422 = arith.addf %421, %420 : vector<8x128xf32>
    %423 = arith.divf %421, %422 : vector<8x128xf32>
    %424 = vector.extract_strided_slice %411 {offsets = [0, 256], sizes = [8, 128], strides = [1, 1]} : vector<8x512xf32> to vector<8x128xf32>
    %425 = math.tanh %424 : vector<8x128xf32>
    %426 = vector.extract_strided_slice %411 {offsets = [0, 384], sizes = [8, 128], strides = [1, 1]} : vector<8x512xf32> to vector<8x128xf32>
    %427 = arith.negf %426 : vector<8x128xf32>
    %428 = math.exp %427 : vector<8x128xf32>
    %cst_149 = arith.constant 1.000000e+00 : f32
    %429 = vector.broadcast %cst_149 : f32 to vector<8x128xf32>
    %430 = arith.addf %429, %428 : vector<8x128xf32>
    %431 = arith.divf %429, %430 : vector<8x128xf32>
    %432 = arith.mulf %423, %404 : vector<8x128xf32>
    %433 = arith.mulf %417, %425 : vector<8x128xf32>
    %434 = arith.addf %432, %433 : vector<8x128xf32>
    %435 = math.tanh %434 : vector<8x128xf32>
    %436 = arith.mulf %431, %435 : vector<8x128xf32>
    %c32_150 = arith.constant 32 : index
    %c0_151 = arith.constant 0 : index
    %437 = vector.load %arg14[%c32_150, %c0_151] : memref<72x128xf32, #tpu.memory_space<vmem>>, vector<8x128xf32>
    tpu.vector_store %arg14[%c32_150, %c0_151], %436 {strides = array<i32>} : memref<72x128xf32, #tpu.memory_space<vmem>>, vector<8x128xf32>,
    %c40_152 = arith.constant 40 : index
    %c0_153 = arith.constant 0 : index
    %438 = vector.load %arg13[%c40_152, %c0_153] : memref<72x512xf32, #tpu.memory_space<vmem>>, vector<8x512xf32>
    %c0_154 = arith.constant 0 : index
    %c0_155 = arith.constant 0 : index
    %439 = vector.load %arg5[%c0_154, %c0_155] : memref<128x512xf32, #tpu.memory_space<vmem>>, vector<128x512xf32>
    %cst_156 = arith.constant dense<0.000000e+00> : vector<8x512xf32>
    %440 = tpu.matmul %436, %439, %cst_156 {dimension_numbers = #tpu.dot_dimension_numbers<[1], [0], [0], [1], [0, 0, 1, 1], [], []>} : vector<8x128xf32>, vector<128x512xf32>, vector<8x512xf32> -> vector<8x512xf32>
    %441 = arith.addf %438, %440 : vector<8x512xf32>
    %442 = vector.extract_strided_slice %441 {offsets = [0, 0], sizes = [8, 128], strides = [1, 1]} : vector<8x512xf32> to vector<8x128xf32>
    %443 = arith.negf %442 : vector<8x128xf32>
    %444 = math.exp %443 : vector<8x128xf32>
    %cst_157 = arith.constant 1.000000e+00 : f32
    %445 = vector.broadcast %cst_157 : f32 to vector<8x128xf32>
    %446 = arith.addf %445, %444 : vector<8x128xf32>
    %447 = arith.divf %445, %446 : vector<8x128xf32>
    %448 = vector.extract_strided_slice %441 {offsets = [0, 128], sizes = [8, 128], strides = [1, 1]} : vector<8x512xf32> to vector<8x128xf32>
    %449 = arith.negf %448 : vector<8x128xf32>
    %450 = math.exp %449 : vector<8x128xf32>
    %cst_158 = arith.constant 1.000000e+00 : f32
    %451 = vector.broadcast %cst_158 : f32 to vector<8x128xf32>
    %452 = arith.addf %451, %450 : vector<8x128xf32>
    %453 = arith.divf %451, %452 : vector<8x128xf32>
    %454 = vector.extract_strided_slice %441 {offsets = [0, 256], sizes = [8, 128], strides = [1, 1]} : vector<8x512xf32> to vector<8x128xf32>
    %455 = math.tanh %454 : vector<8x128xf32>
    %456 = vector.extract_strided_slice %441 {offsets = [0, 384], sizes = [8, 128], strides = [1, 1]} : vector<8x512xf32> to vector<8x128xf32>
    %457 = arith.negf %456 : vector<8x128xf32>
    %458 = math.exp %457 : vector<8x128xf32>
    %cst_159 = arith.constant 1.000000e+00 : f32
    %459 = vector.broadcast %cst_159 : f32 to vector<8x128xf32>
    %460 = arith.addf %459, %458 : vector<8x128xf32>
    %461 = arith.divf %459, %460 : vector<8x128xf32>
    %462 = arith.mulf %453, %434 : vector<8x128xf32>
    %463 = arith.mulf %447, %455 : vector<8x128xf32>
    %464 = arith.addf %462, %463 : vector<8x128xf32>
    %465 = math.tanh %464 : vector<8x128xf32>
    %466 = arith.mulf %461, %465 : vector<8x128xf32>
    %c40_160 = arith.constant 40 : index
    %c0_161 = arith.constant 0 : index
    %467 = vector.load %arg14[%c40_160, %c0_161] : memref<72x128xf32, #tpu.memory_space<vmem>>, vector<8x128xf32>
    tpu.vector_store %arg14[%c40_160, %c0_161], %466 {strides = array<i32>} : memref<72x128xf32, #tpu.memory_space<vmem>>, vector<8x128xf32>,
    %c48_162 = arith.constant 48 : index
    %c0_163 = arith.constant 0 : index
    %468 = vector.load %arg13[%c48_162, %c0_163] : memref<72x512xf32, #tpu.memory_space<vmem>>, vector<8x512xf32>
    %c0_164 = arith.constant 0 : index
    %c0_165 = arith.constant 0 : index
    %469 = vector.load %arg5[%c0_164, %c0_165] : memref<128x512xf32, #tpu.memory_space<vmem>>, vector<128x512xf32>
    %cst_166 = arith.constant dense<0.000000e+00> : vector<8x512xf32>
    %470 = tpu.matmul %466, %469, %cst_166 {dimension_numbers = #tpu.dot_dimension_numbers<[1], [0], [0], [1], [0, 0, 1, 1], [], []>} : vector<8x128xf32>, vector<128x512xf32>, vector<8x512xf32> -> vector<8x512xf32>
    %471 = arith.addf %468, %470 : vector<8x512xf32>
    %472 = vector.extract_strided_slice %471 {offsets = [0, 0], sizes = [8, 128], strides = [1, 1]} : vector<8x512xf32> to vector<8x128xf32>
    %473 = arith.negf %472 : vector<8x128xf32>
    %474 = math.exp %473 : vector<8x128xf32>
    %cst_167 = arith.constant 1.000000e+00 : f32
    %475 = vector.broadcast %cst_167 : f32 to vector<8x128xf32>
    %476 = arith.addf %475, %474 : vector<8x128xf32>
    %477 = arith.divf %475, %476 : vector<8x128xf32>
    %478 = vector.extract_strided_slice %471 {offsets = [0, 128], sizes = [8, 128], strides = [1, 1]} : vector<8x512xf32> to vector<8x128xf32>
    %479 = arith.negf %478 : vector<8x128xf32>
    %480 = math.exp %479 : vector<8x128xf32>
    %cst_168 = arith.constant 1.000000e+00 : f32
    %481 = vector.broadcast %cst_168 : f32 to vector<8x128xf32>
    %482 = arith.addf %481, %480 : vector<8x128xf32>
    %483 = arith.divf %481, %482 : vector<8x128xf32>
    %484 = vector.extract_strided_slice %471 {offsets = [0, 256], sizes = [8, 128], strides = [1, 1]} : vector<8x512xf32> to vector<8x128xf32>
    %485 = math.tanh %484 : vector<8x128xf32>
    %486 = vector.extract_strided_slice %471 {offsets = [0, 384], sizes = [8, 128], strides = [1, 1]} : vector<8x512xf32> to vector<8x128xf32>
    %487 = arith.negf %486 : vector<8x128xf32>
    %488 = math.exp %487 : vector<8x128xf32>
    %cst_169 = arith.constant 1.000000e+00 : f32
    %489 = vector.broadcast %cst_169 : f32 to vector<8x128xf32>
    %490 = arith.addf %489, %488 : vector<8x128xf32>
    %491 = arith.divf %489, %490 : vector<8x128xf32>
    %492 = arith.mulf %483, %464 : vector<8x128xf32>
    %493 = arith.mulf %477, %485 : vector<8x128xf32>
    %494 = arith.addf %492, %493 : vector<8x128xf32>
    %495 = math.tanh %494 : vector<8x128xf32>
    %496 = arith.mulf %491, %495 : vector<8x128xf32>
    %c48_170 = arith.constant 48 : index
    %c0_171 = arith.constant 0 : index
    %497 = vector.load %arg14[%c48_170, %c0_171] : memref<72x128xf32, #tpu.memory_space<vmem>>, vector<8x128xf32>
    tpu.vector_store %arg14[%c48_170, %c0_171], %496 {strides = array<i32>} : memref<72x128xf32, #tpu.memory_space<vmem>>, vector<8x128xf32>,
    %c56_172 = arith.constant 56 : index
    %c0_173 = arith.constant 0 : index
    %498 = vector.load %arg13[%c56_172, %c0_173] : memref<72x512xf32, #tpu.memory_space<vmem>>, vector<8x512xf32>
    %c0_174 = arith.constant 0 : index
    %c0_175 = arith.constant 0 : index
    %499 = vector.load %arg5[%c0_174, %c0_175] : memref<128x512xf32, #tpu.memory_space<vmem>>, vector<128x512xf32>
    %cst_176 = arith.constant dense<0.000000e+00> : vector<8x512xf32>
    %500 = tpu.matmul %496, %499, %cst_176 {dimension_numbers = #tpu.dot_dimension_numbers<[1], [0], [0], [1], [0, 0, 1, 1], [], []>} : vector<8x128xf32>, vector<128x512xf32>, vector<8x512xf32> -> vector<8x512xf32>
    %501 = arith.addf %498, %500 : vector<8x512xf32>
    %502 = vector.extract_strided_slice %501 {offsets = [0, 0], sizes = [8, 128], strides = [1, 1]} : vector<8x512xf32> to vector<8x128xf32>
    %503 = arith.negf %502 : vector<8x128xf32>
    %504 = math.exp %503 : vector<8x128xf32>
    %cst_177 = arith.constant 1.000000e+00 : f32
    %505 = vector.broadcast %cst_177 : f32 to vector<8x128xf32>
    %506 = arith.addf %505, %504 : vector<8x128xf32>
    %507 = arith.divf %505, %506 : vector<8x128xf32>
    %508 = vector.extract_strided_slice %501 {offsets = [0, 128], sizes = [8, 128], strides = [1, 1]} : vector<8x512xf32> to vector<8x128xf32>
    %509 = arith.negf %508 : vector<8x128xf32>
    %510 = math.exp %509 : vector<8x128xf32>
    %cst_178 = arith.constant 1.000000e+00 : f32
    %511 = vector.broadcast %cst_178 : f32 to vector<8x128xf32>
    %512 = arith.addf %511, %510 : vector<8x128xf32>
    %513 = arith.divf %511, %512 : vector<8x128xf32>
    %514 = vector.extract_strided_slice %501 {offsets = [0, 256], sizes = [8, 128], strides = [1, 1]} : vector<8x512xf32> to vector<8x128xf32>
    %515 = math.tanh %514 : vector<8x128xf32>
    %516 = vector.extract_strided_slice %501 {offsets = [0, 384], sizes = [8, 128], strides = [1, 1]} : vector<8x512xf32> to vector<8x128xf32>
    %517 = arith.negf %516 : vector<8x128xf32>
    %518 = math.exp %517 : vector<8x128xf32>
    %cst_179 = arith.constant 1.000000e+00 : f32
    %519 = vector.broadcast %cst_179 : f32 to vector<8x128xf32>
    %520 = arith.addf %519, %518 : vector<8x128xf32>
    %521 = arith.divf %519, %520 : vector<8x128xf32>
    %522 = arith.mulf %513, %494 : vector<8x128xf32>
    %523 = arith.mulf %507, %515 : vector<8x128xf32>
    %524 = arith.addf %522, %523 : vector<8x128xf32>
    %525 = math.tanh %524 : vector<8x128xf32>
    %526 = arith.mulf %521, %525 : vector<8x128xf32>
    %c56_180 = arith.constant 56 : index
    %c0_181 = arith.constant 0 : index
    %527 = vector.load %arg14[%c56_180, %c0_181] : memref<72x128xf32, #tpu.memory_space<vmem>>, vector<8x128xf32>
    tpu.vector_store %arg14[%c56_180, %c0_181], %526 {strides = array<i32>} : memref<72x128xf32, #tpu.memory_space<vmem>>, vector<8x128xf32>,
    %c64_182 = arith.constant 64 : index
    %c0_183 = arith.constant 0 : index
    %528 = vector.load %arg13[%c64_182, %c0_183] : memref<72x512xf32, #tpu.memory_space<vmem>>, vector<8x512xf32>
    %c0_184 = arith.constant 0 : index
    %c0_185 = arith.constant 0 : index
    %529 = vector.load %arg5[%c0_184, %c0_185] : memref<128x512xf32, #tpu.memory_space<vmem>>, vector<128x512xf32>
    %cst_186 = arith.constant dense<0.000000e+00> : vector<8x512xf32>
    %530 = tpu.matmul %526, %529, %cst_186 {dimension_numbers = #tpu.dot_dimension_numbers<[1], [0], [0], [1], [0, 0, 1, 1], [], []>} : vector<8x128xf32>, vector<128x512xf32>, vector<8x512xf32> -> vector<8x512xf32>
    %531 = arith.addf %528, %530 : vector<8x512xf32>
    %532 = vector.extract_strided_slice %531 {offsets = [0, 0], sizes = [8, 128], strides = [1, 1]} : vector<8x512xf32> to vector<8x128xf32>
    %533 = arith.negf %532 : vector<8x128xf32>
    %534 = math.exp %533 : vector<8x128xf32>
    %cst_187 = arith.constant 1.000000e+00 : f32
    %535 = vector.broadcast %cst_187 : f32 to vector<8x128xf32>
    %536 = arith.addf %535, %534 : vector<8x128xf32>
    %537 = arith.divf %535, %536 : vector<8x128xf32>
    %538 = vector.extract_strided_slice %531 {offsets = [0, 128], sizes = [8, 128], strides = [1, 1]} : vector<8x512xf32> to vector<8x128xf32>
    %539 = arith.negf %538 : vector<8x128xf32>
    %540 = math.exp %539 : vector<8x128xf32>
    %cst_188 = arith.constant 1.000000e+00 : f32
    %541 = vector.broadcast %cst_188 : f32 to vector<8x128xf32>
    %542 = arith.addf %541, %540 : vector<8x128xf32>
    %543 = arith.divf %541, %542 : vector<8x128xf32>
    %544 = vector.extract_strided_slice %531 {offsets = [0, 256], sizes = [8, 128], strides = [1, 1]} : vector<8x512xf32> to vector<8x128xf32>
    %545 = math.tanh %544 : vector<8x128xf32>
    %546 = vector.extract_strided_slice %531 {offsets = [0, 384], sizes = [8, 128], strides = [1, 1]} : vector<8x512xf32> to vector<8x128xf32>
    %547 = arith.negf %546 : vector<8x128xf32>
    %548 = math.exp %547 : vector<8x128xf32>
    %cst_189 = arith.constant 1.000000e+00 : f32
    %549 = vector.broadcast %cst_189 : f32 to vector<8x128xf32>
    %550 = arith.addf %549, %548 : vector<8x128xf32>
    %551 = arith.divf %549, %550 : vector<8x128xf32>
    %552 = arith.mulf %543, %524 : vector<8x128xf32>
    %553 = arith.mulf %537, %545 : vector<8x128xf32>
    %554 = arith.addf %552, %553 : vector<8x128xf32>
    %555 = math.tanh %554 : vector<8x128xf32>
    %556 = arith.mulf %551, %555 : vector<8x128xf32>
    %c64_190 = arith.constant 64 : index
    %c0_191 = arith.constant 0 : index
    %557 = vector.load %arg14[%c64_190, %c0_191] : memref<72x128xf32, #tpu.memory_space<vmem>>, vector<8x128xf32>
    tpu.vector_store %arg14[%c64_190, %c0_191], %556 {strides = array<i32>} : memref<72x128xf32, #tpu.memory_space<vmem>>, vector<8x128xf32>,
    %c0_192 = arith.constant 0 : index
    %c0_193 = arith.constant 0 : index
    %558 = vector.load %arg14[%c0_192, %c0_193] : memref<72x128xf32, #tpu.memory_space<vmem>>, vector<72x128xf32>
    %c0_194 = arith.constant 0 : index
    %c0_195 = arith.constant 0 : index
    %559 = vector.load %arg7[%c0_194, %c0_195] : memref<128x512xf32, #tpu.memory_space<vmem>>, vector<128x512xf32>
    %cst_196 = arith.constant dense<0.000000e+00> : vector<72x512xf32>
    %560 = tpu.matmul %558, %559, %cst_196 {dimension_numbers = #tpu.dot_dimension_numbers<[1], [0], [0], [1], [0, 0, 1, 1], [], []>} : vector<72x128xf32>, vector<128x512xf32>, vector<72x512xf32> -> vector<72x512xf32>
    %c0_197 = arith.constant 0 : index
    %c0_198 = arith.constant 0 : index
    %561 = vector.load %arg9[%c0_197, %c0_198] : memref<1x512xf32, #tpu.memory_space<vmem>>, vector<1x512xf32>
    %562 = vector.broadcast %561 : vector<1x512xf32> to vector<72x512xf32>
    %563 = arith.addf %560, %562 : vector<72x512xf32>
    %c0_199 = arith.constant 0 : index
    %c0_200 = arith.constant 0 : index
    %564 = vector.load %arg13[%c0_199, %c0_200] : memref<72x512xf32, #tpu.memory_space<vmem>>, vector<72x512xf32>
    tpu.vector_store %arg13[%c0_199, %c0_200], %563 {strides = array<i32>} : memref<72x512xf32, #tpu.memory_space<vmem>>, vector<72x512xf32>,
    %cst_201 = arith.constant 0.000000e+00 : f32
    %565 = vector.broadcast %cst_201 : f32 to vector<8x128xf32>
    %cst_202 = arith.constant 0.000000e+00 : f32
    %566 = vector.broadcast %cst_202 : f32 to vector<8x128xf32>
    %c0_203 = arith.constant 0 : index
    %c0_204 = arith.constant 0 : index
    %567 = vector.load %arg13[%c0_203, %c0_204] : memref<72x512xf32, #tpu.memory_space<vmem>>, vector<8x512xf32>
    %c0_205 = arith.constant 0 : index
    %c0_206 = arith.constant 0 : index
    %568 = vector.load %arg8[%c0_205, %c0_206] : memref<128x512xf32, #tpu.memory_space<vmem>>, vector<128x512xf32>
    %cst_207 = arith.constant dense<0.000000e+00> : vector<8x512xf32>
    %569 = tpu.matmul %565, %568, %cst_207 {dimension_numbers = #tpu.dot_dimension_numbers<[1], [0], [0], [1], [0, 0, 1, 1], [], []>} : vector<8x128xf32>, vector<128x512xf32>, vector<8x512xf32> -> vector<8x512xf32>
    %570 = arith.addf %567, %569 : vector<8x512xf32>
    %571 = vector.extract_strided_slice %570 {offsets = [0, 0], sizes = [8, 128], strides = [1, 1]} : vector<8x512xf32> to vector<8x128xf32>
    %572 = arith.negf %571 : vector<8x128xf32>
    %573 = math.exp %572 : vector<8x128xf32>
    %cst_208 = arith.constant 1.000000e+00 : f32
    %574 = vector.broadcast %cst_208 : f32 to vector<8x128xf32>
    %575 = arith.addf %574, %573 : vector<8x128xf32>
    %576 = arith.divf %574, %575 : vector<8x128xf32>
    %577 = vector.extract_strided_slice %570 {offsets = [0, 128], sizes = [8, 128], strides = [1, 1]} : vector<8x512xf32> to vector<8x128xf32>
    %578 = arith.negf %577 : vector<8x128xf32>
    %579 = math.exp %578 : vector<8x128xf32>
    %cst_209 = arith.constant 1.000000e+00 : f32
    %580 = vector.broadcast %cst_209 : f32 to vector<8x128xf32>
    %581 = arith.addf %580, %579 : vector<8x128xf32>
    %582 = arith.divf %580, %581 : vector<8x128xf32>
    %583 = vector.extract_strided_slice %570 {offsets = [0, 256], sizes = [8, 128], strides = [1, 1]} : vector<8x512xf32> to vector<8x128xf32>
    %584 = math.tanh %583 : vector<8x128xf32>
    %585 = vector.extract_strided_slice %570 {offsets = [0, 384], sizes = [8, 128], strides = [1, 1]} : vector<8x512xf32> to vector<8x128xf32>
    %586 = arith.negf %585 : vector<8x128xf32>
    %587 = math.exp %586 : vector<8x128xf32>
    %cst_210 = arith.constant 1.000000e+00 : f32
    %588 = vector.broadcast %cst_210 : f32 to vector<8x128xf32>
    %589 = arith.addf %588, %587 : vector<8x128xf32>
    %590 = arith.divf %588, %589 : vector<8x128xf32>
    %591 = arith.mulf %582, %566 : vector<8x128xf32>
    %592 = arith.mulf %576, %584 : vector<8x128xf32>
    %593 = arith.addf %591, %592 : vector<8x128xf32>
    %594 = math.tanh %593 : vector<8x128xf32>
    %595 = arith.mulf %590, %594 : vector<8x128xf32>
    %c8_211 = arith.constant 8 : index
    %c0_212 = arith.constant 0 : index
    %596 = vector.load %arg13[%c8_211, %c0_212] : memref<72x512xf32, #tpu.memory_space<vmem>>, vector<8x512xf32>
    %c0_213 = arith.constant 0 : index
    %c0_214 = arith.constant 0 : index
    %597 = vector.load %arg8[%c0_213, %c0_214] : memref<128x512xf32, #tpu.memory_space<vmem>>, vector<128x512xf32>
    %cst_215 = arith.constant dense<0.000000e+00> : vector<8x512xf32>
    %598 = tpu.matmul %595, %597, %cst_215 {dimension_numbers = #tpu.dot_dimension_numbers<[1], [0], [0], [1], [0, 0, 1, 1], [], []>} : vector<8x128xf32>, vector<128x512xf32>, vector<8x512xf32> -> vector<8x512xf32>
    %599 = arith.addf %596, %598 : vector<8x512xf32>
    %600 = vector.extract_strided_slice %599 {offsets = [0, 0], sizes = [8, 128], strides = [1, 1]} : vector<8x512xf32> to vector<8x128xf32>
    %601 = arith.negf %600 : vector<8x128xf32>
    %602 = math.exp %601 : vector<8x128xf32>
    %cst_216 = arith.constant 1.000000e+00 : f32
    %603 = vector.broadcast %cst_216 : f32 to vector<8x128xf32>
    %604 = arith.addf %603, %602 : vector<8x128xf32>
    %605 = arith.divf %603, %604 : vector<8x128xf32>
    %606 = vector.extract_strided_slice %599 {offsets = [0, 128], sizes = [8, 128], strides = [1, 1]} : vector<8x512xf32> to vector<8x128xf32>
    %607 = arith.negf %606 : vector<8x128xf32>
    %608 = math.exp %607 : vector<8x128xf32>
    %cst_217 = arith.constant 1.000000e+00 : f32
    %609 = vector.broadcast %cst_217 : f32 to vector<8x128xf32>
    %610 = arith.addf %609, %608 : vector<8x128xf32>
    %611 = arith.divf %609, %610 : vector<8x128xf32>
    %612 = vector.extract_strided_slice %599 {offsets = [0, 256], sizes = [8, 128], strides = [1, 1]} : vector<8x512xf32> to vector<8x128xf32>
    %613 = math.tanh %612 : vector<8x128xf32>
    %614 = vector.extract_strided_slice %599 {offsets = [0, 384], sizes = [8, 128], strides = [1, 1]} : vector<8x512xf32> to vector<8x128xf32>
    %615 = arith.negf %614 : vector<8x128xf32>
    %616 = math.exp %615 : vector<8x128xf32>
    %cst_218 = arith.constant 1.000000e+00 : f32
    %617 = vector.broadcast %cst_218 : f32 to vector<8x128xf32>
    %618 = arith.addf %617, %616 : vector<8x128xf32>
    %619 = arith.divf %617, %618 : vector<8x128xf32>
    %620 = arith.mulf %611, %593 : vector<8x128xf32>
    %621 = arith.mulf %605, %613 : vector<8x128xf32>
    %622 = arith.addf %620, %621 : vector<8x128xf32>
    %623 = math.tanh %622 : vector<8x128xf32>
    %624 = arith.mulf %619, %623 : vector<8x128xf32>
    %c16_219 = arith.constant 16 : index
    %c0_220 = arith.constant 0 : index
    %625 = vector.load %arg13[%c16_219, %c0_220] : memref<72x512xf32, #tpu.memory_space<vmem>>, vector<8x512xf32>
    %c0_221 = arith.constant 0 : index
    %c0_222 = arith.constant 0 : index
    %626 = vector.load %arg8[%c0_221, %c0_222] : memref<128x512xf32, #tpu.memory_space<vmem>>, vector<128x512xf32>
    %cst_223 = arith.constant dense<0.000000e+00> : vector<8x512xf32>
    %627 = tpu.matmul %624, %626, %cst_223 {dimension_numbers = #tpu.dot_dimension_numbers<[1], [0], [0], [1], [0, 0, 1, 1], [], []>} : vector<8x128xf32>, vector<128x512xf32>, vector<8x512xf32> -> vector<8x512xf32>
    %628 = arith.addf %625, %627 : vector<8x512xf32>
    %629 = vector.extract_strided_slice %628 {offsets = [0, 0], sizes = [8, 128], strides = [1, 1]} : vector<8x512xf32> to vector<8x128xf32>
    %630 = arith.negf %629 : vector<8x128xf32>
    %631 = math.exp %630 : vector<8x128xf32>
    %cst_224 = arith.constant 1.000000e+00 : f32
    %632 = vector.broadcast %cst_224 : f32 to vector<8x128xf32>
    %633 = arith.addf %632, %631 : vector<8x128xf32>
    %634 = arith.divf %632, %633 : vector<8x128xf32>
    %635 = vector.extract_strided_slice %628 {offsets = [0, 128], sizes = [8, 128], strides = [1, 1]} : vector<8x512xf32> to vector<8x128xf32>
    %636 = arith.negf %635 : vector<8x128xf32>
    %637 = math.exp %636 : vector<8x128xf32>
    %cst_225 = arith.constant 1.000000e+00 : f32
    %638 = vector.broadcast %cst_225 : f32 to vector<8x128xf32>
    %639 = arith.addf %638, %637 : vector<8x128xf32>
    %640 = arith.divf %638, %639 : vector<8x128xf32>
    %641 = vector.extract_strided_slice %628 {offsets = [0, 256], sizes = [8, 128], strides = [1, 1]} : vector<8x512xf32> to vector<8x128xf32>
    %642 = math.tanh %641 : vector<8x128xf32>
    %643 = vector.extract_strided_slice %628 {offsets = [0, 384], sizes = [8, 128], strides = [1, 1]} : vector<8x512xf32> to vector<8x128xf32>
    %644 = arith.negf %643 : vector<8x128xf32>
    %645 = math.exp %644 : vector<8x128xf32>
    %cst_226 = arith.constant 1.000000e+00 : f32
    %646 = vector.broadcast %cst_226 : f32 to vector<8x128xf32>
    %647 = arith.addf %646, %645 : vector<8x128xf32>
    %648 = arith.divf %646, %647 : vector<8x128xf32>
    %649 = arith.mulf %640, %622 : vector<8x128xf32>
    %650 = arith.mulf %634, %642 : vector<8x128xf32>
    %651 = arith.addf %649, %650 : vector<8x128xf32>
    %652 = math.tanh %651 : vector<8x128xf32>
    %653 = arith.mulf %648, %652 : vector<8x128xf32>
    %c24_227 = arith.constant 24 : index
    %c0_228 = arith.constant 0 : index
    %654 = vector.load %arg13[%c24_227, %c0_228] : memref<72x512xf32, #tpu.memory_space<vmem>>, vector<8x512xf32>
    %c0_229 = arith.constant 0 : index
    %c0_230 = arith.constant 0 : index
    %655 = vector.load %arg8[%c0_229, %c0_230] : memref<128x512xf32, #tpu.memory_space<vmem>>, vector<128x512xf32>
    %cst_231 = arith.constant dense<0.000000e+00> : vector<8x512xf32>
    %656 = tpu.matmul %653, %655, %cst_231 {dimension_numbers = #tpu.dot_dimension_numbers<[1], [0], [0], [1], [0, 0, 1, 1], [], []>} : vector<8x128xf32>, vector<128x512xf32>, vector<8x512xf32> -> vector<8x512xf32>
    %657 = arith.addf %654, %656 : vector<8x512xf32>
    %658 = vector.extract_strided_slice %657 {offsets = [0, 0], sizes = [8, 128], strides = [1, 1]} : vector<8x512xf32> to vector<8x128xf32>
    %659 = arith.negf %658 : vector<8x128xf32>
    %660 = math.exp %659 : vector<8x128xf32>
    %cst_232 = arith.constant 1.000000e+00 : f32
    %661 = vector.broadcast %cst_232 : f32 to vector<8x128xf32>
    %662 = arith.addf %661, %660 : vector<8x128xf32>
    %663 = arith.divf %661, %662 : vector<8x128xf32>
    %664 = vector.extract_strided_slice %657 {offsets = [0, 128], sizes = [8, 128], strides = [1, 1]} : vector<8x512xf32> to vector<8x128xf32>
    %665 = arith.negf %664 : vector<8x128xf32>
    %666 = math.exp %665 : vector<8x128xf32>
    %cst_233 = arith.constant 1.000000e+00 : f32
    %667 = vector.broadcast %cst_233 : f32 to vector<8x128xf32>
    %668 = arith.addf %667, %666 : vector<8x128xf32>
    %669 = arith.divf %667, %668 : vector<8x128xf32>
    %670 = vector.extract_strided_slice %657 {offsets = [0, 256], sizes = [8, 128], strides = [1, 1]} : vector<8x512xf32> to vector<8x128xf32>
    %671 = math.tanh %670 : vector<8x128xf32>
    %672 = vector.extract_strided_slice %657 {offsets = [0, 384], sizes = [8, 128], strides = [1, 1]} : vector<8x512xf32> to vector<8x128xf32>
    %673 = arith.negf %672 : vector<8x128xf32>
    %674 = math.exp %673 : vector<8x128xf32>
    %cst_234 = arith.constant 1.000000e+00 : f32
    %675 = vector.broadcast %cst_234 : f32 to vector<8x128xf32>
    %676 = arith.addf %675, %674 : vector<8x128xf32>
    %677 = arith.divf %675, %676 : vector<8x128xf32>
    %678 = arith.mulf %669, %651 : vector<8x128xf32>
    %679 = arith.mulf %663, %671 : vector<8x128xf32>
    %680 = arith.addf %678, %679 : vector<8x128xf32>
    %681 = math.tanh %680 : vector<8x128xf32>
    %682 = arith.mulf %677, %681 : vector<8x128xf32>
    %c32_235 = arith.constant 32 : index
    %c0_236 = arith.constant 0 : index
    %683 = vector.load %arg13[%c32_235, %c0_236] : memref<72x512xf32, #tpu.memory_space<vmem>>, vector<8x512xf32>
    %c0_237 = arith.constant 0 : index
    %c0_238 = arith.constant 0 : index
    %684 = vector.load %arg8[%c0_237, %c0_238] : memref<128x512xf32, #tpu.memory_space<vmem>>, vector<128x512xf32>
    %cst_239 = arith.constant dense<0.000000e+00> : vector<8x512xf32>
    %685 = tpu.matmul %682, %684, %cst_239 {dimension_numbers = #tpu.dot_dimension_numbers<[1], [0], [0], [1], [0, 0, 1, 1], [], []>} : vector<8x128xf32>, vector<128x512xf32>, vector<8x512xf32> -> vector<8x512xf32>
    %686 = arith.addf %683, %685 : vector<8x512xf32>
    %687 = vector.extract_strided_slice %686 {offsets = [0, 0], sizes = [8, 128], strides = [1, 1]} : vector<8x512xf32> to vector<8x128xf32>
    %688 = arith.negf %687 : vector<8x128xf32>
    %689 = math.exp %688 : vector<8x128xf32>
    %cst_240 = arith.constant 1.000000e+00 : f32
    %690 = vector.broadcast %cst_240 : f32 to vector<8x128xf32>
    %691 = arith.addf %690, %689 : vector<8x128xf32>
    %692 = arith.divf %690, %691 : vector<8x128xf32>
    %693 = vector.extract_strided_slice %686 {offsets = [0, 128], sizes = [8, 128], strides = [1, 1]} : vector<8x512xf32> to vector<8x128xf32>
    %694 = arith.negf %693 : vector<8x128xf32>
    %695 = math.exp %694 : vector<8x128xf32>
    %cst_241 = arith.constant 1.000000e+00 : f32
    %696 = vector.broadcast %cst_241 : f32 to vector<8x128xf32>
    %697 = arith.addf %696, %695 : vector<8x128xf32>
    %698 = arith.divf %696, %697 : vector<8x128xf32>
    %699 = vector.extract_strided_slice %686 {offsets = [0, 256], sizes = [8, 128], strides = [1, 1]} : vector<8x512xf32> to vector<8x128xf32>
    %700 = math.tanh %699 : vector<8x128xf32>
    %701 = vector.extract_strided_slice %686 {offsets = [0, 384], sizes = [8, 128], strides = [1, 1]} : vector<8x512xf32> to vector<8x128xf32>
    %702 = arith.negf %701 : vector<8x128xf32>
    %703 = math.exp %702 : vector<8x128xf32>
    %cst_242 = arith.constant 1.000000e+00 : f32
    %704 = vector.broadcast %cst_242 : f32 to vector<8x128xf32>
    %705 = arith.addf %704, %703 : vector<8x128xf32>
    %706 = arith.divf %704, %705 : vector<8x128xf32>
    %707 = arith.mulf %698, %680 : vector<8x128xf32>
    %708 = arith.mulf %692, %700 : vector<8x128xf32>
    %709 = arith.addf %707, %708 : vector<8x128xf32>
    %710 = math.tanh %709 : vector<8x128xf32>
    %711 = arith.mulf %706, %710 : vector<8x128xf32>
    %c40_243 = arith.constant 40 : index
    %c0_244 = arith.constant 0 : index
    %712 = vector.load %arg13[%c40_243, %c0_244] : memref<72x512xf32, #tpu.memory_space<vmem>>, vector<8x512xf32>
    %c0_245 = arith.constant 0 : index
    %c0_246 = arith.constant 0 : index
    %713 = vector.load %arg8[%c0_245, %c0_246] : memref<128x512xf32, #tpu.memory_space<vmem>>, vector<128x512xf32>
    %cst_247 = arith.constant dense<0.000000e+00> : vector<8x512xf32>
    %714 = tpu.matmul %711, %713, %cst_247 {dimension_numbers = #tpu.dot_dimension_numbers<[1], [0], [0], [1], [0, 0, 1, 1], [], []>} : vector<8x128xf32>, vector<128x512xf32>, vector<8x512xf32> -> vector<8x512xf32>
    %715 = arith.addf %712, %714 : vector<8x512xf32>
    %716 = vector.extract_strided_slice %715 {offsets = [0, 0], sizes = [8, 128], strides = [1, 1]} : vector<8x512xf32> to vector<8x128xf32>
    %717 = arith.negf %716 : vector<8x128xf32>
    %718 = math.exp %717 : vector<8x128xf32>
    %cst_248 = arith.constant 1.000000e+00 : f32
    %719 = vector.broadcast %cst_248 : f32 to vector<8x128xf32>
    %720 = arith.addf %719, %718 : vector<8x128xf32>
    %721 = arith.divf %719, %720 : vector<8x128xf32>
    %722 = vector.extract_strided_slice %715 {offsets = [0, 128], sizes = [8, 128], strides = [1, 1]} : vector<8x512xf32> to vector<8x128xf32>
    %723 = arith.negf %722 : vector<8x128xf32>
    %724 = math.exp %723 : vector<8x128xf32>
    %cst_249 = arith.constant 1.000000e+00 : f32
    %725 = vector.broadcast %cst_249 : f32 to vector<8x128xf32>
    %726 = arith.addf %725, %724 : vector<8x128xf32>
    %727 = arith.divf %725, %726 : vector<8x128xf32>
    %728 = vector.extract_strided_slice %715 {offsets = [0, 256], sizes = [8, 128], strides = [1, 1]} : vector<8x512xf32> to vector<8x128xf32>
    %729 = math.tanh %728 : vector<8x128xf32>
    %730 = vector.extract_strided_slice %715 {offsets = [0, 384], sizes = [8, 128], strides = [1, 1]} : vector<8x512xf32> to vector<8x128xf32>
    %731 = arith.negf %730 : vector<8x128xf32>
    %732 = math.exp %731 : vector<8x128xf32>
    %cst_250 = arith.constant 1.000000e+00 : f32
    %733 = vector.broadcast %cst_250 : f32 to vector<8x128xf32>
    %734 = arith.addf %733, %732 : vector<8x128xf32>
    %735 = arith.divf %733, %734 : vector<8x128xf32>
    %736 = arith.mulf %727, %709 : vector<8x128xf32>
    %737 = arith.mulf %721, %729 : vector<8x128xf32>
    %738 = arith.addf %736, %737 : vector<8x128xf32>
    %739 = math.tanh %738 : vector<8x128xf32>
    %740 = arith.mulf %735, %739 : vector<8x128xf32>
    %c48_251 = arith.constant 48 : index
    %c0_252 = arith.constant 0 : index
    %741 = vector.load %arg13[%c48_251, %c0_252] : memref<72x512xf32, #tpu.memory_space<vmem>>, vector<8x512xf32>
    %c0_253 = arith.constant 0 : index
    %c0_254 = arith.constant 0 : index
    %742 = vector.load %arg8[%c0_253, %c0_254] : memref<128x512xf32, #tpu.memory_space<vmem>>, vector<128x512xf32>
    %cst_255 = arith.constant dense<0.000000e+00> : vector<8x512xf32>
    %743 = tpu.matmul %740, %742, %cst_255 {dimension_numbers = #tpu.dot_dimension_numbers<[1], [0], [0], [1], [0, 0, 1, 1], [], []>} : vector<8x128xf32>, vector<128x512xf32>, vector<8x512xf32> -> vector<8x512xf32>
    %744 = arith.addf %741, %743 : vector<8x512xf32>
    %745 = vector.extract_strided_slice %744 {offsets = [0, 0], sizes = [8, 128], strides = [1, 1]} : vector<8x512xf32> to vector<8x128xf32>
    %746 = arith.negf %745 : vector<8x128xf32>
    %747 = math.exp %746 : vector<8x128xf32>
    %cst_256 = arith.constant 1.000000e+00 : f32
    %748 = vector.broadcast %cst_256 : f32 to vector<8x128xf32>
    %749 = arith.addf %748, %747 : vector<8x128xf32>
    %750 = arith.divf %748, %749 : vector<8x128xf32>
    %751 = vector.extract_strided_slice %744 {offsets = [0, 128], sizes = [8, 128], strides = [1, 1]} : vector<8x512xf32> to vector<8x128xf32>
    %752 = arith.negf %751 : vector<8x128xf32>
    %753 = math.exp %752 : vector<8x128xf32>
    %cst_257 = arith.constant 1.000000e+00 : f32
    %754 = vector.broadcast %cst_257 : f32 to vector<8x128xf32>
    %755 = arith.addf %754, %753 : vector<8x128xf32>
    %756 = arith.divf %754, %755 : vector<8x128xf32>
    %757 = vector.extract_strided_slice %744 {offsets = [0, 256], sizes = [8, 128], strides = [1, 1]} : vector<8x512xf32> to vector<8x128xf32>
    %758 = math.tanh %757 : vector<8x128xf32>
    %759 = vector.extract_strided_slice %744 {offsets = [0, 384], sizes = [8, 128], strides = [1, 1]} : vector<8x512xf32> to vector<8x128xf32>
    %760 = arith.negf %759 : vector<8x128xf32>
    %761 = math.exp %760 : vector<8x128xf32>
    %cst_258 = arith.constant 1.000000e+00 : f32
    %762 = vector.broadcast %cst_258 : f32 to vector<8x128xf32>
    %763 = arith.addf %762, %761 : vector<8x128xf32>
    %764 = arith.divf %762, %763 : vector<8x128xf32>
    %765 = arith.mulf %756, %738 : vector<8x128xf32>
    %766 = arith.mulf %750, %758 : vector<8x128xf32>
    %767 = arith.addf %765, %766 : vector<8x128xf32>
    %768 = math.tanh %767 : vector<8x128xf32>
    %769 = arith.mulf %764, %768 : vector<8x128xf32>
    %c56_259 = arith.constant 56 : index
    %c0_260 = arith.constant 0 : index
    %770 = vector.load %arg13[%c56_259, %c0_260] : memref<72x512xf32, #tpu.memory_space<vmem>>, vector<8x512xf32>
    %c0_261 = arith.constant 0 : index
    %c0_262 = arith.constant 0 : index
    %771 = vector.load %arg8[%c0_261, %c0_262] : memref<128x512xf32, #tpu.memory_space<vmem>>, vector<128x512xf32>
    %cst_263 = arith.constant dense<0.000000e+00> : vector<8x512xf32>
    %772 = tpu.matmul %769, %771, %cst_263 {dimension_numbers = #tpu.dot_dimension_numbers<[1], [0], [0], [1], [0, 0, 1, 1], [], []>} : vector<8x128xf32>, vector<128x512xf32>, vector<8x512xf32> -> vector<8x512xf32>
    %773 = arith.addf %770, %772 : vector<8x512xf32>
    %774 = vector.extract_strided_slice %773 {offsets = [0, 0], sizes = [8, 128], strides = [1, 1]} : vector<8x512xf32> to vector<8x128xf32>
    %775 = arith.negf %774 : vector<8x128xf32>
    %776 = math.exp %775 : vector<8x128xf32>
    %cst_264 = arith.constant 1.000000e+00 : f32
    %777 = vector.broadcast %cst_264 : f32 to vector<8x128xf32>
    %778 = arith.addf %777, %776 : vector<8x128xf32>
    %779 = arith.divf %777, %778 : vector<8x128xf32>
    %780 = vector.extract_strided_slice %773 {offsets = [0, 128], sizes = [8, 128], strides = [1, 1]} : vector<8x512xf32> to vector<8x128xf32>
    %781 = arith.negf %780 : vector<8x128xf32>
    %782 = math.exp %781 : vector<8x128xf32>
    %cst_265 = arith.constant 1.000000e+00 : f32
    %783 = vector.broadcast %cst_265 : f32 to vector<8x128xf32>
    %784 = arith.addf %783, %782 : vector<8x128xf32>
    %785 = arith.divf %783, %784 : vector<8x128xf32>
    %786 = vector.extract_strided_slice %773 {offsets = [0, 256], sizes = [8, 128], strides = [1, 1]} : vector<8x512xf32> to vector<8x128xf32>
    %787 = math.tanh %786 : vector<8x128xf32>
    %788 = vector.extract_strided_slice %773 {offsets = [0, 384], sizes = [8, 128], strides = [1, 1]} : vector<8x512xf32> to vector<8x128xf32>
    %789 = arith.negf %788 : vector<8x128xf32>
    %790 = math.exp %789 : vector<8x128xf32>
    %cst_266 = arith.constant 1.000000e+00 : f32
    %791 = vector.broadcast %cst_266 : f32 to vector<8x128xf32>
    %792 = arith.addf %791, %790 : vector<8x128xf32>
    %793 = arith.divf %791, %792 : vector<8x128xf32>
    %794 = arith.mulf %785, %767 : vector<8x128xf32>
    %795 = arith.mulf %779, %787 : vector<8x128xf32>
    %796 = arith.addf %794, %795 : vector<8x128xf32>
    %797 = math.tanh %796 : vector<8x128xf32>
    %798 = arith.mulf %793, %797 : vector<8x128xf32>
    %c64_267 = arith.constant 64 : index
    %c0_268 = arith.constant 0 : index
    %799 = vector.load %arg13[%c64_267, %c0_268] : memref<72x512xf32, #tpu.memory_space<vmem>>, vector<8x512xf32>
    %c0_269 = arith.constant 0 : index
    %c0_270 = arith.constant 0 : index
    %800 = vector.load %arg8[%c0_269, %c0_270] : memref<128x512xf32, #tpu.memory_space<vmem>>, vector<128x512xf32>
    %cst_271 = arith.constant dense<0.000000e+00> : vector<8x512xf32>
    %801 = tpu.matmul %798, %800, %cst_271 {dimension_numbers = #tpu.dot_dimension_numbers<[1], [0], [0], [1], [0, 0, 1, 1], [], []>} : vector<8x128xf32>, vector<128x512xf32>, vector<8x512xf32> -> vector<8x512xf32>
    %802 = arith.addf %799, %801 : vector<8x512xf32>
    %803 = vector.extract_strided_slice %802 {offsets = [0, 0], sizes = [8, 128], strides = [1, 1]} : vector<8x512xf32> to vector<8x128xf32>
    %804 = arith.negf %803 : vector<8x128xf32>
    %805 = math.exp %804 : vector<8x128xf32>
    %cst_272 = arith.constant 1.000000e+00 : f32
    %806 = vector.broadcast %cst_272 : f32 to vector<8x128xf32>
    %807 = arith.addf %806, %805 : vector<8x128xf32>
    %808 = arith.divf %806, %807 : vector<8x128xf32>
    %809 = vector.extract_strided_slice %802 {offsets = [0, 128], sizes = [8, 128], strides = [1, 1]} : vector<8x512xf32> to vector<8x128xf32>
    %810 = arith.negf %809 : vector<8x128xf32>
    %811 = math.exp %810 : vector<8x128xf32>
    %cst_273 = arith.constant 1.000000e+00 : f32
    %812 = vector.broadcast %cst_273 : f32 to vector<8x128xf32>
    %813 = arith.addf %812, %811 : vector<8x128xf32>
    %814 = arith.divf %812, %813 : vector<8x128xf32>
    %815 = vector.extract_strided_slice %802 {offsets = [0, 256], sizes = [8, 128], strides = [1, 1]} : vector<8x512xf32> to vector<8x128xf32>
    %816 = math.tanh %815 : vector<8x128xf32>
    %817 = vector.extract_strided_slice %802 {offsets = [0, 384], sizes = [8, 128], strides = [1, 1]} : vector<8x512xf32> to vector<8x128xf32>
    %818 = arith.negf %817 : vector<8x128xf32>
    %819 = math.exp %818 : vector<8x128xf32>
    %cst_274 = arith.constant 1.000000e+00 : f32
    %820 = vector.broadcast %cst_274 : f32 to vector<8x128xf32>
    %821 = arith.addf %820, %819 : vector<8x128xf32>
    %822 = arith.divf %820, %821 : vector<8x128xf32>
    %823 = arith.mulf %814, %796 : vector<8x128xf32>
    %824 = arith.mulf %808, %816 : vector<8x128xf32>
    %825 = arith.addf %823, %824 : vector<8x128xf32>
    %826 = math.tanh %825 : vector<8x128xf32>
    %827 = arith.mulf %822, %826 : vector<8x128xf32>
    %c0_275 = arith.constant 0 : index
    %c0_276 = arith.constant 0 : index
    %828 = vector.load %arg10[%c0_275, %c0_276] : memref<128x1xf32, #tpu.memory_space<vmem>>, vector<128x1xf32>
    %cst_277 = arith.constant dense<0.000000e+00> : vector<8x1xf32>
    %829 = tpu.matmul %827, %828, %cst_277 {dimension_numbers = #tpu.dot_dimension_numbers<[1], [0], [0], [1], [0, 0, 1, 1], [], []>} : vector<8x128xf32>, vector<128x1xf32>, vector<8x1xf32> -> vector<8x1xf32>
    %c0_278 = arith.constant 0 : index
    %c0_279 = arith.constant 0 : index
    %830 = vector.load %arg11[%c0_278, %c0_279] : memref<1x1xf32, #tpu.memory_space<vmem>>, vector<1x1xf32>
    %831 = vector.broadcast %830 : vector<1x1xf32> to vector<8x1xf32>
    %832 = arith.addf %829, %831 : vector<8x1xf32>
    %c0_280 = arith.constant 0 : index
    %c0_281 = arith.constant 0 : index
    %833 = vector.load %arg12[%c0_280, %c0_281] : memref<8x1xf32, #tpu.memory_space<vmem>>, vector<8x1xf32>
    tpu.vector_store %arg12[%c0_280, %c0_281], %832 {strides = array<i32>} : memref<8x1xf32, #tpu.memory_space<vmem>>, vector<8x1xf32>,
    return
  }
}

</mosaic_0001>

<llo_original>
// kernel: tpu_custom_call.1
$region0: #{tpu_custom_call.1}
  #allocation0 [shape = 'u32[]', space=smem, size = 0x4, offset = 0x4, fixed_abs, tag = 'smem constant byte address 0x4 - core index']
  #allocation1 [shape = 'u32[144,128]{1,0:T(1,128)}', space=vmem, size = 0x12000, scoped, tag = 'internal scratch']
  #allocation2 [shape = 'f32[72,512]{1,0:T(8,128)}', space=vmem, size = 0x24000, scoped, tag = 'scratch operand']
  #allocation3 [shape = 'f32[72,128]{1,0:T(8,128)}', space=vmem, size = 0x9000, scoped, tag = 'scratch operand']
  #allocation4 [shape = 'f32[1,1]{1,0:T(1,128)S(1)}', space=vmem, size = 0x200, scoped, tag = 'scoped memory for tpu_custom_call.1']
  %s0 = inlined_call_operand.vmem [shape: f32[72,128], index: 0, kind: input, shape index: {}]
  %s1 = inlined_call_operand.hbm [shape: f32[128,512], index: 1, kind: input, shape index: {}]
  %s2 = inlined_call_operand.hbm [shape: f32[128,512], index: 2, kind: input, shape index: {}]
  %s3 = inlined_call_operand.vmem [shape: f32[1,512], index: 3, kind: input, shape index: {}]
  %s4 = inlined_call_operand.hbm [shape: f32[128,512], index: 4, kind: input, shape index: {}]
  %s5 = inlined_call_operand.hbm [shape: f32[128,512], index: 5, kind: input, shape index: {}]
  %s6 = inlined_call_operand.vmem [shape: f32[1,512], index: 6, kind: input, shape index: {}]
  %s7 = inlined_call_operand.hbm [shape: f32[128,512], index: 7, kind: input, shape index: {}]
  %s8 = inlined_call_operand.hbm [shape: f32[128,512], index: 8, kind: input, shape index: {}]
  %s9 = inlined_call_operand.vmem [shape: f32[1,512], index: 9, kind: input, shape index: {}]
  %s10 = inlined_call_operand.vmem [shape: f32[128,1], index: 10, kind: input, shape index: {}]
  %s11 = inlined_call_operand.<no memory space> [shape: f32[1,1], index: 11, kind: input, shape index: {}]
  %s12 = inlined_call_operand.vmem [shape: f32[8,1], index: 12, kind: output, shape index: {}]
  %s13 = sld [smem:[#allocation0]]
  $region82: #{tpu_custom_call.1} parent=0
    _
  %s15 = ssub.s32 1, %s13
  %s16 = scalar_select 0, %s15, %s13
  %v17 = vstv %s11
  %18 = vst [vmem:[#allocation4] sm:$0x1] %v17
  $region1: #{tpu_custom_call.1} parent=0
    #allocation5 [shape = 'u8[262144]{0}', space=vmem, size = 0x40000, scoped, tag = 'input window, operand 1, single buffered']
    #allocation6 [shape = 's32[1]{0}', space=sflag, size = 0x4, scoped, tag = 'scoped memory for tpu_custom_call.1']
    #allocation7 [shape = 'u8[262144]{0}', space=vmem, size = 0x40000, scoped, tag = 'input window, operand 2, single buffered']
    #allocation8 [shape = 's32[1]{0}', space=sflag, size = 0x4, scoped, tag = 'scoped memory for tpu_custom_call.1']
    #allocation9 [shape = 'u8[262144]{0}', space=vmem, size = 0x40000, scoped, tag = 'input window, operand 4, single buffered']
    #allocation10 [shape = 'u8[262144]{0}', space=vmem, size = 0x40000, scoped, tag = 'input window, operand 5, single buffered']
    #allocation11 [shape = 's32[1]{0}', space=sflag, size = 0x4, scoped, tag = 'scoped memory for tpu_custom_call.1']
    #allocation12 [shape = 'u8[262144]{0}', space=vmem, size = 0x40000, scoped, tag = 'input window, operand 7, single buffered']
    #allocation13 [shape = 'u8[262144]{0}', space=vmem, size = 0x40000, scoped, tag = 'input window, operand 8, single buffered']
    #allocation14 [shape = 's32[1]{0}', space=sflag, size = 0x4, scoped, tag = 'scoped memory for tpu_custom_call.1']
    %19 = vsyncpa [#allocation6], 0
    %20 = vsyncpa [#allocation8], 0
    %21 = vsyncpa [#allocation11], 0
    %22 = vsyncpa [#allocation14], 0
    // Predicated region
    $region2: #{tpu_custom_call.1} parent=1 // pred_check
      _
    $region3: #{tpu_custom_call.1} parent=1 // pred_check_branch
      %24 = sbr.rel (0) target = $region5
    $region4: #{tpu_custom_call.1} parent=1 // pred_region
      _
    $region5: #{tpu_custom_call.1} parent=1 // pred_fallthru
      _
    // Predicated region
    $region6: #{tpu_custom_call.1} parent=1 // pred_check
      _
    $region7: #{tpu_custom_call.1} parent=1 // pred_check_branch
      %26 = sbr.rel (0) target = $region9
    $region8: #{tpu_custom_call.1} parent=1 // pred_region
      %s28 = ssub.s32 8192, 8192
      %29 = vsyncadd [#allocation6], %s28
      %s30 = sshll.u32 [#allocation5], 4
      %s31 = int_to_ptr.vmem [resolvable:$true] %s30
      %36 = dma.hbm_to_vmem [thread:$0]  %s1, 8192, %s31, [#allocation6], 512, 512, 32
    $region9: #{tpu_custom_call.1} parent=1 // pred_fallthru
      _
    // Predicated region
    $region10: #{tpu_custom_call.1} parent=1 // pred_check
      _
    $region11: #{tpu_custom_call.1} parent=1 // pred_check_branch
      %38 = sbr.rel (0) target = $region13
    $region12: #{tpu_custom_call.1} parent=1 // pred_region
      %s40 = ssub.s32 8192, 8192
      %41 = vsyncadd [#allocation8], %s40
      %s42 = sshll.u32 [#allocation7], 4
      %s43 = int_to_ptr.vmem [resolvable:$true] %s42
      %48 = dma.hbm_to_vmem [thread:$0]  %s2, 8192, %s43, [#allocation8], 512, 512, 32
    $region13: #{tpu_custom_call.1} parent=1 // pred_fallthru
      _
    // Predicated region
    $region14: #{tpu_custom_call.1} parent=1 // pred_check
      _
    $region15: #{tpu_custom_call.1} parent=1 // pred_check_branch
      %50 = sbr.rel (0) target = $region17
    $region16: #{tpu_custom_call.1} parent=1 // pred_region
      _
    $region17: #{tpu_custom_call.1} parent=1 // pred_fallthru
      _
    // Predicated region
    $region18: #{tpu_custom_call.1} parent=1 // pred_check
      _
    $region19: #{tpu_custom_call.1} parent=1 // pred_check_branch
      %52 = sbr.rel (0) target = $region21
    $region20: #{tpu_custom_call.1} parent=1 // pred_region
      %s54 = ssub.s32 8192, 8192
      %55 = vsyncadd [#allocation8], %s54
      %s56 = sshll.u32 [#allocation9], 4
      %s57 = int_to_ptr.vmem [resolvable:$true] %s56
      %62 = dma.hbm_to_vmem [thread:$0]  %s4, 8192, %s57, [#allocation8], 512, 512, 32
    $region21: #{tpu_custom_call.1} parent=1 // pred_fallthru
      _
    // Predicated region
    $region22: #{tpu_custom_call.1} parent=1 // pred_check
      _
    $region23: #{tpu_custom_call.1} parent=1 // pred_check_branch
      %64 = sbr.rel (0) target = $region25
    $region24: #{tpu_custom_call.1} parent=1 // pred_region
      %s66 = ssub.s32 8192, 8192
      %67 = vsyncadd [#allocation11], %s66
      %s68 = sshll.u32 [#allocation10], 4
      %s69 = int_to_ptr.vmem [resolvable:$true] %s68
      %74 = dma.hbm_to_vmem [thread:$0]  %s5, 8192, %s69, [#allocation11], 512, 512, 32
    $region25: #{tpu_custom_call.1} parent=1 // pred_fallthru
      _
    // Predicated region
    $region26: #{tpu_custom_call.1} parent=1 // pred_check
      _
    $region27: #{tpu_custom_call.1} parent=1 // pred_check_branch
      %76 = sbr.rel (0) target = $region29
    $region28: #{tpu_custom_call.1} parent=1 // pred_region
      _
    $region29: #{tpu_custom_call.1} parent=1 // pred_fallthru
      _
    // Predicated region
    $region30: #{tpu_custom_call.1} parent=1 // pred_check
      _
    $region31: #{tpu_custom_call.1} parent=1 // pred_check_branch
      %78 = sbr.rel (0) target = $region33
    $region32: #{tpu_custom_call.1} parent=1 // pred_region
      %s80 = ssub.s32 8192, 8192
      %81 = vsyncadd [#allocation11], %s80
      %s82 = sshll.u32 [#allocation12], 4
      %s83 = int_to_ptr.vmem [resolvable:$true] %s82
      %88 = dma.hbm_to_vmem [thread:$0]  %s7, 8192, %s83, [#allocation11], 512, 512, 32
    $region33: #{tpu_custom_call.1} parent=1 // pred_fallthru
      _
    // Predicated region
    $region34: #{tpu_custom_call.1} parent=1 // pred_check
      _
    $region35: #{tpu_custom_call.1} parent=1 // pred_check_branch
      %90 = sbr.rel (0) target = $region37
    $region36: #{tpu_custom_call.1} parent=1 // pred_region
      %s92 = ssub.s32 8192, 8192
      %93 = vsyncadd [#allocation14], %s92
      %s94 = sshll.u32 [#allocation13], 4
      %s95 = int_to_ptr.vmem [resolvable:$true] %s94
      %100 = dma.hbm_to_vmem [thread:$0]  %s8, 8192, %s95, [#allocation14], 512, 512, 32
    $region37: #{tpu_custom_call.1} parent=1 // pred_fallthru
      _
    // Predicated region
    $region38: #{tpu_custom_call.1} parent=1 // pred_check
      _
    $region39: #{tpu_custom_call.1} parent=1 // pred_check_branch
      %102 = sbr.rel (0) target = $region41
    $region40: #{tpu_custom_call.1} parent=1 // pred_region
      _
    $region41: #{tpu_custom_call.1} parent=1 // pred_fallthru
      _
    // Predicated region
    $region42: #{tpu_custom_call.1} parent=1 // pred_check
      _
    $region43: #{tpu_custom_call.1} parent=1 // pred_check_branch
      %104 = sbr.rel (0) target = $region45
    $region44: #{tpu_custom_call.1} parent=1 // pred_region
      _
    $region45: #{tpu_custom_call.1} parent=1 // pred_fallthru
      _
    // Predicated region
    $region46: #{tpu_custom_call.1} parent=1 // pred_check
      _
    $region47: #{tpu_custom_call.1} parent=1 // pred_check_branch
      %106 = sbr.rel (0) target = $region49
    $region48: #{tpu_custom_call.1} parent=1 // pred_region
      _
    $region49: #{tpu_custom_call.1} parent=1 // pred_fallthru
      _
    // Predicated region
    $region50: #{tpu_custom_call.1} parent=1 // pred_check
      _
    $region51: #{tpu_custom_call.1} parent=1 // pred_check_branch
      %108 = sbr.rel (0) target = $region53
    $region52: #{tpu_custom_call.1} parent=1 // pred_region
      %109 = dma.done [#allocation6], 8192
    $region53: #{tpu_custom_call.1} parent=1 // pred_fallthru
      _
    // Predicated region
    $region54: #{tpu_custom_call.1} parent=1 // pred_check
      _
    $region55: #{tpu_custom_call.1} parent=1 // pred_check_branch
      %111 = sbr.rel (0) target = $region57
    $region56: #{tpu_custom_call.1} parent=1 // pred_region
      %112 = dma.done [#allocation8], 8192
    $region57: #{tpu_custom_call.1} parent=1 // pred_fallthru
      _
    // Predicated region
    $region58: #{tpu_custom_call.1} parent=1 // pred_check
      _
    $region59: #{tpu_custom_call.1} parent=1 // pred_check_branch
      %114 = sbr.rel (0) target = $region61
    $region60: #{tpu_custom_call.1} parent=1 // pred_region
      %115 = dma.done [#allocation8], 8192
    $region61: #{tpu_custom_call.1} parent=1 // pred_fallthru
      _
    // Predicated region
    $region62: #{tpu_custom_call.1} parent=1 // pred_check
      _
    $region63: #{tpu_custom_call.1} parent=1 // pred_check_branch
      %117 = sbr.rel (0) target = $region65
    $region64: #{tpu_custom_call.1} parent=1 // pred_region
      %118 = dma.done [#allocation11], 8192
    $region65: #{tpu_custom_call.1} parent=1 // pred_fallthru
      _
    // Predicated region
    $region66: #{tpu_custom_call.1} parent=1 // pred_check
      _
    $region67: #{tpu_custom_call.1} parent=1 // pred_check_branch
      %120 = sbr.rel (0) target = $region69
    $region68: #{tpu_custom_call.1} parent=1 // pred_region
      %121 = dma.done [#allocation11], 8192
    $region69: #{tpu_custom_call.1} parent=1 // pred_fallthru
      _
    // Predicated region
    $region70: #{tpu_custom_call.1} parent=1 // pred_check
      _
    $region71: #{tpu_custom_call.1} parent=1 // pred_check_branch
      %123 = sbr.rel (0) target = $region73
    $region72: #{tpu_custom_call.1} parent=1 // pred_region
      %124 = dma.done [#allocation14], 8192
    $region73: #{tpu_custom_call.1} parent=1 // pred_fallthru
      _
    %v125 = vld [vmem:[%s0] sm:$0xff]
    %v126 = vld [vmem:[%s0 + $0x8] sm:$0xff]
    %v127 = vld [vmem:[%s0 + $0x10] sm:$0xff]
    %v128 = vld [vmem:[%s0 + $0x18] sm:$0xff]
    %v129 = vld [vmem:[%s0 + $0x20] sm:$0xff]
    %v130 = vld [vmem:[%s0 + $0x28] sm:$0xff]
    %v131 = vld [vmem:[%s0 + $0x30] sm:$0xff]
    %v132 = vld [vmem:[%s0 + $0x38] sm:$0xff]
    %v133 = vld [vmem:[%s0 + $0x40] sm:$0xff]
    %v134 = vld [vmem:[#allocation5] sm:$0xff]
    %v135 = vld [vmem:[#allocation5 + $0x8] sm:$0xff]
    %v136 = vld [vmem:[#allocation5 + $0x10] sm:$0xff]
    %v137 = vld [vmem:[#allocation5 + $0x18] sm:$0xff]
    %v138 = vld [vmem:[#allocation5 + $0x20] sm:$0xff]
    %v139 = vld [vmem:[#allocation5 + $0x28] sm:$0xff]
    %v140 = vld [vmem:[#allocation5 + $0x30] sm:$0xff]
    %v141 = vld [vmem:[#allocation5 + $0x38] sm:$0xff]
    %v142 = vld [vmem:[#allocation5 + $0x40] sm:$0xff]
    %v143 = vld [vmem:[#allocation5 + $0x48] sm:$0xff]
    %v144 = vld [vmem:[#allocation5 + $0x50] sm:$0xff]
    %v145 = vld [vmem:[#allocation5 + $0x58] sm:$0xff]
    %v146 = vld [vmem:[#allocation5 + $0x60] sm:$0xff]
    %v147 = vld [vmem:[#allocation5 + $0x68] sm:$0xff]
    %v148 = vld [vmem:[#allocation5 + $0x70] sm:$0xff]
    %v149 = vld [vmem:[#allocation5 + $0x78] sm:$0xff]
    %v150 = vld [vmem:[#allocation5 + $0x80] sm:$0xff]
    %v151 = vld [vmem:[#allocation5 + $0x88] sm:$0xff]
    %v152 = vld [vmem:[#allocation5 + $0x90] sm:$0xff]
    %v153 = vld [vmem:[#allocation5 + $0x98] sm:$0xff]
    %v154 = vld [vmem:[#allocation5 + $0xa0] sm:$0xff]
    %v155 = vld [vmem:[#allocation5 + $0xa8] sm:$0xff]
    %v156 = vld [vmem:[#allocation5 + $0xb0] sm:$0xff]
    %v157 = vld [vmem:[#allocation5 + $0xb8] sm:$0xff]
    %v158 = vld [vmem:[#allocation5 + $0xc0] sm:$0xff]
    %v159 = vld [vmem:[#allocation5 + $0xc8] sm:$0xff]
    %v160 = vld [vmem:[#allocation5 + $0xd0] sm:$0xff]
    %v161 = vld [vmem:[#allocation5 + $0xd8] sm:$0xff]
    %v162 = vld [vmem:[#allocation5 + $0xe0] sm:$0xff]
    %v163 = vld [vmem:[#allocation5 + $0xe8] sm:$0xff]
    %v164 = vld [vmem:[#allocation5 + $0xf0] sm:$0xff]
    %v165 = vld [vmem:[#allocation5 + $0xf8] sm:$0xff]
    %v166 = vld [vmem:[#allocation5 + $0x100] sm:$0xff]
    %v167 = vld [vmem:[#allocation5 + $0x108] sm:$0xff]
    %v168 = vld [vmem:[#allocation5 + $0x110] sm:$0xff]
    %v169 = vld [vmem:[#allocation5 + $0x118] sm:$0xff]
    %v170 = vld [vmem:[#allocation5 + $0x120] sm:$0xff]
    %v171 = vld [vmem:[#allocation5 + $0x128] sm:$0xff]
    %v172 = vld [vmem:[#allocation5 + $0x130] sm:$0xff]
    %v173 = vld [vmem:[#allocation5 + $0x138] sm:$0xff]
    %v174 = vld [vmem:[#allocation5 + $0x140] sm:$0xff]
    %v175 = vld [vmem:[#allocation5 + $0x148] sm:$0xff]
    %v176 = vld [vmem:[#allocation5 + $0x150] sm:$0xff]
    %v177 = vld [vmem:[#allocation5 + $0x158] sm:$0xff]
    %v178 = vld [vmem:[#allocation5 + $0x160] sm:$0xff]
    %v179 = vld [vmem:[#allocation5 + $0x168] sm:$0xff]
    %v180 = vld [vmem:[#allocation5 + $0x170] sm:$0xff]
    %v181 = vld [vmem:[#allocation5 + $0x178] sm:$0xff]
    %v182 = vld [vmem:[#allocation5 + $0x180] sm:$0xff]
    %v183 = vld [vmem:[#allocation5 + $0x188] sm:$0xff]
    %v184 = vld [vmem:[#allocation5 + $0x190] sm:$0xff]
    %v185 = vld [vmem:[#allocation5 + $0x198] sm:$0xff]
    %v186 = vld [vmem:[#allocation5 + $0x1a0] sm:$0xff]
    %v187 = vld [vmem:[#allocation5 + $0x1a8] sm:$0xff]
    %v188 = vld [vmem:[#allocation5 + $0x1b0] sm:$0xff]
    %v189 = vld [vmem:[#allocation5 + $0x1b8] sm:$0xff]
    %v190 = vld [vmem:[#allocation5 + $0x1c0] sm:$0xff]
    %v191 = vld [vmem:[#allocation5 + $0x1c8] sm:$0xff]
    %v192 = vld [vmem:[#allocation5 + $0x1d0] sm:$0xff]
    %v193 = vld [vmem:[#allocation5 + $0x1d8] sm:$0xff]
    %v194 = vld [vmem:[#allocation5 + $0x1e0] sm:$0xff]
    %v195 = vld [vmem:[#allocation5 + $0x1e8] sm:$0xff]
    %v196 = vld [vmem:[#allocation5 + $0x1f0] sm:$0xff]
    %v197 = vld [vmem:[#allocation5 + $0x1f8] sm:$0xff]
    %v198 = vld [vmem:[%s3] sm:$0xf]
    %v200 = vlaneseq
    %v201 = vshrl.u32 %v200, 7
    %v202 = vsub.s32 0, %v201
    %v203 = vrot.slane %v198, %v202
    %v204 = vlaneseq
    %v205 = vshrl.u32 %v204, 7
    %v206 = vsub.s32 1, %v205
    %v207 = vrot.slane %v198, %v206
    %v208 = vlaneseq
    %v209 = vshrl.u32 %v208, 7
    %v210 = vsub.s32 2, %v209
    %v211 = vrot.slane %v198, %v210
    %v212 = vlaneseq
    %v213 = vshrl.u32 %v212, 7
    %v214 = vsub.s32 3, %v213
    %v215 = vrot.slane %v198, %v214
    %220 = vmatprep.subr.mxu0 %v135
    %221 = vmatpush1.msra.mxu0 %v134
    %222 = vmatprep.subr.mxu0 %v139
    %223 = vmatpush1.msra.mxu0 %v138
    %224 = vmatprep.subr.mxu0 %v143
    %225 = vmatpush1.msra.mxu0 %v142
    %226 = vmatprep.subr.mxu0 %v147
    %227 = vmatpush1.msra.mxu0 %v146
    %228 = vmatprep.subr.mxu0 %v151
    %229 = vmatpush1.msra.mxu0 %v150
    %230 = vmatprep.subr.mxu0 %v155
    %231 = vmatpush1.msra.mxu0 %v154
    %232 = vmatprep.subr.mxu0 %v159
    %233 = vmatpush1.msra.mxu0 %v158
    %234 = vmatprep.subr.mxu0 %v163
    %235 = vmatpush1.msra.mxu0 %v162
    %236 = vmatprep.subr.mxu0 %v167
    %237 = vmatpush1.msra.mxu0 %v166
    %238 = vmatprep.subr.mxu0 %v171
    %239 = vmatpush1.msra.mxu0 %v170
    %240 = vmatprep.subr.mxu0 %v175
    %241 = vmatpush1.msra.mxu0 %v174
    %242 = vmatprep.subr.mxu0 %v179
    %243 = vmatpush1.msra.mxu0 %v178
    %244 = vmatprep.subr.mxu0 %v183
    %245 = vmatpush1.msra.mxu0 %v182
    %246 = vmatprep.subr.mxu0 %v187
    %247 = vmatpush1.msra.mxu0 %v186
    %248 = vmatprep.subr.mxu0 %v191
    %249 = vmatpush1.msra.mxu0 %v190
    %250 = vmatprep.subr.mxu0 %v195
    %251 = vmatpush1.msra.mxu0 %v194
    %252 = vmatprep.subr.mxu0 0.0
    %253 = vmatpush1.msra.mxu0 0.0
    %254 = vmatprep.subr.mxu0 0.0
    %255 = vmatpush1.msra.mxu0 0.0
    %256 = vmatprep.subr.mxu0 0.0
    %257 = vmatpush1.msra.mxu0 0.0
    %258 = vmatprep.subr.mxu0 0.0
    %259 = vmatpush1.msra.mxu0 0.0
    %260 = vmatprep.subr.mxu0 0.0
    %261 = vmatpush1.msra.mxu0 0.0
    %262 = vmatprep.subr.mxu0 0.0
    %263 = vmatpush1.msra.mxu0 0.0
    %264 = vmatprep.subr.mxu0 0.0
    %265 = vmatpush1.msra.mxu0 0.0
    %266 = vmatprep.subr.mxu0 0.0
    %267 = vmatpush1.msra.mxu0 0.0
    %268 = vmatprep.subr.mxu0 0.0
    %269 = vmatpush1.msra.mxu0 0.0
    %270 = vmatprep.subr.mxu0 0.0
    %271 = vmatpush1.msra.mxu0 0.0
    %272 = vmatprep.subr.mxu0 0.0
    %273 = vmatpush1.msra.mxu0 0.0
    %274 = vmatprep.subr.mxu0 0.0
    %275 = vmatpush1.msra.mxu0 0.0
    %276 = vmatprep.subr.mxu0 0.0
    %277 = vmatpush1.msra.mxu0 0.0
    %278 = vmatprep.subr.mxu0 0.0
    %279 = vmatpush1.msra.mxu0 0.0
    %280 = vmatprep.subr.mxu0 0.0
    %281 = vmatpush1.msra.mxu0 0.0
    %282 = vmatprep.subr.mxu0 0.0
    %283 = vmatpush1.msra.mxu0 0.0
    %284 = vmatprep.mubr.f32.mxu0 0.0
    %285 = vmatmul.mubr.f32.gmra.mrb[0].mxu0 %v125
    %v286 = vpop.f32.mrb[0].mxu0
    %v287 = vadd.f32 %v203, %v286
    %v288 = vpop.f32.mrb[0].mxu0
    %v289 = vadd.f32 %v207, %v288
    %290 = vmatprep.mubr.f32.mxu0 0.0
    %291 = vmatmul.mubr.f32.gmra.mrb[0].mxu0 %v126
    %v292 = vpop.f32.mrb[0].mxu0
    %v293 = vadd.f32 %v203, %v292
    %v294 = vpop.f32.mrb[0].mxu0
    %v295 = vadd.f32 %v207, %v294
    %296 = vmatprep.mubr.f32.mxu0 0.0
    %297 = vmatmul.mubr.f32.gmra.mrb[0].mxu0 %v127
    %v298 = vpop.f32.mrb[0].mxu0
    %v299 = vadd.f32 %v203, %v298
    %v300 = vpop.f32.mrb[0].mxu0
    %v301 = vadd.f32 %v207, %v300
    %302 = vmatprep.mubr.f32.mxu0 0.0
    %303 = vmatmul.mubr.f32.gmra.mrb[0].mxu0 %v128
    %v304 = vpop.f32.mrb[0].mxu0
    %v305 = vadd.f32 %v203, %v304
    %v306 = vpop.f32.mrb[0].mxu0
    %v307 = vadd.f32 %v207, %v306
    %308 = vmatprep.mubr.f32.mxu0 0.0
    %309 = vmatmul.mubr.f32.gmra.mrb[0].mxu0 %v129
    %v310 = vpop.f32.mrb[0].mxu0
    %v311 = vadd.f32 %v203, %v310
    %v312 = vpop.f32.mrb[0].mxu0
    %v313 = vadd.f32 %v207, %v312
    %314 = vmatprep.mubr.f32.mxu0 0.0
    %315 = vmatmul.mubr.f32.gmra.mrb[0].mxu0 %v130
    %v316 = vpop.f32.mrb[0].mxu0
    %v317 = vadd.f32 %v203, %v316
    %v318 = vpop.f32.mrb[0].mxu0
    %v319 = vadd.f32 %v207, %v318
    %320 = vmatprep.mubr.f32.mxu0 0.0
    %321 = vmatmul.mubr.f32.gmra.mrb[0].mxu0 %v131
    %v322 = vpop.f32.mrb[0].mxu0
    %v323 = vadd.f32 %v203, %v322
    %v324 = vpop.f32.mrb[0].mxu0
    %v325 = vadd.f32 %v207, %v324
    %326 = vmatprep.mubr.f32.mxu0 0.0
    %327 = vmatmul.mubr.f32.gmra.mrb[0].mxu0 %v132
    %v328 = vpop.f32.mrb[0].mxu0
    %v329 = vadd.f32 %v203, %v328
    %v330 = vpop.f32.mrb[0].mxu0
    %v331 = vadd.f32 %v207, %v330
    %332 = vmatprep.mubr.f32.mxu0 0.0
    %333 = vmatmul.mubr.f32.gmra.mrb[0].mxu0 %v133
    %v334 = vpop.f32.mrb[0].mxu0
    %v335 = vadd.f32 %v203, %v334
    %v336 = vpop.f32.mrb[0].mxu0
    %v337 = vadd.f32 %v207, %v336
    %338 = vdwg.mxu0
    %339 = vmatprep.subr.mxu0 %v137
    %340 = vmatpush1.msra.mxu0 %v136
    %341 = vmatprep.subr.mxu0 %v141
    %342 = vmatpush1.msra.mxu0 %v140
    %343 = vmatprep.subr.mxu0 %v145
    %344 = vmatpush1.msra.mxu0 %v144
    %345 = vmatprep.subr.mxu0 %v149
    %346 = vmatpush1.msra.mxu0 %v148
    %347 = vmatprep.subr.mxu0 %v153
    %348 = vmatpush1.msra.mxu0 %v152
    %349 = vmatprep.subr.mxu0 %v157
    %350 = vmatpush1.msra.mxu0 %v156
    %351 = vmatprep.subr.mxu0 %v161
    %352 = vmatpush1.msra.mxu0 %v160
    %353 = vmatprep.subr.mxu0 %v165
    %354 = vmatpush1.msra.mxu0 %v164
    %355 = vmatprep.subr.mxu0 %v169
    %356 = vmatpush1.msra.mxu0 %v168
    %357 = vmatprep.subr.mxu0 %v173
    %358 = vmatpush1.msra.mxu0 %v172
    %359 = vmatprep.subr.mxu0 %v177
    %360 = vmatpush1.msra.mxu0 %v176
    %361 = vmatprep.subr.mxu0 %v181
    %362 = vmatpush1.msra.mxu0 %v180
    %363 = vmatprep.subr.mxu0 %v185
    %364 = vmatpush1.msra.mxu0 %v184
    %365 = vmatprep.subr.mxu0 %v189
    %366 = vmatpush1.msra.mxu0 %v188
    %367 = vmatprep.subr.mxu0 %v193
    %368 = vmatpush1.msra.mxu0 %v192
    %369 = vmatprep.subr.mxu0 %v197
    %370 = vmatpush1.msra.mxu0 %v196
    %371 = vmatprep.subr.mxu0 0.0
    %372 = vmatpush1.msra.mxu0 0.0
    %373 = vmatprep.subr.mxu0 0.0
    %374 = vmatpush1.msra.mxu0 0.0
    %375 = vmatprep.subr.mxu0 0.0
    %376 = vmatpush1.msra.mxu0 0.0
    %377 = vmatprep.subr.mxu0 0.0
    %378 = vmatpush1.msra.mxu0 0.0
    %379 = vmatprep.subr.mxu0 0.0
    %380 = vmatpush1.msra.mxu0 0.0
    %381 = vmatprep.subr.mxu0 0.0
    %382 = vmatpush1.msra.mxu0 0.0
    %383 = vmatprep.subr.mxu0 0.0
    %384 = vmatpush1.msra.mxu0 0.0
    %385 = vmatprep.subr.mxu0 0.0
    %386 = vmatpush1.msra.mxu0 0.0
    %387 = vmatprep.subr.mxu0 0.0
    %388 = vmatpush1.msra.mxu0 0.0
    %389 = vmatprep.subr.mxu0 0.0
    %390 = vmatpush1.msra.mxu0 0.0
    %391 = vmatprep.subr.mxu0 0.0
    %392 = vmatpush1.msra.mxu0 0.0
    %393 = vmatprep.subr.mxu0 0.0
    %394 = vmatpush1.msra.mxu0 0.0
    %395 = vmatprep.subr.mxu0 0.0
    %396 = vmatpush1.msra.mxu0 0.0
    %397 = vmatprep.subr.mxu0 0.0
    %398 = vmatpush1.msra.mxu0 0.0
    %399 = vmatprep.subr.mxu0 0.0
    %400 = vmatpush1.msra.mxu0 0.0
    %401 = vmatprep.subr.mxu0 0.0
    %402 = vmatpush1.msra.mxu0 0.0
    %403 = vmatprep.mubr.f32.mxu0 0.0
    %404 = vmatmul.mubr.f32.gmra.mrb[0].mxu0 %v125
    %v405 = vpop.f32.mrb[0].mxu0
    %v406 = vadd.f32 %v211, %v405
    %v407 = vpop.f32.mrb[0].mxu0
    %v408 = vadd.f32 %v215, %v407
    %409 = vmatprep.mubr.f32.mxu0 0.0
    %410 = vmatmul.mubr.f32.gmra.mrb[0].mxu0 %v126
    %v411 = vpop.f32.mrb[0].mxu0
    %v412 = vadd.f32 %v211, %v411
    %v413 = vpop.f32.mrb[0].mxu0
    %v414 = vadd.f32 %v215, %v413
    %415 = vmatprep.mubr.f32.mxu0 0.0
    %416 = vmatmul.mubr.f32.gmra.mrb[0].mxu0 %v127
    %v417 = vpop.f32.mrb[0].mxu0
    %v418 = vadd.f32 %v211, %v417
    %v419 = vpop.f32.mrb[0].mxu0
    %v420 = vadd.f32 %v215, %v419
    %421 = vmatprep.mubr.f32.mxu0 0.0
    %422 = vmatmul.mubr.f32.gmra.mrb[0].mxu0 %v128
    %v423 = vpop.f32.mrb[0].mxu0
    %v424 = vadd.f32 %v211, %v423
    %v425 = vpop.f32.mrb[0].mxu0
    %v426 = vadd.f32 %v215, %v425
    %427 = vmatprep.mubr.f32.mxu0 0.0
    %428 = vmatmul.mubr.f32.gmra.mrb[0].mxu0 %v129
    %v429 = vpop.f32.mrb[0].mxu0
    %v430 = vadd.f32 %v211, %v429
    %v431 = vpop.f32.mrb[0].mxu0
    %v432 = vadd.f32 %v215, %v431
    %433 = vmatprep.mubr.f32.mxu0 0.0
    %434 = vmatmul.mubr.f32.gmra.mrb[0].mxu0 %v130
    %v435 = vpop.f32.mrb[0].mxu0
    %v436 = vadd.f32 %v211, %v435
    %v437 = vpop.f32.mrb[0].mxu0
    %v438 = vadd.f32 %v215, %v437
    %439 = vmatprep.mubr.f32.mxu0 0.0
    %440 = vmatmul.mubr.f32.gmra.mrb[0].mxu0 %v131
    %v441 = vpop.f32.mrb[0].mxu0
    %v442 = vadd.f32 %v211, %v441
    %v443 = vpop.f32.mrb[0].mxu0
    %v444 = vadd.f32 %v215, %v443
    %445 = vmatprep.mubr.f32.mxu0 0.0
    %446 = vmatmul.mubr.f32.gmra.mrb[0].mxu0 %v132
    %v447 = vpop.f32.mrb[0].mxu0
    %v448 = vadd.f32 %v211, %v447
    %v449 = vpop.f32.mrb[0].mxu0
    %v450 = vadd.f32 %v215, %v449
    %451 = vmatprep.mubr.f32.mxu0 0.0
    %452 = vmatmul.mubr.f32.gmra.mrb[0].mxu0 %v133
    %v453 = vpop.f32.mrb[0].mxu0
    %v454 = vadd.f32 %v211, %v453
    %v455 = vpop.f32.mrb[0].mxu0
    %v456 = vadd.f32 %v215, %v455
    %457 = vdwg.mxu0
    %458 = vst [vmem:[#allocation2] sm:$0xff] %v287
    %459 = vst [vmem:[#allocation2 + $0x8] sm:$0xff] %v289
    %460 = vst [vmem:[#allocation2 + $0x10] sm:$0xff] %v406
    %461 = vst [vmem:[#allocation2 + $0x18] sm:$0xff] %v408
    %462 = vst [vmem:[#allocation2 + $0x20] sm:$0xff] %v293
    %463 = vst [vmem:[#allocation2 + $0x28] sm:$0xff] %v295
    %464 = vst [vmem:[#allocation2 + $0x30] sm:$0xff] %v412
    %465 = vst [vmem:[#allocation2 + $0x38] sm:$0xff] %v414
    %466 = vst [vmem:[#allocation2 + $0x40] sm:$0xff] %v299
    %467 = vst [vmem:[#allocation2 + $0x48] sm:$0xff] %v301
    %468 = vst [vmem:[#allocation2 + $0x50] sm:$0xff] %v418
    %469 = vst [vmem:[#allocation2 + $0x58] sm:$0xff] %v420
    %470 = vst [vmem:[#allocation2 + $0x60] sm:$0xff] %v305
    %471 = vst [vmem:[#allocation2 + $0x68] sm:$0xff] %v307
    %472 = vst [vmem:[#allocation2 + $0x70] sm:$0xff] %v424
    %473 = vst [vmem:[#allocation2 + $0x78] sm:$0xff] %v426
    %474 = vst [vmem:[#allocation2 + $0x80] sm:$0xff] %v311
    %475 = vst [vmem:[#allocation2 + $0x88] sm:$0xff] %v313
    %476 = vst [vmem:[#allocation2 + $0x90] sm:$0xff] %v430
    %477 = vst [vmem:[#allocation2 + $0x98] sm:$0xff] %v432
    %478 = vst [vmem:[#allocation2 + $0xa0] sm:$0xff] %v317
    %479 = vst [vmem:[#allocation2 + $0xa8] sm:$0xff] %v319
    %480 = vst [vmem:[#allocation2 + $0xb0] sm:$0xff] %v436
    %481 = vst [vmem:[#allocation2 + $0xb8] sm:$0xff] %v438
    %482 = vst [vmem:[#allocation2 + $0xc0] sm:$0xff] %v323
    %483 = vst [vmem:[#allocation2 + $0xc8] sm:$0xff] %v325
    %484 = vst [vmem:[#allocation2 + $0xd0] sm:$0xff] %v442
    %485 = vst [vmem:[#allocation2 + $0xd8] sm:$0xff] %v444
    %486 = vst [vmem:[#allocation2 + $0xe0] sm:$0xff] %v329
    %487 = vst [vmem:[#allocation2 + $0xe8] sm:$0xff] %v331
    %488 = vst [vmem:[#allocation2 + $0xf0] sm:$0xff] %v448
    %489 = vst [vmem:[#allocation2 + $0xf8] sm:$0xff] %v450
    %490 = vst [vmem:[#allocation2 + $0x100] sm:$0xff] %v335
    %491 = vst [vmem:[#allocation2 + $0x108] sm:$0xff] %v337
    %492 = vst [vmem:[#allocation2 + $0x110] sm:$0xff] %v454
    %493 = vst [vmem:[#allocation2 + $0x118] sm:$0xff] %v456
    %v494 = vld [vmem:[#allocation2] sm:$0xff]
    %v495 = vld [vmem:[#allocation2 + $0x8] sm:$0xff]
    %v496 = vld [vmem:[#allocation2 + $0x10] sm:$0xff]
    %v497 = vld [vmem:[#allocation2 + $0x18] sm:$0xff]
    %v498 = vld [vmem:[#allocation7] sm:$0xff]
    %v499 = vld [vmem:[#allocation7 + $0x8] sm:$0xff]
    %v500 = vld [vmem:[#allocation7 + $0x10] sm:$0xff]
    %v501 = vld [vmem:[#allocation7 + $0x18] sm:$0xff]
    %v502 = vld [vmem:[#allocation7 + $0x20] sm:$0xff]
    %v503 = vld [vmem:[#allocation7 + $0x28] sm:$0xff]
    %v504 = vld [vmem:[#allocation7 + $0x30] sm:$0xff]
    %v505 = vld [vmem:[#allocation7 + $0x38] sm:$0xff]
    %v506 = vld [vmem:[#allocation7 + $0x40] sm:$0xff]
    %v507 = vld [vmem:[#allocation7 + $0x48] sm:$0xff]
    %v508 = vld [vmem:[#allocation7 + $0x50] sm:$0xff]
    %v509 = vld [vmem:[#allocation7 + $0x58] sm:$0xff]
    %v510 = vld [vmem:[#allocation7 + $0x60] sm:$0xff]
    %v511 = vld [vmem:[#allocation7 + $0x68] sm:$0xff]
    %v512 = vld [vmem:[#allocation7 + $0x70] sm:$0xff]
    %v513 = vld [vmem:[#allocation7 + $0x78] sm:$0xff]
    %v514 = vld [vmem:[#allocation7 + $0x80] sm:$0xff]
    %v515 = vld [vmem:[#allocation7 + $0x88] sm:$0xff]
    %v516 = vld [vmem:[#allocation7 + $0x90] sm:$0xff]
    %v517 = vld [vmem:[#allocation7 + $0x98] sm:$0xff]
    %v518 = vld [vmem:[#allocation7 + $0xa0] sm:$0xff]
    %v519 = vld [vmem:[#allocation7 + $0xa8] sm:$0xff]
    %v520 = vld [vmem:[#allocation7 + $0xb0] sm:$0xff]
    %v521 = vld [vmem:[#allocation7 + $0xb8] sm:$0xff]
    %v522 = vld [vmem:[#allocation7 + $0xc0] sm:$0xff]
    %v523 = vld [vmem:[#allocation7 + $0xc8] sm:$0xff]
    %v524 = vld [vmem:[#allocation7 + $0xd0] sm:$0xff]
    %v525 = vld [vmem:[#allocation7 + $0xd8] sm:$0xff]
    %v526 = vld [vmem:[#allocation7 + $0xe0] sm:$0xff]
    %v527 = vld [vmem:[#allocation7 + $0xe8] sm:$0xff]
    %v528 = vld [vmem:[#allocation7 + $0xf0] sm:$0xff]
    %v529 = vld [vmem:[#allocation7 + $0xf8] sm:$0xff]
    %v530 = vld [vmem:[#allocation7 + $0x100] sm:$0xff]
    %v531 = vld [vmem:[#allocation7 + $0x108] sm:$0xff]
    %v532 = vld [vmem:[#allocation7 + $0x110] sm:$0xff]
    %v533 = vld [vmem:[#allocation7 + $0x118] sm:$0xff]
    %v534 = vld [vmem:[#allocation7 + $0x120] sm:$0xff]
    %v535 = vld [vmem:[#allocation7 + $0x128] sm:$0xff]
    %v536 = vld [vmem:[#allocation7 + $0x130] sm:$0xff]
    %v537 = vld [vmem:[#allocation7 + $0x138] sm:$0xff]
    %v538 = vld [vmem:[#allocation7 + $0x140] sm:$0xff]
    %v539 = vld [vmem:[#allocation7 + $0x148] sm:$0xff]
    %v540 = vld [vmem:[#allocation7 + $0x150] sm:$0xff]
    %v541 = vld [vmem:[#allocation7 + $0x158] sm:$0xff]
    %v542 = vld [vmem:[#allocation7 + $0x160] sm:$0xff]
    %v543 = vld [vmem:[#allocation7 + $0x168] sm:$0xff]
    %v544 = vld [vmem:[#allocation7 + $0x170] sm:$0xff]
    %v545 = vld [vmem:[#allocation7 + $0x178] sm:$0xff]
    %v546 = vld [vmem:[#allocation7 + $0x180] sm:$0xff]
    %v547 = vld [vmem:[#allocation7 + $0x188] sm:$0xff]
    %v548 = vld [vmem:[#allocation7 + $0x190] sm:$0xff]
    %v549 = vld [vmem:[#allocation7 + $0x198] sm:$0xff]
    %v550 = vld [vmem:[#allocation7 + $0x1a0] sm:$0xff]
    %v551 = vld [vmem:[#allocation7 + $0x1a8] sm:$0xff]
    %v552 = vld [vmem:[#allocation7 + $0x1b0] sm:$0xff]
    %v553 = vld [vmem:[#allocation7 + $0x1b8] sm:$0xff]
    %v554 = vld [vmem:[#allocation7 + $0x1c0] sm:$0xff]
    %v555 = vld [vmem:[#allocation7 + $0x1c8] sm:$0xff]
    %v556 = vld [vmem:[#allocation7 + $0x1d0] sm:$0xff]
    %v557 = vld [vmem:[#allocation7 + $0x1d8] sm:$0xff]
    %v558 = vld [vmem:[#allocation7 + $0x1e0] sm:$0xff]
    %v559 = vld [vmem:[#allocation7 + $0x1e8] sm:$0xff]
    %v560 = vld [vmem:[#allocation7 + $0x1f0] sm:$0xff]
    %v561 = vld [vmem:[#allocation7 + $0x1f8] sm:$0xff]
    %562 = vmatprep.subr.mxu0 %v499
    %563 = vmatpush1.msra.mxu0 %v498
    %564 = vmatprep.subr.mxu0 %v503
    %565 = vmatpush1.msra.mxu0 %v502
    %566 = vmatprep.subr.mxu0 %v507
    %567 = vmatpush1.msra.mxu0 %v506
    %568 = vmatprep.subr.mxu0 %v511
    %569 = vmatpush1.msra.mxu0 %v510
    %570 = vmatprep.subr.mxu0 %v515
    %571 = vmatpush1.msra.mxu0 %v514
    %572 = vmatprep.subr.mxu0 %v519
    %573 = vmatpush1.msra.mxu0 %v518
    %574 = vmatprep.subr.mxu0 %v523
    %575 = vmatpush1.msra.mxu0 %v522
    %576 = vmatprep.subr.mxu0 %v527
    %577 = vmatpush1.msra.mxu0 %v526
    %578 = vmatprep.subr.mxu0 %v531
    %579 = vmatpush1.msra.mxu0 %v530
    %580 = vmatprep.subr.mxu0 %v535
    %581 = vmatpush1.msra.mxu0 %v534
    %582 = vmatprep.subr.mxu0 %v539
    %583 = vmatpush1.msra.mxu0 %v538
    %584 = vmatprep.subr.mxu0 %v543
    %585 = vmatpush1.msra.mxu0 %v542
    %586 = vmatprep.subr.mxu0 %v547
    %587 = vmatpush1.msra.mxu0 %v546
    %588 = vmatprep.subr.mxu0 %v551
    %589 = vmatpush1.msra.mxu0 %v550
    %590 = vmatprep.subr.mxu0 %v555
    %591 = vmatpush1.msra.mxu0 %v554
    %592 = vmatprep.subr.mxu0 %v559
    %593 = vmatpush1.msra.mxu0 %v558
    %594 = vmatprep.subr.mxu0 0.0
    %595 = vmatpush1.msra.mxu0 0.0
    %596 = vmatprep.subr.mxu0 0.0
    %597 = vmatpush1.msra.mxu0 0.0
    %598 = vmatprep.subr.mxu0 0.0
    %599 = vmatpush1.msra.mxu0 0.0
    %600 = vmatprep.subr.mxu0 0.0
    %601 = vmatpush1.msra.mxu0 0.0
    %602 = vmatprep.subr.mxu0 0.0
    %603 = vmatpush1.msra.mxu0 0.0
    %604 = vmatprep.subr.mxu0 0.0
    %605 = vmatpush1.msra.mxu0 0.0
    %606 = vmatprep.subr.mxu0 0.0
    %607 = vmatpush1.msra.mxu0 0.0
    %608 = vmatprep.subr.mxu0 0.0
    %609 = vmatpush1.msra.mxu0 0.0
    %610 = vmatprep.subr.mxu0 0.0
    %611 = vmatpush1.msra.mxu0 0.0
    %612 = vmatprep.subr.mxu0 0.0
    %613 = vmatpush1.msra.mxu0 0.0
    %614 = vmatprep.subr.mxu0 0.0
    %615 = vmatpush1.msra.mxu0 0.0
    %616 = vmatprep.subr.mxu0 0.0
    %617 = vmatpush1.msra.mxu0 0.0
    %618 = vmatprep.subr.mxu0 0.0
    %619 = vmatpush1.msra.mxu0 0.0
    %620 = vmatprep.subr.mxu0 0.0
    %621 = vmatpush1.msra.mxu0 0.0
    %622 = vmatprep.subr.mxu0 0.0
    %623 = vmatpush1.msra.mxu0 0.0
    %624 = vmatprep.subr.mxu0 0.0
    %625 = vmatpush1.msra.mxu0 0.0
    %626 = vmatprep.mubr.f32.mxu0 0.0
    %627 = vmatmul.mubr.f32.gmra.mrb[0].mxu0 0.0
    %v628 = vpop.f32.mrb[0].mxu0
    %v629 = vadd.f32 0.0, %v628
    %v630 = vpop.f32.mrb[0].mxu0
    %v631 = vadd.f32 0.0, %v630
    %632 = vdwg.mxu0
    %633 = vmatprep.subr.mxu0 %v501
    %634 = vmatpush1.msra.mxu0 %v500
    %635 = vmatprep.subr.mxu0 %v505
    %636 = vmatpush1.msra.mxu0 %v504
    %637 = vmatprep.subr.mxu0 %v509
    %638 = vmatpush1.msra.mxu0 %v508
    %639 = vmatprep.subr.mxu0 %v513
    %640 = vmatpush1.msra.mxu0 %v512
    %641 = vmatprep.subr.mxu0 %v517
    %642 = vmatpush1.msra.mxu0 %v516
    %643 = vmatprep.subr.mxu0 %v521
    %644 = vmatpush1.msra.mxu0 %v520
    %645 = vmatprep.subr.mxu0 %v525
    %646 = vmatpush1.msra.mxu0 %v524
    %647 = vmatprep.subr.mxu0 %v529
    %648 = vmatpush1.msra.mxu0 %v528
    %649 = vmatprep.subr.mxu0 %v533
    %650 = vmatpush1.msra.mxu0 %v532
    %651 = vmatprep.subr.mxu0 %v537
    %652 = vmatpush1.msra.mxu0 %v536
    %653 = vmatprep.subr.mxu0 %v541
    %654 = vmatpush1.msra.mxu0 %v540
    %655 = vmatprep.subr.mxu0 %v545
    %656 = vmatpush1.msra.mxu0 %v544
    %657 = vmatprep.subr.mxu0 %v549
    %658 = vmatpush1.msra.mxu0 %v548
    %659 = vmatprep.subr.mxu0 %v553
    %660 = vmatpush1.msra.mxu0 %v552
    %661 = vmatprep.subr.mxu0 %v557
    %662 = vmatpush1.msra.mxu0 %v556
    %663 = vmatprep.subr.mxu0 %v561
    %664 = vmatpush1.msra.mxu0 %v560
    %665 = vmatprep.subr.mxu0 0.0
    %666 = vmatpush1.msra.mxu0 0.0
    %667 = vmatprep.subr.mxu0 0.0
    %668 = vmatpush1.msra.mxu0 0.0
    %669 = vmatprep.subr.mxu0 0.0
    %670 = vmatpush1.msra.mxu0 0.0
    %671 = vmatprep.subr.mxu0 0.0
    %672 = vmatpush1.msra.mxu0 0.0
    %673 = vmatprep.subr.mxu0 0.0
    %674 = vmatpush1.msra.mxu0 0.0
    %675 = vmatprep.subr.mxu0 0.0
    %676 = vmatpush1.msra.mxu0 0.0
    %677 = vmatprep.subr.mxu0 0.0
    %678 = vmatpush1.msra.mxu0 0.0
    %679 = vmatprep.subr.mxu0 0.0
    %680 = vmatpush1.msra.mxu0 0.0
    %681 = vmatprep.subr.mxu0 0.0
    %682 = vmatpush1.msra.mxu0 0.0
    %683 = vmatprep.subr.mxu0 0.0
    %684 = vmatpush1.msra.mxu0 0.0
    %685 = vmatprep.subr.mxu0 0.0
    %686 = vmatpush1.msra.mxu0 0.0
    %687 = vmatprep.subr.mxu0 0.0
    %688 = vmatpush1.msra.mxu0 0.0
    %689 = vmatprep.subr.mxu0 0.0
    %690 = vmatpush1.msra.mxu0 0.0
    %691 = vmatprep.subr.mxu0 0.0
    %692 = vmatpush1.msra.mxu0 0.0
    %693 = vmatprep.subr.mxu0 0.0
    %694 = vmatpush1.msra.mxu0 0.0
    %695 = vmatprep.subr.mxu0 0.0
    %696 = vmatpush1.msra.mxu0 0.0
    %697 = vmatprep.mubr.f32.mxu0 0.0
    %698 = vmatmul.mubr.f32.gmra.mrb[0].mxu0 0.0
    %v699 = vpop.f32.mrb[0].mxu0
    %v700 = vadd.f32 0.0, %v699
    %v701 = vpop.f32.mrb[0].mxu0
    %v702 = vadd.f32 0.0, %v701
    %703 = vdwg.mxu0
    %v704 = vadd.f32 %v494, %v629
    %v705 = vadd.f32 %v495, %v631
    %v706 = vadd.f32 %v496, %v700
    %v707 = vadd.f32 %v497, %v702
    %v708 = vxor.u32 %v704, 2147483648
    %v709 = vmul.f32 %v708, 1.442695
    %v710 = vpow.pop %v709
    %v711 = vadd.f32 %v710, 1.0
    %v712 = vrcp.pop %v711
    %v713 = vmul.f32 1.0, %v712
    %v714 = vxor.u32 %v705, 2147483648
    %v715 = vmul.f32 %v714, 1.442695
    %v716 = vpow.pop %v715
    %v717 = vadd.f32 %v716, 1.0
    %v718 = vrcp.pop %v717
    %v719 = vmul.f32 1.0, %v718
    %v720 = vtanh.pop %v706
    %v721 = vxor.u32 %v707, 2147483648
    %v722 = vmul.f32 %v721, 1.442695
    %v723 = vpow.pop %v722
    %v724 = vadd.f32 %v723, 1.0
    %v725 = vrcp.pop %v724
    %v726 = vmul.f32 1.0, %v725
    %v727 = vmul.f32 %v719, 0.0
    %v728 = vmul.f32 %v713, %v720
    %v729 = vadd.f32 %v727, %v728
    %v730 = vtanh.pop %v729
    %v731 = vmul.f32 %v726, %v730
    %732 = vst [vmem:[#allocation3] sm:$0xff] %v731
    %v733 = vld [vmem:[#allocation2 + $0x20] sm:$0xff]
    %v734 = vld [vmem:[#allocation2 + $0x28] sm:$0xff]
    %v735 = vld [vmem:[#allocation2 + $0x30] sm:$0xff]
    %v736 = vld [vmem:[#allocation2 + $0x38] sm:$0xff]
    %v737 = vld [vmem:[#allocation7] sm:$0xff]
    %v738 = vld [vmem:[#allocation7 + $0x8] sm:$0xff]
    %v739 = vld [vmem:[#allocation7 + $0x10] sm:$0xff]
    %v740 = vld [vmem:[#allocation7 + $0x18] sm:$0xff]
    %v741 = vld [vmem:[#allocation7 + $0x20] sm:$0xff]
    %v742 = vld [vmem:[#allocation7 + $0x28] sm:$0xff]
    %v743 = vld [vmem:[#allocation7 + $0x30] sm:$0xff]
    %v744 = vld [vmem:[#allocation7 + $0x38] sm:$0xff]
    %v745 = vld [vmem:[#allocation7 + $0x40] sm:$0xff]
    %v746 = vld [vmem:[#allocation7 + $0x48] sm:$0xff]
    %v747 = vld [vmem:[#allocation7 + $0x50] sm:$0xff]
    %v748 = vld [vmem:[#allocation7 + $0x58] sm:$0xff]
    %v749 = vld [vmem:[#allocation7 + $0x60] sm:$0xff]
    %v750 = vld [vmem:[#allocation7 + $0x68] sm:$0xff]
    %v751 = vld [vmem:[#allocation7 + $0x70] sm:$0xff]
    %v752 = vld [vmem:[#allocation7 + $0x78] sm:$0xff]
    %v753 = vld [vmem:[#allocation7 + $0x80] sm:$0xff]
    %v754 = vld [vmem:[#allocation7 + $0x88] sm:$0xff]
    %v755 = vld [vmem:[#allocation7 + $0x90] sm:$0xff]
    %v756 = vld [vmem:[#allocation7 + $0x98] sm:$0xff]
    %v757 = vld [vmem:[#allocation7 + $0xa0] sm:$0xff]
    %v758 = vld [vmem:[#allocation7 + $0xa8] sm:$0xff]
    %v759 = vld [vmem:[#allocation7 + $0xb0] sm:$0xff]
    %v760 = vld [vmem:[#allocation7 + $0xb8] sm:$0xff]
    %v761 = vld [vmem:[#allocation7 + $0xc0] sm:$0xff]
    %v762 = vld [vmem:[#allocation7 + $0xc8] sm:$0xff]
    %v763 = vld [vmem:[#allocation7 + $0xd0] sm:$0xff]
    %v764 = vld [vmem:[#allocation7 + $0xd8] sm:$0xff]
    %v765 = vld [vmem:[#allocation7 + $0xe0] sm:$0xff]
    %v766 = vld [vmem:[#allocation7 + $0xe8] sm:$0xff]
    %v767 = vld [vmem:[#allocation7 + $0xf0] sm:$0xff]
    %v768 = vld [vmem:[#allocation7 + $0xf8] sm:$0xff]
    %v769 = vld [vmem:[#allocation7 + $0x100] sm:$0xff]
    %v770 = vld [vmem:[#allocation7 + $0x108] sm:$0xff]
    %v771 = vld [vmem:[#allocation7 + $0x110] sm:$0xff]
    %v772 = vld [vmem:[#allocation7 + $0x118] sm:$0xff]
    %v773 = vld [vmem:[#allocation7 + $0x120] sm:$0xff]
    %v774 = vld [vmem:[#allocation7 + $0x128] sm:$0xff]
    %v775 = vld [vmem:[#allocation7 + $0x130] sm:$0xff]
    %v776 = vld [vmem:[#allocation7 + $0x138] sm:$0xff]
    %v777 = vld [vmem:[#allocation7 + $0x140] sm:$0xff]
    %v778 = vld [vmem:[#allocation7 + $0x148] sm:$0xff]
    %v779 = vld [vmem:[#allocation7 + $0x150] sm:$0xff]
    %v780 = vld [vmem:[#allocation7 + $0x158] sm:$0xff]
    %v781 = vld [vmem:[#allocation7 + $0x160] sm:$0xff]
    %v782 = vld [vmem:[#allocation7 + $0x168] sm:$0xff]
    %v783 = vld [vmem:[#allocation7 + $0x170] sm:$0xff]
    %v784 = vld [vmem:[#allocation7 + $0x178] sm:$0xff]
    %v785 = vld [vmem:[#allocation7 + $0x180] sm:$0xff]
    %v786 = vld [vmem:[#allocation7 + $0x188] sm:$0xff]
    %v787 = vld [vmem:[#allocation7 + $0x190] sm:$0xff]
    %v788 = vld [vmem:[#allocation7 + $0x198] sm:$0xff]
    %v789 = vld [vmem:[#allocation7 + $0x1a0] sm:$0xff]
    %v790 = vld [vmem:[#allocation7 + $0x1a8] sm:$0xff]
    %v791 = vld [vmem:[#allocation7 + $0x1b0] sm:$0xff]
    %v792 = vld [vmem:[#allocation7 + $0x1b8] sm:$0xff]
    %v793 = vld [vmem:[#allocation7 + $0x1c0] sm:$0xff]
    %v794 = vld [vmem:[#allocation7 + $0x1c8] sm:$0xff]
    %v795 = vld [vmem:[#allocation7 + $0x1d0] sm:$0xff]
    %v796 = vld [vmem:[#allocation7 + $0x1d8] sm:$0xff]
    %v797 = vld [vmem:[#allocation7 + $0x1e0] sm:$0xff]
    %v798 = vld [vmem:[#allocation7 + $0x1e8] sm:$0xff]
    %v799 = vld [vmem:[#allocation7 + $0x1f0] sm:$0xff]
    %v800 = vld [vmem:[#allocation7 + $0x1f8] sm:$0xff]
    %801 = vmatprep.subr.mxu0 %v738
    %802 = vmatpush1.msra.mxu0 %v737
    %803 = vmatprep.subr.mxu0 %v742
    %804 = vmatpush1.msra.mxu0 %v741
    %805 = vmatprep.subr.mxu0 %v746
    %806 = vmatpush1.msra.mxu0 %v745
    %807 = vmatprep.subr.mxu0 %v750
    %808 = vmatpush1.msra.mxu0 %v749
    %809 = vmatprep.subr.mxu0 %v754
    %810 = vmatpush1.msra.mxu0 %v753
    %811 = vmatprep.subr.mxu0 %v758
    %812 = vmatpush1.msra.mxu0 %v757
    %813 = vmatprep.subr.mxu0 %v762
    %814 = vmatpush1.msra.mxu0 %v761
    %815 = vmatprep.subr.mxu0 %v766
    %816 = vmatpush1.msra.mxu0 %v765
    %817 = vmatprep.subr.mxu0 %v770
    %818 = vmatpush1.msra.mxu0 %v769
    %819 = vmatprep.subr.mxu0 %v774
    %820 = vmatpush1.msra.mxu0 %v773
    %821 = vmatprep.subr.mxu0 %v778
    %822 = vmatpush1.msra.mxu0 %v777
    %823 = vmatprep.subr.mxu0 %v782
    %824 = vmatpush1.msra.mxu0 %v781
    %825 = vmatprep.subr.mxu0 %v786
    %826 = vmatpush1.msra.mxu0 %v785
    %827 = vmatprep.subr.mxu0 %v790
    %828 = vmatpush1.msra.mxu0 %v789
    %829 = vmatprep.subr.mxu0 %v794
    %830 = vmatpush1.msra.mxu0 %v793
    %831 = vmatprep.subr.mxu0 %v798
    %832 = vmatpush1.msra.mxu0 %v797
    %833 = vmatprep.subr.mxu0 0.0
    %834 = vmatpush1.msra.mxu0 0.0
    %835 = vmatprep.subr.mxu0 0.0
    %836 = vmatpush1.msra.mxu0 0.0
    %837 = vmatprep.subr.mxu0 0.0
    %838 = vmatpush1.msra.mxu0 0.0
    %839 = vmatprep.subr.mxu0 0.0
    %840 = vmatpush1.msra.mxu0 0.0
    %841 = vmatprep.subr.mxu0 0.0
    %842 = vmatpush1.msra.mxu0 0.0
    %843 = vmatprep.subr.mxu0 0.0
    %844 = vmatpush1.msra.mxu0 0.0
    %845 = vmatprep.subr.mxu0 0.0
    %846 = vmatpush1.msra.mxu0 0.0
    %847 = vmatprep.subr.mxu0 0.0
    %848 = vmatpush1.msra.mxu0 0.0
    %849 = vmatprep.subr.mxu0 0.0
    %850 = vmatpush1.msra.mxu0 0.0
    %851 = vmatprep.subr.mxu0 0.0
    %852 = vmatpush1.msra.mxu0 0.0
    %853 = vmatprep.subr.mxu0 0.0
    %854 = vmatpush1.msra.mxu0 0.0
    %855 = vmatprep.subr.mxu0 0.0
    %856 = vmatpush1.msra.mxu0 0.0
    %857 = vmatprep.subr.mxu0 0.0
    %858 = vmatpush1.msra.mxu0 0.0
    %859 = vmatprep.subr.mxu0 0.0
    %860 = vmatpush1.msra.mxu0 0.0
    %861 = vmatprep.subr.mxu0 0.0
    %862 = vmatpush1.msra.mxu0 0.0
    %863 = vmatprep.subr.mxu0 0.0
    %864 = vmatpush1.msra.mxu0 0.0
    %865 = vmatprep.mubr.f32.mxu0 0.0
    %866 = vmatmul.mubr.f32.gmra.mrb[0].mxu0 %v731
    %v867 = vpop.f32.mrb[0].mxu0
    %v868 = vadd.f32 0.0, %v867
    %v869 = vpop.f32.mrb[0].mxu0
    %v870 = vadd.f32 0.0, %v869
    %871 = vdwg.mxu0
    %872 = vmatprep.subr.mxu0 %v740
    %873 = vmatpush1.msra.mxu0 %v739
    %874 = vmatprep.subr.mxu0 %v744
    %875 = vmatpush1.msra.mxu0 %v743
    %876 = vmatprep.subr.mxu0 %v748
    %877 = vmatpush1.msra.mxu0 %v747
    %878 = vmatprep.subr.mxu0 %v752
    %879 = vmatpush1.msra.mxu0 %v751
    %880 = vmatprep.subr.mxu0 %v756
    %881 = vmatpush1.msra.mxu0 %v755
    %882 = vmatprep.subr.mxu0 %v760
    %883 = vmatpush1.msra.mxu0 %v759
    %884 = vmatprep.subr.mxu0 %v764
    %885 = vmatpush1.msra.mxu0 %v763
    %886 = vmatprep.subr.mxu0 %v768
    %887 = vmatpush1.msra.mxu0 %v767
    %888 = vmatprep.subr.mxu0 %v772
    %889 = vmatpush1.msra.mxu0 %v771
    %890 = vmatprep.subr.mxu0 %v776
    %891 = vmatpush1.msra.mxu0 %v775
    %892 = vmatprep.subr.mxu0 %v780
    %893 = vmatpush1.msra.mxu0 %v779
    %894 = vmatprep.subr.mxu0 %v784
    %895 = vmatpush1.msra.mxu0 %v783
    %896 = vmatprep.subr.mxu0 %v788
    %897 = vmatpush1.msra.mxu0 %v787
    %898 = vmatprep.subr.mxu0 %v792
    %899 = vmatpush1.msra.mxu0 %v791
    %900 = vmatprep.subr.mxu0 %v796
    %901 = vmatpush1.msra.mxu0 %v795
    %902 = vmatprep.subr.mxu0 %v800
    %903 = vmatpush1.msra.mxu0 %v799
    %904 = vmatprep.subr.mxu0 0.0
    %905 = vmatpush1.msra.mxu0 0.0
    %906 = vmatprep.subr.mxu0 0.0
    %907 = vmatpush1.msra.mxu0 0.0
    %908 = vmatprep.subr.mxu0 0.0
    %909 = vmatpush1.msra.mxu0 0.0
    %910 = vmatprep.subr.mxu0 0.0
    %911 = vmatpush1.msra.mxu0 0.0
    %912 = vmatprep.subr.mxu0 0.0
    %913 = vmatpush1.msra.mxu0 0.0
    %914 = vmatprep.subr.mxu0 0.0
    %915 = vmatpush1.msra.mxu0 0.0
    %916 = vmatprep.subr.mxu0 0.0
    %917 = vmatpush1.msra.mxu0 0.0
    %918 = vmatprep.subr.mxu0 0.0
    %919 = vmatpush1.msra.mxu0 0.0
    %920 = vmatprep.subr.mxu0 0.0
    %921 = vmatpush1.msra.mxu0 0.0
    %922 = vmatprep.subr.mxu0 0.0
    %923 = vmatpush1.msra.mxu0 0.0
    %924 = vmatprep.subr.mxu0 0.0
    %925 = vmatpush1.msra.mxu0 0.0
    %926 = vmatprep.subr.mxu0 0.0
    %927 = vmatpush1.msra.mxu0 0.0
    %928 = vmatprep.subr.mxu0 0.0
    %929 = vmatpush1.msra.mxu0 0.0
    %930 = vmatprep.subr.mxu0 0.0
    %931 = vmatpush1.msra.mxu0 0.0
    %932 = vmatprep.subr.mxu0 0.0
    %933 = vmatpush1.msra.mxu0 0.0
    %934 = vmatprep.subr.mxu0 0.0
    %935 = vmatpush1.msra.mxu0 0.0
    %936 = vmatprep.mubr.f32.mxu0 0.0
    %937 = vmatmul.mubr.f32.gmra.mrb[0].mxu0 %v731
    %v938 = vpop.f32.mrb[0].mxu0
    %v939 = vadd.f32 0.0, %v938
    %v940 = vpop.f32.mrb[0].mxu0
    %v941 = vadd.f32 0.0, %v940
    %942 = vdwg.mxu0
    %v943 = vadd.f32 %v733, %v868
    %v944 = vadd.f32 %v734, %v870
    %v945 = vadd.f32 %v735, %v939
    %v946 = vadd.f32 %v736, %v941
    %v947 = vxor.u32 %v943, 2147483648
    %v948 = vmul.f32 %v947, 1.442695
    %v949 = vpow.pop %v948
    %v950 = vadd.f32 %v949, 1.0
    %v951 = vrcp.pop %v950
    %v952 = vmul.f32 1.0, %v951
    %v953 = vxor.u32 %v944, 2147483648
    %v954 = vmul.f32 %v953, 1.442695
    %v955 = vpow.pop %v954
    %v956 = vadd.f32 %v955, 1.0
    %v957 = vrcp.pop %v956
    %v958 = vmul.f32 1.0, %v957
    %v959 = vtanh.pop %v945
    %v960 = vxor.u32 %v946, 2147483648
    %v961 = vmul.f32 %v960, 1.442695
    %v962 = vpow.pop %v961
    %v963 = vadd.f32 %v962, 1.0
    %v964 = vrcp.pop %v963
    %v965 = vmul.f32 1.0, %v964
    %v966 = vmul.f32 %v958, %v729
    %v967 = vmul.f32 %v952, %v959
    %v968 = vadd.f32 %v966, %v967
    %v969 = vtanh.pop %v968
    %v970 = vmul.f32 %v965, %v969
    %971 = vst [vmem:[#allocation3 + $0x8] sm:$0xff] %v970
    %v972 = vld [vmem:[#allocation2 + $0x40] sm:$0xff]
    %v973 = vld [vmem:[#allocation2 + $0x48] sm:$0xff]
    %v974 = vld [vmem:[#allocation2 + $0x50] sm:$0xff]
    %v975 = vld [vmem:[#allocation2 + $0x58] sm:$0xff]
    %v976 = vld [vmem:[#allocation7] sm:$0xff]
    %v977 = vld [vmem:[#allocation7 + $0x8] sm:$0xff]
    %v978 = vld [vmem:[#allocation7 + $0x10] sm:$0xff]
    %v979 = vld [vmem:[#allocation7 + $0x18] sm:$0xff]
    %v980 = vld [vmem:[#allocation7 + $0x20] sm:$0xff]
    %v981 = vld [vmem:[#allocation7 + $0x28] sm:$0xff]
    %v982 = vld [vmem:[#allocation7 + $0x30] sm:$0xff]
    %v983 = vld [vmem:[#allocation7 + $0x38] sm:$0xff]
    %v984 = vld [vmem:[#allocation7 + $0x40] sm:$0xff]
    %v985 = vld [vmem:[#allocation7 + $0x48] sm:$0xff]
    %v986 = vld [vmem:[#allocation7 + $0x50] sm:$0xff]
    %v987 = vld [vmem:[#allocation7 + $0x58] sm:$0xff]
    %v988 = vld [vmem:[#allocation7 + $0x60] sm:$0xff]
    %v989 = vld [vmem:[#allocation7 + $0x68] sm:$0xff]
    %v990 = vld [vmem:[#allocation7 + $0x70] sm:$0xff]
    %v991 = vld [vmem:[#allocation7 + $0x78] sm:$0xff]
    %v992 = vld [vmem:[#allocation7 + $0x80] sm:$0xff]
    %v993 = vld [vmem:[#allocation7 + $0x88] sm:$0xff]
    %v994 = vld [vmem:[#allocation7 + $0x90] sm:$0xff]
    %v995 = vld [vmem:[#allocation7 + $0x98] sm:$0xff]
    %v996 = vld [vmem:[#allocation7 + $0xa0] sm:$0xff]
    %v997 = vld [vmem:[#allocation7 + $0xa8] sm:$0xff]
    %v998 = vld [vmem:[#allocation7 + $0xb0] sm:$0xff]
    %v999 = vld [vmem:[#allocation7 + $0xb8] sm:$0xff]
    %v1000 = vld [vmem:[#allocation7 + $0xc0] sm:$0xff]
    %v1001 = vld [vmem:[#allocation7 + $0xc8] sm:$0xff]
    %v1002 = vld [vmem:[#allocation7 + $0xd0] sm:$0xff]
    %v1003 = vld [vmem:[#allocation7 + $0xd8] sm:$0xff]
    %v1004 = vld [vmem:[#allocation7 + $0xe0] sm:$0xff]
    %v1005 = vld [vmem:[#allocation7 + $0xe8] sm:$0xff]
    %v1006 = vld [vmem:[#allocation7 + $0xf0] sm:$0xff]
    %v1007 = vld [vmem:[#allocation7 + $0xf8] sm:$0xff]
    %v1008 = vld [vmem:[#allocation7 + $0x100] sm:$0xff]
    %v1009 = vld [vmem:[#allocation7 + $0x108] sm:$0xff]
    %v1010 = vld [vmem:[#allocation7 + $0x110] sm:$0xff]
    %v1011 = vld [vmem:[#allocation7 + $0x118] sm:$0xff]
    %v1012 = vld [vmem:[#allocation7 + $0x120] sm:$0xff]
    %v1013 = vld [vmem:[#allocation7 + $0x128] sm:$0xff]
    %v1014 = vld [vmem:[#allocation7 + $0x130] sm:$0xff]
    %v1015 = vld [vmem:[#allocation7 + $0x138] sm:$0xff]
    %v1016 = vld [vmem:[#allocation7 + $0x140] sm:$0xff]
    %v1017 = vld [vmem:[#allocation7 + $0x148] sm:$0xff]
    %v1018 = vld [vmem:[#allocation7 + $0x150] sm:$0xff]
    %v1019 = vld [vmem:[#allocation7 + $0x158] sm:$0xff]
    %v1020 = vld [vmem:[#allocation7 + $0x160] sm:$0xff]
    %v1021 = vld [vmem:[#allocation7 + $0x168] sm:$0xff]
    %v1022 = vld [vmem:[#allocation7 + $0x170] sm:$0xff]
    %v1023 = vld [vmem:[#allocation7 + $0x178] sm:$0xff]
    %v1024 = vld [vmem:[#allocation7 + $0x180] sm:$0xff]
    %v1025 = vld [vmem:[#allocation7 + $0x188] sm:$0xff]
    %v1026 = vld [vmem:[#allocation7 + $0x190] sm:$0xff]
    %v1027 = vld [vmem:[#allocation7 + $0x198] sm:$0xff]
    %v1028 = vld [vmem:[#allocation7 + $0x1a0] sm:$0xff]
    %v1029 = vld [vmem:[#allocation7 + $0x1a8] sm:$0xff]
    %v1030 = vld [vmem:[#allocation7 + $0x1b0] sm:$0xff]
    %v1031 = vld [vmem:[#allocation7 + $0x1b8] sm:$0xff]
    %v1032 = vld [vmem:[#allocation7 + $0x1c0] sm:$0xff]
    %v1033 = vld [vmem:[#allocation7 + $0x1c8] sm:$0xff]
    %v1034 = vld [vmem:[#allocation7 + $0x1d0] sm:$0xff]
    %v1035 = vld [vmem:[#allocation7 + $0x1d8] sm:$0xff]
    %v1036 = vld [vmem:[#allocation7 + $0x1e0] sm:$0xff]
    %v1037 = vld [vmem:[#allocation7 + $0x1e8] sm:$0xff]
    %v1038 = vld [vmem:[#allocation7 + $0x1f0] sm:$0xff]
    %v1039 = vld [vmem:[#allocation7 + $0x1f8] sm:$0xff]
    %1040 = vmatprep.subr.mxu0 %v977
    %1041 = vmatpush1.msra.mxu0 %v976
    %1042 = vmatprep.subr.mxu0 %v981
    %1043 = vmatpush1.msra.mxu0 %v980
    %1044 = vmatprep.subr.mxu0 %v985
    %1045 = vmatpush1.msra.mxu0 %v984
    %1046 = vmatprep.subr.mxu0 %v989
    %1047 = vmatpush1.msra.mxu0 %v988
    %1048 = vmatprep.subr.mxu0 %v993
    %1049 = vmatpush1.msra.mxu0 %v992
    %1050 = vmatprep.subr.mxu0 %v997
    %1051 = vmatpush1.msra.mxu0 %v996
    %1052 = vmatprep.subr.mxu0 %v1001
    %1053 = vmatpush1.msra.mxu0 %v1000
    %1054 = vmatprep.subr.mxu0 %v1005
    %1055 = vmatpush1.msra.mxu0 %v1004
    %1056 = vmatprep.subr.mxu0 %v1009
    %1057 = vmatpush1.msra.mxu0 %v1008
    %1058 = vmatprep.subr.mxu0 %v1013
    %1059 = vmatpush1.msra.mxu0 %v1012
    %1060 = vmatprep.subr.mxu0 %v1017
    %1061 = vmatpush1.msra.mxu0 %v1016
    %1062 = vmatprep.subr.mxu0 %v1021
    %1063 = vmatpush1.msra.mxu0 %v1020
    %1064 = vmatprep.subr.mxu0 %v1025
    %1065 = vmatpush1.msra.mxu0 %v1024
    %1066 = vmatprep.subr.mxu0 %v1029
    %1067 = vmatpush1.msra.mxu0 %v1028
    %1068 = vmatprep.subr.mxu0 %v1033
    %1069 = vmatpush1.msra.mxu0 %v1032
    %1070 = vmatprep.subr.mxu0 %v1037
    %1071 = vmatpush1.msra.mxu0 %v1036
    %1072 = vmatprep.subr.mxu0 0.0
    %1073 = vmatpush1.msra.mxu0 0.0
    %1074 = vmatprep.subr.mxu0 0.0
    %1075 = vmatpush1.msra.mxu0 0.0
    %1076 = vmatprep.subr.mxu0 0.0
    %1077 = vmatpush1.msra.mxu0 0.0
    %1078 = vmatprep.subr.mxu0 0.0
    %1079 = vmatpush1.msra.mxu0 0.0
    %1080 = vmatprep.subr.mxu0 0.0
    %1081 = vmatpush1.msra.mxu0 0.0
    %1082 = vmatprep.subr.mxu0 0.0
    %1083 = vmatpush1.msra.mxu0 0.0
    %1084 = vmatprep.subr.mxu0 0.0
    %1085 = vmatpush1.msra.mxu0 0.0
    %1086 = vmatprep.subr.mxu0 0.0
    %1087 = vmatpush1.msra.mxu0 0.0
    %1088 = vmatprep.subr.mxu0 0.0
    %1089 = vmatpush1.msra.mxu0 0.0
    %1090 = vmatprep.subr.mxu0 0.0
    %1091 = vmatpush1.msra.mxu0 0.0
    %1092 = vmatprep.subr.mxu0 0.0
    %1093 = vmatpush1.msra.mxu0 0.0
    %1094 = vmatprep.subr.mxu0 0.0
    %1095 = vmatpush1.msra.mxu0 0.0
    %1096 = vmatprep.subr.mxu0 0.0
    %1097 = vmatpush1.msra.mxu0 0.0
    %1098 = vmatprep.subr.mxu0 0.0
    %1099 = vmatpush1.msra.mxu0 0.0
    %1100 = vmatprep.subr.mxu0 0.0
    %1101 = vmatpush1.msra.mxu0 0.0
    %1102 = vmatprep.subr.mxu0 0.0
    %1103 = vmatpush1.msra.mxu0 0.0
    %1104 = vmatprep.mubr.f32.mxu0 0.0
    %1105 = vmatmul.mubr.f32.gmra.mrb[0].mxu0 %v970
    %v1106 = vpop.f32.mrb[0].mxu0
    %v1107 = vadd.f32 0.0, %v1106
    %v1108 = vpop.f32.mrb[0].mxu0
    %v1109 = vadd.f32 0.0, %v1108
    %1110 = vdwg.mxu0
    %1111 = vmatprep.subr.mxu0 %v979
    %1112 = vmatpush1.msra.mxu0 %v978
    %1113 = vmatprep.subr.mxu0 %v983
    %1114 = vmatpush1.msra.mxu0 %v982
    %1115 = vmatprep.subr.mxu0 %v987
    %1116 = vmatpush1.msra.mxu0 %v986
    %1117 = vmatprep.subr.mxu0 %v991
    %1118 = vmatpush1.msra.mxu0 %v990
    %1119 = vmatprep.subr.mxu0 %v995
    %1120 = vmatpush1.msra.mxu0 %v994
    %1121 = vmatprep.subr.mxu0 %v999
    %1122 = vmatpush1.msra.mxu0 %v998
    %1123 = vmatprep.subr.mxu0 %v1003
    %1124 = vmatpush1.msra.mxu0 %v1002
    %1125 = vmatprep.subr.mxu0 %v1007
    %1126 = vmatpush1.msra.mxu0 %v1006
    %1127 = vmatprep.subr.mxu0 %v1011
    %1128 = vmatpush1.msra.mxu0 %v1010
    %1129 = vmatprep.subr.mxu0 %v1015
    %1130 = vmatpush1.msra.mxu0 %v1014
    %1131 = vmatprep.subr.mxu0 %v1019
    %1132 = vmatpush1.msra.mxu0 %v1018
    %1133 = vmatprep.subr.mxu0 %v1023
    %1134 = vmatpush1.msra.mxu0 %v1022
    %1135 = vmatprep.subr.mxu0 %v1027
    %1136 = vmatpush1.msra.mxu0 %v1026
    %1137 = vmatprep.subr.mxu0 %v1031
    %1138 = vmatpush1.msra.mxu0 %v1030
    %1139 = vmatprep.subr.mxu0 %v1035
    %1140 = vmatpush1.msra.mxu0 %v1034
    %1141 = vmatprep.subr.mxu0 %v1039
    %1142 = vmatpush1.msra.mxu0 %v1038
    %1143 = vmatprep.subr.mxu0 0.0
    %1144 = vmatpush1.msra.mxu0 0.0
    %1145 = vmatprep.subr.mxu0 0.0
    %1146 = vmatpush1.msra.mxu0 0.0
    %1147 = vmatprep.subr.mxu0 0.0
    %1148 = vmatpush1.msra.mxu0 0.0
    %1149 = vmatprep.subr.mxu0 0.0
    %1150 = vmatpush1.msra.mxu0 0.0
    %1151 = vmatprep.subr.mxu0 0.0
    %1152 = vmatpush1.msra.mxu0 0.0
    %1153 = vmatprep.subr.mxu0 0.0
    %1154 = vmatpush1.msra.mxu0 0.0
    %1155 = vmatprep.subr.mxu0 0.0
    %1156 = vmatpush1.msra.mxu0 0.0
    %1157 = vmatprep.subr.mxu0 0.0
    %1158 = vmatpush1.msra.mxu0 0.0
    %1159 = vmatprep.subr.mxu0 0.0
    %1160 = vmatpush1.msra.mxu0 0.0
    %1161 = vmatprep.subr.mxu0 0.0
    %1162 = vmatpush1.msra.mxu0 0.0
    %1163 = vmatprep.subr.mxu0 0.0
    %1164 = vmatpush1.msra.mxu0 0.0
    %1165 = vmatprep.subr.mxu0 0.0
    %1166 = vmatpush1.msra.mxu0 0.0
    %1167 = vmatprep.subr.mxu0 0.0
    %1168 = vmatpush1.msra.mxu0 0.0
    %1169 = vmatprep.subr.mxu0 0.0
    %1170 = vmatpush1.msra.mxu0 0.0
    %1171 = vmatprep.subr.mxu0 0.0
    %1172 = vmatpush1.msra.mxu0 0.0
    %1173 = vmatprep.subr.mxu0 0.0
    %1174 = vmatpush1.msra.mxu0 0.0
    %1175 = vmatprep.mubr.f32.mxu0 0.0
    %1176 = vmatmul.mubr.f32.gmra.mrb[0].mxu0 %v970
    %v1177 = vpop.f32.mrb[0].mxu0
    %v1178 = vadd.f32 0.0, %v1177
    %v1179 = vpop.f32.mrb[0].mxu0
    %v1180 = vadd.f32 0.0, %v1179
    %1181 = vdwg.mxu0
    %v1182 = vadd.f32 %v972, %v1107
    %v1183 = vadd.f32 %v973, %v1109
    %v1184 = vadd.f32 %v974, %v1178
    %v1185 = vadd.f32 %v975, %v1180
    %v1186 = vxor.u32 %v1182, 2147483648
    %v1187 = vmul.f32 %v1186, 1.442695
    %v1188 = vpow.pop %v1187
    %v1189 = vadd.f32 %v1188, 1.0
    %v1190 = vrcp.pop %v1189
    %v1191 = vmul.f32 1.0, %v1190
    %v1192 = vxor.u32 %v1183, 2147483648
    %v1193 = vmul.f32 %v1192, 1.442695
    %v1194 = vpow.pop %v1193
    %v1195 = vadd.f32 %v1194, 1.0
    %v1196 = vrcp.pop %v1195
    %v1197 = vmul.f32 1.0, %v1196
    %v1198 = vtanh.pop %v1184
    %v1199 = vxor.u32 %v1185, 2147483648
    %v1200 = vmul.f32 %v1199, 1.442695
    %v1201 = vpow.pop %v1200
    %v1202 = vadd.f32 %v1201, 1.0
    %v1203 = vrcp.pop %v1202
    %v1204 = vmul.f32 1.0, %v1203
    %v1205 = vmul.f32 %v1197, %v968
    %v1206 = vmul.f32 %v1191, %v1198
    %v1207 = vadd.f32 %v1205, %v1206
    %v1208 = vtanh.pop %v1207
    %v1209 = vmul.f32 %v1204, %v1208
    %1210 = vst [vmem:[#allocation3 + $0x10] sm:$0xff] %v1209
    %v1211 = vld [vmem:[#allocation2 + $0x60] sm:$0xff]
    %v1212 = vld [vmem:[#allocation2 + $0x68] sm:$0xff]
    %v1213 = vld [vmem:[#allocation2 + $0x70] sm:$0xff]
    %v1214 = vld [vmem:[#allocation2 + $0x78] sm:$0xff]
    %v1215 = vld [vmem:[#allocation7] sm:$0xff]
    %v1216 = vld [vmem:[#allocation7 + $0x8] sm:$0xff]
    %v1217 = vld [vmem:[#allocation7 + $0x10] sm:$0xff]
    %v1218 = vld [vmem:[#allocation7 + $0x18] sm:$0xff]
    %v1219 = vld [vmem:[#allocation7 + $0x20] sm:$0xff]
    %v1220 = vld [vmem:[#allocation7 + $0x28] sm:$0xff]
    %v1221 = vld [vmem:[#allocation7 + $0x30] sm:$0xff]
    %v1222 = vld [vmem:[#allocation7 + $0x38] sm:$0xff]
    %v1223 = vld [vmem:[#allocation7 + $0x40] sm:$0xff]
    %v1224 = vld [vmem:[#allocation7 + $0x48] sm:$0xff]
    %v1225 = vld [vmem:[#allocation7 + $0x50] sm:$0xff]
    %v1226 = vld [vmem:[#allocation7 + $0x58] sm:$0xff]
    %v1227 = vld [vmem:[#allocation7 + $0x60] sm:$0xff]
    %v1228 = vld [vmem:[#allocation7 + $0x68] sm:$0xff]
    %v1229 = vld [vmem:[#allocation7 + $0x70] sm:$0xff]
    %v1230 = vld [vmem:[#allocation7 + $0x78] sm:$0xff]
    %v1231 = vld [vmem:[#allocation7 + $0x80] sm:$0xff]
    %v1232 = vld [vmem:[#allocation7 + $0x88] sm:$0xff]
    %v1233 = vld [vmem:[#allocation7 + $0x90] sm:$0xff]
    %v1234 = vld [vmem:[#allocation7 + $0x98] sm:$0xff]
    %v1235 = vld [vmem:[#allocation7 + $0xa0] sm:$0xff]
    %v1236 = vld [vmem:[#allocation7 + $0xa8] sm:$0xff]
    %v1237 = vld [vmem:[#allocation7 + $0xb0] sm:$0xff]
    %v1238 = vld [vmem:[#allocation7 + $0xb8] sm:$0xff]
    %v1239 = vld [vmem:[#allocation7 + $0xc0] sm:$0xff]
    %v1240 = vld [vmem:[#allocation7 + $0xc8] sm:$0xff]
    %v1241 = vld [vmem:[#allocation7 + $0xd0] sm:$0xff]
    %v1242 = vld [vmem:[#allocation7 + $0xd8] sm:$0xff]
    %v1243 = vld [vmem:[#allocation7 + $0xe0] sm:$0xff]
    %v1244 = vld [vmem:[#allocation7 + $0xe8] sm:$0xff]
    %v1245 = vld [vmem:[#allocation7 + $0xf0] sm:$0xff]
    %v1246 = vld [vmem:[#allocation7 + $0xf8] sm:$0xff]
    %v1247 = vld [vmem:[#allocation7 + $0x100] sm:$0xff]
    %v1248 = vld [vmem:[#allocation7 + $0x108] sm:$0xff]
    %v1249 = vld [vmem:[#allocation7 + $0x110] sm:$0xff]
    %v1250 = vld [vmem:[#allocation7 + $0x118] sm:$0xff]
    %v1251 = vld [vmem:[#allocation7 + $0x120] sm:$0xff]
    %v1252 = vld [vmem:[#allocation7 + $0x128] sm:$0xff]
    %v1253 = vld [vmem:[#allocation7 + $0x130] sm:$0xff]
    %v1254 = vld [vmem:[#allocation7 + $0x138] sm:$0xff]
    %v1255 = vld [vmem:[#allocation7 + $0x140] sm:$0xff]
    %v1256 = vld [vmem:[#allocation7 + $0x148] sm:$0xff]
    %v1257 = vld [vmem:[#allocation7 + $0x150] sm:$0xff]
    %v1258 = vld [vmem:[#allocation7 + $0x158] sm:$0xff]
    %v1259 = vld [vmem:[#allocation7 + $0x160] sm:$0xff]
    %v1260 = vld [vmem:[#allocation7 + $0x168] sm:$0xff]
    %v1261 = vld [vmem:[#allocation7 + $0x170] sm:$0xff]
    %v1262 = vld [vmem:[#allocation7 + $0x178] sm:$0xff]
    %v1263 = vld [vmem:[#allocation7 + $0x180] sm:$0xff]
    %v1264 = vld [vmem:[#allocation7 + $0x188] sm:$0xff]
    %v1265 = vld [vmem:[#allocation7 + $0x190] sm:$0xff]
    %v1266 = vld [vmem:[#allocation7 + $0x198] sm:$0xff]
    %v1267 = vld [vmem:[#allocation7 + $0x1a0] sm:$0xff]
    %v1268 = vld [vmem:[#allocation7 + $0x1a8] sm:$0xff]
    %v1269 = vld [vmem:[#allocation7 + $0x1b0] sm:$0xff]
    %v1270 = vld [vmem:[#allocation7 + $0x1b8] sm:$0xff]
    %v1271 = vld [vmem:[#allocation7 + $0x1c0] sm:$0xff]
    %v1272 = vld [vmem:[#allocation7 + $0x1c8] sm:$0xff]
    %v1273 = vld [vmem:[#allocation7 + $0x1d0] sm:$0xff]
    %v1274 = vld [vmem:[#allocation7 + $0x1d8] sm:$0xff]
    %v1275 = vld [vmem:[#allocation7 + $0x1e0] sm:$0xff]
    %v1276 = vld [vmem:[#allocation7 + $0x1e8] sm:$0xff]
    %v1277 = vld [vmem:[#allocation7 + $0x1f0] sm:$0xff]
    %v1278 = vld [vmem:[#allocation7 + $0x1f8] sm:$0xff]
    %1279 = vmatprep.subr.mxu0 %v1216
    %1280 = vmatpush1.msra.mxu0 %v1215
    %1281 = vmatprep.subr.mxu0 %v1220
    %1282 = vmatpush1.msra.mxu0 %v1219
    %1283 = vmatprep.subr.mxu0 %v1224
    %1284 = vmatpush1.msra.mxu0 %v1223
    %1285 = vmatprep.subr.mxu0 %v1228
    %1286 = vmatpush1.msra.mxu0 %v1227
    %1287 = vmatprep.subr.mxu0 %v1232
    %1288 = vmatpush1.msra.mxu0 %v1231
    %1289 = vmatprep.subr.mxu0 %v1236
    %1290 = vmatpush1.msra.mxu0 %v1235
    %1291 = vmatprep.subr.mxu0 %v1240
    %1292 = vmatpush1.msra.mxu0 %v1239
    %1293 = vmatprep.subr.mxu0 %v1244
    %1294 = vmatpush1.msra.mxu0 %v1243
    %1295 = vmatprep.subr.mxu0 %v1248
    %1296 = vmatpush1.msra.mxu0 %v1247
    %1297 = vmatprep.subr.mxu0 %v1252
    %1298 = vmatpush1.msra.mxu0 %v1251
    %1299 = vmatprep.subr.mxu0 %v1256
    %1300 = vmatpush1.msra.mxu0 %v1255
    %1301 = vmatprep.subr.mxu0 %v1260
    %1302 = vmatpush1.msra.mxu0 %v1259
    %1303 = vmatprep.subr.mxu0 %v1264
    %1304 = vmatpush1.msra.mxu0 %v1263
    %1305 = vmatprep.subr.mxu0 %v1268
    %1306 = vmatpush1.msra.mxu0 %v1267
    %1307 = vmatprep.subr.mxu0 %v1272
    %1308 = vmatpush1.msra.mxu0 %v1271
    %1309 = vmatprep.subr.mxu0 %v1276
    %1310 = vmatpush1.msra.mxu0 %v1275
    %1311 = vmatprep.subr.mxu0 0.0
    %1312 = vmatpush1.msra.mxu0 0.0
    %1313 = vmatprep.subr.mxu0 0.0
    %1314 = vmatpush1.msra.mxu0 0.0
    %1315 = vmatprep.subr.mxu0 0.0
    %1316 = vmatpush1.msra.mxu0 0.0
    %1317 = vmatprep.subr.mxu0 0.0
    %1318 = vmatpush1.msra.mxu0 0.0
    %1319 = vmatprep.subr.mxu0 0.0
    %1320 = vmatpush1.msra.mxu0 0.0
    %1321 = vmatprep.subr.mxu0 0.0
    %1322 = vmatpush1.msra.mxu0 0.0
    %1323 = vmatprep.subr.mxu0 0.0
    %1324 = vmatpush1.msra.mxu0 0.0
    %1325 = vmatprep.subr.mxu0 0.0
    %1326 = vmatpush1.msra.mxu0 0.0
    %1327 = vmatprep.subr.mxu0 0.0
    %1328 = vmatpush1.msra.mxu0 0.0
    %1329 = vmatprep.subr.mxu0 0.0
    %1330 = vmatpush1.msra.mxu0 0.0
    %1331 = vmatprep.subr.mxu0 0.0
    %1332 = vmatpush1.msra.mxu0 0.0
    %1333 = vmatprep.subr.mxu0 0.0
    %1334 = vmatpush1.msra.mxu0 0.0
    %1335 = vmatprep.subr.mxu0 0.0
    %1336 = vmatpush1.msra.mxu0 0.0
    %1337 = vmatprep.subr.mxu0 0.0
    %1338 = vmatpush1.msra.mxu0 0.0
    %1339 = vmatprep.subr.mxu0 0.0
    %1340 = vmatpush1.msra.mxu0 0.0
    %1341 = vmatprep.subr.mxu0 0.0
    %1342 = vmatpush1.msra.mxu0 0.0
    %1343 = vmatprep.mubr.f32.mxu0 0.0
    %1344 = vmatmul.mubr.f32.gmra.mrb[0].mxu0 %v1209
    %v1345 = vpop.f32.mrb[0].mxu0
    %v1346 = vadd.f32 0.0, %v1345
    %v1347 = vpop.f32.mrb[0].mxu0
    %v1348 = vadd.f32 0.0, %v1347
    %1349 = vdwg.mxu0
    %1350 = vmatprep.subr.mxu0 %v1218
    %1351 = vmatpush1.msra.mxu0 %v1217
    %1352 = vmatprep.subr.mxu0 %v1222
    %1353 = vmatpush1.msra.mxu0 %v1221
    %1354 = vmatprep.subr.mxu0 %v1226
    %1355 = vmatpush1.msra.mxu0 %v1225
    %1356 = vmatprep.subr.mxu0 %v1230
    %1357 = vmatpush1.msra.mxu0 %v1229
    %1358 = vmatprep.subr.mxu0 %v1234
    %1359 = vmatpush1.msra.mxu0 %v1233
    %1360 = vmatprep.subr.mxu0 %v1238
    %1361 = vmatpush1.msra.mxu0 %v1237
    %1362 = vmatprep.subr.mxu0 %v1242
    %1363 = vmatpush1.msra.mxu0 %v1241
    %1364 = vmatprep.subr.mxu0 %v1246
    %1365 = vmatpush1.msra.mxu0 %v1245
    %1366 = vmatprep.subr.mxu0 %v1250
    %1367 = vmatpush1.msra.mxu0 %v1249
    %1368 = vmatprep.subr.mxu0 %v1254
    %1369 = vmatpush1.msra.mxu0 %v1253
    %1370 = vmatprep.subr.mxu0 %v1258
    %1371 = vmatpush1.msra.mxu0 %v1257
    %1372 = vmatprep.subr.mxu0 %v1262
    %1373 = vmatpush1.msra.mxu0 %v1261
    %1374 = vmatprep.subr.mxu0 %v1266
    %1375 = vmatpush1.msra.mxu0 %v1265
    %1376 = vmatprep.subr.mxu0 %v1270
    %1377 = vmatpush1.msra.mxu0 %v1269
    %1378 = vmatprep.subr.mxu0 %v1274
    %1379 = vmatpush1.msra.mxu0 %v1273
    %1380 = vmatprep.subr.mxu0 %v1278
    %1381 = vmatpush1.msra.mxu0 %v1277
    %1382 = vmatprep.subr.mxu0 0.0
    %1383 = vmatpush1.msra.mxu0 0.0
    %1384 = vmatprep.subr.mxu0 0.0
    %1385 = vmatpush1.msra.mxu0 0.0
    %1386 = vmatprep.subr.mxu0 0.0
    %1387 = vmatpush1.msra.mxu0 0.0
    %1388 = vmatprep.subr.mxu0 0.0
    %1389 = vmatpush1.msra.mxu0 0.0
    %1390 = vmatprep.subr.mxu0 0.0
    %1391 = vmatpush1.msra.mxu0 0.0
    %1392 = vmatprep.subr.mxu0 0.0
    %1393 = vmatpush1.msra.mxu0 0.0
    %1394 = vmatprep.subr.mxu0 0.0
    %1395 = vmatpush1.msra.mxu0 0.0
    %1396 = vmatprep.subr.mxu0 0.0
    %1397 = vmatpush1.msra.mxu0 0.0
    %1398 = vmatprep.subr.mxu0 0.0
    %1399 = vmatpush1.msra.mxu0 0.0
    %1400 = vmatprep.subr.mxu0 0.0
    %1401 = vmatpush1.msra.mxu0 0.0
    %1402 = vmatprep.subr.mxu0 0.0
    %1403 = vmatpush1.msra.mxu0 0.0
    %1404 = vmatprep.subr.mxu0 0.0
    %1405 = vmatpush1.msra.mxu0 0.0
    %1406 = vmatprep.subr.mxu0 0.0
    %1407 = vmatpush1.msra.mxu0 0.0
    %1408 = vmatprep.subr.mxu0 0.0
    %1409 = vmatpush1.msra.mxu0 0.0
    %1410 = vmatprep.subr.mxu0 0.0
    %1411 = vmatpush1.msra.mxu0 0.0
    %1412 = vmatprep.subr.mxu0 0.0
    %1413 = vmatpush1.msra.mxu0 0.0
    %1414 = vmatprep.mubr.f32.mxu0 0.0
    %1415 = vmatmul.mubr.f32.gmra.mrb[0].mxu0 %v1209
    %v1416 = vpop.f32.mrb[0].mxu0
    %v1417 = vadd.f32 0.0, %v1416
    %v1418 = vpop.f32.mrb[0].mxu0
    %v1419 = vadd.f32 0.0, %v1418
    %1420 = vdwg.mxu0
    %v1421 = vadd.f32 %v1211, %v1346
    %v1422 = vadd.f32 %v1212, %v1348
    %v1423 = vadd.f32 %v1213, %v1417
    %v1424 = vadd.f32 %v1214, %v1419
    %v1425 = vxor.u32 %v1421, 2147483648
    %v1426 = vmul.f32 %v1425, 1.442695
    %v1427 = vpow.pop %v1426
    %v1428 = vadd.f32 %v1427, 1.0
    %v1429 = vrcp.pop %v1428
    %v1430 = vmul.f32 1.0, %v1429
    %v1431 = vxor.u32 %v1422, 2147483648
    %v1432 = vmul.f32 %v1431, 1.442695
    %v1433 = vpow.pop %v1432
    %v1434 = vadd.f32 %v1433, 1.0
    %v1435 = vrcp.pop %v1434
    %v1436 = vmul.f32 1.0, %v1435
    %v1437 = vtanh.pop %v1423
    %v1438 = vxor.u32 %v1424, 2147483648
    %v1439 = vmul.f32 %v1438, 1.442695
    %v1440 = vpow.pop %v1439
    %v1441 = vadd.f32 %v1440, 1.0
    %v1442 = vrcp.pop %v1441
    %v1443 = vmul.f32 1.0, %v1442
    %v1444 = vmul.f32 %v1436, %v1207
    %v1445 = vmul.f32 %v1430, %v1437
    %v1446 = vadd.f32 %v1444, %v1445
    %v1447 = vtanh.pop %v1446
    %v1448 = vmul.f32 %v1443, %v1447
    %1449 = vst [vmem:[#allocation3 + $0x18] sm:$0xff] %v1448
    %v1450 = vld [vmem:[#allocation2 + $0x80] sm:$0xff]
    %v1451 = vld [vmem:[#allocation2 + $0x88] sm:$0xff]
    %v1452 = vld [vmem:[#allocation2 + $0x90] sm:$0xff]
    %v1453 = vld [vmem:[#allocation2 + $0x98] sm:$0xff]
    %v1454 = vld [vmem:[#allocation7] sm:$0xff]
    %v1455 = vld [vmem:[#allocation7 + $0x8] sm:$0xff]
    %v1456 = vld [vmem:[#allocation7 + $0x10] sm:$0xff]
    %v1457 = vld [vmem:[#allocation7 + $0x18] sm:$0xff]
    %v1458 = vld [vmem:[#allocation7 + $0x20] sm:$0xff]
    %v1459 = vld [vmem:[#allocation7 + $0x28] sm:$0xff]
    %v1460 = vld [vmem:[#allocation7 + $0x30] sm:$0xff]
    %v1461 = vld [vmem:[#allocation7 + $0x38] sm:$0xff]
    %v1462 = vld [vmem:[#allocation7 + $0x40] sm:$0xff]
    %v1463 = vld [vmem:[#allocation7 + $0x48] sm:$0xff]
    %v1464 = vld [vmem:[#allocation7 + $0x50] sm:$0xff]
    %v1465 = vld [vmem:[#allocation7 + $0x58] sm:$0xff]
    %v1466 = vld [vmem:[#allocation7 + $0x60] sm:$0xff]
    %v1467 = vld [vmem:[#allocation7 + $0x68] sm:$0xff]
    %v1468 = vld [vmem:[#allocation7 + $0x70] sm:$0xff]
    %v1469 = vld [vmem:[#allocation7 + $0x78] sm:$0xff]
    %v1470 = vld [vmem:[#allocation7 + $0x80] sm:$0xff]
    %v1471 = vld [vmem:[#allocation7 + $0x88] sm:$0xff]
    %v1472 = vld [vmem:[#allocation7 + $0x90] sm:$0xff]
    %v1473 = vld [vmem:[#allocation7 + $0x98] sm:$0xff]
    %v1474 = vld [vmem:[#allocation7 + $0xa0] sm:$0xff]
    %v1475 = vld [vmem:[#allocation7 + $0xa8] sm:$0xff]
    %v1476 = vld [vmem:[#allocation7 + $0xb0] sm:$0xff]
    %v1477 = vld [vmem:[#allocation7 + $0xb8] sm:$0xff]
    %v1478 = vld [vmem:[#allocation7 + $0xc0] sm:$0xff]
    %v1479 = vld [vmem:[#allocation7 + $0xc8] sm:$0xff]
    %v1480 = vld [vmem:[#allocation7 + $0xd0] sm:$0xff]
    %v1481 = vld [vmem:[#allocation7 + $0xd8] sm:$0xff]
    %v1482 = vld [vmem:[#allocation7 + $0xe0] sm:$0xff]
    %v1483 = vld [vmem:[#allocation7 + $0xe8] sm:$0xff]
    %v1484 = vld [vmem:[#allocation7 + $0xf0] sm:$0xff]
    %v1485 = vld [vmem:[#allocation7 + $0xf8] sm:$0xff]
    %v1486 = vld [vmem:[#allocation7 + $0x100] sm:$0xff]
    %v1487 = vld [vmem:[#allocation7 + $0x108] sm:$0xff]
    %v1488 = vld [vmem:[#allocation7 + $0x110] sm:$0xff]
    %v1489 = vld [vmem:[#allocation7 + $0x118] sm:$0xff]
    %v1490 = vld [vmem:[#allocation7 + $0x120] sm:$0xff]
    %v1491 = vld [vmem:[#allocation7 + $0x128] sm:$0xff]
    %v1492 = vld [vmem:[#allocation7 + $0x130] sm:$0xff]
    %v1493 = vld [vmem:[#allocation7 + $0x138] sm:$0xff]
    %v1494 = vld [vmem:[#allocation7 + $0x140] sm:$0xff]
    %v1495 = vld [vmem:[#allocation7 + $0x148] sm:$0xff]
    %v1496 = vld [vmem:[#allocation7 + $0x150] sm:$0xff]
    %v1497 = vld [vmem:[#allocation7 + $0x158] sm:$0xff]
    %v1498 = vld [vmem:[#allocation7 + $0x160] sm:$0xff]
    %v1499 = vld [vmem:[#allocation7 + $0x168] sm:$0xff]
    %v1500 = vld [vmem:[#allocation7 + $0x170] sm:$0xff]
    %v1501 = vld [vmem:[#allocation7 + $0x178] sm:$0xff]
    %v1502 = vld [vmem:[#allocation7 + $0x180] sm:$0xff]
    %v1503 = vld [vmem:[#allocation7 + $0x188] sm:$0xff]
    %v1504 = vld [vmem:[#allocation7 + $0x190] sm:$0xff]
    %v1505 = vld [vmem:[#allocation7 + $0x198] sm:$0xff]
    %v1506 = vld [vmem:[#allocation7 + $0x1a0] sm:$0xff]
    %v1507 = vld [vmem:[#allocation7 + $0x1a8] sm:$0xff]
    %v1508 = vld [vmem:[#allocation7 + $0x1b0] sm:$0xff]
    %v1509 = vld [vmem:[#allocation7 + $0x1b8] sm:$0xff]
    %v1510 = vld [vmem:[#allocation7 + $0x1c0] sm:$0xff]
    %v1511 = vld [vmem:[#allocation7 + $0x1c8] sm:$0xff]
    %v1512 = vld [vmem:[#allocation7 + $0x1d0] sm:$0xff]
    %v1513 = vld [vmem:[#allocation7 + $0x1d8] sm:$0xff]
    %v1514 = vld [vmem:[#allocation7 + $0x1e0] sm:$0xff]
    %v1515 = vld [vmem:[#allocation7 + $0x1e8] sm:$0xff]
    %v1516 = vld [vmem:[#allocation7 + $0x1f0] sm:$0xff]
    %v1517 = vld [vmem:[#allocation7 + $0x1f8] sm:$0xff]
    %1518 = vmatprep.subr.mxu0 %v1455
    %1519 = vmatpush1.msra.mxu0 %v1454
    %1520 = vmatprep.subr.mxu0 %v1459
    %1521 = vmatpush1.msra.mxu0 %v1458
    %1522 = vmatprep.subr.mxu0 %v1463
    %1523 = vmatpush1.msra.mxu0 %v1462
    %1524 = vmatprep.subr.mxu0 %v1467
    %1525 = vmatpush1.msra.mxu0 %v1466
    %1526 = vmatprep.subr.mxu0 %v1471
    %1527 = vmatpush1.msra.mxu0 %v1470
    %1528 = vmatprep.subr.mxu0 %v1475
    %1529 = vmatpush1.msra.mxu0 %v1474
    %1530 = vmatprep.subr.mxu0 %v1479
    %1531 = vmatpush1.msra.mxu0 %v1478
    %1532 = vmatprep.subr.mxu0 %v1483
    %1533 = vmatpush1.msra.mxu0 %v1482
    %1534 = vmatprep.subr.mxu0 %v1487
    %1535 = vmatpush1.msra.mxu0 %v1486
    %1536 = vmatprep.subr.mxu0 %v1491
    %1537 = vmatpush1.msra.mxu0 %v1490
    %1538 = vmatprep.subr.mxu0 %v1495
    %1539 = vmatpush1.msra.mxu0 %v1494
    %1540 = vmatprep.subr.mxu0 %v1499
    %1541 = vmatpush1.msra.mxu0 %v1498
    %1542 = vmatprep.subr.mxu0 %v1503
    %1543 = vmatpush1.msra.mxu0 %v1502
    %1544 = vmatprep.subr.mxu0 %v1507
    %1545 = vmatpush1.msra.mxu0 %v1506
    %1546 = vmatprep.subr.mxu0 %v1511
    %1547 = vmatpush1.msra.mxu0 %v1510
    %1548 = vmatprep.subr.mxu0 %v1515
    %1549 = vmatpush1.msra.mxu0 %v1514
    %1550 = vmatprep.subr.mxu0 0.0
    %1551 = vmatpush1.msra.mxu0 0.0
    %1552 = vmatprep.subr.mxu0 0.0
    %1553 = vmatpush1.msra.mxu0 0.0
    %1554 = vmatprep.subr.mxu0 0.0
    %1555 = vmatpush1.msra.mxu0 0.0
    %1556 = vmatprep.subr.mxu0 0.0
    %1557 = vmatpush1.msra.mxu0 0.0
    %1558 = vmatprep.subr.mxu0 0.0
    %1559 = vmatpush1.msra.mxu0 0.0
    %1560 = vmatprep.subr.mxu0 0.0
    %1561 = vmatpush1.msra.mxu0 0.0
    %1562 = vmatprep.subr.mxu0 0.0
    %1563 = vmatpush1.msra.mxu0 0.0
    %1564 = vmatprep.subr.mxu0 0.0
    %1565 = vmatpush1.msra.mxu0 0.0
    %1566 = vmatprep.subr.mxu0 0.0
    %1567 = vmatpush1.msra.mxu0 0.0
    %1568 = vmatprep.subr.mxu0 0.0
    %1569 = vmatpush1.msra.mxu0 0.0
    %1570 = vmatprep.subr.mxu0 0.0
    %1571 = vmatpush1.msra.mxu0 0.0
    %1572 = vmatprep.subr.mxu0 0.0
    %1573 = vmatpush1.msra.mxu0 0.0
    %1574 = vmatprep.subr.mxu0 0.0
    %1575 = vmatpush1.msra.mxu0 0.0
    %1576 = vmatprep.subr.mxu0 0.0
    %1577 = vmatpush1.msra.mxu0 0.0
    %1578 = vmatprep.subr.mxu0 0.0
    %1579 = vmatpush1.msra.mxu0 0.0
    %1580 = vmatprep.subr.mxu0 0.0
    %1581 = vmatpush1.msra.mxu0 0.0
    %1582 = vmatprep.mubr.f32.mxu0 0.0
    %1583 = vmatmul.mubr.f32.gmra.mrb[0].mxu0 %v1448
    %v1584 = vpop.f32.mrb[0].mxu0
    %v1585 = vadd.f32 0.0, %v1584
    %v1586 = vpop.f32.mrb[0].mxu0
    %v1587 = vadd.f32 0.0, %v1586
    %1588 = vdwg.mxu0
    %1589 = vmatprep.subr.mxu0 %v1457
    %1590 = vmatpush1.msra.mxu0 %v1456
    %1591 = vmatprep.subr.mxu0 %v1461
    %1592 = vmatpush1.msra.mxu0 %v1460
    %1593 = vmatprep.subr.mxu0 %v1465
    %1594 = vmatpush1.msra.mxu0 %v1464
    %1595 = vmatprep.subr.mxu0 %v1469
    %1596 = vmatpush1.msra.mxu0 %v1468
    %1597 = vmatprep.subr.mxu0 %v1473
    %1598 = vmatpush1.msra.mxu0 %v1472
    %1599 = vmatprep.subr.mxu0 %v1477
    %1600 = vmatpush1.msra.mxu0 %v1476
    %1601 = vmatprep.subr.mxu0 %v1481
    %1602 = vmatpush1.msra.mxu0 %v1480
    %1603 = vmatprep.subr.mxu0 %v1485
    %1604 = vmatpush1.msra.mxu0 %v1484
    %1605 = vmatprep.subr.mxu0 %v1489
    %1606 = vmatpush1.msra.mxu0 %v1488
    %1607 = vmatprep.subr.mxu0 %v1493
    %1608 = vmatpush1.msra.mxu0 %v1492
    %1609 = vmatprep.subr.mxu0 %v1497
    %1610 = vmatpush1.msra.mxu0 %v1496
    %1611 = vmatprep.subr.mxu0 %v1501
    %1612 = vmatpush1.msra.mxu0 %v1500
    %1613 = vmatprep.subr.mxu0 %v1505
    %1614 = vmatpush1.msra.mxu0 %v1504
    %1615 = vmatprep.subr.mxu0 %v1509
    %1616 = vmatpush1.msra.mxu0 %v1508
    %1617 = vmatprep.subr.mxu0 %v1513
    %1618 = vmatpush1.msra.mxu0 %v1512
    %1619 = vmatprep.subr.mxu0 %v1517
    %1620 = vmatpush1.msra.mxu0 %v1516
    %1621 = vmatprep.subr.mxu0 0.0
    %1622 = vmatpush1.msra.mxu0 0.0
    %1623 = vmatprep.subr.mxu0 0.0
    %1624 = vmatpush1.msra.mxu0 0.0
    %1625 = vmatprep.subr.mxu0 0.0
    %1626 = vmatpush1.msra.mxu0 0.0
    %1627 = vmatprep.subr.mxu0 0.0
    %1628 = vmatpush1.msra.mxu0 0.0
    %1629 = vmatprep.subr.mxu0 0.0
    %1630 = vmatpush1.msra.mxu0 0.0
    %1631 = vmatprep.subr.mxu0 0.0
    %1632 = vmatpush1.msra.mxu0 0.0
    %1633 = vmatprep.subr.mxu0 0.0
    %1634 = vmatpush1.msra.mxu0 0.0
    %1635 = vmatprep.subr.mxu0 0.0
    %1636 = vmatpush1.msra.mxu0 0.0
    %1637 = vmatprep.subr.mxu0 0.0
    %1638 = vmatpush1.msra.mxu0 0.0
    %1639 = vmatprep.subr.mxu0 0.0
    %1640 = vmatpush1.msra.mxu0 0.0
    %1641 = vmatprep.subr.mxu0 0.0
    %1642 = vmatpush1.msra.mxu0 0.0
    %1643 = vmatprep.subr.mxu0 0.0
    %1644 = vmatpush1.msra.mxu0 0.0
    %1645 = vmatprep.subr.mxu0 0.0
    %1646 = vmatpush1.msra.mxu0 0.0
    %1647 = vmatprep.subr.mxu0 0.0
    %1648 = vmatpush1.msra.mxu0 0.0
    %1649 = vmatprep.subr.mxu0 0.0
    %1650 = vmatpush1.msra.mxu0 0.0
    %1651 = vmatprep.subr.mxu0 0.0
    %1652 = vmatpush1.msra.mxu0 0.0
    %1653 = vmatprep.mubr.f32.mxu0 0.0
    %1654 = vmatmul.mubr.f32.gmra.mrb[0].mxu0 %v1448
    %v1655 = vpop.f32.mrb[0].mxu0
    %v1656 = vadd.f32 0.0, %v1655
    %v1657 = vpop.f32.mrb[0].mxu0
    %v1658 = vadd.f32 0.0, %v1657
    %1659 = vdwg.mxu0
    %v1660 = vadd.f32 %v1450, %v1585
    %v1661 = vadd.f32 %v1451, %v1587
    %v1662 = vadd.f32 %v1452, %v1656
    %v1663 = vadd.f32 %v1453, %v1658
    %v1664 = vxor.u32 %v1660, 2147483648
    %v1665 = vmul.f32 %v1664, 1.442695
    %v1666 = vpow.pop %v1665
    %v1667 = vadd.f32 %v1666, 1.0
    %v1668 = vrcp.pop %v1667
    %v1669 = vmul.f32 1.0, %v1668
    %v1670 = vxor.u32 %v1661, 2147483648
    %v1671 = vmul.f32 %v1670, 1.442695
    %v1672 = vpow.pop %v1671
    %v1673 = vadd.f32 %v1672, 1.0
    %v1674 = vrcp.pop %v1673
    %v1675 = vmul.f32 1.0, %v1674
    %v1676 = vtanh.pop %v1662
    %v1677 = vxor.u32 %v1663, 2147483648
    %v1678 = vmul.f32 %v1677, 1.442695
    %v1679 = vpow.pop %v1678
    %v1680 = vadd.f32 %v1679, 1.0
    %v1681 = vrcp.pop %v1680
    %v1682 = vmul.f32 1.0, %v1681
    %v1683 = vmul.f32 %v1675, %v1446
    %v1684 = vmul.f32 %v1669, %v1676
    %v1685 = vadd.f32 %v1683, %v1684
    %v1686 = vtanh.pop %v1685
    %v1687 = vmul.f32 %v1682, %v1686
    %1688 = vst [vmem:[#allocation3 + $0x20] sm:$0xff] %v1687
    %v1689 = vld [vmem:[#allocation2 + $0xa0] sm:$0xff]
    %v1690 = vld [vmem:[#allocation2 + $0xa8] sm:$0xff]
    %v1691 = vld [vmem:[#allocation2 + $0xb0] sm:$0xff]
    %v1692 = vld [vmem:[#allocation2 + $0xb8] sm:$0xff]
    %v1693 = vld [vmem:[#allocation7] sm:$0xff]
    %v1694 = vld [vmem:[#allocation7 + $0x8] sm:$0xff]
    %v1695 = vld [vmem:[#allocation7 + $0x10] sm:$0xff]
    %v1696 = vld [vmem:[#allocation7 + $0x18] sm:$0xff]
    %v1697 = vld [vmem:[#allocation7 + $0x20] sm:$0xff]
    %v1698 = vld [vmem:[#allocation7 + $0x28] sm:$0xff]
    %v1699 = vld [vmem:[#allocation7 + $0x30] sm:$0xff]
    %v1700 = vld [vmem:[#allocation7 + $0x38] sm:$0xff]
    %v1701 = vld [vmem:[#allocation7 + $0x40] sm:$0xff]
    %v1702 = vld [vmem:[#allocation7 + $0x48] sm:$0xff]
    %v1703 = vld [vmem:[#allocation7 + $0x50] sm:$0xff]
    %v1704 = vld [vmem:[#allocation7 + $0x58] sm:$0xff]
    %v1705 = vld [vmem:[#allocation7 + $0x60] sm:$0xff]
    %v1706 = vld [vmem:[#allocation7 + $0x68] sm:$0xff]
    %v1707 = vld [vmem:[#allocation7 + $0x70] sm:$0xff]
    %v1708 = vld [vmem:[#allocation7 + $0x78] sm:$0xff]
    %v1709 = vld [vmem:[#allocation7 + $0x80] sm:$0xff]
    %v1710 = vld [vmem:[#allocation7 + $0x88] sm:$0xff]
    %v1711 = vld [vmem:[#allocation7 + $0x90] sm:$0xff]
    %v1712 = vld [vmem:[#allocation7 + $0x98] sm:$0xff]
    %v1713 = vld [vmem:[#allocation7 + $0xa0] sm:$0xff]
    %v1714 = vld [vmem:[#allocation7 + $0xa8] sm:$0xff]
    %v1715 = vld [vmem:[#allocation7 + $0xb0] sm:$0xff]
    %v1716 = vld [vmem:[#allocation7 + $0xb8] sm:$0xff]
    %v1717 = vld [vmem:[#allocation7 + $0xc0] sm:$0xff]
    %v1718 = vld [vmem:[#allocation7 + $0xc8] sm:$0xff]
    %v1719 = vld [vmem:[#allocation7 + $0xd0] sm:$0xff]
    %v1720 = vld [vmem:[#allocation7 + $0xd8] sm:$0xff]
    %v1721 = vld [vmem:[#allocation7 + $0xe0] sm:$0xff]
    %v1722 = vld [vmem:[#allocation7 + $0xe8] sm:$0xff]
    %v1723 = vld [vmem:[#allocation7 + $0xf0] sm:$0xff]
    %v1724 = vld [vmem:[#allocation7 + $0xf8] sm:$0xff]
    %v1725 = vld [vmem:[#allocation7 + $0x100] sm:$0xff]
    %v1726 = vld [vmem:[#allocation7 + $0x108] sm:$0xff]
    %v1727 = vld [vmem:[#allocation7 + $0x110] sm:$0xff]
    %v1728 = vld [vmem:[#allocation7 + $0x118] sm:$0xff]
    %v1729 = vld [vmem:[#allocation7 + $0x120] sm:$0xff]
    %v1730 = vld [vmem:[#allocation7 + $0x128] sm:$0xff]
    %v1731 = vld [vmem:[#allocation7 + $0x130] sm:$0xff]
    %v1732 = vld [vmem:[#allocation7 + $0x138] sm:$0xff]
    %v1733 = vld [vmem:[#allocation7 + $0x140] sm:$0xff]
    %v1734 = vld [vmem:[#allocation7 + $0x148] sm:$0xff]
    %v1735 = vld [vmem:[#allocation7 + $0x150] sm:$0xff]
    %v1736 = vld [vmem:[#allocation7 + $0x158] sm:$0xff]
    %v1737 = vld [vmem:[#allocation7 + $0x160] sm:$0xff]
    %v1738 = vld [vmem:[#allocation7 + $0x168] sm:$0xff]
    %v1739 = vld [vmem:[#allocation7 + $0x170] sm:$0xff]
    %v1740 = vld [vmem:[#allocation7 + $0x178] sm:$0xff]
    %v1741 = vld [vmem:[#allocation7 + $0x180] sm:$0xff]
    %v1742 = vld [vmem:[#allocation7 + $0x188] sm:$0xff]
    %v1743 = vld [vmem:[#allocation7 + $0x190] sm:$0xff]
    %v1744 = vld [vmem:[#allocation7 + $0x198] sm:$0xff]
    %v1745 = vld [vmem:[#allocation7 + $0x1a0] sm:$0xff]
    %v1746 = vld [vmem:[#allocation7 + $0x1a8] sm:$0xff]
    %v1747 = vld [vmem:[#allocation7 + $0x1b0] sm:$0xff]
    %v1748 = vld [vmem:[#allocation7 + $0x1b8] sm:$0xff]
    %v1749 = vld [vmem:[#allocation7 + $0x1c0] sm:$0xff]
    %v1750 = vld [vmem:[#allocation7 + $0x1c8] sm:$0xff]
    %v1751 = vld [vmem:[#allocation7 + $0x1d0] sm:$0xff]
    %v1752 = vld [vmem:[#allocation7 + $0x1d8] sm:$0xff]
    %v1753 = vld [vmem:[#allocation7 + $0x1e0] sm:$0xff]
    %v1754 = vld [vmem:[#allocation7 + $0x1e8] sm:$0xff]
    %v1755 = vld [vmem:[#allocation7 + $0x1f0] sm:$0xff]
    %v1756 = vld [vmem:[#allocation7 + $0x1f8] sm:$0xff]
    %1757 = vmatprep.subr.mxu0 %v1694
    %1758 = vmatpush1.msra.mxu0 %v1693
    %1759 = vmatprep.subr.mxu0 %v1698
    %1760 = vmatpush1.msra.mxu0 %v1697
    %1761 = vmatprep.subr.mxu0 %v1702
    %1762 = vmatpush1.msra.mxu0 %v1701
    %1763 = vmatprep.subr.mxu0 %v1706
    %1764 = vmatpush1.msra.mxu0 %v1705
    %1765 = vmatprep.subr.mxu0 %v1710
    %1766 = vmatpush1.msra.mxu0 %v1709
    %1767 = vmatprep.subr.mxu0 %v1714
    %1768 = vmatpush1.msra.mxu0 %v1713
    %1769 = vmatprep.subr.mxu0 %v1718
    %1770 = vmatpush1.msra.mxu0 %v1717
    %1771 = vmatprep.subr.mxu0 %v1722
    %1772 = vmatpush1.msra.mxu0 %v1721
    %1773 = vmatprep.subr.mxu0 %v1726
    %1774 = vmatpush1.msra.mxu0 %v1725
    %1775 = vmatprep.subr.mxu0 %v1730
    %1776 = vmatpush1.msra.mxu0 %v1729
    %1777 = vmatprep.subr.mxu0 %v1734
    %1778 = vmatpush1.msra.mxu0 %v1733
    %1779 = vmatprep.subr.mxu0 %v1738
    %1780 = vmatpush1.msra.mxu0 %v1737
    %1781 = vmatprep.subr.mxu0 %v1742
    %1782 = vmatpush1.msra.mxu0 %v1741
    %1783 = vmatprep.subr.mxu0 %v1746
    %1784 = vmatpush1.msra.mxu0 %v1745
    %1785 = vmatprep.subr.mxu0 %v1750
    %1786 = vmatpush1.msra.mxu0 %v1749
    %1787 = vmatprep.subr.mxu0 %v1754
    %1788 = vmatpush1.msra.mxu0 %v1753
    %1789 = vmatprep.subr.mxu0 0.0
    %1790 = vmatpush1.msra.mxu0 0.0
    %1791 = vmatprep.subr.mxu0 0.0
    %1792 = vmatpush1.msra.mxu0 0.0
    %1793 = vmatprep.subr.mxu0 0.0
    %1794 = vmatpush1.msra.mxu0 0.0
    %1795 = vmatprep.subr.mxu0 0.0
    %1796 = vmatpush1.msra.mxu0 0.0
    %1797 = vmatprep.subr.mxu0 0.0
    %1798 = vmatpush1.msra.mxu0 0.0
    %1799 = vmatprep.subr.mxu0 0.0
    %1800 = vmatpush1.msra.mxu0 0.0
    %1801 = vmatprep.subr.mxu0 0.0
    %1802 = vmatpush1.msra.mxu0 0.0
    %1803 = vmatprep.subr.mxu0 0.0
    %1804 = vmatpush1.msra.mxu0 0.0
    %1805 = vmatprep.subr.mxu0 0.0
    %1806 = vmatpush1.msra.mxu0 0.0
    %1807 = vmatprep.subr.mxu0 0.0
    %1808 = vmatpush1.msra.mxu0 0.0
    %1809 = vmatprep.subr.mxu0 0.0
    %1810 = vmatpush1.msra.mxu0 0.0
    %1811 = vmatprep.subr.mxu0 0.0
    %1812 = vmatpush1.msra.mxu0 0.0
    %1813 = vmatprep.subr.mxu0 0.0
    %1814 = vmatpush1.msra.mxu0 0.0
    %1815 = vmatprep.subr.mxu0 0.0
    %1816 = vmatpush1.msra.mxu0 0.0
    %1817 = vmatprep.subr.mxu0 0.0
    %1818 = vmatpush1.msra.mxu0 0.0
    %1819 = vmatprep.subr.mxu0 0.0
    %1820 = vmatpush1.msra.mxu0 0.0
    %1821 = vmatprep.mubr.f32.mxu0 0.0
    %1822 = vmatmul.mubr.f32.gmra.mrb[0].mxu0 %v1687
    %v1823 = vpop.f32.mrb[0].mxu0
    %v1824 = vadd.f32 0.0, %v1823
    %v1825 = vpop.f32.mrb[0].mxu0
    %v1826 = vadd.f32 0.0, %v1825
    %1827 = vdwg.mxu0
    %1828 = vmatprep.subr.mxu0 %v1696
    %1829 = vmatpush1.msra.mxu0 %v1695
    %1830 = vmatprep.subr.mxu0 %v1700
    %1831 = vmatpush1.msra.mxu0 %v1699
    %1832 = vmatprep.subr.mxu0 %v1704
    %1833 = vmatpush1.msra.mxu0 %v1703
    %1834 = vmatprep.subr.mxu0 %v1708
    %1835 = vmatpush1.msra.mxu0 %v1707
    %1836 = vmatprep.subr.mxu0 %v1712
    %1837 = vmatpush1.msra.mxu0 %v1711
    %1838 = vmatprep.subr.mxu0 %v1716
    %1839 = vmatpush1.msra.mxu0 %v1715
    %1840 = vmatprep.subr.mxu0 %v1720
    %1841 = vmatpush1.msra.mxu0 %v1719
    %1842 = vmatprep.subr.mxu0 %v1724
    %1843 = vmatpush1.msra.mxu0 %v1723
    %1844 = vmatprep.subr.mxu0 %v1728
    %1845 = vmatpush1.msra.mxu0 %v1727
    %1846 = vmatprep.subr.mxu0 %v1732
    %1847 = vmatpush1.msra.mxu0 %v1731
    %1848 = vmatprep.subr.mxu0 %v1736
    %1849 = vmatpush1.msra.mxu0 %v1735
    %1850 = vmatprep.subr.mxu0 %v1740
    %1851 = vmatpush1.msra.mxu0 %v1739
    %1852 = vmatprep.subr.mxu0 %v1744
    %1853 = vmatpush1.msra.mxu0 %v1743
    %1854 = vmatprep.subr.mxu0 %v1748
    %1855 = vmatpush1.msra.mxu0 %v1747
    %1856 = vmatprep.subr.mxu0 %v1752
    %1857 = vmatpush1.msra.mxu0 %v1751
    %1858 = vmatprep.subr.mxu0 %v1756
    %1859 = vmatpush1.msra.mxu0 %v1755
    %1860 = vmatprep.subr.mxu0 0.0
    %1861 = vmatpush1.msra.mxu0 0.0
    %1862 = vmatprep.subr.mxu0 0.0
    %1863 = vmatpush1.msra.mxu0 0.0
    %1864 = vmatprep.subr.mxu0 0.0
    %1865 = vmatpush1.msra.mxu0 0.0
    %1866 = vmatprep.subr.mxu0 0.0
    %1867 = vmatpush1.msra.mxu0 0.0
    %1868 = vmatprep.subr.mxu0 0.0
    %1869 = vmatpush1.msra.mxu0 0.0
    %1870 = vmatprep.subr.mxu0 0.0
    %1871 = vmatpush1.msra.mxu0 0.0
    %1872 = vmatprep.subr.mxu0 0.0
    %1873 = vmatpush1.msra.mxu0 0.0
    %1874 = vmatprep.subr.mxu0 0.0
    %1875 = vmatpush1.msra.mxu0 0.0
    %1876 = vmatprep.subr.mxu0 0.0
    %1877 = vmatpush1.msra.mxu0 0.0
    %1878 = vmatprep.subr.mxu0 0.0
    %1879 = vmatpush1.msra.mxu0 0.0
    %1880 = vmatprep.subr.mxu0 0.0
    %1881 = vmatpush1.msra.mxu0 0.0
    %1882 = vmatprep.subr.mxu0 0.0
    %1883 = vmatpush1.msra.mxu0 0.0
    %1884 = vmatprep.subr.mxu0 0.0
    %1885 = vmatpush1.msra.mxu0 0.0
    %1886 = vmatprep.subr.mxu0 0.0
    %1887 = vmatpush1.msra.mxu0 0.0
    %1888 = vmatprep.subr.mxu0 0.0
    %1889 = vmatpush1.msra.mxu0 0.0
    %1890 = vmatprep.subr.mxu0 0.0
    %1891 = vmatpush1.msra.mxu0 0.0
    %1892 = vmatprep.mubr.f32.mxu0 0.0
    %1893 = vmatmul.mubr.f32.gmra.mrb[0].mxu0 %v1687
    %v1894 = vpop.f32.mrb[0].mxu0
    %v1895 = vadd.f32 0.0, %v1894
    %v1896 = vpop.f32.mrb[0].mxu0
    %v1897 = vadd.f32 0.0, %v1896
    %1898 = vdwg.mxu0
    %v1899 = vadd.f32 %v1689, %v1824
    %v1900 = vadd.f32 %v1690, %v1826
    %v1901 = vadd.f32 %v1691, %v1895
    %v1902 = vadd.f32 %v1692, %v1897
    %v1903 = vxor.u32 %v1899, 2147483648
    %v1904 = vmul.f32 %v1903, 1.442695
    %v1905 = vpow.pop %v1904
    %v1906 = vadd.f32 %v1905, 1.0
    %v1907 = vrcp.pop %v1906
    %v1908 = vmul.f32 1.0, %v1907
    %v1909 = vxor.u32 %v1900, 2147483648
    %v1910 = vmul.f32 %v1909, 1.442695
    %v1911 = vpow.pop %v1910
    %v1912 = vadd.f32 %v1911, 1.0
    %v1913 = vrcp.pop %v1912
    %v1914 = vmul.f32 1.0, %v1913
    %v1915 = vtanh.pop %v1901
    %v1916 = vxor.u32 %v1902, 2147483648
    %v1917 = vmul.f32 %v1916, 1.442695
    %v1918 = vpow.pop %v1917
    %v1919 = vadd.f32 %v1918, 1.0
    %v1920 = vrcp.pop %v1919
    %v1921 = vmul.f32 1.0, %v1920
    %v1922 = vmul.f32 %v1914, %v1685
    %v1923 = vmul.f32 %v1908, %v1915
    %v1924 = vadd.f32 %v1922, %v1923
    %v1925 = vtanh.pop %v1924
    %v1926 = vmul.f32 %v1921, %v1925
    %1927 = vst [vmem:[#allocation3 + $0x28] sm:$0xff] %v1926
    %v1928 = vld [vmem:[#allocation2 + $0xc0] sm:$0xff]
    %v1929 = vld [vmem:[#allocation2 + $0xc8] sm:$0xff]
    %v1930 = vld [vmem:[#allocation2 + $0xd0] sm:$0xff]
    %v1931 = vld [vmem:[#allocation2 + $0xd8] sm:$0xff]
    %v1932 = vld [vmem:[#allocation7] sm:$0xff]
    %v1933 = vld [vmem:[#allocation7 + $0x8] sm:$0xff]
    %v1934 = vld [vmem:[#allocation7 + $0x10] sm:$0xff]
    %v1935 = vld [vmem:[#allocation7 + $0x18] sm:$0xff]
    %v1936 = vld [vmem:[#allocation7 + $0x20] sm:$0xff]
    %v1937 = vld [vmem:[#allocation7 + $0x28] sm:$0xff]
    %v1938 = vld [vmem:[#allocation7 + $0x30] sm:$0xff]
    %v1939 = vld [vmem:[#allocation7 + $0x38] sm:$0xff]
    %v1940 = vld [vmem:[#allocation7 + $0x40] sm:$0xff]
    %v1941 = vld [vmem:[#allocation7 + $0x48] sm:$0xff]
    %v1942 = vld [vmem:[#allocation7 + $0x50] sm:$0xff]
    %v1943 = vld [vmem:[#allocation7 + $0x58] sm:$0xff]
    %v1944 = vld [vmem:[#allocation7 + $0x60] sm:$0xff]
    %v1945 = vld [vmem:[#allocation7 + $0x68] sm:$0xff]
    %v1946 = vld [vmem:[#allocation7 + $0x70] sm:$0xff]
    %v1947 = vld [vmem:[#allocation7 + $0x78] sm:$0xff]
    %v1948 = vld [vmem:[#allocation7 + $0x80] sm:$0xff]
    %v1949 = vld [vmem:[#allocation7 + $0x88] sm:$0xff]
    %v1950 = vld [vmem:[#allocation7 + $0x90] sm:$0xff]
    %v1951 = vld [vmem:[#allocation7 + $0x98] sm:$0xff]
    %v1952 = vld [vmem:[#allocation7 + $0xa0] sm:$0xff]
    %v1953 = vld [vmem:[#allocation7 + $0xa8] sm:$0xff]
    %v1954 = vld [vmem:[#allocation7 + $0xb0] sm:$0xff]
    %v1955 = vld [vmem:[#allocation7 + $0xb8] sm:$0xff]
    %v1956 = vld [vmem:[#allocation7 + $0xc0] sm:$0xff]
    %v1957 = vld [vmem:[#allocation7 + $0xc8] sm:$0xff]
    %v1958 = vld [vmem:[#allocation7 + $0xd0] sm:$0xff]
    %v1959 = vld [vmem:[#allocation7 + $0xd8] sm:$0xff]
    %v1960 = vld [vmem:[#allocation7 + $0xe0] sm:$0xff]
    %v1961 = vld [vmem:[#allocation7 + $0xe8] sm:$0xff]
    %v1962 = vld [vmem:[#allocation7 + $0xf0] sm:$0xff]
    %v1963 = vld [vmem:[#allocation7 + $0xf8] sm:$0xff]
    %v1964 = vld [vmem:[#allocation7 + $0x100] sm:$0xff]
    %v1965 = vld [vmem:[#allocation7 + $0x108] sm:$0xff]
    %v1966 = vld [vmem:[#allocation7 + $0x110] sm:$0xff]
    %v1967 = vld [vmem:[#allocation7 + $0x118] sm:$0xff]
    %v1968 = vld [vmem:[#allocation7 + $0x120] sm:$0xff]
    %v1969 = vld [vmem:[#allocation7 + $0x128] sm:$0xff]
    %v1970 = vld [vmem:[#allocation7 + $0x130] sm:$0xff]
    %v1971 = vld [vmem:[#allocation7 + $0x138] sm:$0xff]
    %v1972 = vld [vmem:[#allocation7 + $0x140] sm:$0xff]
    %v1973 = vld [vmem:[#allocation7 + $0x148] sm:$0xff]
    %v1974 = vld [vmem:[#allocation7 + $0x150] sm:$0xff]
    %v1975 = vld [vmem:[#allocation7 + $0x158] sm:$0xff]
    %v1976 = vld [vmem:[#allocation7 + $0x160] sm:$0xff]
    %v1977 = vld [vmem:[#allocation7 + $0x168] sm:$0xff]
    %v1978 = vld [vmem:[#allocation7 + $0x170] sm:$0xff]
    %v1979 = vld [vmem:[#allocation7 + $0x178] sm:$0xff]
    %v1980 = vld [vmem:[#allocation7 + $0x180] sm:$0xff]
    %v1981 = vld [vmem:[#allocation7 + $0x188] sm:$0xff]
    %v1982 = vld [vmem:[#allocation7 + $0x190] sm:$0xff]
    %v1983 = vld [vmem:[#allocation7 + $0x198] sm:$0xff]
    %v1984 = vld [vmem:[#allocation7 + $0x1a0] sm:$0xff]
    %v1985 = vld [vmem:[#allocation7 + $0x1a8] sm:$0xff]
    %v1986 = vld [vmem:[#allocation7 + $0x1b0] sm:$0xff]
    %v1987 = vld [vmem:[#allocation7 + $0x1b8] sm:$0xff]
    %v1988 = vld [vmem:[#allocation7 + $0x1c0] sm:$0xff]
    %v1989 = vld [vmem:[#allocation7 + $0x1c8] sm:$0xff]
    %v1990 = vld [vmem:[#allocation7 + $0x1d0] sm:$0xff]
    %v1991 = vld [vmem:[#allocation7 + $0x1d8] sm:$0xff]
    %v1992 = vld [vmem:[#allocation7 + $0x1e0] sm:$0xff]
    %v1993 = vld [vmem:[#allocation7 + $0x1e8] sm:$0xff]
    %v1994 = vld [vmem:[#allocation7 + $0x1f0] sm:$0xff]
    %v1995 = vld [vmem:[#allocation7 + $0x1f8] sm:$0xff]
    %1996 = vmatprep.subr.mxu0 %v1933
    %1997 = vmatpush1.msra.mxu0 %v1932
    %1998 = vmatprep.subr.mxu0 %v1937
    %1999 = vmatpush1.msra.mxu0 %v1936
    %2000 = vmatprep.subr.mxu0 %v1941
    %2001 = vmatpush1.msra.mxu0 %v1940
    %2002 = vmatprep.subr.mxu0 %v1945
    %2003 = vmatpush1.msra.mxu0 %v1944
    %2004 = vmatprep.subr.mxu0 %v1949
    %2005 = vmatpush1.msra.mxu0 %v1948
    %2006 = vmatprep.subr.mxu0 %v1953
    %2007 = vmatpush1.msra.mxu0 %v1952
    %2008 = vmatprep.subr.mxu0 %v1957
    %2009 = vmatpush1.msra.mxu0 %v1956
    %2010 = vmatprep.subr.mxu0 %v1961
    %2011 = vmatpush1.msra.mxu0 %v1960
    %2012 = vmatprep.subr.mxu0 %v1965
    %2013 = vmatpush1.msra.mxu0 %v1964
    %2014 = vmatprep.subr.mxu0 %v1969
    %2015 = vmatpush1.msra.mxu0 %v1968
    %2016 = vmatprep.subr.mxu0 %v1973
    %2017 = vmatpush1.msra.mxu0 %v1972
    %2018 = vmatprep.subr.mxu0 %v1977
    %2019 = vmatpush1.msra.mxu0 %v1976
    %2020 = vmatprep.subr.mxu0 %v1981
    %2021 = vmatpush1.msra.mxu0 %v1980
    %2022 = vmatprep.subr.mxu0 %v1985
    %2023 = vmatpush1.msra.mxu0 %v1984
    %2024 = vmatprep.subr.mxu0 %v1989
    %2025 = vmatpush1.msra.mxu0 %v1988
    %2026 = vmatprep.subr.mxu0 %v1993
    %2027 = vmatpush1.msra.mxu0 %v1992
    %2028 = vmatprep.subr.mxu0 0.0
    %2029 = vmatpush1.msra.mxu0 0.0
    %2030 = vmatprep.subr.mxu0 0.0
    %2031 = vmatpush1.msra.mxu0 0.0
    %2032 = vmatprep.subr.mxu0 0.0
    %2033 = vmatpush1.msra.mxu0 0.0
    %2034 = vmatprep.subr.mxu0 0.0
    %2035 = vmatpush1.msra.mxu0 0.0
    %2036 = vmatprep.subr.mxu0 0.0
    %2037 = vmatpush1.msra.mxu0 0.0
    %2038 = vmatprep.subr.mxu0 0.0
    %2039 = vmatpush1.msra.mxu0 0.0
    %2040 = vmatprep.subr.mxu0 0.0
    %2041 = vmatpush1.msra.mxu0 0.0
    %2042 = vmatprep.subr.mxu0 0.0
    %2043 = vmatpush1.msra.mxu0 0.0
    %2044 = vmatprep.subr.mxu0 0.0
    %2045 = vmatpush1.msra.mxu0 0.0
    %2046 = vmatprep.subr.mxu0 0.0
    %2047 = vmatpush1.msra.mxu0 0.0
    %2048 = vmatprep.subr.mxu0 0.0
    %2049 = vmatpush1.msra.mxu0 0.0
    %2050 = vmatprep.subr.mxu0 0.0
    %2051 = vmatpush1.msra.mxu0 0.0
    %2052 = vmatprep.subr.mxu0 0.0
    %2053 = vmatpush1.msra.mxu0 0.0
    %2054 = vmatprep.subr.mxu0 0.0
    %2055 = vmatpush1.msra.mxu0 0.0
    %2056 = vmatprep.subr.mxu0 0.0
    %2057 = vmatpush1.msra.mxu0 0.0
    %2058 = vmatprep.subr.mxu0 0.0
    %2059 = vmatpush1.msra.mxu0 0.0
    %2060 = vmatprep.mubr.f32.mxu0 0.0
    %2061 = vmatmul.mubr.f32.gmra.mrb[0].mxu0 %v1926
    %v2062 = vpop.f32.mrb[0].mxu0
    %v2063 = vadd.f32 0.0, %v2062
    %v2064 = vpop.f32.mrb[0].mxu0
    %v2065 = vadd.f32 0.0, %v2064
    %2066 = vdwg.mxu0
    %2067 = vmatprep.subr.mxu0 %v1935
    %2068 = vmatpush1.msra.mxu0 %v1934
    %2069 = vmatprep.subr.mxu0 %v1939
    %2070 = vmatpush1.msra.mxu0 %v1938
    %2071 = vmatprep.subr.mxu0 %v1943
    %2072 = vmatpush1.msra.mxu0 %v1942
    %2073 = vmatprep.subr.mxu0 %v1947
    %2074 = vmatpush1.msra.mxu0 %v1946
    %2075 = vmatprep.subr.mxu0 %v1951
    %2076 = vmatpush1.msra.mxu0 %v1950
    %2077 = vmatprep.subr.mxu0 %v1955
    %2078 = vmatpush1.msra.mxu0 %v1954
    %2079 = vmatprep.subr.mxu0 %v1959
    %2080 = vmatpush1.msra.mxu0 %v1958
    %2081 = vmatprep.subr.mxu0 %v1963
    %2082 = vmatpush1.msra.mxu0 %v1962
    %2083 = vmatprep.subr.mxu0 %v1967
    %2084 = vmatpush1.msra.mxu0 %v1966
    %2085 = vmatprep.subr.mxu0 %v1971
    %2086 = vmatpush1.msra.mxu0 %v1970
    %2087 = vmatprep.subr.mxu0 %v1975
    %2088 = vmatpush1.msra.mxu0 %v1974
    %2089 = vmatprep.subr.mxu0 %v1979
    %2090 = vmatpush1.msra.mxu0 %v1978
    %2091 = vmatprep.subr.mxu0 %v1983
    %2092 = vmatpush1.msra.mxu0 %v1982
    %2093 = vmatprep.subr.mxu0 %v1987
    %2094 = vmatpush1.msra.mxu0 %v1986
    %2095 = vmatprep.subr.mxu0 %v1991
    %2096 = vmatpush1.msra.mxu0 %v1990
    %2097 = vmatprep.subr.mxu0 %v1995
    %2098 = vmatpush1.msra.mxu0 %v1994
    %2099 = vmatprep.subr.mxu0 0.0
    %2100 = vmatpush1.msra.mxu0 0.0
    %2101 = vmatprep.subr.mxu0 0.0
    %2102 = vmatpush1.msra.mxu0 0.0
    %2103 = vmatprep.subr.mxu0 0.0
    %2104 = vmatpush1.msra.mxu0 0.0
    %2105 = vmatprep.subr.mxu0 0.0
    %2106 = vmatpush1.msra.mxu0 0.0
    %2107 = vmatprep.subr.mxu0 0.0
    %2108 = vmatpush1.msra.mxu0 0.0
    %2109 = vmatprep.subr.mxu0 0.0
    %2110 = vmatpush1.msra.mxu0 0.0
    %2111 = vmatprep.subr.mxu0 0.0
    %2112 = vmatpush1.msra.mxu0 0.0
    %2113 = vmatprep.subr.mxu0 0.0
    %2114 = vmatpush1.msra.mxu0 0.0
    %2115 = vmatprep.subr.mxu0 0.0
    %2116 = vmatpush1.msra.mxu0 0.0
    %2117 = vmatprep.subr.mxu0 0.0
    %2118 = vmatpush1.msra.mxu0 0.0
    %2119 = vmatprep.subr.mxu0 0.0
    %2120 = vmatpush1.msra.mxu0 0.0
    %2121 = vmatprep.subr.mxu0 0.0
    %2122 = vmatpush1.msra.mxu0 0.0
    %2123 = vmatprep.subr.mxu0 0.0
    %2124 = vmatpush1.msra.mxu0 0.0
    %2125 = vmatprep.subr.mxu0 0.0
    %2126 = vmatpush1.msra.mxu0 0.0
    %2127 = vmatprep.subr.mxu0 0.0
    %2128 = vmatpush1.msra.mxu0 0.0
    %2129 = vmatprep.subr.mxu0 0.0
    %2130 = vmatpush1.msra.mxu0 0.0
    %2131 = vmatprep.mubr.f32.mxu0 0.0
    %2132 = vmatmul.mubr.f32.gmra.mrb[0].mxu0 %v1926
    %v2133 = vpop.f32.mrb[0].mxu0
    %v2134 = vadd.f32 0.0, %v2133
    %v2135 = vpop.f32.mrb[0].mxu0
    %v2136 = vadd.f32 0.0, %v2135
    %2137 = vdwg.mxu0
    %v2138 = vadd.f32 %v1928, %v2063
    %v2139 = vadd.f32 %v1929, %v2065
    %v2140 = vadd.f32 %v1930, %v2134
    %v2141 = vadd.f32 %v1931, %v2136
    %v2142 = vxor.u32 %v2138, 2147483648
    %v2143 = vmul.f32 %v2142, 1.442695
    %v2144 = vpow.pop %v2143
    %v2145 = vadd.f32 %v2144, 1.0
    %v2146 = vrcp.pop %v2145
    %v2147 = vmul.f32 1.0, %v2146
    %v2148 = vxor.u32 %v2139, 2147483648
    %v2149 = vmul.f32 %v2148, 1.442695
    %v2150 = vpow.pop %v2149
    %v2151 = vadd.f32 %v2150, 1.0
    %v2152 = vrcp.pop %v2151
    %v2153 = vmul.f32 1.0, %v2152
    %v2154 = vtanh.pop %v2140
    %v2155 = vxor.u32 %v2141, 2147483648
    %v2156 = vmul.f32 %v2155, 1.442695
    %v2157 = vpow.pop %v2156
    %v2158 = vadd.f32 %v2157, 1.0
    %v2159 = vrcp.pop %v2158
    %v2160 = vmul.f32 1.0, %v2159
    %v2161 = vmul.f32 %v2153, %v1924
    %v2162 = vmul.f32 %v2147, %v2154
    %v2163 = vadd.f32 %v2161, %v2162
    %v2164 = vtanh.pop %v2163
    %v2165 = vmul.f32 %v2160, %v2164
    %2166 = vst [vmem:[#allocation3 + $0x30] sm:$0xff] %v2165
    %v2167 = vld [vmem:[#allocation2 + $0xe0] sm:$0xff]
    %v2168 = vld [vmem:[#allocation2 + $0xe8] sm:$0xff]
    %v2169 = vld [vmem:[#allocation2 + $0xf0] sm:$0xff]
    %v2170 = vld [vmem:[#allocation2 + $0xf8] sm:$0xff]
    %v2171 = vld [vmem:[#allocation7] sm:$0xff]
    %v2172 = vld [vmem:[#allocation7 + $0x8] sm:$0xff]
    %v2173 = vld [vmem:[#allocation7 + $0x10] sm:$0xff]
    %v2174 = vld [vmem:[#allocation7 + $0x18] sm:$0xff]
    %v2175 = vld [vmem:[#allocation7 + $0x20] sm:$0xff]
    %v2176 = vld [vmem:[#allocation7 + $0x28] sm:$0xff]
    %v2177 = vld [vmem:[#allocation7 + $0x30] sm:$0xff]
    %v2178 = vld [vmem:[#allocation7 + $0x38] sm:$0xff]
    %v2179 = vld [vmem:[#allocation7 + $0x40] sm:$0xff]
    %v2180 = vld [vmem:[#allocation7 + $0x48] sm:$0xff]
    %v2181 = vld [vmem:[#allocation7 + $0x50] sm:$0xff]
    %v2182 = vld [vmem:[#allocation7 + $0x58] sm:$0xff]
    %v2183 = vld [vmem:[#allocation7 + $0x60] sm:$0xff]
    %v2184 = vld [vmem:[#allocation7 + $0x68] sm:$0xff]
    %v2185 = vld [vmem:[#allocation7 + $0x70] sm:$0xff]
    %v2186 = vld [vmem:[#allocation7 + $0x78] sm:$0xff]
    %v2187 = vld [vmem:[#allocation7 + $0x80] sm:$0xff]
    %v2188 = vld [vmem:[#allocation7 + $0x88] sm:$0xff]
    %v2189 = vld [vmem:[#allocation7 + $0x90] sm:$0xff]
    %v2190 = vld [vmem:[#allocation7 + $0x98] sm:$0xff]
    %v2191 = vld [vmem:[#allocation7 + $0xa0] sm:$0xff]
    %v2192 = vld [vmem:[#allocation7 + $0xa8] sm:$0xff]
    %v2193 = vld [vmem:[#allocation7 + $0xb0] sm:$0xff]
    %v2194 = vld [vmem:[#allocation7 + $0xb8] sm:$0xff]
    %v2195 = vld [vmem:[#allocation7 + $0xc0] sm:$0xff]
    %v2196 = vld [vmem:[#allocation7 + $0xc8] sm:$0xff]
    %v2197 = vld [vmem:[#allocation7 + $0xd0] sm:$0xff]
    %v2198 = vld [vmem:[#allocation7 + $0xd8] sm:$0xff]
    %v2199 = vld [vmem:[#allocation7 + $0xe0] sm:$0xff]
    %v2200 = vld [vmem:[#allocation7 + $0xe8] sm:$0xff]
    %v2201 = vld [vmem:[#allocation7 + $0xf0] sm:$0xff]
    %v2202 = vld [vmem:[#allocation7 + $0xf8] sm:$0xff]
    %v2203 = vld [vmem:[#allocation7 + $0x100] sm:$0xff]
    %v2204 = vld [vmem:[#allocation7 + $0x108] sm:$0xff]
    %v2205 = vld [vmem:[#allocation7 + $0x110] sm:$0xff]
    %v2206 = vld [vmem:[#allocation7 + $0x118] sm:$0xff]
    %v2207 = vld [vmem:[#allocation7 + $0x120] sm:$0xff]
    %v2208 = vld [vmem:[#allocation7 + $0x128] sm:$0xff]
    %v2209 = vld [vmem:[#allocation7 + $0x130] sm:$0xff]
    %v2210 = vld [vmem:[#allocation7 + $0x138] sm:$0xff]
    %v2211 = vld [vmem:[#allocation7 + $0x140] sm:$0xff]
    %v2212 = vld [vmem:[#allocation7 + $0x148] sm:$0xff]
    %v2213 = vld [vmem:[#allocation7 + $0x150] sm:$0xff]
    %v2214 = vld [vmem:[#allocation7 + $0x158] sm:$0xff]
    %v2215 = vld [vmem:[#allocation7 + $0x160] sm:$0xff]
    %v2216 = vld [vmem:[#allocation7 + $0x168] sm:$0xff]
    %v2217 = vld [vmem:[#allocation7 + $0x170] sm:$0xff]
    %v2218 = vld [vmem:[#allocation7 + $0x178] sm:$0xff]
    %v2219 = vld [vmem:[#allocation7 + $0x180] sm:$0xff]
    %v2220 = vld [vmem:[#allocation7 + $0x188] sm:$0xff]
    %v2221 = vld [vmem:[#allocation7 + $0x190] sm:$0xff]
    %v2222 = vld [vmem:[#allocation7 + $0x198] sm:$0xff]
    %v2223 = vld [vmem:[#allocation7 + $0x1a0] sm:$0xff]
    %v2224 = vld [vmem:[#allocation7 + $0x1a8] sm:$0xff]
    %v2225 = vld [vmem:[#allocation7 + $0x1b0] sm:$0xff]
    %v2226 = vld [vmem:[#allocation7 + $0x1b8] sm:$0xff]
    %v2227 = vld [vmem:[#allocation7 + $0x1c0] sm:$0xff]
    %v2228 = vld [vmem:[#allocation7 + $0x1c8] sm:$0xff]
    %v2229 = vld [vmem:[#allocation7 + $0x1d0] sm:$0xff]
    %v2230 = vld [vmem:[#allocation7 + $0x1d8] sm:$0xff]
    %v2231 = vld [vmem:[#allocation7 + $0x1e0] sm:$0xff]
    %v2232 = vld [vmem:[#allocation7 + $0x1e8] sm:$0xff]
    %v2233 = vld [vmem:[#allocation7 + $0x1f0] sm:$0xff]
    %v2234 = vld [vmem:[#allocation7 + $0x1f8] sm:$0xff]
    %2235 = vmatprep.subr.mxu0 %v2172
    %2236 = vmatpush1.msra.mxu0 %v2171
    %2237 = vmatprep.subr.mxu0 %v2176
    %2238 = vmatpush1.msra.mxu0 %v2175
    %2239 = vmatprep.subr.mxu0 %v2180
    %2240 = vmatpush1.msra.mxu0 %v2179
    %2241 = vmatprep.subr.mxu0 %v2184
    %2242 = vmatpush1.msra.mxu0 %v2183
    %2243 = vmatprep.subr.mxu0 %v2188
    %2244 = vmatpush1.msra.mxu0 %v2187
    %2245 = vmatprep.subr.mxu0 %v2192
    %2246 = vmatpush1.msra.mxu0 %v2191
    %2247 = vmatprep.subr.mxu0 %v2196
    %2248 = vmatpush1.msra.mxu0 %v2195
    %2249 = vmatprep.subr.mxu0 %v2200
    %2250 = vmatpush1.msra.mxu0 %v2199
    %2251 = vmatprep.subr.mxu0 %v2204
    %2252 = vmatpush1.msra.mxu0 %v2203
    %2253 = vmatprep.subr.mxu0 %v2208
    %2254 = vmatpush1.msra.mxu0 %v2207
    %2255 = vmatprep.subr.mxu0 %v2212
    %2256 = vmatpush1.msra.mxu0 %v2211
    %2257 = vmatprep.subr.mxu0 %v2216
    %2258 = vmatpush1.msra.mxu0 %v2215
    %2259 = vmatprep.subr.mxu0 %v2220
    %2260 = vmatpush1.msra.mxu0 %v2219
    %2261 = vmatprep.subr.mxu0 %v2224
    %2262 = vmatpush1.msra.mxu0 %v2223
    %2263 = vmatprep.subr.mxu0 %v2228
    %2264 = vmatpush1.msra.mxu0 %v2227
    %2265 = vmatprep.subr.mxu0 %v2232
    %2266 = vmatpush1.msra.mxu0 %v2231
    %2267 = vmatprep.subr.mxu0 0.0
    %2268 = vmatpush1.msra.mxu0 0.0
    %2269 = vmatprep.subr.mxu0 0.0
    %2270 = vmatpush1.msra.mxu0 0.0
    %2271 = vmatprep.subr.mxu0 0.0
    %2272 = vmatpush1.msra.mxu0 0.0
    %2273 = vmatprep.subr.mxu0 0.0
    %2274 = vmatpush1.msra.mxu0 0.0
    %2275 = vmatprep.subr.mxu0 0.0
    %2276 = vmatpush1.msra.mxu0 0.0
    %2277 = vmatprep.subr.mxu0 0.0
    %2278 = vmatpush1.msra.mxu0 0.0
    %2279 = vmatprep.subr.mxu0 0.0
    %2280 = vmatpush1.msra.mxu0 0.0
    %2281 = vmatprep.subr.mxu0 0.0
    %2282 = vmatpush1.msra.mxu0 0.0
    %2283 = vmatprep.subr.mxu0 0.0
    %2284 = vmatpush1.msra.mxu0 0.0
    %2285 = vmatprep.subr.mxu0 0.0
    %2286 = vmatpush1.msra.mxu0 0.0
    %2287 = vmatprep.subr.mxu0 0.0
    %2288 = vmatpush1.msra.mxu0 0.0
    %2289 = vmatprep.subr.mxu0 0.0
    %2290 = vmatpush1.msra.mxu0 0.0
    %2291 = vmatprep.subr.mxu0 0.0
    %2292 = vmatpush1.msra.mxu0 0.0
    %2293 = vmatprep.subr.mxu0 0.0
    %2294 = vmatpush1.msra.mxu0 0.0
    %2295 = vmatprep.subr.mxu0 0.0
    %2296 = vmatpush1.msra.mxu0 0.0
    %2297 = vmatprep.subr.mxu0 0.0
    %2298 = vmatpush1.msra.mxu0 0.0
    %2299 = vmatprep.mubr.f32.mxu0 0.0
    %2300 = vmatmul.mubr.f32.gmra.mrb[0].mxu0 %v2165
    %v2301 = vpop.f32.mrb[0].mxu0
    %v2302 = vadd.f32 0.0, %v2301
    %v2303 = vpop.f32.mrb[0].mxu0
    %v2304 = vadd.f32 0.0, %v2303
    %2305 = vdwg.mxu0
    %2306 = vmatprep.subr.mxu0 %v2174
    %2307 = vmatpush1.msra.mxu0 %v2173
    %2308 = vmatprep.subr.mxu0 %v2178
    %2309 = vmatpush1.msra.mxu0 %v2177
    %2310 = vmatprep.subr.mxu0 %v2182
    %2311 = vmatpush1.msra.mxu0 %v2181
    %2312 = vmatprep.subr.mxu0 %v2186
    %2313 = vmatpush1.msra.mxu0 %v2185
    %2314 = vmatprep.subr.mxu0 %v2190
    %2315 = vmatpush1.msra.mxu0 %v2189
    %2316 = vmatprep.subr.mxu0 %v2194
    %2317 = vmatpush1.msra.mxu0 %v2193
    %2318 = vmatprep.subr.mxu0 %v2198
    %2319 = vmatpush1.msra.mxu0 %v2197
    %2320 = vmatprep.subr.mxu0 %v2202
    %2321 = vmatpush1.msra.mxu0 %v2201
    %2322 = vmatprep.subr.mxu0 %v2206
    %2323 = vmatpush1.msra.mxu0 %v2205
    %2324 = vmatprep.subr.mxu0 %v2210
    %2325 = vmatpush1.msra.mxu0 %v2209
    %2326 = vmatprep.subr.mxu0 %v2214
    %2327 = vmatpush1.msra.mxu0 %v2213
    %2328 = vmatprep.subr.mxu0 %v2218
    %2329 = vmatpush1.msra.mxu0 %v2217
    %2330 = vmatprep.subr.mxu0 %v2222
    %2331 = vmatpush1.msra.mxu0 %v2221
    %2332 = vmatprep.subr.mxu0 %v2226
    %2333 = vmatpush1.msra.mxu0 %v2225
    %2334 = vmatprep.subr.mxu0 %v2230
    %2335 = vmatpush1.msra.mxu0 %v2229
    %2336 = vmatprep.subr.mxu0 %v2234
    %2337 = vmatpush1.msra.mxu0 %v2233
    %2338 = vmatprep.subr.mxu0 0.0
    %2339 = vmatpush1.msra.mxu0 0.0
    %2340 = vmatprep.subr.mxu0 0.0
    %2341 = vmatpush1.msra.mxu0 0.0
    %2342 = vmatprep.subr.mxu0 0.0
    %2343 = vmatpush1.msra.mxu0 0.0
    %2344 = vmatprep.subr.mxu0 0.0
    %2345 = vmatpush1.msra.mxu0 0.0
    %2346 = vmatprep.subr.mxu0 0.0
    %2347 = vmatpush1.msra.mxu0 0.0
    %2348 = vmatprep.subr.mxu0 0.0
    %2349 = vmatpush1.msra.mxu0 0.0
    %2350 = vmatprep.subr.mxu0 0.0
    %2351 = vmatpush1.msra.mxu0 0.0
    %2352 = vmatprep.subr.mxu0 0.0
    %2353 = vmatpush1.msra.mxu0 0.0
    %2354 = vmatprep.subr.mxu0 0.0
    %2355 = vmatpush1.msra.mxu0 0.0
    %2356 = vmatprep.subr.mxu0 0.0
    %2357 = vmatpush1.msra.mxu0 0.0
    %2358 = vmatprep.subr.mxu0 0.0
    %2359 = vmatpush1.msra.mxu0 0.0
    %2360 = vmatprep.subr.mxu0 0.0
    %2361 = vmatpush1.msra.mxu0 0.0
    %2362 = vmatprep.subr.mxu0 0.0
    %2363 = vmatpush1.msra.mxu0 0.0
    %2364 = vmatprep.subr.mxu0 0.0
    %2365 = vmatpush1.msra.mxu0 0.0
    %2366 = vmatprep.subr.mxu0 0.0
    %2367 = vmatpush1.msra.mxu0 0.0
    %2368 = vmatprep.subr.mxu0 0.0
    %2369 = vmatpush1.msra.mxu0 0.0
    %2370 = vmatprep.mubr.f32.mxu0 0.0
    %2371 = vmatmul.mubr.f32.gmra.mrb[0].mxu0 %v2165
    %v2372 = vpop.f32.mrb[0].mxu0
    %v2373 = vadd.f32 0.0, %v2372
    %v2374 = vpop.f32.mrb[0].mxu0
    %v2375 = vadd.f32 0.0, %v2374
    %2376 = vdwg.mxu0
    %v2377 = vadd.f32 %v2167, %v2302
    %v2378 = vadd.f32 %v2168, %v2304
    %v2379 = vadd.f32 %v2169, %v2373
    %v2380 = vadd.f32 %v2170, %v2375
    %v2381 = vxor.u32 %v2377, 2147483648
    %v2382 = vmul.f32 %v2381, 1.442695
    %v2383 = vpow.pop %v2382
    %v2384 = vadd.f32 %v2383, 1.0
    %v2385 = vrcp.pop %v2384
    %v2386 = vmul.f32 1.0, %v2385
    %v2387 = vxor.u32 %v2378, 2147483648
    %v2388 = vmul.f32 %v2387, 1.442695
    %v2389 = vpow.pop %v2388
    %v2390 = vadd.f32 %v2389, 1.0
    %v2391 = vrcp.pop %v2390
    %v2392 = vmul.f32 1.0, %v2391
    %v2393 = vtanh.pop %v2379
    %v2394 = vxor.u32 %v2380, 2147483648
    %v2395 = vmul.f32 %v2394, 1.442695
    %v2396 = vpow.pop %v2395
    %v2397 = vadd.f32 %v2396, 1.0
    %v2398 = vrcp.pop %v2397
    %v2399 = vmul.f32 1.0, %v2398
    %v2400 = vmul.f32 %v2392, %v2163
    %v2401 = vmul.f32 %v2386, %v2393
    %v2402 = vadd.f32 %v2400, %v2401
    %v2403 = vtanh.pop %v2402
    %v2404 = vmul.f32 %v2399, %v2403
    %2405 = vst [vmem:[#allocation3 + $0x38] sm:$0xff] %v2404
    %v2406 = vld [vmem:[#allocation2 + $0x100] sm:$0xff]
    %v2407 = vld [vmem:[#allocation2 + $0x108] sm:$0xff]
    %v2408 = vld [vmem:[#allocation2 + $0x110] sm:$0xff]
    %v2409 = vld [vmem:[#allocation2 + $0x118] sm:$0xff]
    %v2410 = vld [vmem:[#allocation7] sm:$0xff]
    %v2411 = vld [vmem:[#allocation7 + $0x8] sm:$0xff]
    %v2412 = vld [vmem:[#allocation7 + $0x10] sm:$0xff]
    %v2413 = vld [vmem:[#allocation7 + $0x18] sm:$0xff]
    %v2414 = vld [vmem:[#allocation7 + $0x20] sm:$0xff]
    %v2415 = vld [vmem:[#allocation7 + $0x28] sm:$0xff]
    %v2416 = vld [vmem:[#allocation7 + $0x30] sm:$0xff]
    %v2417 = vld [vmem:[#allocation7 + $0x38] sm:$0xff]
    %v2418 = vld [vmem:[#allocation7 + $0x40] sm:$0xff]
    %v2419 = vld [vmem:[#allocation7 + $0x48] sm:$0xff]
    %v2420 = vld [vmem:[#allocation7 + $0x50] sm:$0xff]
    %v2421 = vld [vmem:[#allocation7 + $0x58] sm:$0xff]
    %v2422 = vld [vmem:[#allocation7 + $0x60] sm:$0xff]
    %v2423 = vld [vmem:[#allocation7 + $0x68] sm:$0xff]
    %v2424 = vld [vmem:[#allocation7 + $0x70] sm:$0xff]
    %v2425 = vld [vmem:[#allocation7 + $0x78] sm:$0xff]
    %v2426 = vld [vmem:[#allocation7 + $0x80] sm:$0xff]
    %v2427 = vld [vmem:[#allocation7 + $0x88] sm:$0xff]
    %v2428 = vld [vmem:[#allocation7 + $0x90] sm:$0xff]
    %v2429 = vld [vmem:[#allocation7 + $0x98] sm:$0xff]
    %v2430 = vld [vmem:[#allocation7 + $0xa0] sm:$0xff]
    %v2431 = vld [vmem:[#allocation7 + $0xa8] sm:$0xff]
    %v2432 = vld [vmem:[#allocation7 + $0xb0] sm:$0xff]
    %v2433 = vld [vmem:[#allocation7 + $0xb8] sm:$0xff]
    %v2434 = vld [vmem:[#allocation7 + $0xc0] sm:$0xff]
    %v2435 = vld [vmem:[#allocation7 + $0xc8] sm:$0xff]
    %v2436 = vld [vmem:[#allocation7 + $0xd0] sm:$0xff]
    %v2437 = vld [vmem:[#allocation7 + $0xd8] sm:$0xff]
    %v2438 = vld [vmem:[#allocation7 + $0xe0] sm:$0xff]
    %v2439 = vld [vmem:[#allocation7 + $0xe8] sm:$0xff]
    %v2440 = vld [vmem:[#allocation7 + $0xf0] sm:$0xff]
    %v2441 = vld [vmem:[#allocation7 + $0xf8] sm:$0xff]
    %v2442 = vld [vmem:[#allocation7 + $0x100] sm:$0xff]
    %v2443 = vld [vmem:[#allocation7 + $0x108] sm:$0xff]
    %v2444 = vld [vmem:[#allocation7 + $0x110] sm:$0xff]
    %v2445 = vld [vmem:[#allocation7 + $0x118] sm:$0xff]
    %v2446 = vld [vmem:[#allocation7 + $0x120] sm:$0xff]
    %v2447 = vld [vmem:[#allocation7 + $0x128] sm:$0xff]
    %v2448 = vld [vmem:[#allocation7 + $0x130] sm:$0xff]
    %v2449 = vld [vmem:[#allocation7 + $0x138] sm:$0xff]
    %v2450 = vld [vmem:[#allocation7 + $0x140] sm:$0xff]
    %v2451 = vld [vmem:[#allocation7 + $0x148] sm:$0xff]
    %v2452 = vld [vmem:[#allocation7 + $0x150] sm:$0xff]
    %v2453 = vld [vmem:[#allocation7 + $0x158] sm:$0xff]
    %v2454 = vld [vmem:[#allocation7 + $0x160] sm:$0xff]
    %v2455 = vld [vmem:[#allocation7 + $0x168] sm:$0xff]
    %v2456 = vld [vmem:[#allocation7 + $0x170] sm:$0xff]
    %v2457 = vld [vmem:[#allocation7 + $0x178] sm:$0xff]
    %v2458 = vld [vmem:[#allocation7 + $0x180] sm:$0xff]
    %v2459 = vld [vmem:[#allocation7 + $0x188] sm:$0xff]
    %v2460 = vld [vmem:[#allocation7 + $0x190] sm:$0xff]
    %v2461 = vld [vmem:[#allocation7 + $0x198] sm:$0xff]
    %v2462 = vld [vmem:[#allocation7 + $0x1a0] sm:$0xff]
    %v2463 = vld [vmem:[#allocation7 + $0x1a8] sm:$0xff]
    %v2464 = vld [vmem:[#allocation7 + $0x1b0] sm:$0xff]
    %v2465 = vld [vmem:[#allocation7 + $0x1b8] sm:$0xff]
    %v2466 = vld [vmem:[#allocation7 + $0x1c0] sm:$0xff]
    %v2467 = vld [vmem:[#allocation7 + $0x1c8] sm:$0xff]
    %v2468 = vld [vmem:[#allocation7 + $0x1d0] sm:$0xff]
    %v2469 = vld [vmem:[#allocation7 + $0x1d8] sm:$0xff]
    %v2470 = vld [vmem:[#allocation7 + $0x1e0] sm:$0xff]
    %v2471 = vld [vmem:[#allocation7 + $0x1e8] sm:$0xff]
    %v2472 = vld [vmem:[#allocation7 + $0x1f0] sm:$0xff]
    %v2473 = vld [vmem:[#allocation7 + $0x1f8] sm:$0xff]
    %2474 = vmatprep.subr.mxu0 %v2411
    %2475 = vmatpush1.msra.mxu0 %v2410
    %2476 = vmatprep.subr.mxu0 %v2415
    %2477 = vmatpush1.msra.mxu0 %v2414
    %2478 = vmatprep.subr.mxu0 %v2419
    %2479 = vmatpush1.msra.mxu0 %v2418
    %2480 = vmatprep.subr.mxu0 %v2423
    %2481 = vmatpush1.msra.mxu0 %v2422
    %2482 = vmatprep.subr.mxu0 %v2427
    %2483 = vmatpush1.msra.mxu0 %v2426
    %2484 = vmatprep.subr.mxu0 %v2431
    %2485 = vmatpush1.msra.mxu0 %v2430
    %2486 = vmatprep.subr.mxu0 %v2435
    %2487 = vmatpush1.msra.mxu0 %v2434
    %2488 = vmatprep.subr.mxu0 %v2439
    %2489 = vmatpush1.msra.mxu0 %v2438
    %2490 = vmatprep.subr.mxu0 %v2443
    %2491 = vmatpush1.msra.mxu0 %v2442
    %2492 = vmatprep.subr.mxu0 %v2447
    %2493 = vmatpush1.msra.mxu0 %v2446
    %2494 = vmatprep.subr.mxu0 %v2451
    %2495 = vmatpush1.msra.mxu0 %v2450
    %2496 = vmatprep.subr.mxu0 %v2455
    %2497 = vmatpush1.msra.mxu0 %v2454
    %2498 = vmatprep.subr.mxu0 %v2459
    %2499 = vmatpush1.msra.mxu0 %v2458
    %2500 = vmatprep.subr.mxu0 %v2463
    %2501 = vmatpush1.msra.mxu0 %v2462
    %2502 = vmatprep.subr.mxu0 %v2467
    %2503 = vmatpush1.msra.mxu0 %v2466
    %2504 = vmatprep.subr.mxu0 %v2471
    %2505 = vmatpush1.msra.mxu0 %v2470
    %2506 = vmatprep.subr.mxu0 0.0
    %2507 = vmatpush1.msra.mxu0 0.0
    %2508 = vmatprep.subr.mxu0 0.0
    %2509 = vmatpush1.msra.mxu0 0.0
    %2510 = vmatprep.subr.mxu0 0.0
    %2511 = vmatpush1.msra.mxu0 0.0
    %2512 = vmatprep.subr.mxu0 0.0
    %2513 = vmatpush1.msra.mxu0 0.0
    %2514 = vmatprep.subr.mxu0 0.0
    %2515 = vmatpush1.msra.mxu0 0.0
    %2516 = vmatprep.subr.mxu0 0.0
    %2517 = vmatpush1.msra.mxu0 0.0
    %2518 = vmatprep.subr.mxu0 0.0
    %2519 = vmatpush1.msra.mxu0 0.0
    %2520 = vmatprep.subr.mxu0 0.0
    %2521 = vmatpush1.msra.mxu0 0.0
    %2522 = vmatprep.subr.mxu0 0.0
    %2523 = vmatpush1.msra.mxu0 0.0
    %2524 = vmatprep.subr.mxu0 0.0
    %2525 = vmatpush1.msra.mxu0 0.0
    %2526 = vmatprep.subr.mxu0 0.0
    %2527 = vmatpush1.msra.mxu0 0.0
    %2528 = vmatprep.subr.mxu0 0.0
    %2529 = vmatpush1.msra.mxu0 0.0
    %2530 = vmatprep.subr.mxu0 0.0
    %2531 = vmatpush1.msra.mxu0 0.0
    %2532 = vmatprep.subr.mxu0 0.0
    %2533 = vmatpush1.msra.mxu0 0.0
    %2534 = vmatprep.subr.mxu0 0.0
    %2535 = vmatpush1.msra.mxu0 0.0
    %2536 = vmatprep.subr.mxu0 0.0
    %2537 = vmatpush1.msra.mxu0 0.0
    %2538 = vmatprep.mubr.f32.mxu0 0.0
    %2539 = vmatmul.mubr.f32.gmra.mrb[0].mxu0 %v2404
    %v2540 = vpop.f32.mrb[0].mxu0
    %v2541 = vadd.f32 0.0, %v2540
    %v2542 = vpop.f32.mrb[0].mxu0
    %v2543 = vadd.f32 0.0, %v2542
    %2544 = vdwg.mxu0
    %2545 = vmatprep.subr.mxu0 %v2413
    %2546 = vmatpush1.msra.mxu0 %v2412
    %2547 = vmatprep.subr.mxu0 %v2417
    %2548 = vmatpush1.msra.mxu0 %v2416
    %2549 = vmatprep.subr.mxu0 %v2421
    %2550 = vmatpush1.msra.mxu0 %v2420
    %2551 = vmatprep.subr.mxu0 %v2425
    %2552 = vmatpush1.msra.mxu0 %v2424
    %2553 = vmatprep.subr.mxu0 %v2429
    %2554 = vmatpush1.msra.mxu0 %v2428
    %2555 = vmatprep.subr.mxu0 %v2433
    %2556 = vmatpush1.msra.mxu0 %v2432
    %2557 = vmatprep.subr.mxu0 %v2437
    %2558 = vmatpush1.msra.mxu0 %v2436
    %2559 = vmatprep.subr.mxu0 %v2441
    %2560 = vmatpush1.msra.mxu0 %v2440
    %2561 = vmatprep.subr.mxu0 %v2445
    %2562 = vmatpush1.msra.mxu0 %v2444
    %2563 = vmatprep.subr.mxu0 %v2449
    %2564 = vmatpush1.msra.mxu0 %v2448
    %2565 = vmatprep.subr.mxu0 %v2453
    %2566 = vmatpush1.msra.mxu0 %v2452
    %2567 = vmatprep.subr.mxu0 %v2457
    %2568 = vmatpush1.msra.mxu0 %v2456
    %2569 = vmatprep.subr.mxu0 %v2461
    %2570 = vmatpush1.msra.mxu0 %v2460
    %2571 = vmatprep.subr.mxu0 %v2465
    %2572 = vmatpush1.msra.mxu0 %v2464
    %2573 = vmatprep.subr.mxu0 %v2469
    %2574 = vmatpush1.msra.mxu0 %v2468
    %2575 = vmatprep.subr.mxu0 %v2473
    %2576 = vmatpush1.msra.mxu0 %v2472
    %2577 = vmatprep.subr.mxu0 0.0
    %2578 = vmatpush1.msra.mxu0 0.0
    %2579 = vmatprep.subr.mxu0 0.0
    %2580 = vmatpush1.msra.mxu0 0.0
    %2581 = vmatprep.subr.mxu0 0.0
    %2582 = vmatpush1.msra.mxu0 0.0
    %2583 = vmatprep.subr.mxu0 0.0
    %2584 = vmatpush1.msra.mxu0 0.0
    %2585 = vmatprep.subr.mxu0 0.0
    %2586 = vmatpush1.msra.mxu0 0.0
    %2587 = vmatprep.subr.mxu0 0.0
    %2588 = vmatpush1.msra.mxu0 0.0
    %2589 = vmatprep.subr.mxu0 0.0
    %2590 = vmatpush1.msra.mxu0 0.0
    %2591 = vmatprep.subr.mxu0 0.0
    %2592 = vmatpush1.msra.mxu0 0.0
    %2593 = vmatprep.subr.mxu0 0.0
    %2594 = vmatpush1.msra.mxu0 0.0
    %2595 = vmatprep.subr.mxu0 0.0
    %2596 = vmatpush1.msra.mxu0 0.0
    %2597 = vmatprep.subr.mxu0 0.0
    %2598 = vmatpush1.msra.mxu0 0.0
    %2599 = vmatprep.subr.mxu0 0.0
    %2600 = vmatpush1.msra.mxu0 0.0
    %2601 = vmatprep.subr.mxu0 0.0
    %2602 = vmatpush1.msra.mxu0 0.0
    %2603 = vmatprep.subr.mxu0 0.0
    %2604 = vmatpush1.msra.mxu0 0.0
    %2605 = vmatprep.subr.mxu0 0.0
    %2606 = vmatpush1.msra.mxu0 0.0
    %2607 = vmatprep.subr.mxu0 0.0
    %2608 = vmatpush1.msra.mxu0 0.0
    %2609 = vmatprep.mubr.f32.mxu0 0.0
    %2610 = vmatmul.mubr.f32.gmra.mrb[0].mxu0 %v2404
    %v2611 = vpop.f32.mrb[0].mxu0
    %v2612 = vadd.f32 0.0, %v2611
    %v2613 = vpop.f32.mrb[0].mxu0
    %v2614 = vadd.f32 0.0, %v2613
    %2615 = vdwg.mxu0
    %v2616 = vadd.f32 %v2406, %v2541
    %v2617 = vadd.f32 %v2407, %v2543
    %v2618 = vadd.f32 %v2408, %v2612
    %v2619 = vadd.f32 %v2409, %v2614
    %v2620 = vxor.u32 %v2616, 2147483648
    %v2621 = vmul.f32 %v2620, 1.442695
    %v2622 = vpow.pop %v2621
    %v2623 = vadd.f32 %v2622, 1.0
    %v2624 = vrcp.pop %v2623
    %v2625 = vmul.f32 1.0, %v2624
    %v2626 = vxor.u32 %v2617, 2147483648
    %v2627 = vmul.f32 %v2626, 1.442695
    %v2628 = vpow.pop %v2627
    %v2629 = vadd.f32 %v2628, 1.0
    %v2630 = vrcp.pop %v2629
    %v2631 = vmul.f32 1.0, %v2630
    %v2632 = vtanh.pop %v2618
    %v2633 = vxor.u32 %v2619, 2147483648
    %v2634 = vmul.f32 %v2633, 1.442695
    %v2635 = vpow.pop %v2634
    %v2636 = vadd.f32 %v2635, 1.0
    %v2637 = vrcp.pop %v2636
    %v2638 = vmul.f32 1.0, %v2637
    %v2639 = vmul.f32 %v2631, %v2402
    %v2640 = vmul.f32 %v2625, %v2632
    %v2641 = vadd.f32 %v2639, %v2640
    %v2642 = vtanh.pop %v2641
    %v2643 = vmul.f32 %v2638, %v2642
    %2644 = vst [vmem:[#allocation3 + $0x40] sm:$0xff] %v2643
    %v2645 = vld [vmem:[#allocation3] sm:$0xff]
    %v2646 = vld [vmem:[#allocation3 + $0x8] sm:$0xff]
    %v2647 = vld [vmem:[#allocation3 + $0x10] sm:$0xff]
    %v2648 = vld [vmem:[#allocation3 + $0x18] sm:$0xff]
    %v2649 = vld [vmem:[#allocation3 + $0x20] sm:$0xff]
    %v2650 = vld [vmem:[#allocation3 + $0x28] sm:$0xff]
    %v2651 = vld [vmem:[#allocation3 + $0x30] sm:$0xff]
    %v2652 = vld [vmem:[#allocation3 + $0x38] sm:$0xff]
    %v2653 = vld [vmem:[#allocation3 + $0x40] sm:$0xff]
    %v2654 = vld [vmem:[#allocation9] sm:$0xff]
    %v2655 = vld [vmem:[#allocation9 + $0x8] sm:$0xff]
    %v2656 = vld [vmem:[#allocation9 + $0x10] sm:$0xff]
    %v2657 = vld [vmem:[#allocation9 + $0x18] sm:$0xff]
    %v2658 = vld [vmem:[#allocation9 + $0x20] sm:$0xff]
    %v2659 = vld [vmem:[#allocation9 + $0x28] sm:$0xff]
    %v2660 = vld [vmem:[#allocation9 + $0x30] sm:$0xff]
    %v2661 = vld [vmem:[#allocation9 + $0x38] sm:$0xff]
    %v2662 = vld [vmem:[#allocation9 + $0x40] sm:$0xff]
    %v2663 = vld [vmem:[#allocation9 + $0x48] sm:$0xff]
    %v2664 = vld [vmem:[#allocation9 + $0x50] sm:$0xff]
    %v2665 = vld [vmem:[#allocation9 + $0x58] sm:$0xff]
    %v2666 = vld [vmem:[#allocation9 + $0x60] sm:$0xff]
    %v2667 = vld [vmem:[#allocation9 + $0x68] sm:$0xff]
    %v2668 = vld [vmem:[#allocation9 + $0x70] sm:$0xff]
    %v2669 = vld [vmem:[#allocation9 + $0x78] sm:$0xff]
    %v2670 = vld [vmem:[#allocation9 + $0x80] sm:$0xff]
    %v2671 = vld [vmem:[#allocation9 + $0x88] sm:$0xff]
    %v2672 = vld [vmem:[#allocation9 + $0x90] sm:$0xff]
    %v2673 = vld [vmem:[#allocation9 + $0x98] sm:$0xff]
    %v2674 = vld [vmem:[#allocation9 + $0xa0] sm:$0xff]
    %v2675 = vld [vmem:[#allocation9 + $0xa8] sm:$0xff]
    %v2676 = vld [vmem:[#allocation9 + $0xb0] sm:$0xff]
    %v2677 = vld [vmem:[#allocation9 + $0xb8] sm:$0xff]
    %v2678 = vld [vmem:[#allocation9 + $0xc0] sm:$0xff]
    %v2679 = vld [vmem:[#allocation9 + $0xc8] sm:$0xff]
    %v2680 = vld [vmem:[#allocation9 + $0xd0] sm:$0xff]
    %v2681 = vld [vmem:[#allocation9 + $0xd8] sm:$0xff]
    %v2682 = vld [vmem:[#allocation9 + $0xe0] sm:$0xff]
    %v2683 = vld [vmem:[#allocation9 + $0xe8] sm:$0xff]
    %v2684 = vld [vmem:[#allocation9 + $0xf0] sm:$0xff]
    %v2685 = vld [vmem:[#allocation9 + $0xf8] sm:$0xff]
    %v2686 = vld [vmem:[#allocation9 + $0x100] sm:$0xff]
    %v2687 = vld [vmem:[#allocation9 + $0x108] sm:$0xff]
    %v2688 = vld [vmem:[#allocation9 + $0x110] sm:$0xff]
    %v2689 = vld [vmem:[#allocation9 + $0x118] sm:$0xff]
    %v2690 = vld [vmem:[#allocation9 + $0x120] sm:$0xff]
    %v2691 = vld [vmem:[#allocation9 + $0x128] sm:$0xff]
    %v2692 = vld [vmem:[#allocation9 + $0x130] sm:$0xff]
    %v2693 = vld [vmem:[#allocation9 + $0x138] sm:$0xff]
    %v2694 = vld [vmem:[#allocation9 + $0x140] sm:$0xff]
    %v2695 = vld [vmem:[#allocation9 + $0x148] sm:$0xff]
    %v2696 = vld [vmem:[#allocation9 + $0x150] sm:$0xff]
    %v2697 = vld [vmem:[#allocation9 + $0x158] sm:$0xff]
    %v2698 = vld [vmem:[#allocation9 + $0x160] sm:$0xff]
    %v2699 = vld [vmem:[#allocation9 + $0x168] sm:$0xff]
    %v2700 = vld [vmem:[#allocation9 + $0x170] sm:$0xff]
    %v2701 = vld [vmem:[#allocation9 + $0x178] sm:$0xff]
    %v2702 = vld [vmem:[#allocation9 + $0x180] sm:$0xff]
    %v2703 = vld [vmem:[#allocation9 + $0x188] sm:$0xff]
    %v2704 = vld [vmem:[#allocation9 + $0x190] sm:$0xff]
    %v2705 = vld [vmem:[#allocation9 + $0x198] sm:$0xff]
    %v2706 = vld [vmem:[#allocation9 + $0x1a0] sm:$0xff]
    %v2707 = vld [vmem:[#allocation9 + $0x1a8] sm:$0xff]
    %v2708 = vld [vmem:[#allocation9 + $0x1b0] sm:$0xff]
    %v2709 = vld [vmem:[#allocation9 + $0x1b8] sm:$0xff]
    %v2710 = vld [vmem:[#allocation9 + $0x1c0] sm:$0xff]
    %v2711 = vld [vmem:[#allocation9 + $0x1c8] sm:$0xff]
    %v2712 = vld [vmem:[#allocation9 + $0x1d0] sm:$0xff]
    %v2713 = vld [vmem:[#allocation9 + $0x1d8] sm:$0xff]
    %v2714 = vld [vmem:[#allocation9 + $0x1e0] sm:$0xff]
    %v2715 = vld [vmem:[#allocation9 + $0x1e8] sm:$0xff]
    %v2716 = vld [vmem:[#allocation9 + $0x1f0] sm:$0xff]
    %v2717 = vld [vmem:[#allocation9 + $0x1f8] sm:$0xff]
    %v2718 = vld [vmem:[%s6] sm:$0xf]
    %v2720 = vlaneseq
    %v2721 = vshrl.u32 %v2720, 7
    %v2722 = vsub.s32 0, %v2721
    %v2723 = vrot.slane %v2718, %v2722
    %v2724 = vlaneseq
    %v2725 = vshrl.u32 %v2724, 7
    %v2726 = vsub.s32 1, %v2725
    %v2727 = vrot.slane %v2718, %v2726
    %v2728 = vlaneseq
    %v2729 = vshrl.u32 %v2728, 7
    %v2730 = vsub.s32 2, %v2729
    %v2731 = vrot.slane %v2718, %v2730
    %v2732 = vlaneseq
    %v2733 = vshrl.u32 %v2732, 7
    %v2734 = vsub.s32 3, %v2733
    %v2735 = vrot.slane %v2718, %v2734
    %2740 = vmatprep.subr.mxu0 %v2655
    %2741 = vmatpush1.msra.mxu0 %v2654
    %2742 = vmatprep.subr.mxu0 %v2659
    %2743 = vmatpush1.msra.mxu0 %v2658
    %2744 = vmatprep.subr.mxu0 %v2663
    %2745 = vmatpush1.msra.mxu0 %v2662
    %2746 = vmatprep.subr.mxu0 %v2667
    %2747 = vmatpush1.msra.mxu0 %v2666
    %2748 = vmatprep.subr.mxu0 %v2671
    %2749 = vmatpush1.msra.mxu0 %v2670
    %2750 = vmatprep.subr.mxu0 %v2675
    %2751 = vmatpush1.msra.mxu0 %v2674
    %2752 = vmatprep.subr.mxu0 %v2679
    %2753 = vmatpush1.msra.mxu0 %v2678
    %2754 = vmatprep.subr.mxu0 %v2683
    %2755 = vmatpush1.msra.mxu0 %v2682
    %2756 = vmatprep.subr.mxu0 %v2687
    %2757 = vmatpush1.msra.mxu0 %v2686
    %2758 = vmatprep.subr.mxu0 %v2691
    %2759 = vmatpush1.msra.mxu0 %v2690
    %2760 = vmatprep.subr.mxu0 %v2695
    %2761 = vmatpush1.msra.mxu0 %v2694
    %2762 = vmatprep.subr.mxu0 %v2699
    %2763 = vmatpush1.msra.mxu0 %v2698
    %2764 = vmatprep.subr.mxu0 %v2703
    %2765 = vmatpush1.msra.mxu0 %v2702
    %2766 = vmatprep.subr.mxu0 %v2707
    %2767 = vmatpush1.msra.mxu0 %v2706
    %2768 = vmatprep.subr.mxu0 %v2711
    %2769 = vmatpush1.msra.mxu0 %v2710
    %2770 = vmatprep.subr.mxu0 %v2715
    %2771 = vmatpush1.msra.mxu0 %v2714
    %2772 = vmatprep.subr.mxu0 0.0
    %2773 = vmatpush1.msra.mxu0 0.0
    %2774 = vmatprep.subr.mxu0 0.0
    %2775 = vmatpush1.msra.mxu0 0.0
    %2776 = vmatprep.subr.mxu0 0.0
    %2777 = vmatpush1.msra.mxu0 0.0
    %2778 = vmatprep.subr.mxu0 0.0
    %2779 = vmatpush1.msra.mxu0 0.0
    %2780 = vmatprep.subr.mxu0 0.0
    %2781 = vmatpush1.msra.mxu0 0.0
    %2782 = vmatprep.subr.mxu0 0.0
    %2783 = vmatpush1.msra.mxu0 0.0
    %2784 = vmatprep.subr.mxu0 0.0
    %2785 = vmatpush1.msra.mxu0 0.0
    %2786 = vmatprep.subr.mxu0 0.0
    %2787 = vmatpush1.msra.mxu0 0.0
    %2788 = vmatprep.subr.mxu0 0.0
    %2789 = vmatpush1.msra.mxu0 0.0
    %2790 = vmatprep.subr.mxu0 0.0
    %2791 = vmatpush1.msra.mxu0 0.0
    %2792 = vmatprep.subr.mxu0 0.0
    %2793 = vmatpush1.msra.mxu0 0.0
    %2794 = vmatprep.subr.mxu0 0.0
    %2795 = vmatpush1.msra.mxu0 0.0
    %2796 = vmatprep.subr.mxu0 0.0
    %2797 = vmatpush1.msra.mxu0 0.0
    %2798 = vmatprep.subr.mxu0 0.0
    %2799 = vmatpush1.msra.mxu0 0.0
    %2800 = vmatprep.subr.mxu0 0.0
    %2801 = vmatpush1.msra.mxu0 0.0
    %2802 = vmatprep.subr.mxu0 0.0
    %2803 = vmatpush1.msra.mxu0 0.0
    %2804 = vmatprep.mubr.f32.mxu0 0.0
    %2805 = vmatmul.mubr.f32.gmra.mrb[0].mxu0 %v2645
    %v2806 = vpop.f32.mrb[0].mxu0
    %v2807 = vadd.f32 %v2723, %v2806
    %v2808 = vpop.f32.mrb[0].mxu0
    %v2809 = vadd.f32 %v2727, %v2808
    %2810 = vmatprep.mubr.f32.mxu0 0.0
    %2811 = vmatmul.mubr.f32.gmra.mrb[0].mxu0 %v2646
    %v2812 = vpop.f32.mrb[0].mxu0
    %v2813 = vadd.f32 %v2723, %v2812
    %v2814 = vpop.f32.mrb[0].mxu0
    %v2815 = vadd.f32 %v2727, %v2814
    %2816 = vmatprep.mubr.f32.mxu0 0.0
    %2817 = vmatmul.mubr.f32.gmra.mrb[0].mxu0 %v2647
    %v2818 = vpop.f32.mrb[0].mxu0
    %v2819 = vadd.f32 %v2723, %v2818
    %v2820 = vpop.f32.mrb[0].mxu0
    %v2821 = vadd.f32 %v2727, %v2820
    %2822 = vmatprep.mubr.f32.mxu0 0.0
    %2823 = vmatmul.mubr.f32.gmra.mrb[0].mxu0 %v2648
    %v2824 = vpop.f32.mrb[0].mxu0
    %v2825 = vadd.f32 %v2723, %v2824
    %v2826 = vpop.f32.mrb[0].mxu0
    %v2827 = vadd.f32 %v2727, %v2826
    %2828 = vmatprep.mubr.f32.mxu0 0.0
    %2829 = vmatmul.mubr.f32.gmra.mrb[0].mxu0 %v2649
    %v2830 = vpop.f32.mrb[0].mxu0
    %v2831 = vadd.f32 %v2723, %v2830
    %v2832 = vpop.f32.mrb[0].mxu0
    %v2833 = vadd.f32 %v2727, %v2832
    %2834 = vmatprep.mubr.f32.mxu0 0.0
    %2835 = vmatmul.mubr.f32.gmra.mrb[0].mxu0 %v2650
    %v2836 = vpop.f32.mrb[0].mxu0
    %v2837 = vadd.f32 %v2723, %v2836
    %v2838 = vpop.f32.mrb[0].mxu0
    %v2839 = vadd.f32 %v2727, %v2838
    %2840 = vmatprep.mubr.f32.mxu0 0.0
    %2841 = vmatmul.mubr.f32.gmra.mrb[0].mxu0 %v2651
    %v2842 = vpop.f32.mrb[0].mxu0
    %v2843 = vadd.f32 %v2723, %v2842
    %v2844 = vpop.f32.mrb[0].mxu0
    %v2845 = vadd.f32 %v2727, %v2844
    %2846 = vmatprep.mubr.f32.mxu0 0.0
    %2847 = vmatmul.mubr.f32.gmra.mrb[0].mxu0 %v2652
    %v2848 = vpop.f32.mrb[0].mxu0
    %v2849 = vadd.f32 %v2723, %v2848
    %v2850 = vpop.f32.mrb[0].mxu0
    %v2851 = vadd.f32 %v2727, %v2850
    %2852 = vmatprep.mubr.f32.mxu0 0.0
    %2853 = vmatmul.mubr.f32.gmra.mrb[0].mxu0 %v2653
    %v2854 = vpop.f32.mrb[0].mxu0
    %v2855 = vadd.f32 %v2723, %v2854
    %v2856 = vpop.f32.mrb[0].mxu0
    %v2857 = vadd.f32 %v2727, %v2856
    %2858 = vdwg.mxu0
    %2859 = vmatprep.subr.mxu0 %v2657
    %2860 = vmatpush1.msra.mxu0 %v2656
    %2861 = vmatprep.subr.mxu0 %v2661
    %2862 = vmatpush1.msra.mxu0 %v2660
    %2863 = vmatprep.subr.mxu0 %v2665
    %2864 = vmatpush1.msra.mxu0 %v2664
    %2865 = vmatprep.subr.mxu0 %v2669
    %2866 = vmatpush1.msra.mxu0 %v2668
    %2867 = vmatprep.subr.mxu0 %v2673
    %2868 = vmatpush1.msra.mxu0 %v2672
    %2869 = vmatprep.subr.mxu0 %v2677
    %2870 = vmatpush1.msra.mxu0 %v2676
    %2871 = vmatprep.subr.mxu0 %v2681
    %2872 = vmatpush1.msra.mxu0 %v2680
    %2873 = vmatprep.subr.mxu0 %v2685
    %2874 = vmatpush1.msra.mxu0 %v2684
    %2875 = vmatprep.subr.mxu0 %v2689
    %2876 = vmatpush1.msra.mxu0 %v2688
    %2877 = vmatprep.subr.mxu0 %v2693
    %2878 = vmatpush1.msra.mxu0 %v2692
    %2879 = vmatprep.subr.mxu0 %v2697
    %2880 = vmatpush1.msra.mxu0 %v2696
    %2881 = vmatprep.subr.mxu0 %v2701
    %2882 = vmatpush1.msra.mxu0 %v2700
    %2883 = vmatprep.subr.mxu0 %v2705
    %2884 = vmatpush1.msra.mxu0 %v2704
    %2885 = vmatprep.subr.mxu0 %v2709
    %2886 = vmatpush1.msra.mxu0 %v2708
    %2887 = vmatprep.subr.mxu0 %v2713
    %2888 = vmatpush1.msra.mxu0 %v2712
    %2889 = vmatprep.subr.mxu0 %v2717
    %2890 = vmatpush1.msra.mxu0 %v2716
    %2891 = vmatprep.subr.mxu0 0.0
    %2892 = vmatpush1.msra.mxu0 0.0
    %2893 = vmatprep.subr.mxu0 0.0
    %2894 = vmatpush1.msra.mxu0 0.0
    %2895 = vmatprep.subr.mxu0 0.0
    %2896 = vmatpush1.msra.mxu0 0.0
    %2897 = vmatprep.subr.mxu0 0.0
    %2898 = vmatpush1.msra.mxu0 0.0
    %2899 = vmatprep.subr.mxu0 0.0
    %2900 = vmatpush1.msra.mxu0 0.0
    %2901 = vmatprep.subr.mxu0 0.0
    %2902 = vmatpush1.msra.mxu0 0.0
    %2903 = vmatprep.subr.mxu0 0.0
    %2904 = vmatpush1.msra.mxu0 0.0
    %2905 = vmatprep.subr.mxu0 0.0
    %2906 = vmatpush1.msra.mxu0 0.0
    %2907 = vmatprep.subr.mxu0 0.0
    %2908 = vmatpush1.msra.mxu0 0.0
    %2909 = vmatprep.subr.mxu0 0.0
    %2910 = vmatpush1.msra.mxu0 0.0
    %2911 = vmatprep.subr.mxu0 0.0
    %2912 = vmatpush1.msra.mxu0 0.0
    %2913 = vmatprep.subr.mxu0 0.0
    %2914 = vmatpush1.msra.mxu0 0.0
    %2915 = vmatprep.subr.mxu0 0.0
    %2916 = vmatpush1.msra.mxu0 0.0
    %2917 = vmatprep.subr.mxu0 0.0
    %2918 = vmatpush1.msra.mxu0 0.0
    %2919 = vmatprep.subr.mxu0 0.0
    %2920 = vmatpush1.msra.mxu0 0.0
    %2921 = vmatprep.subr.mxu0 0.0
    %2922 = vmatpush1.msra.mxu0 0.0
    %2923 = vmatprep.mubr.f32.mxu0 0.0
    %2924 = vmatmul.mubr.f32.gmra.mrb[0].mxu0 %v2645
    %v2925 = vpop.f32.mrb[0].mxu0
    %v2926 = vadd.f32 %v2731, %v2925
    %v2927 = vpop.f32.mrb[0].mxu0
    %v2928 = vadd.f32 %v2735, %v2927
    %2929 = vmatprep.mubr.f32.mxu0 0.0
    %2930 = vmatmul.mubr.f32.gmra.mrb[0].mxu0 %v2646
    %v2931 = vpop.f32.mrb[0].mxu0
    %v2932 = vadd.f32 %v2731, %v2931
    %v2933 = vpop.f32.mrb[0].mxu0
    %v2934 = vadd.f32 %v2735, %v2933
    %2935 = vmatprep.mubr.f32.mxu0 0.0
    %2936 = vmatmul.mubr.f32.gmra.mrb[0].mxu0 %v2647
    %v2937 = vpop.f32.mrb[0].mxu0
    %v2938 = vadd.f32 %v2731, %v2937
    %v2939 = vpop.f32.mrb[0].mxu0
    %v2940 = vadd.f32 %v2735, %v2939
    %2941 = vmatprep.mubr.f32.mxu0 0.0
    %2942 = vmatmul.mubr.f32.gmra.mrb[0].mxu0 %v2648
    %v2943 = vpop.f32.mrb[0].mxu0
    %v2944 = vadd.f32 %v2731, %v2943
    %v2945 = vpop.f32.mrb[0].mxu0
    %v2946 = vadd.f32 %v2735, %v2945
    %2947 = vmatprep.mubr.f32.mxu0 0.0
    %2948 = vmatmul.mubr.f32.gmra.mrb[0].mxu0 %v2649
    %v2949 = vpop.f32.mrb[0].mxu0
    %v2950 = vadd.f32 %v2731, %v2949
    %v2951 = vpop.f32.mrb[0].mxu0
    %v2952 = vadd.f32 %v2735, %v2951
    %2953 = vmatprep.mubr.f32.mxu0 0.0
    %2954 = vmatmul.mubr.f32.gmra.mrb[0].mxu0 %v2650
    %v2955 = vpop.f32.mrb[0].mxu0
    %v2956 = vadd.f32 %v2731, %v2955
    %v2957 = vpop.f32.mrb[0].mxu0
    %v2958 = vadd.f32 %v2735, %v2957
    %2959 = vmatprep.mubr.f32.mxu0 0.0
    %2960 = vmatmul.mubr.f32.gmra.mrb[0].mxu0 %v2651
    %v2961 = vpop.f32.mrb[0].mxu0
    %v2962 = vadd.f32 %v2731, %v2961
    %v2963 = vpop.f32.mrb[0].mxu0
    %v2964 = vadd.f32 %v2735, %v2963
    %2965 = vmatprep.mubr.f32.mxu0 0.0
    %2966 = vmatmul.mubr.f32.gmra.mrb[0].mxu0 %v2652
    %v2967 = vpop.f32.mrb[0].mxu0
    %v2968 = vadd.f32 %v2731, %v2967
    %v2969 = vpop.f32.mrb[0].mxu0
    %v2970 = vadd.f32 %v2735, %v2969
    %2971 = vmatprep.mubr.f32.mxu0 0.0
    %2972 = vmatmul.mubr.f32.gmra.mrb[0].mxu0 %v2653
    %v2973 = vpop.f32.mrb[0].mxu0
    %v2974 = vadd.f32 %v2731, %v2973
    %v2975 = vpop.f32.mrb[0].mxu0
    %v2976 = vadd.f32 %v2735, %v2975
    %2977 = vdwg.mxu0
    %2978 = vst [vmem:[#allocation2] sm:$0xff] %v2807
    %2979 = vst [vmem:[#allocation2 + $0x8] sm:$0xff] %v2809
    %2980 = vst [vmem:[#allocation2 + $0x10] sm:$0xff] %v2926
    %2981 = vst [vmem:[#allocation2 + $0x18] sm:$0xff] %v2928
    %2982 = vst [vmem:[#allocation2 + $0x20] sm:$0xff] %v2813
    %2983 = vst [vmem:[#allocation2 + $0x28] sm:$0xff] %v2815
    %2984 = vst [vmem:[#allocation2 + $0x30] sm:$0xff] %v2932
    %2985 = vst [vmem:[#allocation2 + $0x38] sm:$0xff] %v2934
    %2986 = vst [vmem:[#allocation2 + $0x40] sm:$0xff] %v2819
    %2987 = vst [vmem:[#allocation2 + $0x48] sm:$0xff] %v2821
    %2988 = vst [vmem:[#allocation2 + $0x50] sm:$0xff] %v2938
    %2989 = vst [vmem:[#allocation2 + $0x58] sm:$0xff] %v2940
    %2990 = vst [vmem:[#allocation2 + $0x60] sm:$0xff] %v2825
    %2991 = vst [vmem:[#allocation2 + $0x68] sm:$0xff] %v2827
    %2992 = vst [vmem:[#allocation2 + $0x70] sm:$0xff] %v2944
    %2993 = vst [vmem:[#allocation2 + $0x78] sm:$0xff] %v2946
    %2994 = vst [vmem:[#allocation2 + $0x80] sm:$0xff] %v2831
    %2995 = vst [vmem:[#allocation2 + $0x88] sm:$0xff] %v2833
    %2996 = vst [vmem:[#allocation2 + $0x90] sm:$0xff] %v2950
    %2997 = vst [vmem:[#allocation2 + $0x98] sm:$0xff] %v2952
    %2998 = vst [vmem:[#allocation2 + $0xa0] sm:$0xff] %v2837
    %2999 = vst [vmem:[#allocation2 + $0xa8] sm:$0xff] %v2839
    %3000 = vst [vmem:[#allocation2 + $0xb0] sm:$0xff] %v2956
    %3001 = vst [vmem:[#allocation2 + $0xb8] sm:$0xff] %v2958
    %3002 = vst [vmem:[#allocation2 + $0xc0] sm:$0xff] %v2843
    %3003 = vst [vmem:[#allocation2 + $0xc8] sm:$0xff] %v2845
    %3004 = vst [vmem:[#allocation2 + $0xd0] sm:$0xff] %v2962
    %3005 = vst [vmem:[#allocation2 + $0xd8] sm:$0xff] %v2964
    %3006 = vst [vmem:[#allocation2 + $0xe0] sm:$0xff] %v2849
    %3007 = vst [vmem:[#allocation2 + $0xe8] sm:$0xff] %v2851
    %3008 = vst [vmem:[#allocation2 + $0xf0] sm:$0xff] %v2968
    %3009 = vst [vmem:[#allocation2 + $0xf8] sm:$0xff] %v2970
    %3010 = vst [vmem:[#allocation2 + $0x100] sm:$0xff] %v2855
    %3011 = vst [vmem:[#allocation2 + $0x108] sm:$0xff] %v2857
    %3012 = vst [vmem:[#allocation2 + $0x110] sm:$0xff] %v2974
    %3013 = vst [vmem:[#allocation2 + $0x118] sm:$0xff] %v2976
    %v3014 = vld [vmem:[#allocation2] sm:$0xff]
    %v3015 = vld [vmem:[#allocation2 + $0x8] sm:$0xff]
    %v3016 = vld [vmem:[#allocation2 + $0x10] sm:$0xff]
    %v3017 = vld [vmem:[#allocation2 + $0x18] sm:$0xff]
    %v3018 = vld [vmem:[#allocation10] sm:$0xff]
    %v3019 = vld [vmem:[#allocation10 + $0x8] sm:$0xff]
    %v3020 = vld [vmem:[#allocation10 + $0x10] sm:$0xff]
    %v3021 = vld [vmem:[#allocation10 + $0x18] sm:$0xff]
    %v3022 = vld [vmem:[#allocation10 + $0x20] sm:$0xff]
    %v3023 = vld [vmem:[#allocation10 + $0x28] sm:$0xff]
    %v3024 = vld [vmem:[#allocation10 + $0x30] sm:$0xff]
    %v3025 = vld [vmem:[#allocation10 + $0x38] sm:$0xff]
    %v3026 = vld [vmem:[#allocation10 + $0x40] sm:$0xff]
    %v3027 = vld [vmem:[#allocation10 + $0x48] sm:$0xff]
    %v3028 = vld [vmem:[#allocation10 + $0x50] sm:$0xff]
    %v3029 = vld [vmem:[#allocation10 + $0x58] sm:$0xff]
    %v3030 = vld [vmem:[#allocation10 + $0x60] sm:$0xff]
    %v3031 = vld [vmem:[#allocation10 + $0x68] sm:$0xff]
    %v3032 = vld [vmem:[#allocation10 + $0x70] sm:$0xff]
    %v3033 = vld [vmem:[#allocation10 + $0x78] sm:$0xff]
    %v3034 = vld [vmem:[#allocation10 + $0x80] sm:$0xff]
    %v3035 = vld [vmem:[#allocation10 + $0x88] sm:$0xff]
    %v3036 = vld [vmem:[#allocation10 + $0x90] sm:$0xff]
    %v3037 = vld [vmem:[#allocation10 + $0x98] sm:$0xff]
    %v3038 = vld [vmem:[#allocation10 + $0xa0] sm:$0xff]
    %v3039 = vld [vmem:[#allocation10 + $0xa8] sm:$0xff]
    %v3040 = vld [vmem:[#allocation10 + $0xb0] sm:$0xff]
    %v3041 = vld [vmem:[#allocation10 + $0xb8] sm:$0xff]
    %v3042 = vld [vmem:[#allocation10 + $0xc0] sm:$0xff]
    %v3043 = vld [vmem:[#allocation10 + $0xc8] sm:$0xff]
    %v3044 = vld [vmem:[#allocation10 + $0xd0] sm:$0xff]
    %v3045 = vld [vmem:[#allocation10 + $0xd8] sm:$0xff]
    %v3046 = vld [vmem:[#allocation10 + $0xe0] sm:$0xff]
    %v3047 = vld [vmem:[#allocation10 + $0xe8] sm:$0xff]
    %v3048 = vld [vmem:[#allocation10 + $0xf0] sm:$0xff]
    %v3049 = vld [vmem:[#allocation10 + $0xf8] sm:$0xff]
    %v3050 = vld [vmem:[#allocation10 + $0x100] sm:$0xff]
    %v3051 = vld [vmem:[#allocation10 + $0x108] sm:$0xff]
    %v3052 = vld [vmem:[#allocation10 + $0x110] sm:$0xff]
    %v3053 = vld [vmem:[#allocation10 + $0x118] sm:$0xff]
    %v3054 = vld [vmem:[#allocation10 + $0x120] sm:$0xff]
    %v3055 = vld [vmem:[#allocation10 + $0x128] sm:$0xff]
    %v3056 = vld [vmem:[#allocation10 + $0x130] sm:$0xff]
    %v3057 = vld [vmem:[#allocation10 + $0x138] sm:$0xff]
    %v3058 = vld [vmem:[#allocation10 + $0x140] sm:$0xff]
    %v3059 = vld [vmem:[#allocation10 + $0x148] sm:$0xff]
    %v3060 = vld [vmem:[#allocation10 + $0x150] sm:$0xff]
    %v3061 = vld [vmem:[#allocation10 + $0x158] sm:$0xff]
    %v3062 = vld [vmem:[#allocation10 + $0x160] sm:$0xff]
    %v3063 = vld [vmem:[#allocation10 + $0x168] sm:$0xff]
    %v3064 = vld [vmem:[#allocation10 + $0x170] sm:$0xff]
    %v3065 = vld [vmem:[#allocation10 + $0x178] sm:$0xff]
    %v3066 = vld [vmem:[#allocation10 + $0x180] sm:$0xff]
    %v3067 = vld [vmem:[#allocation10 + $0x188] sm:$0xff]
    %v3068 = vld [vmem:[#allocation10 + $0x190] sm:$0xff]
    %v3069 = vld [vmem:[#allocation10 + $0x198] sm:$0xff]
    %v3070 = vld [vmem:[#allocation10 + $0x1a0] sm:$0xff]
    %v3071 = vld [vmem:[#allocation10 + $0x1a8] sm:$0xff]
    %v3072 = vld [vmem:[#allocation10 + $0x1b0] sm:$0xff]
    %v3073 = vld [vmem:[#allocation10 + $0x1b8] sm:$0xff]
    %v3074 = vld [vmem:[#allocation10 + $0x1c0] sm:$0xff]
    %v3075 = vld [vmem:[#allocation10 + $0x1c8] sm:$0xff]
    %v3076 = vld [vmem:[#allocation10 + $0x1d0] sm:$0xff]
    %v3077 = vld [vmem:[#allocation10 + $0x1d8] sm:$0xff]
    %v3078 = vld [vmem:[#allocation10 + $0x1e0] sm:$0xff]
    %v3079 = vld [vmem:[#allocation10 + $0x1e8] sm:$0xff]
    %v3080 = vld [vmem:[#allocation10 + $0x1f0] sm:$0xff]
    %v3081 = vld [vmem:[#allocation10 + $0x1f8] sm:$0xff]
    %3082 = vmatprep.subr.mxu0 %v3019
    %3083 = vmatpush1.msra.mxu0 %v3018
    %3084 = vmatprep.subr.mxu0 %v3023
    %3085 = vmatpush1.msra.mxu0 %v3022
    %3086 = vmatprep.subr.mxu0 %v3027
    %3087 = vmatpush1.msra.mxu0 %v3026
    %3088 = vmatprep.subr.mxu0 %v3031
    %3089 = vmatpush1.msra.mxu0 %v3030
    %3090 = vmatprep.subr.mxu0 %v3035
    %3091 = vmatpush1.msra.mxu0 %v3034
    %3092 = vmatprep.subr.mxu0 %v3039
    %3093 = vmatpush1.msra.mxu0 %v3038
    %3094 = vmatprep.subr.mxu0 %v3043
    %3095 = vmatpush1.msra.mxu0 %v3042
    %3096 = vmatprep.subr.mxu0 %v3047
    %3097 = vmatpush1.msra.mxu0 %v3046
    %3098 = vmatprep.subr.mxu0 %v3051
    %3099 = vmatpush1.msra.mxu0 %v3050
    %3100 = vmatprep.subr.mxu0 %v3055
    %3101 = vmatpush1.msra.mxu0 %v3054
    %3102 = vmatprep.subr.mxu0 %v3059
    %3103 = vmatpush1.msra.mxu0 %v3058
    %3104 = vmatprep.subr.mxu0 %v3063
    %3105 = vmatpush1.msra.mxu0 %v3062
    %3106 = vmatprep.subr.mxu0 %v3067
    %3107 = vmatpush1.msra.mxu0 %v3066
    %3108 = vmatprep.subr.mxu0 %v3071
    %3109 = vmatpush1.msra.mxu0 %v3070
    %3110 = vmatprep.subr.mxu0 %v3075
    %3111 = vmatpush1.msra.mxu0 %v3074
    %3112 = vmatprep.subr.mxu0 %v3079
    %3113 = vmatpush1.msra.mxu0 %v3078
    %3114 = vmatprep.subr.mxu0 0.0
    %3115 = vmatpush1.msra.mxu0 0.0
    %3116 = vmatprep.subr.mxu0 0.0
    %3117 = vmatpush1.msra.mxu0 0.0
    %3118 = vmatprep.subr.mxu0 0.0
    %3119 = vmatpush1.msra.mxu0 0.0
    %3120 = vmatprep.subr.mxu0 0.0
    %3121 = vmatpush1.msra.mxu0 0.0
    %3122 = vmatprep.subr.mxu0 0.0
    %3123 = vmatpush1.msra.mxu0 0.0
    %3124 = vmatprep.subr.mxu0 0.0
    %3125 = vmatpush1.msra.mxu0 0.0
    %3126 = vmatprep.subr.mxu0 0.0
    %3127 = vmatpush1.msra.mxu0 0.0
    %3128 = vmatprep.subr.mxu0 0.0
    %3129 = vmatpush1.msra.mxu0 0.0
    %3130 = vmatprep.subr.mxu0 0.0
    %3131 = vmatpush1.msra.mxu0 0.0
    %3132 = vmatprep.subr.mxu0 0.0
    %3133 = vmatpush1.msra.mxu0 0.0
    %3134 = vmatprep.subr.mxu0 0.0
    %3135 = vmatpush1.msra.mxu0 0.0
    %3136 = vmatprep.subr.mxu0 0.0
    %3137 = vmatpush1.msra.mxu0 0.0
    %3138 = vmatprep.subr.mxu0 0.0
    %3139 = vmatpush1.msra.mxu0 0.0
    %3140 = vmatprep.subr.mxu0 0.0
    %3141 = vmatpush1.msra.mxu0 0.0
    %3142 = vmatprep.subr.mxu0 0.0
    %3143 = vmatpush1.msra.mxu0 0.0
    %3144 = vmatprep.subr.mxu0 0.0
    %3145 = vmatpush1.msra.mxu0 0.0
    %3146 = vmatprep.mubr.f32.mxu0 0.0
    %3147 = vmatmul.mubr.f32.gmra.mrb[0].mxu0 0.0
    %v3148 = vpop.f32.mrb[0].mxu0
    %v3149 = vadd.f32 0.0, %v3148
    %v3150 = vpop.f32.mrb[0].mxu0
    %v3151 = vadd.f32 0.0, %v3150
    %3152 = vdwg.mxu0
    %3153 = vmatprep.subr.mxu0 %v3021
    %3154 = vmatpush1.msra.mxu0 %v3020
    %3155 = vmatprep.subr.mxu0 %v3025
    %3156 = vmatpush1.msra.mxu0 %v3024
    %3157 = vmatprep.subr.mxu0 %v3029
    %3158 = vmatpush1.msra.mxu0 %v3028
    %3159 = vmatprep.subr.mxu0 %v3033
    %3160 = vmatpush1.msra.mxu0 %v3032
    %3161 = vmatprep.subr.mxu0 %v3037
    %3162 = vmatpush1.msra.mxu0 %v3036
    %3163 = vmatprep.subr.mxu0 %v3041
    %3164 = vmatpush1.msra.mxu0 %v3040
    %3165 = vmatprep.subr.mxu0 %v3045
    %3166 = vmatpush1.msra.mxu0 %v3044
    %3167 = vmatprep.subr.mxu0 %v3049
    %3168 = vmatpush1.msra.mxu0 %v3048
    %3169 = vmatprep.subr.mxu0 %v3053
    %3170 = vmatpush1.msra.mxu0 %v3052
    %3171 = vmatprep.subr.mxu0 %v3057
    %3172 = vmatpush1.msra.mxu0 %v3056
    %3173 = vmatprep.subr.mxu0 %v3061
    %3174 = vmatpush1.msra.mxu0 %v3060
    %3175 = vmatprep.subr.mxu0 %v3065
    %3176 = vmatpush1.msra.mxu0 %v3064
    %3177 = vmatprep.subr.mxu0 %v3069
    %3178 = vmatpush1.msra.mxu0 %v3068
    %3179 = vmatprep.subr.mxu0 %v3073
    %3180 = vmatpush1.msra.mxu0 %v3072
    %3181 = vmatprep.subr.mxu0 %v3077
    %3182 = vmatpush1.msra.mxu0 %v3076
    %3183 = vmatprep.subr.mxu0 %v3081
    %3184 = vmatpush1.msra.mxu0 %v3080
    %3185 = vmatprep.subr.mxu0 0.0
    %3186 = vmatpush1.msra.mxu0 0.0
    %3187 = vmatprep.subr.mxu0 0.0
    %3188 = vmatpush1.msra.mxu0 0.0
    %3189 = vmatprep.subr.mxu0 0.0
    %3190 = vmatpush1.msra.mxu0 0.0
    %3191 = vmatprep.subr.mxu0 0.0
    %3192 = vmatpush1.msra.mxu0 0.0
    %3193 = vmatprep.subr.mxu0 0.0
    %3194 = vmatpush1.msra.mxu0 0.0
    %3195 = vmatprep.subr.mxu0 0.0
    %3196 = vmatpush1.msra.mxu0 0.0
    %3197 = vmatprep.subr.mxu0 0.0
    %3198 = vmatpush1.msra.mxu0 0.0
    %3199 = vmatprep.subr.mxu0 0.0
    %3200 = vmatpush1.msra.mxu0 0.0
    %3201 = vmatprep.subr.mxu0 0.0
    %3202 = vmatpush1.msra.mxu0 0.0
    %3203 = vmatprep.subr.mxu0 0.0
    %3204 = vmatpush1.msra.mxu0 0.0
    %3205 = vmatprep.subr.mxu0 0.0
    %3206 = vmatpush1.msra.mxu0 0.0
    %3207 = vmatprep.subr.mxu0 0.0
    %3208 = vmatpush1.msra.mxu0 0.0
    %3209 = vmatprep.subr.mxu0 0.0
    %3210 = vmatpush1.msra.mxu0 0.0
    %3211 = vmatprep.subr.mxu0 0.0
    %3212 = vmatpush1.msra.mxu0 0.0
    %3213 = vmatprep.subr.mxu0 0.0
    %3214 = vmatpush1.msra.mxu0 0.0
    %3215 = vmatprep.subr.mxu0 0.0
    %3216 = vmatpush1.msra.mxu0 0.0
    %3217 = vmatprep.mubr.f32.mxu0 0.0
    %3218 = vmatmul.mubr.f32.gmra.mrb[0].mxu0 0.0
    %v3219 = vpop.f32.mrb[0].mxu0
    %v3220 = vadd.f32 0.0, %v3219
    %v3221 = vpop.f32.mrb[0].mxu0
    %v3222 = vadd.f32 0.0, %v3221
    %3223 = vdwg.mxu0
    %v3224 = vadd.f32 %v3014, %v3149
    %v3225 = vadd.f32 %v3015, %v3151
    %v3226 = vadd.f32 %v3016, %v3220
    %v3227 = vadd.f32 %v3017, %v3222
    %v3228 = vxor.u32 %v3224, 2147483648
    %v3229 = vmul.f32 %v3228, 1.442695
    %v3230 = vpow.pop %v3229
    %v3231 = vadd.f32 %v3230, 1.0
    %v3232 = vrcp.pop %v3231
    %v3233 = vmul.f32 1.0, %v3232
    %v3234 = vxor.u32 %v3225, 2147483648
    %v3235 = vmul.f32 %v3234, 1.442695
    %v3236 = vpow.pop %v3235
    %v3237 = vadd.f32 %v3236, 1.0
    %v3238 = vrcp.pop %v3237
    %v3239 = vmul.f32 1.0, %v3238
    %v3240 = vtanh.pop %v3226
    %v3241 = vxor.u32 %v3227, 2147483648
    %v3242 = vmul.f32 %v3241, 1.442695
    %v3243 = vpow.pop %v3242
    %v3244 = vadd.f32 %v3243, 1.0
    %v3245 = vrcp.pop %v3244
    %v3246 = vmul.f32 1.0, %v3245
    %v3247 = vmul.f32 %v3239, 0.0
    %v3248 = vmul.f32 %v3233, %v3240
    %v3249 = vadd.f32 %v3247, %v3248
    %v3250 = vtanh.pop %v3249
    %v3251 = vmul.f32 %v3246, %v3250
    %3252 = vst [vmem:[#allocation3] sm:$0xff] %v3251
    %v3253 = vld [vmem:[#allocation2 + $0x20] sm:$0xff]
    %v3254 = vld [vmem:[#allocation2 + $0x28] sm:$0xff]
    %v3255 = vld [vmem:[#allocation2 + $0x30] sm:$0xff]
    %v3256 = vld [vmem:[#allocation2 + $0x38] sm:$0xff]
    %v3257 = vld [vmem:[#allocation10] sm:$0xff]
    %v3258 = vld [vmem:[#allocation10 + $0x8] sm:$0xff]
    %v3259 = vld [vmem:[#allocation10 + $0x10] sm:$0xff]
    %v3260 = vld [vmem:[#allocation10 + $0x18] sm:$0xff]
    %v3261 = vld [vmem:[#allocation10 + $0x20] sm:$0xff]
    %v3262 = vld [vmem:[#allocation10 + $0x28] sm:$0xff]
    %v3263 = vld [vmem:[#allocation10 + $0x30] sm:$0xff]
    %v3264 = vld [vmem:[#allocation10 + $0x38] sm:$0xff]
    %v3265 = vld [vmem:[#allocation10 + $0x40] sm:$0xff]
    %v3266 = vld [vmem:[#allocation10 + $0x48] sm:$0xff]
    %v3267 = vld [vmem:[#allocation10 + $0x50] sm:$0xff]
    %v3268 = vld [vmem:[#allocation10 + $0x58] sm:$0xff]
    %v3269 = vld [vmem:[#allocation10 + $0x60] sm:$0xff]
    %v3270 = vld [vmem:[#allocation10 + $0x68] sm:$0xff]
    %v3271 = vld [vmem:[#allocation10 + $0x70] sm:$0xff]
    %v3272 = vld [vmem:[#allocation10 + $0x78] sm:$0xff]
    %v3273 = vld [vmem:[#allocation10 + $0x80] sm:$0xff]
    %v3274 = vld [vmem:[#allocation10 + $0x88] sm:$0xff]
    %v3275 = vld [vmem:[#allocation10 + $0x90] sm:$0xff]
    %v3276 = vld [vmem:[#allocation10 + $0x98] sm:$0xff]
    %v3277 = vld [vmem:[#allocation10 + $0xa0] sm:$0xff]
    %v3278 = vld [vmem:[#allocation10 + $0xa8] sm:$0xff]
    %v3279 = vld [vmem:[#allocation10 + $0xb0] sm:$0xff]
    %v3280 = vld [vmem:[#allocation10 + $0xb8] sm:$0xff]
    %v3281 = vld [vmem:[#allocation10 + $0xc0] sm:$0xff]
    %v3282 = vld [vmem:[#allocation10 + $0xc8] sm:$0xff]
    %v3283 = vld [vmem:[#allocation10 + $0xd0] sm:$0xff]
    %v3284 = vld [vmem:[#allocation10 + $0xd8] sm:$0xff]
    %v3285 = vld [vmem:[#allocation10 + $0xe0] sm:$0xff]
    %v3286 = vld [vmem:[#allocation10 + $0xe8] sm:$0xff]
    %v3287 = vld [vmem:[#allocation10 + $0xf0] sm:$0xff]
    %v3288 = vld [vmem:[#allocation10 + $0xf8] sm:$0xff]
    %v3289 = vld [vmem:[#allocation10 + $0x100] sm:$0xff]
    %v3290 = vld [vmem:[#allocation10 + $0x108] sm:$0xff]
    %v3291 = vld [vmem:[#allocation10 + $0x110] sm:$0xff]
    %v3292 = vld [vmem:[#allocation10 + $0x118] sm:$0xff]
    %v3293 = vld [vmem:[#allocation10 + $0x120] sm:$0xff]
    %v3294 = vld [vmem:[#allocation10 + $0x128] sm:$0xff]
    %v3295 = vld [vmem:[#allocation10 + $0x130] sm:$0xff]
    %v3296 = vld [vmem:[#allocation10 + $0x138] sm:$0xff]
    %v3297 = vld [vmem:[#allocation10 + $0x140] sm:$0xff]
    %v3298 = vld [vmem:[#allocation10 + $0x148] sm:$0xff]
    %v3299 = vld [vmem:[#allocation10 + $0x150] sm:$0xff]
    %v3300 = vld [vmem:[#allocation10 + $0x158] sm:$0xff]
    %v3301 = vld [vmem:[#allocation10 + $0x160] sm:$0xff]
    %v3302 = vld [vmem:[#allocation10 + $0x168] sm:$0xff]
    %v3303 = vld [vmem:[#allocation10 + $0x170] sm:$0xff]
    %v3304 = vld [vmem:[#allocation10 + $0x178] sm:$0xff]
    %v3305 = vld [vmem:[#allocation10 + $0x180] sm:$0xff]
    %v3306 = vld [vmem:[#allocation10 + $0x188] sm:$0xff]
    %v3307 = vld [vmem:[#allocation10 + $0x190] sm:$0xff]
    %v3308 = vld [vmem:[#allocation10 + $0x198] sm:$0xff]
    %v3309 = vld [vmem:[#allocation10 + $0x1a0] sm:$0xff]
    %v3310 = vld [vmem:[#allocation10 + $0x1a8] sm:$0xff]
    %v3311 = vld [vmem:[#allocation10 + $0x1b0] sm:$0xff]
    %v3312 = vld [vmem:[#allocation10 + $0x1b8] sm:$0xff]
    %v3313 = vld [vmem:[#allocation10 + $0x1c0] sm:$0xff]
    %v3314 = vld [vmem:[#allocation10 + $0x1c8] sm:$0xff]
    %v3315 = vld [vmem:[#allocation10 + $0x1d0] sm:$0xff]
    %v3316 = vld [vmem:[#allocation10 + $0x1d8] sm:$0xff]
    %v3317 = vld [vmem:[#allocation10 + $0x1e0] sm:$0xff]
    %v3318 = vld [vmem:[#allocation10 + $0x1e8] sm:$0xff]
    %v3319 = vld [vmem:[#allocation10 + $0x1f0] sm:$0xff]
    %v3320 = vld [vmem:[#allocation10 + $0x1f8] sm:$0xff]
    %3321 = vmatprep.subr.mxu0 %v3258
    %3322 = vmatpush1.msra.mxu0 %v3257
    %3323 = vmatprep.subr.mxu0 %v3262
    %3324 = vmatpush1.msra.mxu0 %v3261
    %3325 = vmatprep.subr.mxu0 %v3266
    %3326 = vmatpush1.msra.mxu0 %v3265
    %3327 = vmatprep.subr.mxu0 %v3270
    %3328 = vmatpush1.msra.mxu0 %v3269
    %3329 = vmatprep.subr.mxu0 %v3274
    %3330 = vmatpush1.msra.mxu0 %v3273
    %3331 = vmatprep.subr.mxu0 %v3278
    %3332 = vmatpush1.msra.mxu0 %v3277
    %3333 = vmatprep.subr.mxu0 %v3282
    %3334 = vmatpush1.msra.mxu0 %v3281
    %3335 = vmatprep.subr.mxu0 %v3286
    %3336 = vmatpush1.msra.mxu0 %v3285
    %3337 = vmatprep.subr.mxu0 %v3290
    %3338 = vmatpush1.msra.mxu0 %v3289
    %3339 = vmatprep.subr.mxu0 %v3294
    %3340 = vmatpush1.msra.mxu0 %v3293
    %3341 = vmatprep.subr.mxu0 %v3298
    %3342 = vmatpush1.msra.mxu0 %v3297
    %3343 = vmatprep.subr.mxu0 %v3302
    %3344 = vmatpush1.msra.mxu0 %v3301
    %3345 = vmatprep.subr.mxu0 %v3306
    %3346 = vmatpush1.msra.mxu0 %v3305
    %3347 = vmatprep.subr.mxu0 %v3310
    %3348 = vmatpush1.msra.mxu0 %v3309
    %3349 = vmatprep.subr.mxu0 %v3314
    %3350 = vmatpush1.msra.mxu0 %v3313
    %3351 = vmatprep.subr.mxu0 %v3318
    %3352 = vmatpush1.msra.mxu0 %v3317
    %3353 = vmatprep.subr.mxu0 0.0
    %3354 = vmatpush1.msra.mxu0 0.0
    %3355 = vmatprep.subr.mxu0 0.0
    %3356 = vmatpush1.msra.mxu0 0.0
    %3357 = vmatprep.subr.mxu0 0.0
    %3358 = vmatpush1.msra.mxu0 0.0
    %3359 = vmatprep.subr.mxu0 0.0
    %3360 = vmatpush1.msra.mxu0 0.0
    %3361 = vmatprep.subr.mxu0 0.0
    %3362 = vmatpush1.msra.mxu0 0.0
    %3363 = vmatprep.subr.mxu0 0.0
    %3364 = vmatpush1.msra.mxu0 0.0
    %3365 = vmatprep.subr.mxu0 0.0
    %3366 = vmatpush1.msra.mxu0 0.0
    %3367 = vmatprep.subr.mxu0 0.0
    %3368 = vmatpush1.msra.mxu0 0.0
    %3369 = vmatprep.subr.mxu0 0.0
    %3370 = vmatpush1.msra.mxu0 0.0
    %3371 = vmatprep.subr.mxu0 0.0
    %3372 = vmatpush1.msra.mxu0 0.0
    %3373 = vmatprep.subr.mxu0 0.0
    %3374 = vmatpush1.msra.mxu0 0.0
    %3375 = vmatprep.subr.mxu0 0.0
    %3376 = vmatpush1.msra.mxu0 0.0
    %3377 = vmatprep.subr.mxu0 0.0
    %3378 = vmatpush1.msra.mxu0 0.0
    %3379 = vmatprep.subr.mxu0 0.0
    %3380 = vmatpush1.msra.mxu0 0.0
    %3381 = vmatprep.subr.mxu0 0.0
    %3382 = vmatpush1.msra.mxu0 0.0
    %3383 = vmatprep.subr.mxu0 0.0
    %3384 = vmatpush1.msra.mxu0 0.0
    %3385 = vmatprep.mubr.f32.mxu0 0.0
    %3386 = vmatmul.mubr.f32.gmra.mrb[0].mxu0 %v3251
    %v3387 = vpop.f32.mrb[0].mxu0
    %v3388 = vadd.f32 0.0, %v3387
    %v3389 = vpop.f32.mrb[0].mxu0
    %v3390 = vadd.f32 0.0, %v3389
    %3391 = vdwg.mxu0
    %3392 = vmatprep.subr.mxu0 %v3260
    %3393 = vmatpush1.msra.mxu0 %v3259
    %3394 = vmatprep.subr.mxu0 %v3264
    %3395 = vmatpush1.msra.mxu0 %v3263
    %3396 = vmatprep.subr.mxu0 %v3268
    %3397 = vmatpush1.msra.mxu0 %v3267
    %3398 = vmatprep.subr.mxu0 %v3272
    %3399 = vmatpush1.msra.mxu0 %v3271
    %3400 = vmatprep.subr.mxu0 %v3276
    %3401 = vmatpush1.msra.mxu0 %v3275
    %3402 = vmatprep.subr.mxu0 %v3280
    %3403 = vmatpush1.msra.mxu0 %v3279
    %3404 = vmatprep.subr.mxu0 %v3284
    %3405 = vmatpush1.msra.mxu0 %v3283
    %3406 = vmatprep.subr.mxu0 %v3288
    %3407 = vmatpush1.msra.mxu0 %v3287
    %3408 = vmatprep.subr.mxu0 %v3292
    %3409 = vmatpush1.msra.mxu0 %v3291
    %3410 = vmatprep.subr.mxu0 %v3296
    %3411 = vmatpush1.msra.mxu0 %v3295
    %3412 = vmatprep.subr.mxu0 %v3300
    %3413 = vmatpush1.msra.mxu0 %v3299
    %3414 = vmatprep.subr.mxu0 %v3304
    %3415 = vmatpush1.msra.mxu0 %v3303
    %3416 = vmatprep.subr.mxu0 %v3308
    %3417 = vmatpush1.msra.mxu0 %v3307
    %3418 = vmatprep.subr.mxu0 %v3312
    %3419 = vmatpush1.msra.mxu0 %v3311
    %3420 = vmatprep.subr.mxu0 %v3316
    %3421 = vmatpush1.msra.mxu0 %v3315
    %3422 = vmatprep.subr.mxu0 %v3320
    %3423 = vmatpush1.msra.mxu0 %v3319
    %3424 = vmatprep.subr.mxu0 0.0
    %3425 = vmatpush1.msra.mxu0 0.0
    %3426 = vmatprep.subr.mxu0 0.0
    %3427 = vmatpush1.msra.mxu0 0.0
    %3428 = vmatprep.subr.mxu0 0.0
    %3429 = vmatpush1.msra.mxu0 0.0
    %3430 = vmatprep.subr.mxu0 0.0
    %3431 = vmatpush1.msra.mxu0 0.0
    %3432 = vmatprep.subr.mxu0 0.0
    %3433 = vmatpush1.msra.mxu0 0.0
    %3434 = vmatprep.subr.mxu0 0.0
    %3435 = vmatpush1.msra.mxu0 0.0
    %3436 = vmatprep.subr.mxu0 0.0
    %3437 = vmatpush1.msra.mxu0 0.0
    %3438 = vmatprep.subr.mxu0 0.0
    %3439 = vmatpush1.msra.mxu0 0.0
    %3440 = vmatprep.subr.mxu0 0.0
    %3441 = vmatpush1.msra.mxu0 0.0
    %3442 = vmatprep.subr.mxu0 0.0
    %3443 = vmatpush1.msra.mxu0 0.0
    %3444 = vmatprep.subr.mxu0 0.0
    %3445 = vmatpush1.msra.mxu0 0.0
    %3446 = vmatprep.subr.mxu0 0.0
    %3447 = vmatpush1.msra.mxu0 0.0
    %3448 = vmatprep.subr.mxu0 0.0
    %3449 = vmatpush1.msra.mxu0 0.0
    %3450 = vmatprep.subr.mxu0 0.0
    %3451 = vmatpush1.msra.mxu0 0.0
    %3452 = vmatprep.subr.mxu0 0.0
    %3453 = vmatpush1.msra.mxu0 0.0
    %3454 = vmatprep.subr.mxu0 0.0
    %3455 = vmatpush1.msra.mxu0 0.0
    %3456 = vmatprep.mubr.f32.mxu0 0.0
    %3457 = vmatmul.mubr.f32.gmra.mrb[0].mxu0 %v3251
    %v3458 = vpop.f32.mrb[0].mxu0
    %v3459 = vadd.f32 0.0, %v3458
    %v3460 = vpop.f32.mrb[0].mxu0
    %v3461 = vadd.f32 0.0, %v3460
    %3462 = vdwg.mxu0
    %v3463 = vadd.f32 %v3253, %v3388
    %v3464 = vadd.f32 %v3254, %v3390
    %v3465 = vadd.f32 %v3255, %v3459
    %v3466 = vadd.f32 %v3256, %v3461
    %v3467 = vxor.u32 %v3463, 2147483648
    %v3468 = vmul.f32 %v3467, 1.442695
    %v3469 = vpow.pop %v3468
    %v3470 = vadd.f32 %v3469, 1.0
    %v3471 = vrcp.pop %v3470
    %v3472 = vmul.f32 1.0, %v3471
    %v3473 = vxor.u32 %v3464, 2147483648
    %v3474 = vmul.f32 %v3473, 1.442695
    %v3475 = vpow.pop %v3474
    %v3476 = vadd.f32 %v3475, 1.0
    %v3477 = vrcp.pop %v3476
    %v3478 = vmul.f32 1.0, %v3477
    %v3479 = vtanh.pop %v3465
    %v3480 = vxor.u32 %v3466, 2147483648
    %v3481 = vmul.f32 %v3480, 1.442695
    %v3482 = vpow.pop %v3481
    %v3483 = vadd.f32 %v3482, 1.0
    %v3484 = vrcp.pop %v3483
    %v3485 = vmul.f32 1.0, %v3484
    %v3486 = vmul.f32 %v3478, %v3249
    %v3487 = vmul.f32 %v3472, %v3479
    %v3488 = vadd.f32 %v3486, %v3487
    %v3489 = vtanh.pop %v3488
    %v3490 = vmul.f32 %v3485, %v3489
    %3491 = vst [vmem:[#allocation3 + $0x8] sm:$0xff] %v3490
    %v3492 = vld [vmem:[#allocation2 + $0x40] sm:$0xff]
    %v3493 = vld [vmem:[#allocation2 + $0x48] sm:$0xff]
    %v3494 = vld [vmem:[#allocation2 + $0x50] sm:$0xff]
    %v3495 = vld [vmem:[#allocation2 + $0x58] sm:$0xff]
    %v3496 = vld [vmem:[#allocation10] sm:$0xff]
    %v3497 = vld [vmem:[#allocation10 + $0x8] sm:$0xff]
    %v3498 = vld [vmem:[#allocation10 + $0x10] sm:$0xff]
    %v3499 = vld [vmem:[#allocation10 + $0x18] sm:$0xff]
    %v3500 = vld [vmem:[#allocation10 + $0x20] sm:$0xff]
    %v3501 = vld [vmem:[#allocation10 + $0x28] sm:$0xff]
    %v3502 = vld [vmem:[#allocation10 + $0x30] sm:$0xff]
    %v3503 = vld [vmem:[#allocation10 + $0x38] sm:$0xff]
    %v3504 = vld [vmem:[#allocation10 + $0x40] sm:$0xff]
    %v3505 = vld [vmem:[#allocation10 + $0x48] sm:$0xff]
    %v3506 = vld [vmem:[#allocation10 + $0x50] sm:$0xff]
    %v3507 = vld [vmem:[#allocation10 + $0x58] sm:$0xff]
    %v3508 = vld [vmem:[#allocation10 + $0x60] sm:$0xff]
    %v3509 = vld [vmem:[#allocation10 + $0x68] sm:$0xff]
    %v3510 = vld [vmem:[#allocation10 + $0x70] sm:$0xff]
    %v3511 = vld [vmem:[#allocation10 + $0x78] sm:$0xff]
    %v3512 = vld [vmem:[#allocation10 + $0x80] sm:$0xff]
    %v3513 = vld [vmem:[#allocation10 + $0x88] sm:$0xff]
    %v3514 = vld [vmem:[#allocation10 + $0x90] sm:$0xff]
    %v3515 = vld [vmem:[#allocation10 + $0x98] sm:$0xff]
    %v3516 = vld [vmem:[#allocation10 + $0xa0] sm:$0xff]
    %v3517 = vld [vmem:[#allocation10 + $0xa8] sm:$0xff]
    %v3518 = vld [vmem:[#allocation10 + $0xb0] sm:$0xff]
    %v3519 = vld [vmem:[#allocation10 + $0xb8] sm:$0xff]
    %v3520 = vld [vmem:[#allocation10 + $0xc0] sm:$0xff]
    %v3521 = vld [vmem:[#allocation10 + $0xc8] sm:$0xff]
    %v3522 = vld [vmem:[#allocation10 + $0xd0] sm:$0xff]
    %v3523 = vld [vmem:[#allocation10 + $0xd8] sm:$0xff]
    %v3524 = vld [vmem:[#allocation10 + $0xe0] sm:$0xff]
    %v3525 = vld [vmem:[#allocation10 + $0xe8] sm:$0xff]
    %v3526 = vld [vmem:[#allocation10 + $0xf0] sm:$0xff]
    %v3527 = vld [vmem:[#allocation10 + $0xf8] sm:$0xff]
    %v3528 = vld [vmem:[#allocation10 + $0x100] sm:$0xff]
    %v3529 = vld [vmem:[#allocation10 + $0x108] sm:$0xff]
    %v3530 = vld [vmem:[#allocation10 + $0x110] sm:$0xff]
    %v3531 = vld [vmem:[#allocation10 + $0x118] sm:$0xff]
    %v3532 = vld [vmem:[#allocation10 + $0x120] sm:$0xff]
    %v3533 = vld [vmem:[#allocation10 + $0x128] sm:$0xff]
    %v3534 = vld [vmem:[#allocation10 + $0x130] sm:$0xff]
    %v3535 = vld [vmem:[#allocation10 + $0x138] sm:$0xff]
    %v3536 = vld [vmem:[#allocation10 + $0x140] sm:$0xff]
    %v3537 = vld [vmem:[#allocation10 + $0x148] sm:$0xff]
    %v3538 = vld [vmem:[#allocation10 + $0x150] sm:$0xff]
    %v3539 = vld [vmem:[#allocation10 + $0x158] sm:$0xff]
    %v3540 = vld [vmem:[#allocation10 + $0x160] sm:$0xff]
    %v3541 = vld [vmem:[#allocation10 + $0x168] sm:$0xff]
    %v3542 = vld [vmem:[#allocation10 + $0x170] sm:$0xff]
    %v3543 = vld [vmem:[#allocation10 + $0x178] sm:$0xff]
    %v3544 = vld [vmem:[#allocation10 + $0x180] sm:$0xff]
    %v3545 = vld [vmem:[#allocation10 + $0x188] sm:$0xff]
    %v3546 = vld [vmem:[#allocation10 + $0x190] sm:$0xff]
    %v3547 = vld [vmem:[#allocation10 + $0x198] sm:$0xff]
    %v3548 = vld [vmem:[#allocation10 + $0x1a0] sm:$0xff]
    %v3549 = vld [vmem:[#allocation10 + $0x1a8] sm:$0xff]
    %v3550 = vld [vmem:[#allocation10 + $0x1b0] sm:$0xff]
    %v3551 = vld [vmem:[#allocation10 + $0x1b8] sm:$0xff]
    %v3552 = vld [vmem:[#allocation10 + $0x1c0] sm:$0xff]
    %v3553 = vld [vmem:[#allocation10 + $0x1c8] sm:$0xff]
    %v3554 = vld [vmem:[#allocation10 + $0x1d0] sm:$0xff]
    %v3555 = vld [vmem:[#allocation10 + $0x1d8] sm:$0xff]
    %v3556 = vld [vmem:[#allocation10 + $0x1e0] sm:$0xff]
    %v3557 = vld [vmem:[#allocation10 + $0x1e8] sm:$0xff]
    %v3558 = vld [vmem:[#allocation10 + $0x1f0] sm:$0xff]
    %v3559 = vld [vmem:[#allocation10 + $0x1f8] sm:$0xff]
    %3560 = vmatprep.subr.mxu0 %v3497
    %3561 = vmatpush1.msra.mxu0 %v3496
    %3562 = vmatprep.subr.mxu0 %v3501
    %3563 = vmatpush1.msra.mxu0 %v3500
    %3564 = vmatprep.subr.mxu0 %v3505
    %3565 = vmatpush1.msra.mxu0 %v3504
    %3566 = vmatprep.subr.mxu0 %v3509
    %3567 = vmatpush1.msra.mxu0 %v3508
    %3568 = vmatprep.subr.mxu0 %v3513
    %3569 = vmatpush1.msra.mxu0 %v3512
    %3570 = vmatprep.subr.mxu0 %v3517
    %3571 = vmatpush1.msra.mxu0 %v3516
    %3572 = vmatprep.subr.mxu0 %v3521
    %3573 = vmatpush1.msra.mxu0 %v3520
    %3574 = vmatprep.subr.mxu0 %v3525
    %3575 = vmatpush1.msra.mxu0 %v3524
    %3576 = vmatprep.subr.mxu0 %v3529
    %3577 = vmatpush1.msra.mxu0 %v3528
    %3578 = vmatprep.subr.mxu0 %v3533
    %3579 = vmatpush1.msra.mxu0 %v3532
    %3580 = vmatprep.subr.mxu0 %v3537
    %3581 = vmatpush1.msra.mxu0 %v3536
    %3582 = vmatprep.subr.mxu0 %v3541
    %3583 = vmatpush1.msra.mxu0 %v3540
    %3584 = vmatprep.subr.mxu0 %v3545
    %3585 = vmatpush1.msra.mxu0 %v3544
    %3586 = vmatprep.subr.mxu0 %v3549
    %3587 = vmatpush1.msra.mxu0 %v3548
    %3588 = vmatprep.subr.mxu0 %v3553
    %3589 = vmatpush1.msra.mxu0 %v3552
    %3590 = vmatprep.subr.mxu0 %v3557
    %3591 = vmatpush1.msra.mxu0 %v3556
    %3592 = vmatprep.subr.mxu0 0.0
    %3593 = vmatpush1.msra.mxu0 0.0
    %3594 = vmatprep.subr.mxu0 0.0
    %3595 = vmatpush1.msra.mxu0 0.0
    %3596 = vmatprep.subr.mxu0 0.0
    %3597 = vmatpush1.msra.mxu0 0.0
    %3598 = vmatprep.subr.mxu0 0.0
    %3599 = vmatpush1.msra.mxu0 0.0
    %3600 = vmatprep.subr.mxu0 0.0
    %3601 = vmatpush1.msra.mxu0 0.0
    %3602 = vmatprep.subr.mxu0 0.0
    %3603 = vmatpush1.msra.mxu0 0.0
    %3604 = vmatprep.subr.mxu0 0.0
    %3605 = vmatpush1.msra.mxu0 0.0
    %3606 = vmatprep.subr.mxu0 0.0
    %3607 = vmatpush1.msra.mxu0 0.0
    %3608 = vmatprep.subr.mxu0 0.0
    %3609 = vmatpush1.msra.mxu0 0.0
    %3610 = vmatprep.subr.mxu0 0.0
    %3611 = vmatpush1.msra.mxu0 0.0
    %3612 = vmatprep.subr.mxu0 0.0
    %3613 = vmatpush1.msra.mxu0 0.0
    %3614 = vmatprep.subr.mxu0 0.0
    %3615 = vmatpush1.msra.mxu0 0.0
    %3616 = vmatprep.subr.mxu0 0.0
    %3617 = vmatpush1.msra.mxu0 0.0
    %3618 = vmatprep.subr.mxu0 0.0
    %3619 = vmatpush1.msra.mxu0 0.0
    %3620 = vmatprep.subr.mxu0 0.0
    %3621 = vmatpush1.msra.mxu0 0.0
    %3622 = vmatprep.subr.mxu0 0.0
    %3623 = vmatpush1.msra.mxu0 0.0
    %3624 = vmatprep.mubr.f32.mxu0 0.0
    %3625 = vmatmul.mubr.f32.gmra.mrb[0].mxu0 %v3490
    %v3626 = vpop.f32.mrb[0].mxu0
    %v3627 = vadd.f32 0.0, %v3626
    %v3628 = vpop.f32.mrb[0].mxu0
    %v3629 = vadd.f32 0.0, %v3628
    %3630 = vdwg.mxu0
    %3631 = vmatprep.subr.mxu0 %v3499
    %3632 = vmatpush1.msra.mxu0 %v3498
    %3633 = vmatprep.subr.mxu0 %v3503
    %3634 = vmatpush1.msra.mxu0 %v3502
    %3635 = vmatprep.subr.mxu0 %v3507
    %3636 = vmatpush1.msra.mxu0 %v3506
    %3637 = vmatprep.subr.mxu0 %v3511
    %3638 = vmatpush1.msra.mxu0 %v3510
    %3639 = vmatprep.subr.mxu0 %v3515
    %3640 = vmatpush1.msra.mxu0 %v3514
    %3641 = vmatprep.subr.mxu0 %v3519
    %3642 = vmatpush1.msra.mxu0 %v3518
    %3643 = vmatprep.subr.mxu0 %v3523
    %3644 = vmatpush1.msra.mxu0 %v3522
    %3645 = vmatprep.subr.mxu0 %v3527
    %3646 = vmatpush1.msra.mxu0 %v3526
    %3647 = vmatprep.subr.mxu0 %v3531
    %3648 = vmatpush1.msra.mxu0 %v3530
    %3649 = vmatprep.subr.mxu0 %v3535
    %3650 = vmatpush1.msra.mxu0 %v3534
    %3651 = vmatprep.subr.mxu0 %v3539
    %3652 = vmatpush1.msra.mxu0 %v3538
    %3653 = vmatprep.subr.mxu0 %v3543
    %3654 = vmatpush1.msra.mxu0 %v3542
    %3655 = vmatprep.subr.mxu0 %v3547
    %3656 = vmatpush1.msra.mxu0 %v3546
    %3657 = vmatprep.subr.mxu0 %v3551
    %3658 = vmatpush1.msra.mxu0 %v3550
    %3659 = vmatprep.subr.mxu0 %v3555
    %3660 = vmatpush1.msra.mxu0 %v3554
    %3661 = vmatprep.subr.mxu0 %v3559
    %3662 = vmatpush1.msra.mxu0 %v3558
    %3663 = vmatprep.subr.mxu0 0.0
    %3664 = vmatpush1.msra.mxu0 0.0
    %3665 = vmatprep.subr.mxu0 0.0
    %3666 = vmatpush1.msra.mxu0 0.0
    %3667 = vmatprep.subr.mxu0 0.0
    %3668 = vmatpush1.msra.mxu0 0.0
    %3669 = vmatprep.subr.mxu0 0.0
    %3670 = vmatpush1.msra.mxu0 0.0
    %3671 = vmatprep.subr.mxu0 0.0
    %3672 = vmatpush1.msra.mxu0 0.0
    %3673 = vmatprep.subr.mxu0 0.0
    %3674 = vmatpush1.msra.mxu0 0.0
    %3675 = vmatprep.subr.mxu0 0.0
    %3676 = vmatpush1.msra.mxu0 0.0
    %3677 = vmatprep.subr.mxu0 0.0
    %3678 = vmatpush1.msra.mxu0 0.0
    %3679 = vmatprep.subr.mxu0 0.0
    %3680 = vmatpush1.msra.mxu0 0.0
    %3681 = vmatprep.subr.mxu0 0.0
    %3682 = vmatpush1.msra.mxu0 0.0
    %3683 = vmatprep.subr.mxu0 0.0
    %3684 = vmatpush1.msra.mxu0 0.0
    %3685 = vmatprep.subr.mxu0 0.0
    %3686 = vmatpush1.msra.mxu0 0.0
    %3687 = vmatprep.subr.mxu0 0.0
    %3688 = vmatpush1.msra.mxu0 0.0
    %3689 = vmatprep.subr.mxu0 0.0
    %3690 = vmatpush1.msra.mxu0 0.0
    %3691 = vmatprep.subr.mxu0 0.0
    %3692 = vmatpush1.msra.mxu0 0.0
    %3693 = vmatprep.subr.mxu0 0.0
    %3694 = vmatpush1.msra.mxu0 0.0
    %3695 = vmatprep.mubr.f32.mxu0 0.0
    %3696 = vmatmul.mubr.f32.gmra.mrb[0].mxu0 %v3490
    %v3697 = vpop.f32.mrb[0].mxu0
    %v3698 = vadd.f32 0.0, %v3697
    %v3699 = vpop.f32.mrb[0].mxu0
    %v3700 = vadd.f32 0.0, %v3699
    %3701 = vdwg.mxu0
    %v3702 = vadd.f32 %v3492, %v3627
    %v3703 = vadd.f32 %v3493, %v3629
    %v3704 = vadd.f32 %v3494, %v3698
    %v3705 = vadd.f32 %v3495, %v3700
    %v3706 = vxor.u32 %v3702, 2147483648
    %v3707 = vmul.f32 %v3706, 1.442695
    %v3708 = vpow.pop %v3707
    %v3709 = vadd.f32 %v3708, 1.0
    %v3710 = vrcp.pop %v3709
    %v3711 = vmul.f32 1.0, %v3710
    %v3712 = vxor.u32 %v3703, 2147483648
    %v3713 = vmul.f32 %v3712, 1.442695
    %v3714 = vpow.pop %v3713
    %v3715 = vadd.f32 %v3714, 1.0
    %v3716 = vrcp.pop %v3715
    %v3717 = vmul.f32 1.0, %v3716
    %v3718 = vtanh.pop %v3704
    %v3719 = vxor.u32 %v3705, 2147483648
    %v3720 = vmul.f32 %v3719, 1.442695
    %v3721 = vpow.pop %v3720
    %v3722 = vadd.f32 %v3721, 1.0
    %v3723 = vrcp.pop %v3722
    %v3724 = vmul.f32 1.0, %v3723
    %v3725 = vmul.f32 %v3717, %v3488
    %v3726 = vmul.f32 %v3711, %v3718
    %v3727 = vadd.f32 %v3725, %v3726
    %v3728 = vtanh.pop %v3727
    %v3729 = vmul.f32 %v3724, %v3728
    %3730 = vst [vmem:[#allocation3 + $0x10] sm:$0xff] %v3729
    %v3731 = vld [vmem:[#allocation2 + $0x60] sm:$0xff]
    %v3732 = vld [vmem:[#allocation2 + $0x68] sm:$0xff]
    %v3733 = vld [vmem:[#allocation2 + $0x70] sm:$0xff]
    %v3734 = vld [vmem:[#allocation2 + $0x78] sm:$0xff]
    %v3735 = vld [vmem:[#allocation10] sm:$0xff]
    %v3736 = vld [vmem:[#allocation10 + $0x8] sm:$0xff]
    %v3737 = vld [vmem:[#allocation10 + $0x10] sm:$0xff]
    %v3738 = vld [vmem:[#allocation10 + $0x18] sm:$0xff]
    %v3739 = vld [vmem:[#allocation10 + $0x20] sm:$0xff]
    %v3740 = vld [vmem:[#allocation10 + $0x28] sm:$0xff]
    %v3741 = vld [vmem:[#allocation10 + $0x30] sm:$0xff]
    %v3742 = vld [vmem:[#allocation10 + $0x38] sm:$0xff]
    %v3743 = vld [vmem:[#allocation10 + $0x40] sm:$0xff]
    %v3744 = vld [vmem:[#allocation10 + $0x48] sm:$0xff]
    %v3745 = vld [vmem:[#allocation10 + $0x50] sm:$0xff]
    %v3746 = vld [vmem:[#allocation10 + $0x58] sm:$0xff]
    %v3747 = vld [vmem:[#allocation10 + $0x60] sm:$0xff]
    %v3748 = vld [vmem:[#allocation10 + $0x68] sm:$0xff]
    %v3749 = vld [vmem:[#allocation10 + $0x70] sm:$0xff]
    %v3750 = vld [vmem:[#allocation10 + $0x78] sm:$0xff]
    %v3751 = vld [vmem:[#allocation10 + $0x80] sm:$0xff]
    %v3752 = vld [vmem:[#allocation10 + $0x88] sm:$0xff]
    %v3753 = vld [vmem:[#allocation10 + $0x90] sm:$0xff]
    %v3754 = vld [vmem:[#allocation10 + $0x98] sm:$0xff]
    %v3755 = vld [vmem:[#allocation10 + $0xa0] sm:$0xff]
    %v3756 = vld [vmem:[#allocation10 + $0xa8] sm:$0xff]
    %v3757 = vld [vmem:[#allocation10 + $0xb0] sm:$0xff]
    %v3758 = vld [vmem:[#allocation10 + $0xb8] sm:$0xff]
    %v3759 = vld [vmem:[#allocation10 + $0xc0] sm:$0xff]
    %v3760 = vld [vmem:[#allocation10 + $0xc8] sm:$0xff]
    %v3761 = vld [vmem:[#allocation10 + $0xd0] sm:$0xff]
    %v3762 = vld [vmem:[#allocation10 + $0xd8] sm:$0xff]
    %v3763 = vld [vmem:[#allocation10 + $0xe0] sm:$0xff]
    %v3764 = vld [vmem:[#allocation10 + $0xe8] sm:$0xff]
    %v3765 = vld [vmem:[#allocation10 + $0xf0] sm:$0xff]
    %v3766 = vld [vmem:[#allocation10 + $0xf8] sm:$0xff]
    %v3767 = vld [vmem:[#allocation10 + $0x100] sm:$0xff]
    %v3768 = vld [vmem:[#allocation10 + $0x108] sm:$0xff]
    %v3769 = vld [vmem:[#allocation10 + $0x110] sm:$0xff]
    %v3770 = vld [vmem:[#allocation10 + $0x118] sm:$0xff]
    %v3771 = vld [vmem:[#allocation10 + $0x120] sm:$0xff]
    %v3772 = vld [vmem:[#allocation10 + $0x128] sm:$0xff]
    %v3773 = vld [vmem:[#allocation10 + $0x130] sm:$0xff]
    %v3774 = vld [vmem:[#allocation10 + $0x138] sm:$0xff]
    %v3775 = vld [vmem:[#allocation10 + $0x140] sm:$0xff]
    %v3776 = vld [vmem:[#allocation10 + $0x148] sm:$0xff]
    %v3777 = vld [vmem:[#allocation10 + $0x150] sm:$0xff]
    %v3778 = vld [vmem:[#allocation10 + $0x158] sm:$0xff]
    %v3779 = vld [vmem:[#allocation10 + $0x160] sm:$0xff]
    %v3780 = vld [vmem:[#allocation10 + $0x168] sm:$0xff]
    %v3781 = vld [vmem:[#allocation10 + $0x170] sm:$0xff]
    %v3782 = vld [vmem:[#allocation10 + $0x178] sm:$0xff]
    %v3783 = vld [vmem:[#allocation10 + $0x180] sm:$0xff]
    %v3784 = vld [vmem:[#allocation10 + $0x188] sm:$0xff]
    %v3785 = vld [vmem:[#allocation10 + $0x190] sm:$0xff]
    %v3786 = vld [vmem:[#allocation10 + $0x198] sm:$0xff]
    %v3787 = vld [vmem:[#allocation10 + $0x1a0] sm:$0xff]
    %v3788 = vld [vmem:[#allocation10 + $0x1a8] sm:$0xff]
    %v3789 = vld [vmem:[#allocation10 + $0x1b0] sm:$0xff]
    %v3790 = vld [vmem:[#allocation10 + $0x1b8] sm:$0xff]
    %v3791 = vld [vmem:[#allocation10 + $0x1c0] sm:$0xff]
    %v3792 = vld [vmem:[#allocation10 + $0x1c8] sm:$0xff]
    %v3793 = vld [vmem:[#allocation10 + $0x1d0] sm:$0xff]
    %v3794 = vld [vmem:[#allocation10 + $0x1d8] sm:$0xff]
    %v3795 = vld [vmem:[#allocation10 + $0x1e0] sm:$0xff]
    %v3796 = vld [vmem:[#allocation10 + $0x1e8] sm:$0xff]
    %v3797 = vld [vmem:[#allocation10 + $0x1f0] sm:$0xff]
    %v3798 = vld [vmem:[#allocation10 + $0x1f8] sm:$0xff]
    %3799 = vmatprep.subr.mxu0 %v3736
    %3800 = vmatpush1.msra.mxu0 %v3735
    %3801 = vmatprep.subr.mxu0 %v3740
    %3802 = vmatpush1.msra.mxu0 %v3739
    %3803 = vmatprep.subr.mxu0 %v3744
    %3804 = vmatpush1.msra.mxu0 %v3743
    %3805 = vmatprep.subr.mxu0 %v3748
    %3806 = vmatpush1.msra.mxu0 %v3747
    %3807 = vmatprep.subr.mxu0 %v3752
    %3808 = vmatpush1.msra.mxu0 %v3751
    %3809 = vmatprep.subr.mxu0 %v3756
    %3810 = vmatpush1.msra.mxu0 %v3755
    %3811 = vmatprep.subr.mxu0 %v3760
    %3812 = vmatpush1.msra.mxu0 %v3759
    %3813 = vmatprep.subr.mxu0 %v3764
    %3814 = vmatpush1.msra.mxu0 %v3763
    %3815 = vmatprep.subr.mxu0 %v3768
    %3816 = vmatpush1.msra.mxu0 %v3767
    %3817 = vmatprep.subr.mxu0 %v3772
    %3818 = vmatpush1.msra.mxu0 %v3771
    %3819 = vmatprep.subr.mxu0 %v3776
    %3820 = vmatpush1.msra.mxu0 %v3775
    %3821 = vmatprep.subr.mxu0 %v3780
    %3822 = vmatpush1.msra.mxu0 %v3779
    %3823 = vmatprep.subr.mxu0 %v3784
    %3824 = vmatpush1.msra.mxu0 %v3783
    %3825 = vmatprep.subr.mxu0 %v3788
    %3826 = vmatpush1.msra.mxu0 %v3787
    %3827 = vmatprep.subr.mxu0 %v3792
    %3828 = vmatpush1.msra.mxu0 %v3791
    %3829 = vmatprep.subr.mxu0 %v3796
    %3830 = vmatpush1.msra.mxu0 %v3795
    %3831 = vmatprep.subr.mxu0 0.0
    %3832 = vmatpush1.msra.mxu0 0.0
    %3833 = vmatprep.subr.mxu0 0.0
    %3834 = vmatpush1.msra.mxu0 0.0
    %3835 = vmatprep.subr.mxu0 0.0
    %3836 = vmatpush1.msra.mxu0 0.0
    %3837 = vmatprep.subr.mxu0 0.0
    %3838 = vmatpush1.msra.mxu0 0.0
    %3839 = vmatprep.subr.mxu0 0.0
    %3840 = vmatpush1.msra.mxu0 0.0
    %3841 = vmatprep.subr.mxu0 0.0
    %3842 = vmatpush1.msra.mxu0 0.0
    %3843 = vmatprep.subr.mxu0 0.0
    %3844 = vmatpush1.msra.mxu0 0.0
    %3845 = vmatprep.subr.mxu0 0.0
    %3846 = vmatpush1.msra.mxu0 0.0
    %3847 = vmatprep.subr.mxu0 0.0
    %3848 = vmatpush1.msra.mxu0 0.0
    %3849 = vmatprep.subr.mxu0 0.0
    %3850 = vmatpush1.msra.mxu0 0.0
    %3851 = vmatprep.subr.mxu0 0.0
    %3852 = vmatpush1.msra.mxu0 0.0
    %3853 = vmatprep.subr.mxu0 0.0
    %3854 = vmatpush1.msra.mxu0 0.0
    %3855 = vmatprep.subr.mxu0 0.0
    %3856 = vmatpush1.msra.mxu0 0.0
    %3857 = vmatprep.subr.mxu0 0.0
    %3858 = vmatpush1.msra.mxu0 0.0
    %3859 = vmatprep.subr.mxu0 0.0
    %3860 = vmatpush1.msra.mxu0 0.0
    %3861 = vmatprep.subr.mxu0 0.0
    %3862 = vmatpush1.msra.mxu0 0.0
    %3863 = vmatprep.mubr.f32.mxu0 0.0
    %3864 = vmatmul.mubr.f32.gmra.mrb[0].mxu0 %v3729
    %v3865 = vpop.f32.mrb[0].mxu0
    %v3866 = vadd.f32 0.0, %v3865
    %v3867 = vpop.f32.mrb[0].mxu0
    %v3868 = vadd.f32 0.0, %v3867
    %3869 = vdwg.mxu0
    %3870 = vmatprep.subr.mxu0 %v3738
    %3871 = vmatpush1.msra.mxu0 %v3737
    %3872 = vmatprep.subr.mxu0 %v3742
    %3873 = vmatpush1.msra.mxu0 %v3741
    %3874 = vmatprep.subr.mxu0 %v3746
    %3875 = vmatpush1.msra.mxu0 %v3745
    %3876 = vmatprep.subr.mxu0 %v3750
    %3877 = vmatpush1.msra.mxu0 %v3749
    %3878 = vmatprep.subr.mxu0 %v3754
    %3879 = vmatpush1.msra.mxu0 %v3753
    %3880 = vmatprep.subr.mxu0 %v3758
    %3881 = vmatpush1.msra.mxu0 %v3757
    %3882 = vmatprep.subr.mxu0 %v3762
    %3883 = vmatpush1.msra.mxu0 %v3761
    %3884 = vmatprep.subr.mxu0 %v3766
    %3885 = vmatpush1.msra.mxu0 %v3765
    %3886 = vmatprep.subr.mxu0 %v3770
    %3887 = vmatpush1.msra.mxu0 %v3769
    %3888 = vmatprep.subr.mxu0 %v3774
    %3889 = vmatpush1.msra.mxu0 %v3773
    %3890 = vmatprep.subr.mxu0 %v3778
    %3891 = vmatpush1.msra.mxu0 %v3777
    %3892 = vmatprep.subr.mxu0 %v3782
    %3893 = vmatpush1.msra.mxu0 %v3781
    %3894 = vmatprep.subr.mxu0 %v3786
    %3895 = vmatpush1.msra.mxu0 %v3785
    %3896 = vmatprep.subr.mxu0 %v3790
    %3897 = vmatpush1.msra.mxu0 %v3789
    %3898 = vmatprep.subr.mxu0 %v3794
    %3899 = vmatpush1.msra.mxu0 %v3793
    %3900 = vmatprep.subr.mxu0 %v3798
    %3901 = vmatpush1.msra.mxu0 %v3797
    %3902 = vmatprep.subr.mxu0 0.0
    %3903 = vmatpush1.msra.mxu0 0.0
    %3904 = vmatprep.subr.mxu0 0.0
    %3905 = vmatpush1.msra.mxu0 0.0
    %3906 = vmatprep.subr.mxu0 0.0
    %3907 = vmatpush1.msra.mxu0 0.0
    %3908 = vmatprep.subr.mxu0 0.0
    %3909 = vmatpush1.msra.mxu0 0.0
    %3910 = vmatprep.subr.mxu0 0.0
    %3911 = vmatpush1.msra.mxu0 0.0
    %3912 = vmatprep.subr.mxu0 0.0
    %3913 = vmatpush1.msra.mxu0 0.0
    %3914 = vmatprep.subr.mxu0 0.0
    %3915 = vmatpush1.msra.mxu0 0.0
    %3916 = vmatprep.subr.mxu0 0.0
    %3917 = vmatpush1.msra.mxu0 0.0
    %3918 = vmatprep.subr.mxu0 0.0
    %3919 = vmatpush1.msra.mxu0 0.0
    %3920 = vmatprep.subr.mxu0 0.0
    %3921 = vmatpush1.msra.mxu0 0.0
    %3922 = vmatprep.subr.mxu0 0.0
    %3923 = vmatpush1.msra.mxu0 0.0
    %3924 = vmatprep.subr.mxu0 0.0
    %3925 = vmatpush1.msra.mxu0 0.0
    %3926 = vmatprep.subr.mxu0 0.0
    %3927 = vmatpush1.msra.mxu0 0.0
    %3928 = vmatprep.subr.mxu0 0.0
    %3929 = vmatpush1.msra.mxu0 0.0
    %3930 = vmatprep.subr.mxu0 0.0
    %3931 = vmatpush1.msra.mxu0 0.0
    %3932 = vmatprep.subr.mxu0 0.0
    %3933 = vmatpush1.msra.mxu0 0.0
    %3934 = vmatprep.mubr.f32.mxu0 0.0
    %3935 = vmatmul.mubr.f32.gmra.mrb[0].mxu0 %v3729
    %v3936 = vpop.f32.mrb[0].mxu0
    %v3937 = vadd.f32 0.0, %v3936
    %v3938 = vpop.f32.mrb[0].mxu0
    %v3939 = vadd.f32 0.0, %v3938
    %3940 = vdwg.mxu0
    %v3941 = vadd.f32 %v3731, %v3866
    %v3942 = vadd.f32 %v3732, %v3868
    %v3943 = vadd.f32 %v3733, %v3937
    %v3944 = vadd.f32 %v3734, %v3939
    %v3945 = vxor.u32 %v3941, 2147483648
    %v3946 = vmul.f32 %v3945, 1.442695
    %v3947 = vpow.pop %v3946
    %v3948 = vadd.f32 %v3947, 1.0
    %v3949 = vrcp.pop %v3948
    %v3950 = vmul.f32 1.0, %v3949
    %v3951 = vxor.u32 %v3942, 2147483648
    %v3952 = vmul.f32 %v3951, 1.442695
    %v3953 = vpow.pop %v3952
    %v3954 = vadd.f32 %v3953, 1.0
    %v3955 = vrcp.pop %v3954
    %v3956 = vmul.f32 1.0, %v3955
    %v3957 = vtanh.pop %v3943
    %v3958 = vxor.u32 %v3944, 2147483648
    %v3959 = vmul.f32 %v3958, 1.442695
    %v3960 = vpow.pop %v3959
    %v3961 = vadd.f32 %v3960, 1.0
    %v3962 = vrcp.pop %v3961
    %v3963 = vmul.f32 1.0, %v3962
    %v3964 = vmul.f32 %v3956, %v3727
    %v3965 = vmul.f32 %v3950, %v3957
    %v3966 = vadd.f32 %v3964, %v3965
    %v3967 = vtanh.pop %v3966
    %v3968 = vmul.f32 %v3963, %v3967
    %3969 = vst [vmem:[#allocation3 + $0x18] sm:$0xff] %v3968
    %v3970 = vld [vmem:[#allocation2 + $0x80] sm:$0xff]
    %v3971 = vld [vmem:[#allocation2 + $0x88] sm:$0xff]
    %v3972 = vld [vmem:[#allocation2 + $0x90] sm:$0xff]
    %v3973 = vld [vmem:[#allocation2 + $0x98] sm:$0xff]
    %v3974 = vld [vmem:[#allocation10] sm:$0xff]
    %v3975 = vld [vmem:[#allocation10 + $0x8] sm:$0xff]
    %v3976 = vld [vmem:[#allocation10 + $0x10] sm:$0xff]
    %v3977 = vld [vmem:[#allocation10 + $0x18] sm:$0xff]
    %v3978 = vld [vmem:[#allocation10 + $0x20] sm:$0xff]
    %v3979 = vld [vmem:[#allocation10 + $0x28] sm:$0xff]
    %v3980 = vld [vmem:[#allocation10 + $0x30] sm:$0xff]
    %v3981 = vld [vmem:[#allocation10 + $0x38] sm:$0xff]
    %v3982 = vld [vmem:[#allocation10 + $0x40] sm:$0xff]
    %v3983 = vld [vmem:[#allocation10 + $0x48] sm:$0xff]
    %v3984 = vld [vmem:[#allocation10 + $0x50] sm:$0xff]
    %v3985 = vld [vmem:[#allocation10 + $0x58] sm:$0xff]
    %v3986 = vld [vmem:[#allocation10 + $0x60] sm:$0xff]
    %v3987 = vld [vmem:[#allocation10 + $0x68] sm:$0xff]
    %v3988 = vld [vmem:[#allocation10 + $0x70] sm:$0xff]
    %v3989 = vld [vmem:[#allocation10 + $0x78] sm:$0xff]
    %v3990 = vld [vmem:[#allocation10 + $0x80] sm:$0xff]
    %v3991 = vld [vmem:[#allocation10 + $0x88] sm:$0xff]
    %v3992 = vld [vmem:[#allocation10 + $0x90] sm:$0xff]
    %v3993 = vld [vmem:[#allocation10 + $0x98] sm:$0xff]
    %v3994 = vld [vmem:[#allocation10 + $0xa0] sm:$0xff]
    %v3995 = vld [vmem:[#allocation10 + $0xa8] sm:$0xff]
    %v3996 = vld [vmem:[#allocation10 + $0xb0] sm:$0xff]
    %v3997 = vld [vmem:[#allocation10 + $0xb8] sm:$0xff]
    %v3998 = vld [vmem:[#allocation10 + $0xc0] sm:$0xff]
    %v3999 = vld [vmem:[#allocation10 + $0xc8] sm:$0xff]
    %v4000 = vld [vmem:[#allocation10 + $0xd0] sm:$0xff]
    %v4001 = vld [vmem:[#allocation10 + $0xd8] sm:$0xff]
    %v4002 = vld [vmem:[#allocation10 + $0xe0] sm:$0xff]
    %v4003 = vld [vmem:[#allocation10 + $0xe8] sm:$0xff]
    %v4004 = vld [vmem:[#allocation10 + $0xf0] sm:$0xff]
    %v4005 = vld [vmem:[#allocation10 + $0xf8] sm:$0xff]
    %v4006 = vld [vmem:[#allocation10 + $0x100] sm:$0xff]
    %v4007 = vld [vmem:[#allocation10 + $0x108] sm:$0xff]
    %v4008 = vld [vmem:[#allocation10 + $0x110] sm:$0xff]
    %v4009 = vld [vmem:[#allocation10 + $0x118] sm:$0xff]
    %v4010 = vld [vmem:[#allocation10 + $0x120] sm:$0xff]
    %v4011 = vld [vmem:[#allocation10 + $0x128] sm:$0xff]
    %v4012 = vld [vmem:[#allocation10 + $0x130] sm:$0xff]
    %v4013 = vld [vmem:[#allocation10 + $0x138] sm:$0xff]
    %v4014 = vld [vmem:[#allocation10 + $0x140] sm:$0xff]
    %v4015 = vld [vmem:[#allocation10 + $0x148] sm:$0xff]
    %v4016 = vld [vmem:[#allocation10 + $0x150] sm:$0xff]
    %v4017 = vld [vmem:[#allocation10 + $0x158] sm:$0xff]
    %v4018 = vld [vmem:[#allocation10 + $0x160] sm:$0xff]
    %v4019 = vld [vmem:[#allocation10 + $0x168] sm:$0xff]
    %v4020 = vld [vmem:[#allocation10 + $0x170] sm:$0xff]
    %v4021 = vld [vmem:[#allocation10 + $0x178] sm:$0xff]
    %v4022 = vld [vmem:[#allocation10 + $0x180] sm:$0xff]
    %v4023 = vld [vmem:[#allocation10 + $0x188] sm:$0xff]
    %v4024 = vld [vmem:[#allocation10 + $0x190] sm:$0xff]
    %v4025 = vld [vmem:[#allocation10 + $0x198] sm:$0xff]
    %v4026 = vld [vmem:[#allocation10 + $0x1a0] sm:$0xff]
    %v4027 = vld [vmem:[#allocation10 + $0x1a8] sm:$0xff]
    %v4028 = vld [vmem:[#allocation10 + $0x1b0] sm:$0xff]
    %v4029 = vld [vmem:[#allocation10 + $0x1b8] sm:$0xff]
    %v4030 = vld [vmem:[#allocation10 + $0x1c0] sm:$0xff]
    %v4031 = vld [vmem:[#allocation10 + $0x1c8] sm:$0xff]
    %v4032 = vld [vmem:[#allocation10 + $0x1d0] sm:$0xff]
    %v4033 = vld [vmem:[#allocation10 + $0x1d8] sm:$0xff]
    %v4034 = vld [vmem:[#allocation10 + $0x1e0] sm:$0xff]
    %v4035 = vld [vmem:[#allocation10 + $0x1e8] sm:$0xff]
    %v4036 = vld [vmem:[#allocation10 + $0x1f0] sm:$0xff]
    %v4037 = vld [vmem:[#allocation10 + $0x1f8] sm:$0xff]
    %4038 = vmatprep.subr.mxu0 %v3975
    %4039 = vmatpush1.msra.mxu0 %v3974
    %4040 = vmatprep.subr.mxu0 %v3979
    %4041 = vmatpush1.msra.mxu0 %v3978
    %4042 = vmatprep.subr.mxu0 %v3983
    %4043 = vmatpush1.msra.mxu0 %v3982
    %4044 = vmatprep.subr.mxu0 %v3987
    %4045 = vmatpush1.msra.mxu0 %v3986
    %4046 = vmatprep.subr.mxu0 %v3991
    %4047 = vmatpush1.msra.mxu0 %v3990
    %4048 = vmatprep.subr.mxu0 %v3995
    %4049 = vmatpush1.msra.mxu0 %v3994
    %4050 = vmatprep.subr.mxu0 %v3999
    %4051 = vmatpush1.msra.mxu0 %v3998
    %4052 = vmatprep.subr.mxu0 %v4003
    %4053 = vmatpush1.msra.mxu0 %v4002
    %4054 = vmatprep.subr.mxu0 %v4007
    %4055 = vmatpush1.msra.mxu0 %v4006
    %4056 = vmatprep.subr.mxu0 %v4011
    %4057 = vmatpush1.msra.mxu0 %v4010
    %4058 = vmatprep.subr.mxu0 %v4015
    %4059 = vmatpush1.msra.mxu0 %v4014
    %4060 = vmatprep.subr.mxu0 %v4019
    %4061 = vmatpush1.msra.mxu0 %v4018
    %4062 = vmatprep.subr.mxu0 %v4023
    %4063 = vmatpush1.msra.mxu0 %v4022
    %4064 = vmatprep.subr.mxu0 %v4027
    %4065 = vmatpush1.msra.mxu0 %v4026
    %4066 = vmatprep.subr.mxu0 %v4031
    %4067 = vmatpush1.msra.mxu0 %v4030
    %4068 = vmatprep.subr.mxu0 %v4035
    %4069 = vmatpush1.msra.mxu0 %v4034
    %4070 = vmatprep.subr.mxu0 0.0
    %4071 = vmatpush1.msra.mxu0 0.0
    %4072 = vmatprep.subr.mxu0 0.0
    %4073 = vmatpush1.msra.mxu0 0.0
    %4074 = vmatprep.subr.mxu0 0.0
    %4075 = vmatpush1.msra.mxu0 0.0
    %4076 = vmatprep.subr.mxu0 0.0
    %4077 = vmatpush1.msra.mxu0 0.0
    %4078 = vmatprep.subr.mxu0 0.0
    %4079 = vmatpush1.msra.mxu0 0.0
    %4080 = vmatprep.subr.mxu0 0.0
    %4081 = vmatpush1.msra.mxu0 0.0
    %4082 = vmatprep.subr.mxu0 0.0
    %4083 = vmatpush1.msra.mxu0 0.0
    %4084 = vmatprep.subr.mxu0 0.0
    %4085 = vmatpush1.msra.mxu0 0.0
    %4086 = vmatprep.subr.mxu0 0.0
    %4087 = vmatpush1.msra.mxu0 0.0
    %4088 = vmatprep.subr.mxu0 0.0
    %4089 = vmatpush1.msra.mxu0 0.0
    %4090 = vmatprep.subr.mxu0 0.0
    %4091 = vmatpush1.msra.mxu0 0.0
    %4092 = vmatprep.subr.mxu0 0.0
    %4093 = vmatpush1.msra.mxu0 0.0
    %4094 = vmatprep.subr.mxu0 0.0
    %4095 = vmatpush1.msra.mxu0 0.0
    %4096 = vmatprep.subr.mxu0 0.0
    %4097 = vmatpush1.msra.mxu0 0.0
    %4098 = vmatprep.subr.mxu0 0.0
    %4099 = vmatpush1.msra.mxu0 0.0
    %4100 = vmatprep.subr.mxu0 0.0
    %4101 = vmatpush1.msra.mxu0 0.0
    %4102 = vmatprep.mubr.f32.mxu0 0.0
    %4103 = vmatmul.mubr.f32.gmra.mrb[0].mxu0 %v3968
    %v4104 = vpop.f32.mrb[0].mxu0
    %v4105 = vadd.f32 0.0, %v4104
    %v4106 = vpop.f32.mrb[0].mxu0
    %v4107 = vadd.f32 0.0, %v4106
    %4108 = vdwg.mxu0
    %4109 = vmatprep.subr.mxu0 %v3977
    %4110 = vmatpush1.msra.mxu0 %v3976
    %4111 = vmatprep.subr.mxu0 %v3981
    %4112 = vmatpush1.msra.mxu0 %v3980
    %4113 = vmatprep.subr.mxu0 %v3985
    %4114 = vmatpush1.msra.mxu0 %v3984
    %4115 = vmatprep.subr.mxu0 %v3989
    %4116 = vmatpush1.msra.mxu0 %v3988
    %4117 = vmatprep.subr.mxu0 %v3993
    %4118 = vmatpush1.msra.mxu0 %v3992
    %4119 = vmatprep.subr.mxu0 %v3997
    %4120 = vmatpush1.msra.mxu0 %v3996
    %4121 = vmatprep.subr.mxu0 %v4001
    %4122 = vmatpush1.msra.mxu0 %v4000
    %4123 = vmatprep.subr.mxu0 %v4005
    %4124 = vmatpush1.msra.mxu0 %v4004
    %4125 = vmatprep.subr.mxu0 %v4009
    %4126 = vmatpush1.msra.mxu0 %v4008
    %4127 = vmatprep.subr.mxu0 %v4013
    %4128 = vmatpush1.msra.mxu0 %v4012
    %4129 = vmatprep.subr.mxu0 %v4017
    %4130 = vmatpush1.msra.mxu0 %v4016
    %4131 = vmatprep.subr.mxu0 %v4021
    %4132 = vmatpush1.msra.mxu0 %v4020
    %4133 = vmatprep.subr.mxu0 %v4025
    %4134 = vmatpush1.msra.mxu0 %v4024
    %4135 = vmatprep.subr.mxu0 %v4029
    %4136 = vmatpush1.msra.mxu0 %v4028
    %4137 = vmatprep.subr.mxu0 %v4033
    %4138 = vmatpush1.msra.mxu0 %v4032
    %4139 = vmatprep.subr.mxu0 %v4037
    %4140 = vmatpush1.msra.mxu0 %v4036
    %4141 = vmatprep.subr.mxu0 0.0
    %4142 = vmatpush1.msra.mxu0 0.0
    %4143 = vmatprep.subr.mxu0 0.0
    %4144 = vmatpush1.msra.mxu0 0.0
    %4145 = vmatprep.subr.mxu0 0.0
    %4146 = vmatpush1.msra.mxu0 0.0
    %4147 = vmatprep.subr.mxu0 0.0
    %4148 = vmatpush1.msra.mxu0 0.0
    %4149 = vmatprep.subr.mxu0 0.0
    %4150 = vmatpush1.msra.mxu0 0.0
    %4151 = vmatprep.subr.mxu0 0.0
    %4152 = vmatpush1.msra.mxu0 0.0
    %4153 = vmatprep.subr.mxu0 0.0
    %4154 = vmatpush1.msra.mxu0 0.0
    %4155 = vmatprep.subr.mxu0 0.0
    %4156 = vmatpush1.msra.mxu0 0.0
    %4157 = vmatprep.subr.mxu0 0.0
    %4158 = vmatpush1.msra.mxu0 0.0
    %4159 = vmatprep.subr.mxu0 0.0
    %4160 = vmatpush1.msra.mxu0 0.0
    %4161 = vmatprep.subr.mxu0 0.0
    %4162 = vmatpush1.msra.mxu0 0.0
    %4163 = vmatprep.subr.mxu0 0.0
    %4164 = vmatpush1.msra.mxu0 0.0
    %4165 = vmatprep.subr.mxu0 0.0
    %4166 = vmatpush1.msra.mxu0 0.0
    %4167 = vmatprep.subr.mxu0 0.0
    %4168 = vmatpush1.msra.mxu0 0.0
    %4169 = vmatprep.subr.mxu0 0.0
    %4170 = vmatpush1.msra.mxu0 0.0
    %4171 = vmatprep.subr.mxu0 0.0
    %4172 = vmatpush1.msra.mxu0 0.0
    %4173 = vmatprep.mubr.f32.mxu0 0.0
    %4174 = vmatmul.mubr.f32.gmra.mrb[0].mxu0 %v3968
    %v4175 = vpop.f32.mrb[0].mxu0
    %v4176 = vadd.f32 0.0, %v4175
    %v4177 = vpop.f32.mrb[0].mxu0
    %v4178 = vadd.f32 0.0, %v4177
    %4179 = vdwg.mxu0
    %v4180 = vadd.f32 %v3970, %v4105
    %v4181 = vadd.f32 %v3971, %v4107
    %v4182 = vadd.f32 %v3972, %v4176
    %v4183 = vadd.f32 %v3973, %v4178
    %v4184 = vxor.u32 %v4180, 2147483648
    %v4185 = vmul.f32 %v4184, 1.442695
    %v4186 = vpow.pop %v4185
    %v4187 = vadd.f32 %v4186, 1.0
    %v4188 = vrcp.pop %v4187
    %v4189 = vmul.f32 1.0, %v4188
    %v4190 = vxor.u32 %v4181, 2147483648
    %v4191 = vmul.f32 %v4190, 1.442695
    %v4192 = vpow.pop %v4191
    %v4193 = vadd.f32 %v4192, 1.0
    %v4194 = vrcp.pop %v4193
    %v4195 = vmul.f32 1.0, %v4194
    %v4196 = vtanh.pop %v4182
    %v4197 = vxor.u32 %v4183, 2147483648
    %v4198 = vmul.f32 %v4197, 1.442695
    %v4199 = vpow.pop %v4198
    %v4200 = vadd.f32 %v4199, 1.0
    %v4201 = vrcp.pop %v4200
    %v4202 = vmul.f32 1.0, %v4201
    %v4203 = vmul.f32 %v4195, %v3966
    %v4204 = vmul.f32 %v4189, %v4196
    %v4205 = vadd.f32 %v4203, %v4204
    %v4206 = vtanh.pop %v4205
    %v4207 = vmul.f32 %v4202, %v4206
    %4208 = vst [vmem:[#allocation3 + $0x20] sm:$0xff] %v4207
    %v4209 = vld [vmem:[#allocation2 + $0xa0] sm:$0xff]
    %v4210 = vld [vmem:[#allocation2 + $0xa8] sm:$0xff]
    %v4211 = vld [vmem:[#allocation2 + $0xb0] sm:$0xff]
    %v4212 = vld [vmem:[#allocation2 + $0xb8] sm:$0xff]
    %v4213 = vld [vmem:[#allocation10] sm:$0xff]
    %v4214 = vld [vmem:[#allocation10 + $0x8] sm:$0xff]
    %v4215 = vld [vmem:[#allocation10 + $0x10] sm:$0xff]
    %v4216 = vld [vmem:[#allocation10 + $0x18] sm:$0xff]
    %v4217 = vld [vmem:[#allocation10 + $0x20] sm:$0xff]
    %v4218 = vld [vmem:[#allocation10 + $0x28] sm:$0xff]
    %v4219 = vld [vmem:[#allocation10 + $0x30] sm:$0xff]
    %v4220 = vld [vmem:[#allocation10 + $0x38] sm:$0xff]
    %v4221 = vld [vmem:[#allocation10 + $0x40] sm:$0xff]
    %v4222 = vld [vmem:[#allocation10 + $0x48] sm:$0xff]
    %v4223 = vld [vmem:[#allocation10 + $0x50] sm:$0xff]
    %v4224 = vld [vmem:[#allocation10 + $0x58] sm:$0xff]
    %v4225 = vld [vmem:[#allocation10 + $0x60] sm:$0xff]
    %v4226 = vld [vmem:[#allocation10 + $0x68] sm:$0xff]
    %v4227 = vld [vmem:[#allocation10 + $0x70] sm:$0xff]
    %v4228 = vld [vmem:[#allocation10 + $0x78] sm:$0xff]
    %v4229 = vld [vmem:[#allocation10 + $0x80] sm:$0xff]
    %v4230 = vld [vmem:[#allocation10 + $0x88] sm:$0xff]
    %v4231 = vld [vmem:[#allocation10 + $0x90] sm:$0xff]
    %v4232 = vld [vmem:[#allocation10 + $0x98] sm:$0xff]
    %v4233 = vld [vmem:[#allocation10 + $0xa0] sm:$0xff]
    %v4234 = vld [vmem:[#allocation10 + $0xa8] sm:$0xff]
    %v4235 = vld [vmem:[#allocation10 + $0xb0] sm:$0xff]
    %v4236 = vld [vmem:[#allocation10 + $0xb8] sm:$0xff]
    %v4237 = vld [vmem:[#allocation10 + $0xc0] sm:$0xff]
    %v4238 = vld [vmem:[#allocation10 + $0xc8] sm:$0xff]
    %v4239 = vld [vmem:[#allocation10 + $0xd0] sm:$0xff]
    %v4240 = vld [vmem:[#allocation10 + $0xd8] sm:$0xff]
    %v4241 = vld [vmem:[#allocation10 + $0xe0] sm:$0xff]
    %v4242 = vld [vmem:[#allocation10 + $0xe8] sm:$0xff]
    %v4243 = vld [vmem:[#allocation10 + $0xf0] sm:$0xff]
    %v4244 = vld [vmem:[#allocation10 + $0xf8] sm:$0xff]
    %v4245 = vld [vmem:[#allocation10 + $0x100] sm:$0xff]
    %v4246 = vld [vmem:[#allocation10 + $0x108] sm:$0xff]
    %v4247 = vld [vmem:[#allocation10 + $0x110] sm:$0xff]
    %v4248 = vld [vmem:[#allocation10 + $0x118] sm:$0xff]
    %v4249 = vld [vmem:[#allocation10 + $0x120] sm:$0xff]
    %v4250 = vld [vmem:[#allocation10 + $0x128] sm:$0xff]
    %v4251 = vld [vmem:[#allocation10 + $0x130] sm:$0xff]
    %v4252 = vld [vmem:[#allocation10 + $0x138] sm:$0xff]
    %v4253 = vld [vmem:[#allocation10 + $0x140] sm:$0xff]
    %v4254 = vld [vmem:[#allocation10 + $0x148] sm:$0xff]
    %v4255 = vld [vmem:[#allocation10 + $0x150] sm:$0xff]
    %v4256 = vld [vmem:[#allocation10 + $0x158] sm:$0xff]
    %v4257 = vld [vmem:[#allocation10 + $0x160] sm:$0xff]
    %v4258 = vld [vmem:[#allocation10 + $0x168] sm:$0xff]
    %v4259 = vld [vmem:[#allocation10 + $0x170] sm:$0xff]
    %v4260 = vld [vmem:[#allocation10 + $0x178] sm:$0xff]
    %v4261 = vld [vmem:[#allocation10 + $0x180] sm:$0xff]
    %v4262 = vld [vmem:[#allocation10 + $0x188] sm:$0xff]
    %v4263 = vld [vmem:[#allocation10 + $0x190] sm:$0xff]
    %v4264 = vld [vmem:[#allocation10 + $0x198] sm:$0xff]
    %v4265 = vld [vmem:[#allocation10 + $0x1a0] sm:$0xff]
    %v4266 = vld [vmem:[#allocation10 + $0x1a8] sm:$0xff]
    %v4267 = vld [vmem:[#allocation10 + $0x1b0] sm:$0xff]
    %v4268 = vld [vmem:[#allocation10 + $0x1b8] sm:$0xff]
    %v4269 = vld [vmem:[#allocation10 + $0x1c0] sm:$0xff]
    %v4270 = vld [vmem:[#allocation10 + $0x1c8] sm:$0xff]
    %v4271 = vld [vmem:[#allocation10 + $0x1d0] sm:$0xff]
    %v4272 = vld [vmem:[#allocation10 + $0x1d8] sm:$0xff]
    %v4273 = vld [vmem:[#allocation10 + $0x1e0] sm:$0xff]
    %v4274 = vld [vmem:[#allocation10 + $0x1e8] sm:$0xff]
    %v4275 = vld [vmem:[#allocation10 + $0x1f0] sm:$0xff]
    %v4276 = vld [vmem:[#allocation10 + $0x1f8] sm:$0xff]
    %4277 = vmatprep.subr.mxu0 %v4214
    %4278 = vmatpush1.msra.mxu0 %v4213
    %4279 = vmatprep.subr.mxu0 %v4218
    %4280 = vmatpush1.msra.mxu0 %v4217
    %4281 = vmatprep.subr.mxu0 %v4222
    %4282 = vmatpush1.msra.mxu0 %v4221
    %4283 = vmatprep.subr.mxu0 %v4226
    %4284 = vmatpush1.msra.mxu0 %v4225
    %4285 = vmatprep.subr.mxu0 %v4230
    %4286 = vmatpush1.msra.mxu0 %v4229
    %4287 = vmatprep.subr.mxu0 %v4234
    %4288 = vmatpush1.msra.mxu0 %v4233
    %4289 = vmatprep.subr.mxu0 %v4238
    %4290 = vmatpush1.msra.mxu0 %v4237
    %4291 = vmatprep.subr.mxu0 %v4242
    %4292 = vmatpush1.msra.mxu0 %v4241
    %4293 = vmatprep.subr.mxu0 %v4246
    %4294 = vmatpush1.msra.mxu0 %v4245
    %4295 = vmatprep.subr.mxu0 %v4250
    %4296 = vmatpush1.msra.mxu0 %v4249
    %4297 = vmatprep.subr.mxu0 %v4254
    %4298 = vmatpush1.msra.mxu0 %v4253
    %4299 = vmatprep.subr.mxu0 %v4258
    %4300 = vmatpush1.msra.mxu0 %v4257
    %4301 = vmatprep.subr.mxu0 %v4262
    %4302 = vmatpush1.msra.mxu0 %v4261
    %4303 = vmatprep.subr.mxu0 %v4266
    %4304 = vmatpush1.msra.mxu0 %v4265
    %4305 = vmatprep.subr.mxu0 %v4270
    %4306 = vmatpush1.msra.mxu0 %v4269
    %4307 = vmatprep.subr.mxu0 %v4274
    %4308 = vmatpush1.msra.mxu0 %v4273
    %4309 = vmatprep.subr.mxu0 0.0
    %4310 = vmatpush1.msra.mxu0 0.0
    %4311 = vmatprep.subr.mxu0 0.0
    %4312 = vmatpush1.msra.mxu0 0.0
    %4313 = vmatprep.subr.mxu0 0.0
    %4314 = vmatpush1.msra.mxu0 0.0
    %4315 = vmatprep.subr.mxu0 0.0
    %4316 = vmatpush1.msra.mxu0 0.0
    %4317 = vmatprep.subr.mxu0 0.0
    %4318 = vmatpush1.msra.mxu0 0.0
    %4319 = vmatprep.subr.mxu0 0.0
    %4320 = vmatpush1.msra.mxu0 0.0
    %4321 = vmatprep.subr.mxu0 0.0
    %4322 = vmatpush1.msra.mxu0 0.0
    %4323 = vmatprep.subr.mxu0 0.0
    %4324 = vmatpush1.msra.mxu0 0.0
    %4325 = vmatprep.subr.mxu0 0.0
    %4326 = vmatpush1.msra.mxu0 0.0
    %4327 = vmatprep.subr.mxu0 0.0
    %4328 = vmatpush1.msra.mxu0 0.0
    %4329 = vmatprep.subr.mxu0 0.0
    %4330 = vmatpush1.msra.mxu0 0.0
    %4331 = vmatprep.subr.mxu0 0.0
    %4332 = vmatpush1.msra.mxu0 0.0
    %4333 = vmatprep.subr.mxu0 0.0
    %4334 = vmatpush1.msra.mxu0 0.0
    %4335 = vmatprep.subr.mxu0 0.0
    %4336 = vmatpush1.msra.mxu0 0.0
    %4337 = vmatprep.subr.mxu0 0.0
    %4338 = vmatpush1.msra.mxu0 0.0
    %4339 = vmatprep.subr.mxu0 0.0
    %4340 = vmatpush1.msra.mxu0 0.0
    %4341 = vmatprep.mubr.f32.mxu0 0.0
    %4342 = vmatmul.mubr.f32.gmra.mrb[0].mxu0 %v4207
    %v4343 = vpop.f32.mrb[0].mxu0
    %v4344 = vadd.f32 0.0, %v4343
    %v4345 = vpop.f32.mrb[0].mxu0
    %v4346 = vadd.f32 0.0, %v4345
    %4347 = vdwg.mxu0
    %4348 = vmatprep.subr.mxu0 %v4216
    %4349 = vmatpush1.msra.mxu0 %v4215
    %4350 = vmatprep.subr.mxu0 %v4220
    %4351 = vmatpush1.msra.mxu0 %v4219
    %4352 = vmatprep.subr.mxu0 %v4224
    %4353 = vmatpush1.msra.mxu0 %v4223
    %4354 = vmatprep.subr.mxu0 %v4228
    %4355 = vmatpush1.msra.mxu0 %v4227
    %4356 = vmatprep.subr.mxu0 %v4232
    %4357 = vmatpush1.msra.mxu0 %v4231
    %4358 = vmatprep.subr.mxu0 %v4236
    %4359 = vmatpush1.msra.mxu0 %v4235
    %4360 = vmatprep.subr.mxu0 %v4240
    %4361 = vmatpush1.msra.mxu0 %v4239
    %4362 = vmatprep.subr.mxu0 %v4244
    %4363 = vmatpush1.msra.mxu0 %v4243
    %4364 = vmatprep.subr.mxu0 %v4248
    %4365 = vmatpush1.msra.mxu0 %v4247
    %4366 = vmatprep.subr.mxu0 %v4252
    %4367 = vmatpush1.msra.mxu0 %v4251
    %4368 = vmatprep.subr.mxu0 %v4256
    %4369 = vmatpush1.msra.mxu0 %v4255
    %4370 = vmatprep.subr.mxu0 %v4260
    %4371 = vmatpush1.msra.mxu0 %v4259
    %4372 = vmatprep.subr.mxu0 %v4264
    %4373 = vmatpush1.msra.mxu0 %v4263
    %4374 = vmatprep.subr.mxu0 %v4268
    %4375 = vmatpush1.msra.mxu0 %v4267
    %4376 = vmatprep.subr.mxu0 %v4272
    %4377 = vmatpush1.msra.mxu0 %v4271
    %4378 = vmatprep.subr.mxu0 %v4276
    %4379 = vmatpush1.msra.mxu0 %v4275
    %4380 = vmatprep.subr.mxu0 0.0
    %4381 = vmatpush1.msra.mxu0 0.0
    %4382 = vmatprep.subr.mxu0 0.0
    %4383 = vmatpush1.msra.mxu0 0.0
    %4384 = vmatprep.subr.mxu0 0.0
    %4385 = vmatpush1.msra.mxu0 0.0
    %4386 = vmatprep.subr.mxu0 0.0
    %4387 = vmatpush1.msra.mxu0 0.0
    %4388 = vmatprep.subr.mxu0 0.0
    %4389 = vmatpush1.msra.mxu0 0.0
    %4390 = vmatprep.subr.mxu0 0.0
    %4391 = vmatpush1.msra.mxu0 0.0
    %4392 = vmatprep.subr.mxu0 0.0
    %4393 = vmatpush1.msra.mxu0 0.0
    %4394 = vmatprep.subr.mxu0 0.0
    %4395 = vmatpush1.msra.mxu0 0.0
    %4396 = vmatprep.subr.mxu0 0.0
    %4397 = vmatpush1.msra.mxu0 0.0
    %4398 = vmatprep.subr.mxu0 0.0
    %4399 = vmatpush1.msra.mxu0 0.0
    %4400 = vmatprep.subr.mxu0 0.0
    %4401 = vmatpush1.msra.mxu0 0.0
    %4402 = vmatprep.subr.mxu0 0.0
    %4403 = vmatpush1.msra.mxu0 0.0
    %4404 = vmatprep.subr.mxu0 0.0
    %4405 = vmatpush1.msra.mxu0 0.0
    %4406 = vmatprep.subr.mxu0 0.0
    %4407 = vmatpush1.msra.mxu0 0.0
    %4408 = vmatprep.subr.mxu0 0.0
    %4409 = vmatpush1.msra.mxu0 0.0
    %4410 = vmatprep.subr.mxu0 0.0
    %4411 = vmatpush1.msra.mxu0 0.0
    %4412 = vmatprep.mubr.f32.mxu0 0.0
    %4413 = vmatmul.mubr.f32.gmra.mrb[0].mxu0 %v4207
    %v4414 = vpop.f32.mrb[0].mxu0
    %v4415 = vadd.f32 0.0, %v4414
    %v4416 = vpop.f32.mrb[0].mxu0
    %v4417 = vadd.f32 0.0, %v4416
    %4418 = vdwg.mxu0
    %v4419 = vadd.f32 %v4209, %v4344
    %v4420 = vadd.f32 %v4210, %v4346
    %v4421 = vadd.f32 %v4211, %v4415
    %v4422 = vadd.f32 %v4212, %v4417
    %v4423 = vxor.u32 %v4419, 2147483648
    %v4424 = vmul.f32 %v4423, 1.442695
    %v4425 = vpow.pop %v4424
    %v4426 = vadd.f32 %v4425, 1.0
    %v4427 = vrcp.pop %v4426
    %v4428 = vmul.f32 1.0, %v4427
    %v4429 = vxor.u32 %v4420, 2147483648
    %v4430 = vmul.f32 %v4429, 1.442695
    %v4431 = vpow.pop %v4430
    %v4432 = vadd.f32 %v4431, 1.0
    %v4433 = vrcp.pop %v4432
    %v4434 = vmul.f32 1.0, %v4433
    %v4435 = vtanh.pop %v4421
    %v4436 = vxor.u32 %v4422, 2147483648
    %v4437 = vmul.f32 %v4436, 1.442695
    %v4438 = vpow.pop %v4437
    %v4439 = vadd.f32 %v4438, 1.0
    %v4440 = vrcp.pop %v4439
    %v4441 = vmul.f32 1.0, %v4440
    %v4442 = vmul.f32 %v4434, %v4205
    %v4443 = vmul.f32 %v4428, %v4435
    %v4444 = vadd.f32 %v4442, %v4443
    %v4445 = vtanh.pop %v4444
    %v4446 = vmul.f32 %v4441, %v4445
    %4447 = vst [vmem:[#allocation3 + $0x28] sm:$0xff] %v4446
    %v4448 = vld [vmem:[#allocation2 + $0xc0] sm:$0xff]
    %v4449 = vld [vmem:[#allocation2 + $0xc8] sm:$0xff]
    %v4450 = vld [vmem:[#allocation2 + $0xd0] sm:$0xff]
    %v4451 = vld [vmem:[#allocation2 + $0xd8] sm:$0xff]
    %v4452 = vld [vmem:[#allocation10] sm:$0xff]
    %v4453 = vld [vmem:[#allocation10 + $0x8] sm:$0xff]
    %v4454 = vld [vmem:[#allocation10 + $0x10] sm:$0xff]
    %v4455 = vld [vmem:[#allocation10 + $0x18] sm:$0xff]
    %v4456 = vld [vmem:[#allocation10 + $0x20] sm:$0xff]
    %v4457 = vld [vmem:[#allocation10 + $0x28] sm:$0xff]
    %v4458 = vld [vmem:[#allocation10 + $0x30] sm:$0xff]
    %v4459 = vld [vmem:[#allocation10 + $0x38] sm:$0xff]
    %v4460 = vld [vmem:[#allocation10 + $0x40] sm:$0xff]
    %v4461 = vld [vmem:[#allocation10 + $0x48] sm:$0xff]
    %v4462 = vld [vmem:[#allocation10 + $0x50] sm:$0xff]
    %v4463 = vld [vmem:[#allocation10 + $0x58] sm:$0xff]
    %v4464 = vld [vmem:[#allocation10 + $0x60] sm:$0xff]
    %v4465 = vld [vmem:[#allocation10 + $0x68] sm:$0xff]
    %v4466 = vld [vmem:[#allocation10 + $0x70] sm:$0xff]
    %v4467 = vld [vmem:[#allocation10 + $0x78] sm:$0xff]
    %v4468 = vld [vmem:[#allocation10 + $0x80] sm:$0xff]
    %v4469 = vld [vmem:[#allocation10 + $0x88] sm:$0xff]
    %v4470 = vld [vmem:[#allocation10 + $0x90] sm:$0xff]
    %v4471 = vld [vmem:[#allocation10 + $0x98] sm:$0xff]
    %v4472 = vld [vmem:[#allocation10 + $0xa0] sm:$0xff]
    %v4473 = vld [vmem:[#allocation10 + $0xa8] sm:$0xff]
    %v4474 = vld [vmem:[#allocation10 + $0xb0] sm:$0xff]
    %v4475 = vld [vmem:[#allocation10 + $0xb8] sm:$0xff]
    %v4476 = vld [vmem:[#allocation10 + $0xc0] sm:$0xff]
    %v4477 = vld [vmem:[#allocation10 + $0xc8] sm:$0xff]
    %v4478 = vld [vmem:[#allocation10 + $0xd0] sm:$0xff]
    %v4479 = vld [vmem:[#allocation10 + $0xd8] sm:$0xff]
    %v4480 = vld [vmem:[#allocation10 + $0xe0] sm:$0xff]
    %v4481 = vld [vmem:[#allocation10 + $0xe8] sm:$0xff]
    %v4482 = vld [vmem:[#allocation10 + $0xf0] sm:$0xff]
    %v4483 = vld [vmem:[#allocation10 + $0xf8] sm:$0xff]
    %v4484 = vld [vmem:[#allocation10 + $0x100] sm:$0xff]
    %v4485 = vld [vmem:[#allocation10 + $0x108] sm:$0xff]
    %v4486 = vld [vmem:[#allocation10 + $0x110] sm:$0xff]
    %v4487 = vld [vmem:[#allocation10 + $0x118] sm:$0xff]
    %v4488 = vld [vmem:[#allocation10 + $0x120] sm:$0xff]
    %v4489 = vld [vmem:[#allocation10 + $0x128] sm:$0xff]
    %v4490 = vld [vmem:[#allocation10 + $0x130] sm:$0xff]
    %v4491 = vld [vmem:[#allocation10 + $0x138] sm:$0xff]
    %v4492 = vld [vmem:[#allocation10 + $0x140] sm:$0xff]
    %v4493 = vld [vmem:[#allocation10 + $0x148] sm:$0xff]
    %v4494 = vld [vmem:[#allocation10 + $0x150] sm:$0xff]
    %v4495 = vld [vmem:[#allocation10 + $0x158] sm:$0xff]
    %v4496 = vld [vmem:[#allocation10 + $0x160] sm:$0xff]
    %v4497 = vld [vmem:[#allocation10 + $0x168] sm:$0xff]
    %v4498 = vld [vmem:[#allocation10 + $0x170] sm:$0xff]
    %v4499 = vld [vmem:[#allocation10 + $0x178] sm:$0xff]
    %v4500 = vld [vmem:[#allocation10 + $0x180] sm:$0xff]
    %v4501 = vld [vmem:[#allocation10 + $0x188] sm:$0xff]
    %v4502 = vld [vmem:[#allocation10 + $0x190] sm:$0xff]
    %v4503 = vld [vmem:[#allocation10 + $0x198] sm:$0xff]
    %v4504 = vld [vmem:[#allocation10 + $0x1a0] sm:$0xff]
    %v4505 = vld [vmem:[#allocation10 + $0x1a8] sm:$0xff]
    %v4506 = vld [vmem:[#allocation10 + $0x1b0] sm:$0xff]
    %v4507 = vld [vmem:[#allocation10 + $0x1b8] sm:$0xff]
    %v4508 = vld [vmem:[#allocation10 + $0x1c0] sm:$0xff]
    %v4509 = vld [vmem:[#allocation10 + $0x1c8] sm:$0xff]
    %v4510 = vld [vmem:[#allocation10 + $0x1d0] sm:$0xff]
    %v4511 = vld [vmem:[#allocation10 + $0x1d8] sm:$0xff]
    %v4512 = vld [vmem:[#allocation10 + $0x1e0] sm:$0xff]
    %v4513 = vld [vmem:[#allocation10 + $0x1e8] sm:$0xff]
    %v4514 = vld [vmem:[#allocation10 + $0x1f0] sm:$0xff]
    %v4515 = vld [vmem:[#allocation10 + $0x1f8] sm:$0xff]
    %4516 = vmatprep.subr.mxu0 %v4453
    %4517 = vmatpush1.msra.mxu0 %v4452
    %4518 = vmatprep.subr.mxu0 %v4457
    %4519 = vmatpush1.msra.mxu0 %v4456
    %4520 = vmatprep.subr.mxu0 %v4461
    %4521 = vmatpush1.msra.mxu0 %v4460
    %4522 = vmatprep.subr.mxu0 %v4465
    %4523 = vmatpush1.msra.mxu0 %v4464
    %4524 = vmatprep.subr.mxu0 %v4469
    %4525 = vmatpush1.msra.mxu0 %v4468
    %4526 = vmatprep.subr.mxu0 %v4473
    %4527 = vmatpush1.msra.mxu0 %v4472
    %4528 = vmatprep.subr.mxu0 %v4477
    %4529 = vmatpush1.msra.mxu0 %v4476
    %4530 = vmatprep.subr.mxu0 %v4481
    %4531 = vmatpush1.msra.mxu0 %v4480
    %4532 = vmatprep.subr.mxu0 %v4485
    %4533 = vmatpush1.msra.mxu0 %v4484
    %4534 = vmatprep.subr.mxu0 %v4489
    %4535 = vmatpush1.msra.mxu0 %v4488
    %4536 = vmatprep.subr.mxu0 %v4493
    %4537 = vmatpush1.msra.mxu0 %v4492
    %4538 = vmatprep.subr.mxu0 %v4497
    %4539 = vmatpush1.msra.mxu0 %v4496
    %4540 = vmatprep.subr.mxu0 %v4501
    %4541 = vmatpush1.msra.mxu0 %v4500
    %4542 = vmatprep.subr.mxu0 %v4505
    %4543 = vmatpush1.msra.mxu0 %v4504
    %4544 = vmatprep.subr.mxu0 %v4509
    %4545 = vmatpush1.msra.mxu0 %v4508
    %4546 = vmatprep.subr.mxu0 %v4513
    %4547 = vmatpush1.msra.mxu0 %v4512
    %4548 = vmatprep.subr.mxu0 0.0
    %4549 = vmatpush1.msra.mxu0 0.0
    %4550 = vmatprep.subr.mxu0 0.0
    %4551 = vmatpush1.msra.mxu0 0.0
    %4552 = vmatprep.subr.mxu0 0.0
    %4553 = vmatpush1.msra.mxu0 0.0
    %4554 = vmatprep.subr.mxu0 0.0
    %4555 = vmatpush1.msra.mxu0 0.0
    %4556 = vmatprep.subr.mxu0 0.0
    %4557 = vmatpush1.msra.mxu0 0.0
    %4558 = vmatprep.subr.mxu0 0.0
    %4559 = vmatpush1.msra.mxu0 0.0
    %4560 = vmatprep.subr.mxu0 0.0
    %4561 = vmatpush1.msra.mxu0 0.0
    %4562 = vmatprep.subr.mxu0 0.0
    %4563 = vmatpush1.msra.mxu0 0.0
    %4564 = vmatprep.subr.mxu0 0.0
    %4565 = vmatpush1.msra.mxu0 0.0
    %4566 = vmatprep.subr.mxu0 0.0
    %4567 = vmatpush1.msra.mxu0 0.0
    %4568 = vmatprep.subr.mxu0 0.0
    %4569 = vmatpush1.msra.mxu0 0.0
    %4570 = vmatprep.subr.mxu0 0.0
    %4571 = vmatpush1.msra.mxu0 0.0
    %4572 = vmatprep.subr.mxu0 0.0
    %4573 = vmatpush1.msra.mxu0 0.0
    %4574 = vmatprep.subr.mxu0 0.0
    %4575 = vmatpush1.msra.mxu0 0.0
    %4576 = vmatprep.subr.mxu0 0.0
    %4577 = vmatpush1.msra.mxu0 0.0
    %4578 = vmatprep.subr.mxu0 0.0
    %4579 = vmatpush1.msra.mxu0 0.0
    %4580 = vmatprep.mubr.f32.mxu0 0.0
    %4581 = vmatmul.mubr.f32.gmra.mrb[0].mxu0 %v4446
    %v4582 = vpop.f32.mrb[0].mxu0
    %v4583 = vadd.f32 0.0, %v4582
    %v4584 = vpop.f32.mrb[0].mxu0
    %v4585 = vadd.f32 0.0, %v4584
    %4586 = vdwg.mxu0
    %4587 = vmatprep.subr.mxu0 %v4455
    %4588 = vmatpush1.msra.mxu0 %v4454
    %4589 = vmatprep.subr.mxu0 %v4459
    %4590 = vmatpush1.msra.mxu0 %v4458
    %4591 = vmatprep.subr.mxu0 %v4463
    %4592 = vmatpush1.msra.mxu0 %v4462
    %4593 = vmatprep.subr.mxu0 %v4467
    %4594 = vmatpush1.msra.mxu0 %v4466
    %4595 = vmatprep.subr.mxu0 %v4471
    %4596 = vmatpush1.msra.mxu0 %v4470
    %4597 = vmatprep.subr.mxu0 %v4475
    %4598 = vmatpush1.msra.mxu0 %v4474
    %4599 = vmatprep.subr.mxu0 %v4479
    %4600 = vmatpush1.msra.mxu0 %v4478
    %4601 = vmatprep.subr.mxu0 %v4483
    %4602 = vmatpush1.msra.mxu0 %v4482
    %4603 = vmatprep.subr.mxu0 %v4487
    %4604 = vmatpush1.msra.mxu0 %v4486
    %4605 = vmatprep.subr.mxu0 %v4491
    %4606 = vmatpush1.msra.mxu0 %v4490
    %4607 = vmatprep.subr.mxu0 %v4495
    %4608 = vmatpush1.msra.mxu0 %v4494
    %4609 = vmatprep.subr.mxu0 %v4499
    %4610 = vmatpush1.msra.mxu0 %v4498
    %4611 = vmatprep.subr.mxu0 %v4503
    %4612 = vmatpush1.msra.mxu0 %v4502
    %4613 = vmatprep.subr.mxu0 %v4507
    %4614 = vmatpush1.msra.mxu0 %v4506
    %4615 = vmatprep.subr.mxu0 %v4511
    %4616 = vmatpush1.msra.mxu0 %v4510
    %4617 = vmatprep.subr.mxu0 %v4515
    %4618 = vmatpush1.msra.mxu0 %v4514
    %4619 = vmatprep.subr.mxu0 0.0
    %4620 = vmatpush1.msra.mxu0 0.0
    %4621 = vmatprep.subr.mxu0 0.0
    %4622 = vmatpush1.msra.mxu0 0.0
    %4623 = vmatprep.subr.mxu0 0.0
    %4624 = vmatpush1.msra.mxu0 0.0
    %4625 = vmatprep.subr.mxu0 0.0
    %4626 = vmatpush1.msra.mxu0 0.0
    %4627 = vmatprep.subr.mxu0 0.0
    %4628 = vmatpush1.msra.mxu0 0.0
    %4629 = vmatprep.subr.mxu0 0.0
    %4630 = vmatpush1.msra.mxu0 0.0
    %4631 = vmatprep.subr.mxu0 0.0
    %4632 = vmatpush1.msra.mxu0 0.0
    %4633 = vmatprep.subr.mxu0 0.0
    %4634 = vmatpush1.msra.mxu0 0.0
    %4635 = vmatprep.subr.mxu0 0.0
    %4636 = vmatpush1.msra.mxu0 0.0
    %4637 = vmatprep.subr.mxu0 0.0
    %4638 = vmatpush1.msra.mxu0 0.0
    %4639 = vmatprep.subr.mxu0 0.0
    %4640 = vmatpush1.msra.mxu0 0.0
    %4641 = vmatprep.subr.mxu0 0.0
    %4642 = vmatpush1.msra.mxu0 0.0
    %4643 = vmatprep.subr.mxu0 0.0
    %4644 = vmatpush1.msra.mxu0 0.0
    %4645 = vmatprep.subr.mxu0 0.0
    %4646 = vmatpush1.msra.mxu0 0.0
    %4647 = vmatprep.subr.mxu0 0.0
    %4648 = vmatpush1.msra.mxu0 0.0
    %4649 = vmatprep.subr.mxu0 0.0
    %4650 = vmatpush1.msra.mxu0 0.0
    %4651 = vmatprep.mubr.f32.mxu0 0.0
    %4652 = vmatmul.mubr.f32.gmra.mrb[0].mxu0 %v4446
    %v4653 = vpop.f32.mrb[0].mxu0
    %v4654 = vadd.f32 0.0, %v4653
    %v4655 = vpop.f32.mrb[0].mxu0
    %v4656 = vadd.f32 0.0, %v4655
    %4657 = vdwg.mxu0
    %v4658 = vadd.f32 %v4448, %v4583
    %v4659 = vadd.f32 %v4449, %v4585
    %v4660 = vadd.f32 %v4450, %v4654
    %v4661 = vadd.f32 %v4451, %v4656
    %v4662 = vxor.u32 %v4658, 2147483648
    %v4663 = vmul.f32 %v4662, 1.442695
    %v4664 = vpow.pop %v4663
    %v4665 = vadd.f32 %v4664, 1.0
    %v4666 = vrcp.pop %v4665
    %v4667 = vmul.f32 1.0, %v4666
    %v4668 = vxor.u32 %v4659, 2147483648
    %v4669 = vmul.f32 %v4668, 1.442695
    %v4670 = vpow.pop %v4669
    %v4671 = vadd.f32 %v4670, 1.0
    %v4672 = vrcp.pop %v4671
    %v4673 = vmul.f32 1.0, %v4672
    %v4674 = vtanh.pop %v4660
    %v4675 = vxor.u32 %v4661, 2147483648
    %v4676 = vmul.f32 %v4675, 1.442695
    %v4677 = vpow.pop %v4676
    %v4678 = vadd.f32 %v4677, 1.0
    %v4679 = vrcp.pop %v4678
    %v4680 = vmul.f32 1.0, %v4679
    %v4681 = vmul.f32 %v4673, %v4444
    %v4682 = vmul.f32 %v4667, %v4674
    %v4683 = vadd.f32 %v4681, %v4682
    %v4684 = vtanh.pop %v4683
    %v4685 = vmul.f32 %v4680, %v4684
    %4686 = vst [vmem:[#allocation3 + $0x30] sm:$0xff] %v4685
    %v4687 = vld [vmem:[#allocation2 + $0xe0] sm:$0xff]
    %v4688 = vld [vmem:[#allocation2 + $0xe8] sm:$0xff]
    %v4689 = vld [vmem:[#allocation2 + $0xf0] sm:$0xff]
    %v4690 = vld [vmem:[#allocation2 + $0xf8] sm:$0xff]
    %v4691 = vld [vmem:[#allocation10] sm:$0xff]
    %v4692 = vld [vmem:[#allocation10 + $0x8] sm:$0xff]
    %v4693 = vld [vmem:[#allocation10 + $0x10] sm:$0xff]
    %v4694 = vld [vmem:[#allocation10 + $0x18] sm:$0xff]
    %v4695 = vld [vmem:[#allocation10 + $0x20] sm:$0xff]
    %v4696 = vld [vmem:[#allocation10 + $0x28] sm:$0xff]
    %v4697 = vld [vmem:[#allocation10 + $0x30] sm:$0xff]
    %v4698 = vld [vmem:[#allocation10 + $0x38] sm:$0xff]
    %v4699 = vld [vmem:[#allocation10 + $0x40] sm:$0xff]
    %v4700 = vld [vmem:[#allocation10 + $0x48] sm:$0xff]
    %v4701 = vld [vmem:[#allocation10 + $0x50] sm:$0xff]
    %v4702 = vld [vmem:[#allocation10 + $0x58] sm:$0xff]
    %v4703 = vld [vmem:[#allocation10 + $0x60] sm:$0xff]
    %v4704 = vld [vmem:[#allocation10 + $0x68] sm:$0xff]
    %v4705 = vld [vmem:[#allocation10 + $0x70] sm:$0xff]
    %v4706 = vld [vmem:[#allocation10 + $0x78] sm:$0xff]
    %v4707 = vld [vmem:[#allocation10 + $0x80] sm:$0xff]
    %v4708 = vld [vmem:[#allocation10 + $0x88] sm:$0xff]
    %v4709 = vld [vmem:[#allocation10 + $0x90] sm:$0xff]
    %v4710 = vld [vmem:[#allocation10 + $0x98] sm:$0xff]
    %v4711 = vld [vmem:[#allocation10 + $0xa0] sm:$0xff]
    %v4712 = vld [vmem:[#allocation10 + $0xa8] sm:$0xff]
    %v4713 = vld [vmem:[#allocation10 + $0xb0] sm:$0xff]
    %v4714 = vld [vmem:[#allocation10 + $0xb8] sm:$0xff]
    %v4715 = vld [vmem:[#allocation10 + $0xc0] sm:$0xff]
    %v4716 = vld [vmem:[#allocation10 + $0xc8] sm:$0xff]
    %v4717 = vld [vmem:[#allocation10 + $0xd0] sm:$0xff]
    %v4718 = vld [vmem:[#allocation10 + $0xd8] sm:$0xff]
    %v4719 = vld [vmem:[#allocation10 + $0xe0] sm:$0xff]
    %v4720 = vld [vmem:[#allocation10 + $0xe8] sm:$0xff]
    %v4721 = vld [vmem:[#allocation10 + $0xf0] sm:$0xff]
    %v4722 = vld [vmem:[#allocation10 + $0xf8] sm:$0xff]
    %v4723 = vld [vmem:[#allocation10 + $0x100] sm:$0xff]
    %v4724 = vld [vmem:[#allocation10 + $0x108] sm:$0xff]
    %v4725 = vld [vmem:[#allocation10 + $0x110] sm:$0xff]
    %v4726 = vld [vmem:[#allocation10 + $0x118] sm:$0xff]
    %v4727 = vld [vmem:[#allocation10 + $0x120] sm:$0xff]
    %v4728 = vld [vmem:[#allocation10 + $0x128] sm:$0xff]
    %v4729 = vld [vmem:[#allocation10 + $0x130] sm:$0xff]
    %v4730 = vld [vmem:[#allocation10 + $0x138] sm:$0xff]
    %v4731 = vld [vmem:[#allocation10 + $0x140] sm:$0xff]
    %v4732 = vld [vmem:[#allocation10 + $0x148] sm:$0xff]
    %v4733 = vld [vmem:[#allocation10 + $0x150] sm:$0xff]
    %v4734 = vld [vmem:[#allocation10 + $0x158] sm:$0xff]
    %v4735 = vld [vmem:[#allocation10 + $0x160] sm:$0xff]
    %v4736 = vld [vmem:[#allocation10 + $0x168] sm:$0xff]
    %v4737 = vld [vmem:[#allocation10 + $0x170] sm:$0xff]
    %v4738 = vld [vmem:[#allocation10 + $0x178] sm:$0xff]
    %v4739 = vld [vmem:[#allocation10 + $0x180] sm:$0xff]
    %v4740 = vld [vmem:[#allocation10 + $0x188] sm:$0xff]
    %v4741 = vld [vmem:[#allocation10 + $0x190] sm:$0xff]
    %v4742 = vld [vmem:[#allocation10 + $0x198] sm:$0xff]
    %v4743 = vld [vmem:[#allocation10 + $0x1a0] sm:$0xff]
    %v4744 = vld [vmem:[#allocation10 + $0x1a8] sm:$0xff]
    %v4745 = vld [vmem:[#allocation10 + $0x1b0] sm:$0xff]
    %v4746 = vld [vmem:[#allocation10 + $0x1b8] sm:$0xff]
    %v4747 = vld [vmem:[#allocation10 + $0x1c0] sm:$0xff]
    %v4748 = vld [vmem:[#allocation10 + $0x1c8] sm:$0xff]
    %v4749 = vld [vmem:[#allocation10 + $0x1d0] sm:$0xff]
    %v4750 = vld [vmem:[#allocation10 + $0x1d8] sm:$0xff]
    %v4751 = vld [vmem:[#allocation10 + $0x1e0] sm:$0xff]
    %v4752 = vld [vmem:[#allocation10 + $0x1e8] sm:$0xff]
    %v4753 = vld [vmem:[#allocation10 + $0x1f0] sm:$0xff]
    %v4754 = vld [vmem:[#allocation10 + $0x1f8] sm:$0xff]
    %4755 = vmatprep.subr.mxu0 %v4692
    %4756 = vmatpush1.msra.mxu0 %v4691
    %4757 = vmatprep.subr.mxu0 %v4696
    %4758 = vmatpush1.msra.mxu0 %v4695
    %4759 = vmatprep.subr.mxu0 %v4700
    %4760 = vmatpush1.msra.mxu0 %v4699
    %4761 = vmatprep.subr.mxu0 %v4704
    %4762 = vmatpush1.msra.mxu0 %v4703
    %4763 = vmatprep.subr.mxu0 %v4708
    %4764 = vmatpush1.msra.mxu0 %v4707
    %4765 = vmatprep.subr.mxu0 %v4712
    %4766 = vmatpush1.msra.mxu0 %v4711
    %4767 = vmatprep.subr.mxu0 %v4716
    %4768 = vmatpush1.msra.mxu0 %v4715
    %4769 = vmatprep.subr.mxu0 %v4720
    %4770 = vmatpush1.msra.mxu0 %v4719
    %4771 = vmatprep.subr.mxu0 %v4724
    %4772 = vmatpush1.msra.mxu0 %v4723
    %4773 = vmatprep.subr.mxu0 %v4728
    %4774 = vmatpush1.msra.mxu0 %v4727
    %4775 = vmatprep.subr.mxu0 %v4732
    %4776 = vmatpush1.msra.mxu0 %v4731
    %4777 = vmatprep.subr.mxu0 %v4736
    %4778 = vmatpush1.msra.mxu0 %v4735
    %4779 = vmatprep.subr.mxu0 %v4740
    %4780 = vmatpush1.msra.mxu0 %v4739
    %4781 = vmatprep.subr.mxu0 %v4744
    %4782 = vmatpush1.msra.mxu0 %v4743
    %4783 = vmatprep.subr.mxu0 %v4748
    %4784 = vmatpush1.msra.mxu0 %v4747
    %4785 = vmatprep.subr.mxu0 %v4752
    %4786 = vmatpush1.msra.mxu0 %v4751
    %4787 = vmatprep.subr.mxu0 0.0
    %4788 = vmatpush1.msra.mxu0 0.0
    %4789 = vmatprep.subr.mxu0 0.0
    %4790 = vmatpush1.msra.mxu0 0.0
    %4791 = vmatprep.subr.mxu0 0.0
    %4792 = vmatpush1.msra.mxu0 0.0
    %4793 = vmatprep.subr.mxu0 0.0
    %4794 = vmatpush1.msra.mxu0 0.0
    %4795 = vmatprep.subr.mxu0 0.0
    %4796 = vmatpush1.msra.mxu0 0.0
    %4797 = vmatprep.subr.mxu0 0.0
    %4798 = vmatpush1.msra.mxu0 0.0
    %4799 = vmatprep.subr.mxu0 0.0
    %4800 = vmatpush1.msra.mxu0 0.0
    %4801 = vmatprep.subr.mxu0 0.0
    %4802 = vmatpush1.msra.mxu0 0.0
    %4803 = vmatprep.subr.mxu0 0.0
    %4804 = vmatpush1.msra.mxu0 0.0
    %4805 = vmatprep.subr.mxu0 0.0
    %4806 = vmatpush1.msra.mxu0 0.0
    %4807 = vmatprep.subr.mxu0 0.0
    %4808 = vmatpush1.msra.mxu0 0.0
    %4809 = vmatprep.subr.mxu0 0.0
    %4810 = vmatpush1.msra.mxu0 0.0
    %4811 = vmatprep.subr.mxu0 0.0
    %4812 = vmatpush1.msra.mxu0 0.0
    %4813 = vmatprep.subr.mxu0 0.0
    %4814 = vmatpush1.msra.mxu0 0.0
    %4815 = vmatprep.subr.mxu0 0.0
    %4816 = vmatpush1.msra.mxu0 0.0
    %4817 = vmatprep.subr.mxu0 0.0
    %4818 = vmatpush1.msra.mxu0 0.0
    %4819 = vmatprep.mubr.f32.mxu0 0.0
    %4820 = vmatmul.mubr.f32.gmra.mrb[0].mxu0 %v4685
    %v4821 = vpop.f32.mrb[0].mxu0
    %v4822 = vadd.f32 0.0, %v4821
    %v4823 = vpop.f32.mrb[0].mxu0
    %v4824 = vadd.f32 0.0, %v4823
    %4825 = vdwg.mxu0
    %4826 = vmatprep.subr.mxu0 %v4694
    %4827 = vmatpush1.msra.mxu0 %v4693
    %4828 = vmatprep.subr.mxu0 %v4698
    %4829 = vmatpush1.msra.mxu0 %v4697
    %4830 = vmatprep.subr.mxu0 %v4702
    %4831 = vmatpush1.msra.mxu0 %v4701
    %4832 = vmatprep.subr.mxu0 %v4706
    %4833 = vmatpush1.msra.mxu0 %v4705
    %4834 = vmatprep.subr.mxu0 %v4710
    %4835 = vmatpush1.msra.mxu0 %v4709
    %4836 = vmatprep.subr.mxu0 %v4714
    %4837 = vmatpush1.msra.mxu0 %v4713
    %4838 = vmatprep.subr.mxu0 %v4718
    %4839 = vmatpush1.msra.mxu0 %v4717
    %4840 = vmatprep.subr.mxu0 %v4722
    %4841 = vmatpush1.msra.mxu0 %v4721
    %4842 = vmatprep.subr.mxu0 %v4726
    %4843 = vmatpush1.msra.mxu0 %v4725
    %4844 = vmatprep.subr.mxu0 %v4730
    %4845 = vmatpush1.msra.mxu0 %v4729
    %4846 = vmatprep.subr.mxu0 %v4734
    %4847 = vmatpush1.msra.mxu0 %v4733
    %4848 = vmatprep.subr.mxu0 %v4738
    %4849 = vmatpush1.msra.mxu0 %v4737
    %4850 = vmatprep.subr.mxu0 %v4742
    %4851 = vmatpush1.msra.mxu0 %v4741
    %4852 = vmatprep.subr.mxu0 %v4746
    %4853 = vmatpush1.msra.mxu0 %v4745
    %4854 = vmatprep.subr.mxu0 %v4750
    %4855 = vmatpush1.msra.mxu0 %v4749
    %4856 = vmatprep.subr.mxu0 %v4754
    %4857 = vmatpush1.msra.mxu0 %v4753
    %4858 = vmatprep.subr.mxu0 0.0
    %4859 = vmatpush1.msra.mxu0 0.0
    %4860 = vmatprep.subr.mxu0 0.0
    %4861 = vmatpush1.msra.mxu0 0.0
    %4862 = vmatprep.subr.mxu0 0.0
    %4863 = vmatpush1.msra.mxu0 0.0
    %4864 = vmatprep.subr.mxu0 0.0
    %4865 = vmatpush1.msra.mxu0 0.0
    %4866 = vmatprep.subr.mxu0 0.0
    %4867 = vmatpush1.msra.mxu0 0.0
    %4868 = vmatprep.subr.mxu0 0.0
    %4869 = vmatpush1.msra.mxu0 0.0
    %4870 = vmatprep.subr.mxu0 0.0
    %4871 = vmatpush1.msra.mxu0 0.0
    %4872 = vmatprep.subr.mxu0 0.0
    %4873 = vmatpush1.msra.mxu0 0.0
    %4874 = vmatprep.subr.mxu0 0.0
    %4875 = vmatpush1.msra.mxu0 0.0
    %4876 = vmatprep.subr.mxu0 0.0
    %4877 = vmatpush1.msra.mxu0 0.0
    %4878 = vmatprep.subr.mxu0 0.0
    %4879 = vmatpush1.msra.mxu0 0.0
    %4880 = vmatprep.subr.mxu0 0.0
    %4881 = vmatpush1.msra.mxu0 0.0
    %4882 = vmatprep.subr.mxu0 0.0
    %4883 = vmatpush1.msra.mxu0 0.0
    %4884 = vmatprep.subr.mxu0 0.0
    %4885 = vmatpush1.msra.mxu0 0.0
    %4886 = vmatprep.subr.mxu0 0.0
    %4887 = vmatpush1.msra.mxu0 0.0
    %4888 = vmatprep.subr.mxu0 0.0
    %4889 = vmatpush1.msra.mxu0 0.0
    %4890 = vmatprep.mubr.f32.mxu0 0.0
    %4891 = vmatmul.mubr.f32.gmra.mrb[0].mxu0 %v4685
    %v4892 = vpop.f32.mrb[0].mxu0
    %v4893 = vadd.f32 0.0, %v4892
    %v4894 = vpop.f32.mrb[0].mxu0
    %v4895 = vadd.f32 0.0, %v4894
    %4896 = vdwg.mxu0
    %v4897 = vadd.f32 %v4687, %v4822
    %v4898 = vadd.f32 %v4688, %v4824
    %v4899 = vadd.f32 %v4689, %v4893
    %v4900 = vadd.f32 %v4690, %v4895
    %v4901 = vxor.u32 %v4897, 2147483648
    %v4902 = vmul.f32 %v4901, 1.442695
    %v4903 = vpow.pop %v4902
    %v4904 = vadd.f32 %v4903, 1.0
    %v4905 = vrcp.pop %v4904
    %v4906 = vmul.f32 1.0, %v4905
    %v4907 = vxor.u32 %v4898, 2147483648
    %v4908 = vmul.f32 %v4907, 1.442695
    %v4909 = vpow.pop %v4908
    %v4910 = vadd.f32 %v4909, 1.0
    %v4911 = vrcp.pop %v4910
    %v4912 = vmul.f32 1.0, %v4911
    %v4913 = vtanh.pop %v4899
    %v4914 = vxor.u32 %v4900, 2147483648
    %v4915 = vmul.f32 %v4914, 1.442695
    %v4916 = vpow.pop %v4915
    %v4917 = vadd.f32 %v4916, 1.0
    %v4918 = vrcp.pop %v4917
    %v4919 = vmul.f32 1.0, %v4918
    %v4920 = vmul.f32 %v4912, %v4683
    %v4921 = vmul.f32 %v4906, %v4913
    %v4922 = vadd.f32 %v4920, %v4921
    %v4923 = vtanh.pop %v4922
    %v4924 = vmul.f32 %v4919, %v4923
    %4925 = vst [vmem:[#allocation3 + $0x38] sm:$0xff] %v4924
    %v4926 = vld [vmem:[#allocation2 + $0x100] sm:$0xff]
    %v4927 = vld [vmem:[#allocation2 + $0x108] sm:$0xff]
    %v4928 = vld [vmem:[#allocation2 + $0x110] sm:$0xff]
    %v4929 = vld [vmem:[#allocation2 + $0x118] sm:$0xff]
    %v4930 = vld [vmem:[#allocation10] sm:$0xff]
    %v4931 = vld [vmem:[#allocation10 + $0x8] sm:$0xff]
    %v4932 = vld [vmem:[#allocation10 + $0x10] sm:$0xff]
    %v4933 = vld [vmem:[#allocation10 + $0x18] sm:$0xff]
    %v4934 = vld [vmem:[#allocation10 + $0x20] sm:$0xff]
    %v4935 = vld [vmem:[#allocation10 + $0x28] sm:$0xff]
    %v4936 = vld [vmem:[#allocation10 + $0x30] sm:$0xff]
    %v4937 = vld [vmem:[#allocation10 + $0x38] sm:$0xff]
    %v4938 = vld [vmem:[#allocation10 + $0x40] sm:$0xff]
    %v4939 = vld [vmem:[#allocation10 + $0x48] sm:$0xff]
    %v4940 = vld [vmem:[#allocation10 + $0x50] sm:$0xff]
    %v4941 = vld [vmem:[#allocation10 + $0x58] sm:$0xff]
    %v4942 = vld [vmem:[#allocation10 + $0x60] sm:$0xff]
    %v4943 = vld [vmem:[#allocation10 + $0x68] sm:$0xff]
    %v4944 = vld [vmem:[#allocation10 + $0x70] sm:$0xff]
    %v4945 = vld [vmem:[#allocation10 + $0x78] sm:$0xff]
    %v4946 = vld [vmem:[#allocation10 + $0x80] sm:$0xff]
    %v4947 = vld [vmem:[#allocation10 + $0x88] sm:$0xff]
    %v4948 = vld [vmem:[#allocation10 + $0x90] sm:$0xff]
    %v4949 = vld [vmem:[#allocation10 + $0x98] sm:$0xff]
    %v4950 = vld [vmem:[#allocation10 + $0xa0] sm:$0xff]
    %v4951 = vld [vmem:[#allocation10 + $0xa8] sm:$0xff]
    %v4952 = vld [vmem:[#allocation10 + $0xb0] sm:$0xff]
    %v4953 = vld [vmem:[#allocation10 + $0xb8] sm:$0xff]
    %v4954 = vld [vmem:[#allocation10 + $0xc0] sm:$0xff]
    %v4955 = vld [vmem:[#allocation10 + $0xc8] sm:$0xff]
    %v4956 = vld [vmem:[#allocation10 + $0xd0] sm:$0xff]
    %v4957 = vld [vmem:[#allocation10 + $0xd8] sm:$0xff]
    %v4958 = vld [vmem:[#allocation10 + $0xe0] sm:$0xff]
    %v4959 = vld [vmem:[#allocation10 + $0xe8] sm:$0xff]
    %v4960 = vld [vmem:[#allocation10 + $0xf0] sm:$0xff]
    %v4961 = vld [vmem:[#allocation10 + $0xf8] sm:$0xff]
    %v4962 = vld [vmem:[#allocation10 + $0x100] sm:$0xff]
    %v4963 = vld [vmem:[#allocation10 + $0x108] sm:$0xff]
    %v4964 = vld [vmem:[#allocation10 + $0x110] sm:$0xff]
    %v4965 = vld [vmem:[#allocation10 + $0x118] sm:$0xff]
    %v4966 = vld [vmem:[#allocation10 + $0x120] sm:$0xff]
    %v4967 = vld [vmem:[#allocation10 + $0x128] sm:$0xff]
    %v4968 = vld [vmem:[#allocation10 + $0x130] sm:$0xff]
    %v4969 = vld [vmem:[#allocation10 + $0x138] sm:$0xff]
    %v4970 = vld [vmem:[#allocation10 + $0x140] sm:$0xff]
    %v4971 = vld [vmem:[#allocation10 + $0x148] sm:$0xff]
    %v4972 = vld [vmem:[#allocation10 + $0x150] sm:$0xff]
    %v4973 = vld [vmem:[#allocation10 + $0x158] sm:$0xff]
    %v4974 = vld [vmem:[#allocation10 + $0x160] sm:$0xff]
    %v4975 = vld [vmem:[#allocation10 + $0x168] sm:$0xff]
    %v4976 = vld [vmem:[#allocation10 + $0x170] sm:$0xff]
    %v4977 = vld [vmem:[#allocation10 + $0x178] sm:$0xff]
    %v4978 = vld [vmem:[#allocation10 + $0x180] sm:$0xff]
    %v4979 = vld [vmem:[#allocation10 + $0x188] sm:$0xff]
    %v4980 = vld [vmem:[#allocation10 + $0x190] sm:$0xff]
    %v4981 = vld [vmem:[#allocation10 + $0x198] sm:$0xff]
    %v4982 = vld [vmem:[#allocation10 + $0x1a0] sm:$0xff]
    %v4983 = vld [vmem:[#allocation10 + $0x1a8] sm:$0xff]
    %v4984 = vld [vmem:[#allocation10 + $0x1b0] sm:$0xff]
    %v4985 = vld [vmem:[#allocation10 + $0x1b8] sm:$0xff]
    %v4986 = vld [vmem:[#allocation10 + $0x1c0] sm:$0xff]
    %v4987 = vld [vmem:[#allocation10 + $0x1c8] sm:$0xff]
    %v4988 = vld [vmem:[#allocation10 + $0x1d0] sm:$0xff]
    %v4989 = vld [vmem:[#allocation10 + $0x1d8] sm:$0xff]
    %v4990 = vld [vmem:[#allocation10 + $0x1e0] sm:$0xff]
    %v4991 = vld [vmem:[#allocation10 + $0x1e8] sm:$0xff]
    %v4992 = vld [vmem:[#allocation10 + $0x1f0] sm:$0xff]
    %v4993 = vld [vmem:[#allocation10 + $0x1f8] sm:$0xff]
    %4994 = vmatprep.subr.mxu0 %v4931
    %4995 = vmatpush1.msra.mxu0 %v4930
    %4996 = vmatprep.subr.mxu0 %v4935
    %4997 = vmatpush1.msra.mxu0 %v4934
    %4998 = vmatprep.subr.mxu0 %v4939
    %4999 = vmatpush1.msra.mxu0 %v4938
    %5000 = vmatprep.subr.mxu0 %v4943
    %5001 = vmatpush1.msra.mxu0 %v4942
    %5002 = vmatprep.subr.mxu0 %v4947
    %5003 = vmatpush1.msra.mxu0 %v4946
    %5004 = vmatprep.subr.mxu0 %v4951
    %5005 = vmatpush1.msra.mxu0 %v4950
    %5006 = vmatprep.subr.mxu0 %v4955
    %5007 = vmatpush1.msra.mxu0 %v4954
    %5008 = vmatprep.subr.mxu0 %v4959
    %5009 = vmatpush1.msra.mxu0 %v4958
    %5010 = vmatprep.subr.mxu0 %v4963
    %5011 = vmatpush1.msra.mxu0 %v4962
    %5012 = vmatprep.subr.mxu0 %v4967
    %5013 = vmatpush1.msra.mxu0 %v4966
    %5014 = vmatprep.subr.mxu0 %v4971
    %5015 = vmatpush1.msra.mxu0 %v4970
    %5016 = vmatprep.subr.mxu0 %v4975
    %5017 = vmatpush1.msra.mxu0 %v4974
    %5018 = vmatprep.subr.mxu0 %v4979
    %5019 = vmatpush1.msra.mxu0 %v4978
    %5020 = vmatprep.subr.mxu0 %v4983
    %5021 = vmatpush1.msra.mxu0 %v4982
    %5022 = vmatprep.subr.mxu0 %v4987
    %5023 = vmatpush1.msra.mxu0 %v4986
    %5024 = vmatprep.subr.mxu0 %v4991
    %5025 = vmatpush1.msra.mxu0 %v4990
    %5026 = vmatprep.subr.mxu0 0.0
    %5027 = vmatpush1.msra.mxu0 0.0
    %5028 = vmatprep.subr.mxu0 0.0
    %5029 = vmatpush1.msra.mxu0 0.0
    %5030 = vmatprep.subr.mxu0 0.0
    %5031 = vmatpush1.msra.mxu0 0.0
    %5032 = vmatprep.subr.mxu0 0.0
    %5033 = vmatpush1.msra.mxu0 0.0
    %5034 = vmatprep.subr.mxu0 0.0
    %5035 = vmatpush1.msra.mxu0 0.0
    %5036 = vmatprep.subr.mxu0 0.0
    %5037 = vmatpush1.msra.mxu0 0.0
    %5038 = vmatprep.subr.mxu0 0.0
    %5039 = vmatpush1.msra.mxu0 0.0
    %5040 = vmatprep.subr.mxu0 0.0
    %5041 = vmatpush1.msra.mxu0 0.0
    %5042 = vmatprep.subr.mxu0 0.0
    %5043 = vmatpush1.msra.mxu0 0.0
    %5044 = vmatprep.subr.mxu0 0.0
    %5045 = vmatpush1.msra.mxu0 0.0
    %5046 = vmatprep.subr.mxu0 0.0
    %5047 = vmatpush1.msra.mxu0 0.0
    %5048 = vmatprep.subr.mxu0 0.0
    %5049 = vmatpush1.msra.mxu0 0.0
    %5050 = vmatprep.subr.mxu0 0.0
    %5051 = vmatpush1.msra.mxu0 0.0
    %5052 = vmatprep.subr.mxu0 0.0
    %5053 = vmatpush1.msra.mxu0 0.0
    %5054 = vmatprep.subr.mxu0 0.0
    %5055 = vmatpush1.msra.mxu0 0.0
    %5056 = vmatprep.subr.mxu0 0.0
    %5057 = vmatpush1.msra.mxu0 0.0
    %5058 = vmatprep.mubr.f32.mxu0 0.0
    %5059 = vmatmul.mubr.f32.gmra.mrb[0].mxu0 %v4924
    %v5060 = vpop.f32.mrb[0].mxu0
    %v5061 = vadd.f32 0.0, %v5060
    %v5062 = vpop.f32.mrb[0].mxu0
    %v5063 = vadd.f32 0.0, %v5062
    %5064 = vdwg.mxu0
    %5065 = vmatprep.subr.mxu0 %v4933
    %5066 = vmatpush1.msra.mxu0 %v4932
    %5067 = vmatprep.subr.mxu0 %v4937
    %5068 = vmatpush1.msra.mxu0 %v4936
    %5069 = vmatprep.subr.mxu0 %v4941
    %5070 = vmatpush1.msra.mxu0 %v4940
    %5071 = vmatprep.subr.mxu0 %v4945
    %5072 = vmatpush1.msra.mxu0 %v4944
    %5073 = vmatprep.subr.mxu0 %v4949
    %5074 = vmatpush1.msra.mxu0 %v4948
    %5075 = vmatprep.subr.mxu0 %v4953
    %5076 = vmatpush1.msra.mxu0 %v4952
    %5077 = vmatprep.subr.mxu0 %v4957
    %5078 = vmatpush1.msra.mxu0 %v4956
    %5079 = vmatprep.subr.mxu0 %v4961
    %5080 = vmatpush1.msra.mxu0 %v4960
    %5081 = vmatprep.subr.mxu0 %v4965
    %5082 = vmatpush1.msra.mxu0 %v4964
    %5083 = vmatprep.subr.mxu0 %v4969
    %5084 = vmatpush1.msra.mxu0 %v4968
    %5085 = vmatprep.subr.mxu0 %v4973
    %5086 = vmatpush1.msra.mxu0 %v4972
    %5087 = vmatprep.subr.mxu0 %v4977
    %5088 = vmatpush1.msra.mxu0 %v4976
    %5089 = vmatprep.subr.mxu0 %v4981
    %5090 = vmatpush1.msra.mxu0 %v4980
    %5091 = vmatprep.subr.mxu0 %v4985
    %5092 = vmatpush1.msra.mxu0 %v4984
    %5093 = vmatprep.subr.mxu0 %v4989
    %5094 = vmatpush1.msra.mxu0 %v4988
    %5095 = vmatprep.subr.mxu0 %v4993
    %5096 = vmatpush1.msra.mxu0 %v4992
    %5097 = vmatprep.subr.mxu0 0.0
    %5098 = vmatpush1.msra.mxu0 0.0
    %5099 = vmatprep.subr.mxu0 0.0
    %5100 = vmatpush1.msra.mxu0 0.0
    %5101 = vmatprep.subr.mxu0 0.0
    %5102 = vmatpush1.msra.mxu0 0.0
    %5103 = vmatprep.subr.mxu0 0.0
    %5104 = vmatpush1.msra.mxu0 0.0
    %5105 = vmatprep.subr.mxu0 0.0
    %5106 = vmatpush1.msra.mxu0 0.0
    %5107 = vmatprep.subr.mxu0 0.0
    %5108 = vmatpush1.msra.mxu0 0.0
    %5109 = vmatprep.subr.mxu0 0.0
    %5110 = vmatpush1.msra.mxu0 0.0
    %5111 = vmatprep.subr.mxu0 0.0
    %5112 = vmatpush1.msra.mxu0 0.0
    %5113 = vmatprep.subr.mxu0 0.0
    %5114 = vmatpush1.msra.mxu0 0.0
    %5115 = vmatprep.subr.mxu0 0.0
    %5116 = vmatpush1.msra.mxu0 0.0
    %5117 = vmatprep.subr.mxu0 0.0
    %5118 = vmatpush1.msra.mxu0 0.0
    %5119 = vmatprep.subr.mxu0 0.0
    %5120 = vmatpush1.msra.mxu0 0.0
    %5121 = vmatprep.subr.mxu0 0.0
    %5122 = vmatpush1.msra.mxu0 0.0
    %5123 = vmatprep.subr.mxu0 0.0
    %5124 = vmatpush1.msra.mxu0 0.0
    %5125 = vmatprep.subr.mxu0 0.0
    %5126 = vmatpush1.msra.mxu0 0.0
    %5127 = vmatprep.subr.mxu0 0.0
    %5128 = vmatpush1.msra.mxu0 0.0
    %5129 = vmatprep.mubr.f32.mxu0 0.0
    %5130 = vmatmul.mubr.f32.gmra.mrb[0].mxu0 %v4924
    %v5131 = vpop.f32.mrb[0].mxu0
    %v5132 = vadd.f32 0.0, %v5131
    %v5133 = vpop.f32.mrb[0].mxu0
    %v5134 = vadd.f32 0.0, %v5133
    %5135 = vdwg.mxu0
    %v5136 = vadd.f32 %v4926, %v5061
    %v5137 = vadd.f32 %v4927, %v5063
    %v5138 = vadd.f32 %v4928, %v5132
    %v5139 = vadd.f32 %v4929, %v5134
    %v5140 = vxor.u32 %v5136, 2147483648
    %v5141 = vmul.f32 %v5140, 1.442695
    %v5142 = vpow.pop %v5141
    %v5143 = vadd.f32 %v5142, 1.0
    %v5144 = vrcp.pop %v5143
    %v5145 = vmul.f32 1.0, %v5144
    %v5146 = vxor.u32 %v5137, 2147483648
    %v5147 = vmul.f32 %v5146, 1.442695
    %v5148 = vpow.pop %v5147
    %v5149 = vadd.f32 %v5148, 1.0
    %v5150 = vrcp.pop %v5149
    %v5151 = vmul.f32 1.0, %v5150
    %v5152 = vtanh.pop %v5138
    %v5153 = vxor.u32 %v5139, 2147483648
    %v5154 = vmul.f32 %v5153, 1.442695
    %v5155 = vpow.pop %v5154
    %v5156 = vadd.f32 %v5155, 1.0
    %v5157 = vrcp.pop %v5156
    %v5158 = vmul.f32 1.0, %v5157
    %v5159 = vmul.f32 %v5151, %v4922
    %v5160 = vmul.f32 %v5145, %v5152
    %v5161 = vadd.f32 %v5159, %v5160
    %v5162 = vtanh.pop %v5161
    %v5163 = vmul.f32 %v5158, %v5162
    %5164 = vst [vmem:[#allocation3 + $0x40] sm:$0xff] %v5163
    %v5165 = vld [vmem:[#allocation3] sm:$0xff]
    %v5166 = vld [vmem:[#allocation3 + $0x8] sm:$0xff]
    %v5167 = vld [vmem:[#allocation3 + $0x10] sm:$0xff]
    %v5168 = vld [vmem:[#allocation3 + $0x18] sm:$0xff]
    %v5169 = vld [vmem:[#allocation3 + $0x20] sm:$0xff]
    %v5170 = vld [vmem:[#allocation3 + $0x28] sm:$0xff]
    %v5171 = vld [vmem:[#allocation3 + $0x30] sm:$0xff]
    %v5172 = vld [vmem:[#allocation3 + $0x38] sm:$0xff]
    %v5173 = vld [vmem:[#allocation3 + $0x40] sm:$0xff]
    %v5174 = vld [vmem:[#allocation12] sm:$0xff]
    %v5175 = vld [vmem:[#allocation12 + $0x8] sm:$0xff]
    %v5176 = vld [vmem:[#allocation12 + $0x10] sm:$0xff]
    %v5177 = vld [vmem:[#allocation12 + $0x18] sm:$0xff]
    %v5178 = vld [vmem:[#allocation12 + $0x20] sm:$0xff]
    %v5179 = vld [vmem:[#allocation12 + $0x28] sm:$0xff]
    %v5180 = vld [vmem:[#allocation12 + $0x30] sm:$0xff]
    %v5181 = vld [vmem:[#allocation12 + $0x38] sm:$0xff]
    %v5182 = vld [vmem:[#allocation12 + $0x40] sm:$0xff]
    %v5183 = vld [vmem:[#allocation12 + $0x48] sm:$0xff]
    %v5184 = vld [vmem:[#allocation12 + $0x50] sm:$0xff]
    %v5185 = vld [vmem:[#allocation12 + $0x58] sm:$0xff]
    %v5186 = vld [vmem:[#allocation12 + $0x60] sm:$0xff]
    %v5187 = vld [vmem:[#allocation12 + $0x68] sm:$0xff]
    %v5188 = vld [vmem:[#allocation12 + $0x70] sm:$0xff]
    %v5189 = vld [vmem:[#allocation12 + $0x78] sm:$0xff]
    %v5190 = vld [vmem:[#allocation12 + $0x80] sm:$0xff]
    %v5191 = vld [vmem:[#allocation12 + $0x88] sm:$0xff]
    %v5192 = vld [vmem:[#allocation12 + $0x90] sm:$0xff]
    %v5193 = vld [vmem:[#allocation12 + $0x98] sm:$0xff]
    %v5194 = vld [vmem:[#allocation12 + $0xa0] sm:$0xff]
    %v5195 = vld [vmem:[#allocation12 + $0xa8] sm:$0xff]
    %v5196 = vld [vmem:[#allocation12 + $0xb0] sm:$0xff]
    %v5197 = vld [vmem:[#allocation12 + $0xb8] sm:$0xff]
    %v5198 = vld [vmem:[#allocation12 + $0xc0] sm:$0xff]
    %v5199 = vld [vmem:[#allocation12 + $0xc8] sm:$0xff]
    %v5200 = vld [vmem:[#allocation12 + $0xd0] sm:$0xff]
    %v5201 = vld [vmem:[#allocation12 + $0xd8] sm:$0xff]
    %v5202 = vld [vmem:[#allocation12 + $0xe0] sm:$0xff]
    %v5203 = vld [vmem:[#allocation12 + $0xe8] sm:$0xff]
    %v5204 = vld [vmem:[#allocation12 + $0xf0] sm:$0xff]
    %v5205 = vld [vmem:[#allocation12 + $0xf8] sm:$0xff]
    %v5206 = vld [vmem:[#allocation12 + $0x100] sm:$0xff]
    %v5207 = vld [vmem:[#allocation12 + $0x108] sm:$0xff]
    %v5208 = vld [vmem:[#allocation12 + $0x110] sm:$0xff]
    %v5209 = vld [vmem:[#allocation12 + $0x118] sm:$0xff]
    %v5210 = vld [vmem:[#allocation12 + $0x120] sm:$0xff]
    %v5211 = vld [vmem:[#allocation12 + $0x128] sm:$0xff]
    %v5212 = vld [vmem:[#allocation12 + $0x130] sm:$0xff]
    %v5213 = vld [vmem:[#allocation12 + $0x138] sm:$0xff]
    %v5214 = vld [vmem:[#allocation12 + $0x140] sm:$0xff]
    %v5215 = vld [vmem:[#allocation12 + $0x148] sm:$0xff]
    %v5216 = vld [vmem:[#allocation12 + $0x150] sm:$0xff]
    %v5217 = vld [vmem:[#allocation12 + $0x158] sm:$0xff]
    %v5218 = vld [vmem:[#allocation12 + $0x160] sm:$0xff]
    %v5219 = vld [vmem:[#allocation12 + $0x168] sm:$0xff]
    %v5220 = vld [vmem:[#allocation12 + $0x170] sm:$0xff]
    %v5221 = vld [vmem:[#allocation12 + $0x178] sm:$0xff]
    %v5222 = vld [vmem:[#allocation12 + $0x180] sm:$0xff]
    %v5223 = vld [vmem:[#allocation12 + $0x188] sm:$0xff]
    %v5224 = vld [vmem:[#allocation12 + $0x190] sm:$0xff]
    %v5225 = vld [vmem:[#allocation12 + $0x198] sm:$0xff]
    %v5226 = vld [vmem:[#allocation12 + $0x1a0] sm:$0xff]
    %v5227 = vld [vmem:[#allocation12 + $0x1a8] sm:$0xff]
    %v5228 = vld [vmem:[#allocation12 + $0x1b0] sm:$0xff]
    %v5229 = vld [vmem:[#allocation12 + $0x1b8] sm:$0xff]
    %v5230 = vld [vmem:[#allocation12 + $0x1c0] sm:$0xff]
    %v5231 = vld [vmem:[#allocation12 + $0x1c8] sm:$0xff]
    %v5232 = vld [vmem:[#allocation12 + $0x1d0] sm:$0xff]
    %v5233 = vld [vmem:[#allocation12 + $0x1d8] sm:$0xff]
    %v5234 = vld [vmem:[#allocation12 + $0x1e0] sm:$0xff]
    %v5235 = vld [vmem:[#allocation12 + $0x1e8] sm:$0xff]
    %v5236 = vld [vmem:[#allocation12 + $0x1f0] sm:$0xff]
    %v5237 = vld [vmem:[#allocation12 + $0x1f8] sm:$0xff]
    %v5238 = vld [vmem:[%s9] sm:$0xf]
    %v5240 = vlaneseq
    %v5241 = vshrl.u32 %v5240, 7
    %v5242 = vsub.s32 0, %v5241
    %v5243 = vrot.slane %v5238, %v5242
    %v5244 = vlaneseq
    %v5245 = vshrl.u32 %v5244, 7
    %v5246 = vsub.s32 1, %v5245
    %v5247 = vrot.slane %v5238, %v5246
    %v5248 = vlaneseq
    %v5249 = vshrl.u32 %v5248, 7
    %v5250 = vsub.s32 2, %v5249
    %v5251 = vrot.slane %v5238, %v5250
    %v5252 = vlaneseq
    %v5253 = vshrl.u32 %v5252, 7
    %v5254 = vsub.s32 3, %v5253
    %v5255 = vrot.slane %v5238, %v5254
    %5260 = vmatprep.subr.mxu0 %v5175
    %5261 = vmatpush1.msra.mxu0 %v5174
    %5262 = vmatprep.subr.mxu0 %v5179
    %5263 = vmatpush1.msra.mxu0 %v5178
    %5264 = vmatprep.subr.mxu0 %v5183
    %5265 = vmatpush1.msra.mxu0 %v5182
    %5266 = vmatprep.subr.mxu0 %v5187
    %5267 = vmatpush1.msra.mxu0 %v5186
    %5268 = vmatprep.subr.mxu0 %v5191
    %5269 = vmatpush1.msra.mxu0 %v5190
    %5270 = vmatprep.subr.mxu0 %v5195
    %5271 = vmatpush1.msra.mxu0 %v5194
    %5272 = vmatprep.subr.mxu0 %v5199
    %5273 = vmatpush1.msra.mxu0 %v5198
    %5274 = vmatprep.subr.mxu0 %v5203
    %5275 = vmatpush1.msra.mxu0 %v5202
    %5276 = vmatprep.subr.mxu0 %v5207
    %5277 = vmatpush1.msra.mxu0 %v5206
    %5278 = vmatprep.subr.mxu0 %v5211
    %5279 = vmatpush1.msra.mxu0 %v5210
    %5280 = vmatprep.subr.mxu0 %v5215
    %5281 = vmatpush1.msra.mxu0 %v5214
    %5282 = vmatprep.subr.mxu0 %v5219
    %5283 = vmatpush1.msra.mxu0 %v5218
    %5284 = vmatprep.subr.mxu0 %v5223
    %5285 = vmatpush1.msra.mxu0 %v5222
    %5286 = vmatprep.subr.mxu0 %v5227
    %5287 = vmatpush1.msra.mxu0 %v5226
    %5288 = vmatprep.subr.mxu0 %v5231
    %5289 = vmatpush1.msra.mxu0 %v5230
    %5290 = vmatprep.subr.mxu0 %v5235
    %5291 = vmatpush1.msra.mxu0 %v5234
    %5292 = vmatprep.subr.mxu0 0.0
    %5293 = vmatpush1.msra.mxu0 0.0
    %5294 = vmatprep.subr.mxu0 0.0
    %5295 = vmatpush1.msra.mxu0 0.0
    %5296 = vmatprep.subr.mxu0 0.0
    %5297 = vmatpush1.msra.mxu0 0.0
    %5298 = vmatprep.subr.mxu0 0.0
    %5299 = vmatpush1.msra.mxu0 0.0
    %5300 = vmatprep.subr.mxu0 0.0
    %5301 = vmatpush1.msra.mxu0 0.0
    %5302 = vmatprep.subr.mxu0 0.0
    %5303 = vmatpush1.msra.mxu0 0.0
    %5304 = vmatprep.subr.mxu0 0.0
    %5305 = vmatpush1.msra.mxu0 0.0
    %5306 = vmatprep.subr.mxu0 0.0
    %5307 = vmatpush1.msra.mxu0 0.0
    %5308 = vmatprep.subr.mxu0 0.0
    %5309 = vmatpush1.msra.mxu0 0.0
    %5310 = vmatprep.subr.mxu0 0.0
    %5311 = vmatpush1.msra.mxu0 0.0
    %5312 = vmatprep.subr.mxu0 0.0
    %5313 = vmatpush1.msra.mxu0 0.0
    %5314 = vmatprep.subr.mxu0 0.0
    %5315 = vmatpush1.msra.mxu0 0.0
    %5316 = vmatprep.subr.mxu0 0.0
    %5317 = vmatpush1.msra.mxu0 0.0
    %5318 = vmatprep.subr.mxu0 0.0
    %5319 = vmatpush1.msra.mxu0 0.0
    %5320 = vmatprep.subr.mxu0 0.0
    %5321 = vmatpush1.msra.mxu0 0.0
    %5322 = vmatprep.subr.mxu0 0.0
    %5323 = vmatpush1.msra.mxu0 0.0
    %5324 = vmatprep.mubr.f32.mxu0 0.0
    %5325 = vmatmul.mubr.f32.gmra.mrb[0].mxu0 %v5165
    %v5326 = vpop.f32.mrb[0].mxu0
    %v5327 = vadd.f32 %v5243, %v5326
    %v5328 = vpop.f32.mrb[0].mxu0
    %v5329 = vadd.f32 %v5247, %v5328
    %5330 = vmatprep.mubr.f32.mxu0 0.0
    %5331 = vmatmul.mubr.f32.gmra.mrb[0].mxu0 %v5166
    %v5332 = vpop.f32.mrb[0].mxu0
    %v5333 = vadd.f32 %v5243, %v5332
    %v5334 = vpop.f32.mrb[0].mxu0
    %v5335 = vadd.f32 %v5247, %v5334
    %5336 = vmatprep.mubr.f32.mxu0 0.0
    %5337 = vmatmul.mubr.f32.gmra.mrb[0].mxu0 %v5167
    %v5338 = vpop.f32.mrb[0].mxu0
    %v5339 = vadd.f32 %v5243, %v5338
    %v5340 = vpop.f32.mrb[0].mxu0
    %v5341 = vadd.f32 %v5247, %v5340
    %5342 = vmatprep.mubr.f32.mxu0 0.0
    %5343 = vmatmul.mubr.f32.gmra.mrb[0].mxu0 %v5168
    %v5344 = vpop.f32.mrb[0].mxu0
    %v5345 = vadd.f32 %v5243, %v5344
    %v5346 = vpop.f32.mrb[0].mxu0
    %v5347 = vadd.f32 %v5247, %v5346
    %5348 = vmatprep.mubr.f32.mxu0 0.0
    %5349 = vmatmul.mubr.f32.gmra.mrb[0].mxu0 %v5169
    %v5350 = vpop.f32.mrb[0].mxu0
    %v5351 = vadd.f32 %v5243, %v5350
    %v5352 = vpop.f32.mrb[0].mxu0
    %v5353 = vadd.f32 %v5247, %v5352
    %5354 = vmatprep.mubr.f32.mxu0 0.0
    %5355 = vmatmul.mubr.f32.gmra.mrb[0].mxu0 %v5170
    %v5356 = vpop.f32.mrb[0].mxu0
    %v5357 = vadd.f32 %v5243, %v5356
    %v5358 = vpop.f32.mrb[0].mxu0
    %v5359 = vadd.f32 %v5247, %v5358
    %5360 = vmatprep.mubr.f32.mxu0 0.0
    %5361 = vmatmul.mubr.f32.gmra.mrb[0].mxu0 %v5171
    %v5362 = vpop.f32.mrb[0].mxu0
    %v5363 = vadd.f32 %v5243, %v5362
    %v5364 = vpop.f32.mrb[0].mxu0
    %v5365 = vadd.f32 %v5247, %v5364
    %5366 = vmatprep.mubr.f32.mxu0 0.0
    %5367 = vmatmul.mubr.f32.gmra.mrb[0].mxu0 %v5172
    %v5368 = vpop.f32.mrb[0].mxu0
    %v5369 = vadd.f32 %v5243, %v5368
    %v5370 = vpop.f32.mrb[0].mxu0
    %v5371 = vadd.f32 %v5247, %v5370
    %5372 = vmatprep.mubr.f32.mxu0 0.0
    %5373 = vmatmul.mubr.f32.gmra.mrb[0].mxu0 %v5173
    %v5374 = vpop.f32.mrb[0].mxu0
    %v5375 = vadd.f32 %v5243, %v5374
    %v5376 = vpop.f32.mrb[0].mxu0
    %v5377 = vadd.f32 %v5247, %v5376
    %5378 = vdwg.mxu0
    %5379 = vmatprep.subr.mxu0 %v5177
    %5380 = vmatpush1.msra.mxu0 %v5176
    %5381 = vmatprep.subr.mxu0 %v5181
    %5382 = vmatpush1.msra.mxu0 %v5180
    %5383 = vmatprep.subr.mxu0 %v5185
    %5384 = vmatpush1.msra.mxu0 %v5184
    %5385 = vmatprep.subr.mxu0 %v5189
    %5386 = vmatpush1.msra.mxu0 %v5188
    %5387 = vmatprep.subr.mxu0 %v5193
    %5388 = vmatpush1.msra.mxu0 %v5192
    %5389 = vmatprep.subr.mxu0 %v5197
    %5390 = vmatpush1.msra.mxu0 %v5196
    %5391 = vmatprep.subr.mxu0 %v5201
    %5392 = vmatpush1.msra.mxu0 %v5200
    %5393 = vmatprep.subr.mxu0 %v5205
    %5394 = vmatpush1.msra.mxu0 %v5204
    %5395 = vmatprep.subr.mxu0 %v5209
    %5396 = vmatpush1.msra.mxu0 %v5208
    %5397 = vmatprep.subr.mxu0 %v5213
    %5398 = vmatpush1.msra.mxu0 %v5212
    %5399 = vmatprep.subr.mxu0 %v5217
    %5400 = vmatpush1.msra.mxu0 %v5216
    %5401 = vmatprep.subr.mxu0 %v5221
    %5402 = vmatpush1.msra.mxu0 %v5220
    %5403 = vmatprep.subr.mxu0 %v5225
    %5404 = vmatpush1.msra.mxu0 %v5224
    %5405 = vmatprep.subr.mxu0 %v5229
    %5406 = vmatpush1.msra.mxu0 %v5228
    %5407 = vmatprep.subr.mxu0 %v5233
    %5408 = vmatpush1.msra.mxu0 %v5232
    %5409 = vmatprep.subr.mxu0 %v5237
    %5410 = vmatpush1.msra.mxu0 %v5236
    %5411 = vmatprep.subr.mxu0 0.0
    %5412 = vmatpush1.msra.mxu0 0.0
    %5413 = vmatprep.subr.mxu0 0.0
    %5414 = vmatpush1.msra.mxu0 0.0
    %5415 = vmatprep.subr.mxu0 0.0
    %5416 = vmatpush1.msra.mxu0 0.0
    %5417 = vmatprep.subr.mxu0 0.0
    %5418 = vmatpush1.msra.mxu0 0.0
    %5419 = vmatprep.subr.mxu0 0.0
    %5420 = vmatpush1.msra.mxu0 0.0
    %5421 = vmatprep.subr.mxu0 0.0
    %5422 = vmatpush1.msra.mxu0 0.0
    %5423 = vmatprep.subr.mxu0 0.0
    %5424 = vmatpush1.msra.mxu0 0.0
    %5425 = vmatprep.subr.mxu0 0.0
    %5426 = vmatpush1.msra.mxu0 0.0
    %5427 = vmatprep.subr.mxu0 0.0
    %5428 = vmatpush1.msra.mxu0 0.0
    %5429 = vmatprep.subr.mxu0 0.0
    %5430 = vmatpush1.msra.mxu0 0.0
    %5431 = vmatprep.subr.mxu0 0.0
    %5432 = vmatpush1.msra.mxu0 0.0
    %5433 = vmatprep.subr.mxu0 0.0
    %5434 = vmatpush1.msra.mxu0 0.0
    %5435 = vmatprep.subr.mxu0 0.0
    %5436 = vmatpush1.msra.mxu0 0.0
    %5437 = vmatprep.subr.mxu0 0.0
    %5438 = vmatpush1.msra.mxu0 0.0
    %5439 = vmatprep.subr.mxu0 0.0
    %5440 = vmatpush1.msra.mxu0 0.0
    %5441 = vmatprep.subr.mxu0 0.0
    %5442 = vmatpush1.msra.mxu0 0.0
    %5443 = vmatprep.mubr.f32.mxu0 0.0
    %5444 = vmatmul.mubr.f32.gmra.mrb[0].mxu0 %v5165
    %v5445 = vpop.f32.mrb[0].mxu0
    %v5446 = vadd.f32 %v5251, %v5445
    %v5447 = vpop.f32.mrb[0].mxu0
    %v5448 = vadd.f32 %v5255, %v5447
    %5449 = vmatprep.mubr.f32.mxu0 0.0
    %5450 = vmatmul.mubr.f32.gmra.mrb[0].mxu0 %v5166
    %v5451 = vpop.f32.mrb[0].mxu0
    %v5452 = vadd.f32 %v5251, %v5451
    %v5453 = vpop.f32.mrb[0].mxu0
    %v5454 = vadd.f32 %v5255, %v5453
    %5455 = vmatprep.mubr.f32.mxu0 0.0
    %5456 = vmatmul.mubr.f32.gmra.mrb[0].mxu0 %v5167
    %v5457 = vpop.f32.mrb[0].mxu0
    %v5458 = vadd.f32 %v5251, %v5457
    %v5459 = vpop.f32.mrb[0].mxu0
    %v5460 = vadd.f32 %v5255, %v5459
    %5461 = vmatprep.mubr.f32.mxu0 0.0
    %5462 = vmatmul.mubr.f32.gmra.mrb[0].mxu0 %v5168
    %v5463 = vpop.f32.mrb[0].mxu0
    %v5464 = vadd.f32 %v5251, %v5463
    %v5465 = vpop.f32.mrb[0].mxu0
    %v5466 = vadd.f32 %v5255, %v5465
    %5467 = vmatprep.mubr.f32.mxu0 0.0
    %5468 = vmatmul.mubr.f32.gmra.mrb[0].mxu0 %v5169
    %v5469 = vpop.f32.mrb[0].mxu0
    %v5470 = vadd.f32 %v5251, %v5469
    %v5471 = vpop.f32.mrb[0].mxu0
    %v5472 = vadd.f32 %v5255, %v5471
    %5473 = vmatprep.mubr.f32.mxu0 0.0
    %5474 = vmatmul.mubr.f32.gmra.mrb[0].mxu0 %v5170
    %v5475 = vpop.f32.mrb[0].mxu0
    %v5476 = vadd.f32 %v5251, %v5475
    %v5477 = vpop.f32.mrb[0].mxu0
    %v5478 = vadd.f32 %v5255, %v5477
    %5479 = vmatprep.mubr.f32.mxu0 0.0
    %5480 = vmatmul.mubr.f32.gmra.mrb[0].mxu0 %v5171
    %v5481 = vpop.f32.mrb[0].mxu0
    %v5482 = vadd.f32 %v5251, %v5481
    %v5483 = vpop.f32.mrb[0].mxu0
    %v5484 = vadd.f32 %v5255, %v5483
    %5485 = vmatprep.mubr.f32.mxu0 0.0
    %5486 = vmatmul.mubr.f32.gmra.mrb[0].mxu0 %v5172
    %v5487 = vpop.f32.mrb[0].mxu0
    %v5488 = vadd.f32 %v5251, %v5487
    %v5489 = vpop.f32.mrb[0].mxu0
    %v5490 = vadd.f32 %v5255, %v5489
    %5491 = vmatprep.mubr.f32.mxu0 0.0
    %5492 = vmatmul.mubr.f32.gmra.mrb[0].mxu0 %v5173
    %v5493 = vpop.f32.mrb[0].mxu0
    %v5494 = vadd.f32 %v5251, %v5493
    %v5495 = vpop.f32.mrb[0].mxu0
    %v5496 = vadd.f32 %v5255, %v5495
    %5497 = vdwg.mxu0
    %5498 = vst [vmem:[#allocation2] sm:$0xff] %v5327
    %5499 = vst [vmem:[#allocation2 + $0x8] sm:$0xff] %v5329
    %5500 = vst [vmem:[#allocation2 + $0x10] sm:$0xff] %v5446
    %5501 = vst [vmem:[#allocation2 + $0x18] sm:$0xff] %v5448
    %5502 = vst [vmem:[#allocation2 + $0x20] sm:$0xff] %v5333
    %5503 = vst [vmem:[#allocation2 + $0x28] sm:$0xff] %v5335
    %5504 = vst [vmem:[#allocation2 + $0x30] sm:$0xff] %v5452
    %5505 = vst [vmem:[#allocation2 + $0x38] sm:$0xff] %v5454
    %5506 = vst [vmem:[#allocation2 + $0x40] sm:$0xff] %v5339
    %5507 = vst [vmem:[#allocation2 + $0x48] sm:$0xff] %v5341
    %5508 = vst [vmem:[#allocation2 + $0x50] sm:$0xff] %v5458
    %5509 = vst [vmem:[#allocation2 + $0x58] sm:$0xff] %v5460
    %5510 = vst [vmem:[#allocation2 + $0x60] sm:$0xff] %v5345
    %5511 = vst [vmem:[#allocation2 + $0x68] sm:$0xff] %v5347
    %5512 = vst [vmem:[#allocation2 + $0x70] sm:$0xff] %v5464
    %5513 = vst [vmem:[#allocation2 + $0x78] sm:$0xff] %v5466
    %5514 = vst [vmem:[#allocation2 + $0x80] sm:$0xff] %v5351
    %5515 = vst [vmem:[#allocation2 + $0x88] sm:$0xff] %v5353
    %5516 = vst [vmem:[#allocation2 + $0x90] sm:$0xff] %v5470
    %5517 = vst [vmem:[#allocation2 + $0x98] sm:$0xff] %v5472
    %5518 = vst [vmem:[#allocation2 + $0xa0] sm:$0xff] %v5357
    %5519 = vst [vmem:[#allocation2 + $0xa8] sm:$0xff] %v5359
    %5520 = vst [vmem:[#allocation2 + $0xb0] sm:$0xff] %v5476
    %5521 = vst [vmem:[#allocation2 + $0xb8] sm:$0xff] %v5478
    %5522 = vst [vmem:[#allocation2 + $0xc0] sm:$0xff] %v5363
    %5523 = vst [vmem:[#allocation2 + $0xc8] sm:$0xff] %v5365
    %5524 = vst [vmem:[#allocation2 + $0xd0] sm:$0xff] %v5482
    %5525 = vst [vmem:[#allocation2 + $0xd8] sm:$0xff] %v5484
    %5526 = vst [vmem:[#allocation2 + $0xe0] sm:$0xff] %v5369
    %5527 = vst [vmem:[#allocation2 + $0xe8] sm:$0xff] %v5371
    %5528 = vst [vmem:[#allocation2 + $0xf0] sm:$0xff] %v5488
    %5529 = vst [vmem:[#allocation2 + $0xf8] sm:$0xff] %v5490
    %5530 = vst [vmem:[#allocation2 + $0x100] sm:$0xff] %v5375
    %5531 = vst [vmem:[#allocation2 + $0x108] sm:$0xff] %v5377
    %5532 = vst [vmem:[#allocation2 + $0x110] sm:$0xff] %v5494
    %5533 = vst [vmem:[#allocation2 + $0x118] sm:$0xff] %v5496
    %v5534 = vld [vmem:[#allocation2] sm:$0xff]
    %v5535 = vld [vmem:[#allocation2 + $0x8] sm:$0xff]
    %v5536 = vld [vmem:[#allocation2 + $0x10] sm:$0xff]
    %v5537 = vld [vmem:[#allocation2 + $0x18] sm:$0xff]
    %v5538 = vld [vmem:[#allocation13] sm:$0xff]
    %v5539 = vld [vmem:[#allocation13 + $0x8] sm:$0xff]
    %v5540 = vld [vmem:[#allocation13 + $0x10] sm:$0xff]
    %v5541 = vld [vmem:[#allocation13 + $0x18] sm:$0xff]
    %v5542 = vld [vmem:[#allocation13 + $0x20] sm:$0xff]
    %v5543 = vld [vmem:[#allocation13 + $0x28] sm:$0xff]
    %v5544 = vld [vmem:[#allocation13 + $0x30] sm:$0xff]
    %v5545 = vld [vmem:[#allocation13 + $0x38] sm:$0xff]
    %v5546 = vld [vmem:[#allocation13 + $0x40] sm:$0xff]
    %v5547 = vld [vmem:[#allocation13 + $0x48] sm:$0xff]
    %v5548 = vld [vmem:[#allocation13 + $0x50] sm:$0xff]
    %v5549 = vld [vmem:[#allocation13 + $0x58] sm:$0xff]
    %v5550 = vld [vmem:[#allocation13 + $0x60] sm:$0xff]
    %v5551 = vld [vmem:[#allocation13 + $0x68] sm:$0xff]
    %v5552 = vld [vmem:[#allocation13 + $0x70] sm:$0xff]
    %v5553 = vld [vmem:[#allocation13 + $0x78] sm:$0xff]
    %v5554 = vld [vmem:[#allocation13 + $0x80] sm:$0xff]
    %v5555 = vld [vmem:[#allocation13 + $0x88] sm:$0xff]
    %v5556 = vld [vmem:[#allocation13 + $0x90] sm:$0xff]
    %v5557 = vld [vmem:[#allocation13 + $0x98] sm:$0xff]
    %v5558 = vld [vmem:[#allocation13 + $0xa0] sm:$0xff]
    %v5559 = vld [vmem:[#allocation13 + $0xa8] sm:$0xff]
    %v5560 = vld [vmem:[#allocation13 + $0xb0] sm:$0xff]
    %v5561 = vld [vmem:[#allocation13 + $0xb8] sm:$0xff]
    %v5562 = vld [vmem:[#allocation13 + $0xc0] sm:$0xff]
    %v5563 = vld [vmem:[#allocation13 + $0xc8] sm:$0xff]
    %v5564 = vld [vmem:[#allocation13 + $0xd0] sm:$0xff]
    %v5565 = vld [vmem:[#allocation13 + $0xd8] sm:$0xff]
    %v5566 = vld [vmem:[#allocation13 + $0xe0] sm:$0xff]
    %v5567 = vld [vmem:[#allocation13 + $0xe8] sm:$0xff]
    %v5568 = vld [vmem:[#allocation13 + $0xf0] sm:$0xff]
    %v5569 = vld [vmem:[#allocation13 + $0xf8] sm:$0xff]
    %v5570 = vld [vmem:[#allocation13 + $0x100] sm:$0xff]
    %v5571 = vld [vmem:[#allocation13 + $0x108] sm:$0xff]
    %v5572 = vld [vmem:[#allocation13 + $0x110] sm:$0xff]
    %v5573 = vld [vmem:[#allocation13 + $0x118] sm:$0xff]
    %v5574 = vld [vmem:[#allocation13 + $0x120] sm:$0xff]
    %v5575 = vld [vmem:[#allocation13 + $0x128] sm:$0xff]
    %v5576 = vld [vmem:[#allocation13 + $0x130] sm:$0xff]
    %v5577 = vld [vmem:[#allocation13 + $0x138] sm:$0xff]
    %v5578 = vld [vmem:[#allocation13 + $0x140] sm:$0xff]
    %v5579 = vld [vmem:[#allocation13 + $0x148] sm:$0xff]
    %v5580 = vld [vmem:[#allocation13 + $0x150] sm:$0xff]
    %v5581 = vld [vmem:[#allocation13 + $0x158] sm:$0xff]
    %v5582 = vld [vmem:[#allocation13 + $0x160] sm:$0xff]
    %v5583 = vld [vmem:[#allocation13 + $0x168] sm:$0xff]
    %v5584 = vld [vmem:[#allocation13 + $0x170] sm:$0xff]
    %v5585 = vld [vmem:[#allocation13 + $0x178] sm:$0xff]
    %v5586 = vld [vmem:[#allocation13 + $0x180] sm:$0xff]
    %v5587 = vld [vmem:[#allocation13 + $0x188] sm:$0xff]
    %v5588 = vld [vmem:[#allocation13 + $0x190] sm:$0xff]
    %v5589 = vld [vmem:[#allocation13 + $0x198] sm:$0xff]
    %v5590 = vld [vmem:[#allocation13 + $0x1a0] sm:$0xff]
    %v5591 = vld [vmem:[#allocation13 + $0x1a8] sm:$0xff]
    %v5592 = vld [vmem:[#allocation13 + $0x1b0] sm:$0xff]
    %v5593 = vld [vmem:[#allocation13 + $0x1b8] sm:$0xff]
    %v5594 = vld [vmem:[#allocation13 + $0x1c0] sm:$0xff]
    %v5595 = vld [vmem:[#allocation13 + $0x1c8] sm:$0xff]
    %v5596 = vld [vmem:[#allocation13 + $0x1d0] sm:$0xff]
    %v5597 = vld [vmem:[#allocation13 + $0x1d8] sm:$0xff]
    %v5598 = vld [vmem:[#allocation13 + $0x1e0] sm:$0xff]
    %v5599 = vld [vmem:[#allocation13 + $0x1e8] sm:$0xff]
    %v5600 = vld [vmem:[#allocation13 + $0x1f0] sm:$0xff]
    %v5601 = vld [vmem:[#allocation13 + $0x1f8] sm:$0xff]
    %5602 = vmatprep.subr.mxu0 %v5539
    %5603 = vmatpush1.msra.mxu0 %v5538
    %5604 = vmatprep.subr.mxu0 %v5543
    %5605 = vmatpush1.msra.mxu0 %v5542
    %5606 = vmatprep.subr.mxu0 %v5547
    %5607 = vmatpush1.msra.mxu0 %v5546
    %5608 = vmatprep.subr.mxu0 %v5551
    %5609 = vmatpush1.msra.mxu0 %v5550
    %5610 = vmatprep.subr.mxu0 %v5555
    %5611 = vmatpush1.msra.mxu0 %v5554
    %5612 = vmatprep.subr.mxu0 %v5559
    %5613 = vmatpush1.msra.mxu0 %v5558
    %5614 = vmatprep.subr.mxu0 %v5563
    %5615 = vmatpush1.msra.mxu0 %v5562
    %5616 = vmatprep.subr.mxu0 %v5567
    %5617 = vmatpush1.msra.mxu0 %v5566
    %5618 = vmatprep.subr.mxu0 %v5571
    %5619 = vmatpush1.msra.mxu0 %v5570
    %5620 = vmatprep.subr.mxu0 %v5575
    %5621 = vmatpush1.msra.mxu0 %v5574
    %5622 = vmatprep.subr.mxu0 %v5579
    %5623 = vmatpush1.msra.mxu0 %v5578
    %5624 = vmatprep.subr.mxu0 %v5583
    %5625 = vmatpush1.msra.mxu0 %v5582
    %5626 = vmatprep.subr.mxu0 %v5587
    %5627 = vmatpush1.msra.mxu0 %v5586
    %5628 = vmatprep.subr.mxu0 %v5591
    %5629 = vmatpush1.msra.mxu0 %v5590
    %5630 = vmatprep.subr.mxu0 %v5595
    %5631 = vmatpush1.msra.mxu0 %v5594
    %5632 = vmatprep.subr.mxu0 %v5599
    %5633 = vmatpush1.msra.mxu0 %v5598
    %5634 = vmatprep.subr.mxu0 0.0
    %5635 = vmatpush1.msra.mxu0 0.0
    %5636 = vmatprep.subr.mxu0 0.0
    %5637 = vmatpush1.msra.mxu0 0.0
    %5638 = vmatprep.subr.mxu0 0.0
    %5639 = vmatpush1.msra.mxu0 0.0
    %5640 = vmatprep.subr.mxu0 0.0
    %5641 = vmatpush1.msra.mxu0 0.0
    %5642 = vmatprep.subr.mxu0 0.0
    %5643 = vmatpush1.msra.mxu0 0.0
    %5644 = vmatprep.subr.mxu0 0.0
    %5645 = vmatpush1.msra.mxu0 0.0
    %5646 = vmatprep.subr.mxu0 0.0
    %5647 = vmatpush1.msra.mxu0 0.0
    %5648 = vmatprep.subr.mxu0 0.0
    %5649 = vmatpush1.msra.mxu0 0.0
    %5650 = vmatprep.subr.mxu0 0.0
    %5651 = vmatpush1.msra.mxu0 0.0
    %5652 = vmatprep.subr.mxu0 0.0
    %5653 = vmatpush1.msra.mxu0 0.0
    %5654 = vmatprep.subr.mxu0 0.0
    %5655 = vmatpush1.msra.mxu0 0.0
    %5656 = vmatprep.subr.mxu0 0.0
    %5657 = vmatpush1.msra.mxu0 0.0
    %5658 = vmatprep.subr.mxu0 0.0
    %5659 = vmatpush1.msra.mxu0 0.0
    %5660 = vmatprep.subr.mxu0 0.0
    %5661 = vmatpush1.msra.mxu0 0.0
    %5662 = vmatprep.subr.mxu0 0.0
    %5663 = vmatpush1.msra.mxu0 0.0
    %5664 = vmatprep.subr.mxu0 0.0
    %5665 = vmatpush1.msra.mxu0 0.0
    %5666 = vmatprep.mubr.f32.mxu0 0.0
    %5667 = vmatmul.mubr.f32.gmra.mrb[0].mxu0 0.0
    %v5668 = vpop.f32.mrb[0].mxu0
    %v5669 = vadd.f32 0.0, %v5668
    %v5670 = vpop.f32.mrb[0].mxu0
    %v5671 = vadd.f32 0.0, %v5670
    %5672 = vdwg.mxu0
    %5673 = vmatprep.subr.mxu0 %v5541
    %5674 = vmatpush1.msra.mxu0 %v5540
    %5675 = vmatprep.subr.mxu0 %v5545
    %5676 = vmatpush1.msra.mxu0 %v5544
    %5677 = vmatprep.subr.mxu0 %v5549
    %5678 = vmatpush1.msra.mxu0 %v5548
    %5679 = vmatprep.subr.mxu0 %v5553
    %5680 = vmatpush1.msra.mxu0 %v5552
    %5681 = vmatprep.subr.mxu0 %v5557
    %5682 = vmatpush1.msra.mxu0 %v5556
    %5683 = vmatprep.subr.mxu0 %v5561
    %5684 = vmatpush1.msra.mxu0 %v5560
    %5685 = vmatprep.subr.mxu0 %v5565
    %5686 = vmatpush1.msra.mxu0 %v5564
    %5687 = vmatprep.subr.mxu0 %v5569
    %5688 = vmatpush1.msra.mxu0 %v5568
    %5689 = vmatprep.subr.mxu0 %v5573
    %5690 = vmatpush1.msra.mxu0 %v5572
    %5691 = vmatprep.subr.mxu0 %v5577
    %5692 = vmatpush1.msra.mxu0 %v5576
    %5693 = vmatprep.subr.mxu0 %v5581
    %5694 = vmatpush1.msra.mxu0 %v5580
    %5695 = vmatprep.subr.mxu0 %v5585
    %5696 = vmatpush1.msra.mxu0 %v5584
    %5697 = vmatprep.subr.mxu0 %v5589
    %5698 = vmatpush1.msra.mxu0 %v5588
    %5699 = vmatprep.subr.mxu0 %v5593
    %5700 = vmatpush1.msra.mxu0 %v5592
    %5701 = vmatprep.subr.mxu0 %v5597
    %5702 = vmatpush1.msra.mxu0 %v5596
    %5703 = vmatprep.subr.mxu0 %v5601
    %5704 = vmatpush1.msra.mxu0 %v5600
    %5705 = vmatprep.subr.mxu0 0.0
    %5706 = vmatpush1.msra.mxu0 0.0
    %5707 = vmatprep.subr.mxu0 0.0
    %5708 = vmatpush1.msra.mxu0 0.0
    %5709 = vmatprep.subr.mxu0 0.0
    %5710 = vmatpush1.msra.mxu0 0.0
    %5711 = vmatprep.subr.mxu0 0.0
    %5712 = vmatpush1.msra.mxu0 0.0
    %5713 = vmatprep.subr.mxu0 0.0
    %5714 = vmatpush1.msra.mxu0 0.0
    %5715 = vmatprep.subr.mxu0 0.0
    %5716 = vmatpush1.msra.mxu0 0.0
    %5717 = vmatprep.subr.mxu0 0.0
    %5718 = vmatpush1.msra.mxu0 0.0
    %5719 = vmatprep.subr.mxu0 0.0
    %5720 = vmatpush1.msra.mxu0 0.0
    %5721 = vmatprep.subr.mxu0 0.0
    %5722 = vmatpush1.msra.mxu0 0.0
    %5723 = vmatprep.subr.mxu0 0.0
    %5724 = vmatpush1.msra.mxu0 0.0
    %5725 = vmatprep.subr.mxu0 0.0
    %5726 = vmatpush1.msra.mxu0 0.0
    %5727 = vmatprep.subr.mxu0 0.0
    %5728 = vmatpush1.msra.mxu0 0.0
    %5729 = vmatprep.subr.mxu0 0.0
    %5730 = vmatpush1.msra.mxu0 0.0
    %5731 = vmatprep.subr.mxu0 0.0
    %5732 = vmatpush1.msra.mxu0 0.0
    %5733 = vmatprep.subr.mxu0 0.0
    %5734 = vmatpush1.msra.mxu0 0.0
    %5735 = vmatprep.subr.mxu0 0.0
    %5736 = vmatpush1.msra.mxu0 0.0
    %5737 = vmatprep.mubr.f32.mxu0 0.0
    %5738 = vmatmul.mubr.f32.gmra.mrb[0].mxu0 0.0
    %v5739 = vpop.f32.mrb[0].mxu0
    %v5740 = vadd.f32 0.0, %v5739
    %v5741 = vpop.f32.mrb[0].mxu0
    %v5742 = vadd.f32 0.0, %v5741
    %5743 = vdwg.mxu0
    %v5744 = vadd.f32 %v5534, %v5669
    %v5745 = vadd.f32 %v5535, %v5671
    %v5746 = vadd.f32 %v5536, %v5740
    %v5747 = vadd.f32 %v5537, %v5742
    %v5748 = vxor.u32 %v5744, 2147483648
    %v5749 = vmul.f32 %v5748, 1.442695
    %v5750 = vpow.pop %v5749
    %v5751 = vadd.f32 %v5750, 1.0
    %v5752 = vrcp.pop %v5751
    %v5753 = vmul.f32 1.0, %v5752
    %v5754 = vxor.u32 %v5745, 2147483648
    %v5755 = vmul.f32 %v5754, 1.442695
    %v5756 = vpow.pop %v5755
    %v5757 = vadd.f32 %v5756, 1.0
    %v5758 = vrcp.pop %v5757
    %v5759 = vmul.f32 1.0, %v5758
    %v5760 = vtanh.pop %v5746
    %v5761 = vxor.u32 %v5747, 2147483648
    %v5762 = vmul.f32 %v5761, 1.442695
    %v5763 = vpow.pop %v5762
    %v5764 = vadd.f32 %v5763, 1.0
    %v5765 = vrcp.pop %v5764
    %v5766 = vmul.f32 1.0, %v5765
    %v5767 = vmul.f32 %v5759, 0.0
    %v5768 = vmul.f32 %v5753, %v5760
    %v5769 = vadd.f32 %v5767, %v5768
    %v5770 = vtanh.pop %v5769
    %v5771 = vmul.f32 %v5766, %v5770
    %v5772 = vld [vmem:[#allocation2 + $0x20] sm:$0xff]
    %v5773 = vld [vmem:[#allocation2 + $0x28] sm:$0xff]
    %v5774 = vld [vmem:[#allocation2 + $0x30] sm:$0xff]
    %v5775 = vld [vmem:[#allocation2 + $0x38] sm:$0xff]
    %5776 = vmatprep.subr.mxu0 %v5539
    %5777 = vmatpush1.msra.mxu0 %v5538
    %5778 = vmatprep.subr.mxu0 %v5543
    %5779 = vmatpush1.msra.mxu0 %v5542
    %5780 = vmatprep.subr.mxu0 %v5547
    %5781 = vmatpush1.msra.mxu0 %v5546
    %5782 = vmatprep.subr.mxu0 %v5551
    %5783 = vmatpush1.msra.mxu0 %v5550
    %5784 = vmatprep.subr.mxu0 %v5555
    %5785 = vmatpush1.msra.mxu0 %v5554
    %5786 = vmatprep.subr.mxu0 %v5559
    %5787 = vmatpush1.msra.mxu0 %v5558
    %5788 = vmatprep.subr.mxu0 %v5563
    %5789 = vmatpush1.msra.mxu0 %v5562
    %5790 = vmatprep.subr.mxu0 %v5567
    %5791 = vmatpush1.msra.mxu0 %v5566
    %5792 = vmatprep.subr.mxu0 %v5571
    %5793 = vmatpush1.msra.mxu0 %v5570
    %5794 = vmatprep.subr.mxu0 %v5575
    %5795 = vmatpush1.msra.mxu0 %v5574
    %5796 = vmatprep.subr.mxu0 %v5579
    %5797 = vmatpush1.msra.mxu0 %v5578
    %5798 = vmatprep.subr.mxu0 %v5583
    %5799 = vmatpush1.msra.mxu0 %v5582
    %5800 = vmatprep.subr.mxu0 %v5587
    %5801 = vmatpush1.msra.mxu0 %v5586
    %5802 = vmatprep.subr.mxu0 %v5591
    %5803 = vmatpush1.msra.mxu0 %v5590
    %5804 = vmatprep.subr.mxu0 %v5595
    %5805 = vmatpush1.msra.mxu0 %v5594
    %5806 = vmatprep.subr.mxu0 %v5599
    %5807 = vmatpush1.msra.mxu0 %v5598
    %5808 = vmatprep.subr.mxu0 0.0
    %5809 = vmatpush1.msra.mxu0 0.0
    %5810 = vmatprep.subr.mxu0 0.0
    %5811 = vmatpush1.msra.mxu0 0.0
    %5812 = vmatprep.subr.mxu0 0.0
    %5813 = vmatpush1.msra.mxu0 0.0
    %5814 = vmatprep.subr.mxu0 0.0
    %5815 = vmatpush1.msra.mxu0 0.0
    %5816 = vmatprep.subr.mxu0 0.0
    %5817 = vmatpush1.msra.mxu0 0.0
    %5818 = vmatprep.subr.mxu0 0.0
    %5819 = vmatpush1.msra.mxu0 0.0
    %5820 = vmatprep.subr.mxu0 0.0
    %5821 = vmatpush1.msra.mxu0 0.0
    %5822 = vmatprep.subr.mxu0 0.0
    %5823 = vmatpush1.msra.mxu0 0.0
    %5824 = vmatprep.subr.mxu0 0.0
    %5825 = vmatpush1.msra.mxu0 0.0
    %5826 = vmatprep.subr.mxu0 0.0
    %5827 = vmatpush1.msra.mxu0 0.0
    %5828 = vmatprep.subr.mxu0 0.0
    %5829 = vmatpush1.msra.mxu0 0.0
    %5830 = vmatprep.subr.mxu0 0.0
    %5831 = vmatpush1.msra.mxu0 0.0
    %5832 = vmatprep.subr.mxu0 0.0
    %5833 = vmatpush1.msra.mxu0 0.0
    %5834 = vmatprep.subr.mxu0 0.0
    %5835 = vmatpush1.msra.mxu0 0.0
    %5836 = vmatprep.subr.mxu0 0.0
    %5837 = vmatpush1.msra.mxu0 0.0
    %5838 = vmatprep.subr.mxu0 0.0
    %5839 = vmatpush1.msra.mxu0 0.0
    %5840 = vmatprep.mubr.f32.mxu0 0.0
    %5841 = vmatmul.mubr.f32.gmra.mrb[0].mxu0 %v5771
    %v5842 = vpop.f32.mrb[0].mxu0
    %v5843 = vadd.f32 0.0, %v5842
    %v5844 = vpop.f32.mrb[0].mxu0
    %v5845 = vadd.f32 0.0, %v5844
    %5846 = vdwg.mxu0
    %5847 = vmatprep.subr.mxu0 %v5541
    %5848 = vmatpush1.msra.mxu0 %v5540
    %5849 = vmatprep.subr.mxu0 %v5545
    %5850 = vmatpush1.msra.mxu0 %v5544
    %5851 = vmatprep.subr.mxu0 %v5549
    %5852 = vmatpush1.msra.mxu0 %v5548
    %5853 = vmatprep.subr.mxu0 %v5553
    %5854 = vmatpush1.msra.mxu0 %v5552
    %5855 = vmatprep.subr.mxu0 %v5557
    %5856 = vmatpush1.msra.mxu0 %v5556
    %5857 = vmatprep.subr.mxu0 %v5561
    %5858 = vmatpush1.msra.mxu0 %v5560
    %5859 = vmatprep.subr.mxu0 %v5565
    %5860 = vmatpush1.msra.mxu0 %v5564
    %5861 = vmatprep.subr.mxu0 %v5569
    %5862 = vmatpush1.msra.mxu0 %v5568
    %5863 = vmatprep.subr.mxu0 %v5573
    %5864 = vmatpush1.msra.mxu0 %v5572
    %5865 = vmatprep.subr.mxu0 %v5577
    %5866 = vmatpush1.msra.mxu0 %v5576
    %5867 = vmatprep.subr.mxu0 %v5581
    %5868 = vmatpush1.msra.mxu0 %v5580
    %5869 = vmatprep.subr.mxu0 %v5585
    %5870 = vmatpush1.msra.mxu0 %v5584
    %5871 = vmatprep.subr.mxu0 %v5589
    %5872 = vmatpush1.msra.mxu0 %v5588
    %5873 = vmatprep.subr.mxu0 %v5593
    %5874 = vmatpush1.msra.mxu0 %v5592
    %5875 = vmatprep.subr.mxu0 %v5597
    %5876 = vmatpush1.msra.mxu0 %v5596
    %5877 = vmatprep.subr.mxu0 %v5601
    %5878 = vmatpush1.msra.mxu0 %v5600
    %5879 = vmatprep.subr.mxu0 0.0
    %5880 = vmatpush1.msra.mxu0 0.0
    %5881 = vmatprep.subr.mxu0 0.0
    %5882 = vmatpush1.msra.mxu0 0.0
    %5883 = vmatprep.subr.mxu0 0.0
    %5884 = vmatpush1.msra.mxu0 0.0
    %5885 = vmatprep.subr.mxu0 0.0
    %5886 = vmatpush1.msra.mxu0 0.0
    %5887 = vmatprep.subr.mxu0 0.0
    %5888 = vmatpush1.msra.mxu0 0.0
    %5889 = vmatprep.subr.mxu0 0.0
    %5890 = vmatpush1.msra.mxu0 0.0
    %5891 = vmatprep.subr.mxu0 0.0
    %5892 = vmatpush1.msra.mxu0 0.0
    %5893 = vmatprep.subr.mxu0 0.0
    %5894 = vmatpush1.msra.mxu0 0.0
    %5895 = vmatprep.subr.mxu0 0.0
    %5896 = vmatpush1.msra.mxu0 0.0
    %5897 = vmatprep.subr.mxu0 0.0
    %5898 = vmatpush1.msra.mxu0 0.0
    %5899 = vmatprep.subr.mxu0 0.0
    %5900 = vmatpush1.msra.mxu0 0.0
    %5901 = vmatprep.subr.mxu0 0.0
    %5902 = vmatpush1.msra.mxu0 0.0
    %5903 = vmatprep.subr.mxu0 0.0
    %5904 = vmatpush1.msra.mxu0 0.0
    %5905 = vmatprep.subr.mxu0 0.0
    %5906 = vmatpush1.msra.mxu0 0.0
    %5907 = vmatprep.subr.mxu0 0.0
    %5908 = vmatpush1.msra.mxu0 0.0
    %5909 = vmatprep.subr.mxu0 0.0
    %5910 = vmatpush1.msra.mxu0 0.0
    %5911 = vmatprep.mubr.f32.mxu0 0.0
    %5912 = vmatmul.mubr.f32.gmra.mrb[0].mxu0 %v5771
    %v5913 = vpop.f32.mrb[0].mxu0
    %v5914 = vadd.f32 0.0, %v5913
    %v5915 = vpop.f32.mrb[0].mxu0
    %v5916 = vadd.f32 0.0, %v5915
    %5917 = vdwg.mxu0
    %v5918 = vadd.f32 %v5772, %v5843
    %v5919 = vadd.f32 %v5773, %v5845
    %v5920 = vadd.f32 %v5774, %v5914
    %v5921 = vadd.f32 %v5775, %v5916
    %v5922 = vxor.u32 %v5918, 2147483648
    %v5923 = vmul.f32 %v5922, 1.442695
    %v5924 = vpow.pop %v5923
    %v5925 = vadd.f32 %v5924, 1.0
    %v5926 = vrcp.pop %v5925
    %v5927 = vmul.f32 1.0, %v5926
    %v5928 = vxor.u32 %v5919, 2147483648
    %v5929 = vmul.f32 %v5928, 1.442695
    %v5930 = vpow.pop %v5929
    %v5931 = vadd.f32 %v5930, 1.0
    %v5932 = vrcp.pop %v5931
    %v5933 = vmul.f32 1.0, %v5932
    %v5934 = vtanh.pop %v5920
    %v5935 = vxor.u32 %v5921, 2147483648
    %v5936 = vmul.f32 %v5935, 1.442695
    %v5937 = vpow.pop %v5936
    %v5938 = vadd.f32 %v5937, 1.0
    %v5939 = vrcp.pop %v5938
    %v5940 = vmul.f32 1.0, %v5939
    %v5941 = vmul.f32 %v5933, %v5769
    %v5942 = vmul.f32 %v5927, %v5934
    %v5943 = vadd.f32 %v5941, %v5942
    %v5944 = vtanh.pop %v5943
    %v5945 = vmul.f32 %v5940, %v5944
    %v5946 = vld [vmem:[#allocation2 + $0x40] sm:$0xff]
    %v5947 = vld [vmem:[#allocation2 + $0x48] sm:$0xff]
    %v5948 = vld [vmem:[#allocation2 + $0x50] sm:$0xff]
    %v5949 = vld [vmem:[#allocation2 + $0x58] sm:$0xff]
    %5950 = vmatprep.subr.mxu0 %v5539
    %5951 = vmatpush1.msra.mxu0 %v5538
    %5952 = vmatprep.subr.mxu0 %v5543
    %5953 = vmatpush1.msra.mxu0 %v5542
    %5954 = vmatprep.subr.mxu0 %v5547
    %5955 = vmatpush1.msra.mxu0 %v5546
    %5956 = vmatprep.subr.mxu0 %v5551
    %5957 = vmatpush1.msra.mxu0 %v5550
    %5958 = vmatprep.subr.mxu0 %v5555
    %5959 = vmatpush1.msra.mxu0 %v5554
    %5960 = vmatprep.subr.mxu0 %v5559
    %5961 = vmatpush1.msra.mxu0 %v5558
    %5962 = vmatprep.subr.mxu0 %v5563
    %5963 = vmatpush1.msra.mxu0 %v5562
    %5964 = vmatprep.subr.mxu0 %v5567
    %5965 = vmatpush1.msra.mxu0 %v5566
    %5966 = vmatprep.subr.mxu0 %v5571
    %5967 = vmatpush1.msra.mxu0 %v5570
    %5968 = vmatprep.subr.mxu0 %v5575
    %5969 = vmatpush1.msra.mxu0 %v5574
    %5970 = vmatprep.subr.mxu0 %v5579
    %5971 = vmatpush1.msra.mxu0 %v5578
    %5972 = vmatprep.subr.mxu0 %v5583
    %5973 = vmatpush1.msra.mxu0 %v5582
    %5974 = vmatprep.subr.mxu0 %v5587
    %5975 = vmatpush1.msra.mxu0 %v5586
    %5976 = vmatprep.subr.mxu0 %v5591
    %5977 = vmatpush1.msra.mxu0 %v5590
    %5978 = vmatprep.subr.mxu0 %v5595
    %5979 = vmatpush1.msra.mxu0 %v5594
    %5980 = vmatprep.subr.mxu0 %v5599
    %5981 = vmatpush1.msra.mxu0 %v5598
    %5982 = vmatprep.subr.mxu0 0.0
    %5983 = vmatpush1.msra.mxu0 0.0
    %5984 = vmatprep.subr.mxu0 0.0
    %5985 = vmatpush1.msra.mxu0 0.0
    %5986 = vmatprep.subr.mxu0 0.0
    %5987 = vmatpush1.msra.mxu0 0.0
    %5988 = vmatprep.subr.mxu0 0.0
    %5989 = vmatpush1.msra.mxu0 0.0
    %5990 = vmatprep.subr.mxu0 0.0
    %5991 = vmatpush1.msra.mxu0 0.0
    %5992 = vmatprep.subr.mxu0 0.0
    %5993 = vmatpush1.msra.mxu0 0.0
    %5994 = vmatprep.subr.mxu0 0.0
    %5995 = vmatpush1.msra.mxu0 0.0
    %5996 = vmatprep.subr.mxu0 0.0
    %5997 = vmatpush1.msra.mxu0 0.0
    %5998 = vmatprep.subr.mxu0 0.0
    %5999 = vmatpush1.msra.mxu0 0.0
    %6000 = vmatprep.subr.mxu0 0.0
    %6001 = vmatpush1.msra.mxu0 0.0
    %6002 = vmatprep.subr.mxu0 0.0
    %6003 = vmatpush1.msra.mxu0 0.0
    %6004 = vmatprep.subr.mxu0 0.0
    %6005 = vmatpush1.msra.mxu0 0.0
    %6006 = vmatprep.subr.mxu0 0.0
    %6007 = vmatpush1.msra.mxu0 0.0
    %6008 = vmatprep.subr.mxu0 0.0
    %6009 = vmatpush1.msra.mxu0 0.0
    %6010 = vmatprep.subr.mxu0 0.0
    %6011 = vmatpush1.msra.mxu0 0.0
    %6012 = vmatprep.subr.mxu0 0.0
    %6013 = vmatpush1.msra.mxu0 0.0
    %6014 = vmatprep.mubr.f32.mxu0 0.0
    %6015 = vmatmul.mubr.f32.gmra.mrb[0].mxu0 %v5945
    %v6016 = vpop.f32.mrb[0].mxu0
    %v6017 = vadd.f32 0.0, %v6016
    %v6018 = vpop.f32.mrb[0].mxu0
    %v6019 = vadd.f32 0.0, %v6018
    %6020 = vdwg.mxu0
    %6021 = vmatprep.subr.mxu0 %v5541
    %6022 = vmatpush1.msra.mxu0 %v5540
    %6023 = vmatprep.subr.mxu0 %v5545
    %6024 = vmatpush1.msra.mxu0 %v5544
    %6025 = vmatprep.subr.mxu0 %v5549
    %6026 = vmatpush1.msra.mxu0 %v5548
    %6027 = vmatprep.subr.mxu0 %v5553
    %6028 = vmatpush1.msra.mxu0 %v5552
    %6029 = vmatprep.subr.mxu0 %v5557
    %6030 = vmatpush1.msra.mxu0 %v5556
    %6031 = vmatprep.subr.mxu0 %v5561
    %6032 = vmatpush1.msra.mxu0 %v5560
    %6033 = vmatprep.subr.mxu0 %v5565
    %6034 = vmatpush1.msra.mxu0 %v5564
    %6035 = vmatprep.subr.mxu0 %v5569
    %6036 = vmatpush1.msra.mxu0 %v5568
    %6037 = vmatprep.subr.mxu0 %v5573
    %6038 = vmatpush1.msra.mxu0 %v5572
    %6039 = vmatprep.subr.mxu0 %v5577
    %6040 = vmatpush1.msra.mxu0 %v5576
    %6041 = vmatprep.subr.mxu0 %v5581
    %6042 = vmatpush1.msra.mxu0 %v5580
    %6043 = vmatprep.subr.mxu0 %v5585
    %6044 = vmatpush1.msra.mxu0 %v5584
    %6045 = vmatprep.subr.mxu0 %v5589
    %6046 = vmatpush1.msra.mxu0 %v5588
    %6047 = vmatprep.subr.mxu0 %v5593
    %6048 = vmatpush1.msra.mxu0 %v5592
    %6049 = vmatprep.subr.mxu0 %v5597
    %6050 = vmatpush1.msra.mxu0 %v5596
    %6051 = vmatprep.subr.mxu0 %v5601
    %6052 = vmatpush1.msra.mxu0 %v5600
    %6053 = vmatprep.subr.mxu0 0.0
    %6054 = vmatpush1.msra.mxu0 0.0
    %6055 = vmatprep.subr.mxu0 0.0
    %6056 = vmatpush1.msra.mxu0 0.0
    %6057 = vmatprep.subr.mxu0 0.0
    %6058 = vmatpush1.msra.mxu0 0.0
    %6059 = vmatprep.subr.mxu0 0.0
    %6060 = vmatpush1.msra.mxu0 0.0
    %6061 = vmatprep.subr.mxu0 0.0
    %6062 = vmatpush1.msra.mxu0 0.0
    %6063 = vmatprep.subr.mxu0 0.0
    %6064 = vmatpush1.msra.mxu0 0.0
    %6065 = vmatprep.subr.mxu0 0.0
    %6066 = vmatpush1.msra.mxu0 0.0
    %6067 = vmatprep.subr.mxu0 0.0
    %6068 = vmatpush1.msra.mxu0 0.0
    %6069 = vmatprep.subr.mxu0 0.0
    %6070 = vmatpush1.msra.mxu0 0.0
    %6071 = vmatprep.subr.mxu0 0.0
    %6072 = vmatpush1.msra.mxu0 0.0
    %6073 = vmatprep.subr.mxu0 0.0
    %6074 = vmatpush1.msra.mxu0 0.0
    %6075 = vmatprep.subr.mxu0 0.0
    %6076 = vmatpush1.msra.mxu0 0.0
    %6077 = vmatprep.subr.mxu0 0.0
    %6078 = vmatpush1.msra.mxu0 0.0
    %6079 = vmatprep.subr.mxu0 0.0
    %6080 = vmatpush1.msra.mxu0 0.0
    %6081 = vmatprep.subr.mxu0 0.0
    %6082 = vmatpush1.msra.mxu0 0.0
    %6083 = vmatprep.subr.mxu0 0.0
    %6084 = vmatpush1.msra.mxu0 0.0
    %6085 = vmatprep.mubr.f32.mxu0 0.0
    %6086 = vmatmul.mubr.f32.gmra.mrb[0].mxu0 %v5945
    %v6087 = vpop.f32.mrb[0].mxu0
    %v6088 = vadd.f32 0.0, %v6087
    %v6089 = vpop.f32.mrb[0].mxu0
    %v6090 = vadd.f32 0.0, %v6089
    %6091 = vdwg.mxu0
    %v6092 = vadd.f32 %v5946, %v6017
    %v6093 = vadd.f32 %v5947, %v6019
    %v6094 = vadd.f32 %v5948, %v6088
    %v6095 = vadd.f32 %v5949, %v6090
    %v6096 = vxor.u32 %v6092, 2147483648
    %v6097 = vmul.f32 %v6096, 1.442695
    %v6098 = vpow.pop %v6097
    %v6099 = vadd.f32 %v6098, 1.0
    %v6100 = vrcp.pop %v6099
    %v6101 = vmul.f32 1.0, %v6100
    %v6102 = vxor.u32 %v6093, 2147483648
    %v6103 = vmul.f32 %v6102, 1.442695
    %v6104 = vpow.pop %v6103
    %v6105 = vadd.f32 %v6104, 1.0
    %v6106 = vrcp.pop %v6105
    %v6107 = vmul.f32 1.0, %v6106
    %v6108 = vtanh.pop %v6094
    %v6109 = vxor.u32 %v6095, 2147483648
    %v6110 = vmul.f32 %v6109, 1.442695
    %v6111 = vpow.pop %v6110
    %v6112 = vadd.f32 %v6111, 1.0
    %v6113 = vrcp.pop %v6112
    %v6114 = vmul.f32 1.0, %v6113
    %v6115 = vmul.f32 %v6107, %v5943
    %v6116 = vmul.f32 %v6101, %v6108
    %v6117 = vadd.f32 %v6115, %v6116
    %v6118 = vtanh.pop %v6117
    %v6119 = vmul.f32 %v6114, %v6118
    %v6120 = vld [vmem:[#allocation2 + $0x60] sm:$0xff]
    %v6121 = vld [vmem:[#allocation2 + $0x68] sm:$0xff]
    %v6122 = vld [vmem:[#allocation2 + $0x70] sm:$0xff]
    %v6123 = vld [vmem:[#allocation2 + $0x78] sm:$0xff]
    %6124 = vmatprep.subr.mxu0 %v5539
    %6125 = vmatpush1.msra.mxu0 %v5538
    %6126 = vmatprep.subr.mxu0 %v5543
    %6127 = vmatpush1.msra.mxu0 %v5542
    %6128 = vmatprep.subr.mxu0 %v5547
    %6129 = vmatpush1.msra.mxu0 %v5546
    %6130 = vmatprep.subr.mxu0 %v5551
    %6131 = vmatpush1.msra.mxu0 %v5550
    %6132 = vmatprep.subr.mxu0 %v5555
    %6133 = vmatpush1.msra.mxu0 %v5554
    %6134 = vmatprep.subr.mxu0 %v5559
    %6135 = vmatpush1.msra.mxu0 %v5558
    %6136 = vmatprep.subr.mxu0 %v5563
    %6137 = vmatpush1.msra.mxu0 %v5562
    %6138 = vmatprep.subr.mxu0 %v5567
    %6139 = vmatpush1.msra.mxu0 %v5566
    %6140 = vmatprep.subr.mxu0 %v5571
    %6141 = vmatpush1.msra.mxu0 %v5570
    %6142 = vmatprep.subr.mxu0 %v5575
    %6143 = vmatpush1.msra.mxu0 %v5574
    %6144 = vmatprep.subr.mxu0 %v5579
    %6145 = vmatpush1.msra.mxu0 %v5578
    %6146 = vmatprep.subr.mxu0 %v5583
    %6147 = vmatpush1.msra.mxu0 %v5582
    %6148 = vmatprep.subr.mxu0 %v5587
    %6149 = vmatpush1.msra.mxu0 %v5586
    %6150 = vmatprep.subr.mxu0 %v5591
    %6151 = vmatpush1.msra.mxu0 %v5590
    %6152 = vmatprep.subr.mxu0 %v5595
    %6153 = vmatpush1.msra.mxu0 %v5594
    %6154 = vmatprep.subr.mxu0 %v5599
    %6155 = vmatpush1.msra.mxu0 %v5598
    %6156 = vmatprep.subr.mxu0 0.0
    %6157 = vmatpush1.msra.mxu0 0.0
    %6158 = vmatprep.subr.mxu0 0.0
    %6159 = vmatpush1.msra.mxu0 0.0
    %6160 = vmatprep.subr.mxu0 0.0
    %6161 = vmatpush1.msra.mxu0 0.0
    %6162 = vmatprep.subr.mxu0 0.0
    %6163 = vmatpush1.msra.mxu0 0.0
    %6164 = vmatprep.subr.mxu0 0.0
    %6165 = vmatpush1.msra.mxu0 0.0
    %6166 = vmatprep.subr.mxu0 0.0
    %6167 = vmatpush1.msra.mxu0 0.0
    %6168 = vmatprep.subr.mxu0 0.0
    %6169 = vmatpush1.msra.mxu0 0.0
    %6170 = vmatprep.subr.mxu0 0.0
    %6171 = vmatpush1.msra.mxu0 0.0
    %6172 = vmatprep.subr.mxu0 0.0
    %6173 = vmatpush1.msra.mxu0 0.0
    %6174 = vmatprep.subr.mxu0 0.0
    %6175 = vmatpush1.msra.mxu0 0.0
    %6176 = vmatprep.subr.mxu0 0.0
    %6177 = vmatpush1.msra.mxu0 0.0
    %6178 = vmatprep.subr.mxu0 0.0
    %6179 = vmatpush1.msra.mxu0 0.0
    %6180 = vmatprep.subr.mxu0 0.0
    %6181 = vmatpush1.msra.mxu0 0.0
    %6182 = vmatprep.subr.mxu0 0.0
    %6183 = vmatpush1.msra.mxu0 0.0
    %6184 = vmatprep.subr.mxu0 0.0
    %6185 = vmatpush1.msra.mxu0 0.0
    %6186 = vmatprep.subr.mxu0 0.0
    %6187 = vmatpush1.msra.mxu0 0.0
    %6188 = vmatprep.mubr.f32.mxu0 0.0
    %6189 = vmatmul.mubr.f32.gmra.mrb[0].mxu0 %v6119
    %v6190 = vpop.f32.mrb[0].mxu0
    %v6191 = vadd.f32 0.0, %v6190
    %v6192 = vpop.f32.mrb[0].mxu0
    %v6193 = vadd.f32 0.0, %v6192
    %6194 = vdwg.mxu0
    %6195 = vmatprep.subr.mxu0 %v5541
    %6196 = vmatpush1.msra.mxu0 %v5540
    %6197 = vmatprep.subr.mxu0 %v5545
    %6198 = vmatpush1.msra.mxu0 %v5544
    %6199 = vmatprep.subr.mxu0 %v5549
    %6200 = vmatpush1.msra.mxu0 %v5548
    %6201 = vmatprep.subr.mxu0 %v5553
    %6202 = vmatpush1.msra.mxu0 %v5552
    %6203 = vmatprep.subr.mxu0 %v5557
    %6204 = vmatpush1.msra.mxu0 %v5556
    %6205 = vmatprep.subr.mxu0 %v5561
    %6206 = vmatpush1.msra.mxu0 %v5560
    %6207 = vmatprep.subr.mxu0 %v5565
    %6208 = vmatpush1.msra.mxu0 %v5564
    %6209 = vmatprep.subr.mxu0 %v5569
    %6210 = vmatpush1.msra.mxu0 %v5568
    %6211 = vmatprep.subr.mxu0 %v5573
    %6212 = vmatpush1.msra.mxu0 %v5572
    %6213 = vmatprep.subr.mxu0 %v5577
    %6214 = vmatpush1.msra.mxu0 %v5576
    %6215 = vmatprep.subr.mxu0 %v5581
    %6216 = vmatpush1.msra.mxu0 %v5580
    %6217 = vmatprep.subr.mxu0 %v5585
    %6218 = vmatpush1.msra.mxu0 %v5584
    %6219 = vmatprep.subr.mxu0 %v5589
    %6220 = vmatpush1.msra.mxu0 %v5588
    %6221 = vmatprep.subr.mxu0 %v5593
    %6222 = vmatpush1.msra.mxu0 %v5592
    %6223 = vmatprep.subr.mxu0 %v5597
    %6224 = vmatpush1.msra.mxu0 %v5596
    %6225 = vmatprep.subr.mxu0 %v5601
    %6226 = vmatpush1.msra.mxu0 %v5600
    %6227 = vmatprep.subr.mxu0 0.0
    %6228 = vmatpush1.msra.mxu0 0.0
    %6229 = vmatprep.subr.mxu0 0.0
    %6230 = vmatpush1.msra.mxu0 0.0
    %6231 = vmatprep.subr.mxu0 0.0
    %6232 = vmatpush1.msra.mxu0 0.0
    %6233 = vmatprep.subr.mxu0 0.0
    %6234 = vmatpush1.msra.mxu0 0.0
    %6235 = vmatprep.subr.mxu0 0.0
    %6236 = vmatpush1.msra.mxu0 0.0
    %6237 = vmatprep.subr.mxu0 0.0
    %6238 = vmatpush1.msra.mxu0 0.0
    %6239 = vmatprep.subr.mxu0 0.0
    %6240 = vmatpush1.msra.mxu0 0.0
    %6241 = vmatprep.subr.mxu0 0.0
    %6242 = vmatpush1.msra.mxu0 0.0
    %6243 = vmatprep.subr.mxu0 0.0
    %6244 = vmatpush1.msra.mxu0 0.0
    %6245 = vmatprep.subr.mxu0 0.0
    %6246 = vmatpush1.msra.mxu0 0.0
    %6247 = vmatprep.subr.mxu0 0.0
    %6248 = vmatpush1.msra.mxu0 0.0
    %6249 = vmatprep.subr.mxu0 0.0
    %6250 = vmatpush1.msra.mxu0 0.0
    %6251 = vmatprep.subr.mxu0 0.0
    %6252 = vmatpush1.msra.mxu0 0.0
    %6253 = vmatprep.subr.mxu0 0.0
    %6254 = vmatpush1.msra.mxu0 0.0
    %6255 = vmatprep.subr.mxu0 0.0
    %6256 = vmatpush1.msra.mxu0 0.0
    %6257 = vmatprep.subr.mxu0 0.0
    %6258 = vmatpush1.msra.mxu0 0.0
    %6259 = vmatprep.mubr.f32.mxu0 0.0
    %6260 = vmatmul.mubr.f32.gmra.mrb[0].mxu0 %v6119
    %v6261 = vpop.f32.mrb[0].mxu0
    %v6262 = vadd.f32 0.0, %v6261
    %v6263 = vpop.f32.mrb[0].mxu0
    %v6264 = vadd.f32 0.0, %v6263
    %6265 = vdwg.mxu0
    %v6266 = vadd.f32 %v6120, %v6191
    %v6267 = vadd.f32 %v6121, %v6193
    %v6268 = vadd.f32 %v6122, %v6262
    %v6269 = vadd.f32 %v6123, %v6264
    %v6270 = vxor.u32 %v6266, 2147483648
    %v6271 = vmul.f32 %v6270, 1.442695
    %v6272 = vpow.pop %v6271
    %v6273 = vadd.f32 %v6272, 1.0
    %v6274 = vrcp.pop %v6273
    %v6275 = vmul.f32 1.0, %v6274
    %v6276 = vxor.u32 %v6267, 2147483648
    %v6277 = vmul.f32 %v6276, 1.442695
    %v6278 = vpow.pop %v6277
    %v6279 = vadd.f32 %v6278, 1.0
    %v6280 = vrcp.pop %v6279
    %v6281 = vmul.f32 1.0, %v6280
    %v6282 = vtanh.pop %v6268
    %v6283 = vxor.u32 %v6269, 2147483648
    %v6284 = vmul.f32 %v6283, 1.442695
    %v6285 = vpow.pop %v6284
    %v6286 = vadd.f32 %v6285, 1.0
    %v6287 = vrcp.pop %v6286
    %v6288 = vmul.f32 1.0, %v6287
    %v6289 = vmul.f32 %v6281, %v6117
    %v6290 = vmul.f32 %v6275, %v6282
    %v6291 = vadd.f32 %v6289, %v6290
    %v6292 = vtanh.pop %v6291
    %v6293 = vmul.f32 %v6288, %v6292
    %v6294 = vld [vmem:[#allocation2 + $0x80] sm:$0xff]
    %v6295 = vld [vmem:[#allocation2 + $0x88] sm:$0xff]
    %v6296 = vld [vmem:[#allocation2 + $0x90] sm:$0xff]
    %v6297 = vld [vmem:[#allocation2 + $0x98] sm:$0xff]
    %6298 = vmatprep.subr.mxu0 %v5539
    %6299 = vmatpush1.msra.mxu0 %v5538
    %6300 = vmatprep.subr.mxu0 %v5543
    %6301 = vmatpush1.msra.mxu0 %v5542
    %6302 = vmatprep.subr.mxu0 %v5547
    %6303 = vmatpush1.msra.mxu0 %v5546
    %6304 = vmatprep.subr.mxu0 %v5551
    %6305 = vmatpush1.msra.mxu0 %v5550
    %6306 = vmatprep.subr.mxu0 %v5555
    %6307 = vmatpush1.msra.mxu0 %v5554
    %6308 = vmatprep.subr.mxu0 %v5559
    %6309 = vmatpush1.msra.mxu0 %v5558
    %6310 = vmatprep.subr.mxu0 %v5563
    %6311 = vmatpush1.msra.mxu0 %v5562
    %6312 = vmatprep.subr.mxu0 %v5567
    %6313 = vmatpush1.msra.mxu0 %v5566
    %6314 = vmatprep.subr.mxu0 %v5571
    %6315 = vmatpush1.msra.mxu0 %v5570
    %6316 = vmatprep.subr.mxu0 %v5575
    %6317 = vmatpush1.msra.mxu0 %v5574
    %6318 = vmatprep.subr.mxu0 %v5579
    %6319 = vmatpush1.msra.mxu0 %v5578
    %6320 = vmatprep.subr.mxu0 %v5583
    %6321 = vmatpush1.msra.mxu0 %v5582
    %6322 = vmatprep.subr.mxu0 %v5587
    %6323 = vmatpush1.msra.mxu0 %v5586
    %6324 = vmatprep.subr.mxu0 %v5591
    %6325 = vmatpush1.msra.mxu0 %v5590
    %6326 = vmatprep.subr.mxu0 %v5595
    %6327 = vmatpush1.msra.mxu0 %v5594
    %6328 = vmatprep.subr.mxu0 %v5599
    %6329 = vmatpush1.msra.mxu0 %v5598
    %6330 = vmatprep.subr.mxu0 0.0
    %6331 = vmatpush1.msra.mxu0 0.0
    %6332 = vmatprep.subr.mxu0 0.0
    %6333 = vmatpush1.msra.mxu0 0.0
    %6334 = vmatprep.subr.mxu0 0.0
    %6335 = vmatpush1.msra.mxu0 0.0
    %6336 = vmatprep.subr.mxu0 0.0
    %6337 = vmatpush1.msra.mxu0 0.0
    %6338 = vmatprep.subr.mxu0 0.0
    %6339 = vmatpush1.msra.mxu0 0.0
    %6340 = vmatprep.subr.mxu0 0.0
    %6341 = vmatpush1.msra.mxu0 0.0
    %6342 = vmatprep.subr.mxu0 0.0
    %6343 = vmatpush1.msra.mxu0 0.0
    %6344 = vmatprep.subr.mxu0 0.0
    %6345 = vmatpush1.msra.mxu0 0.0
    %6346 = vmatprep.subr.mxu0 0.0
    %6347 = vmatpush1.msra.mxu0 0.0
    %6348 = vmatprep.subr.mxu0 0.0
    %6349 = vmatpush1.msra.mxu0 0.0
    %6350 = vmatprep.subr.mxu0 0.0
    %6351 = vmatpush1.msra.mxu0 0.0
    %6352 = vmatprep.subr.mxu0 0.0
    %6353 = vmatpush1.msra.mxu0 0.0
    %6354 = vmatprep.subr.mxu0 0.0
    %6355 = vmatpush1.msra.mxu0 0.0
    %6356 = vmatprep.subr.mxu0 0.0
    %6357 = vmatpush1.msra.mxu0 0.0
    %6358 = vmatprep.subr.mxu0 0.0
    %6359 = vmatpush1.msra.mxu0 0.0
    %6360 = vmatprep.subr.mxu0 0.0
    %6361 = vmatpush1.msra.mxu0 0.0
    %6362 = vmatprep.mubr.f32.mxu0 0.0
    %6363 = vmatmul.mubr.f32.gmra.mrb[0].mxu0 %v6293
    %v6364 = vpop.f32.mrb[0].mxu0
    %v6365 = vadd.f32 0.0, %v6364
    %v6366 = vpop.f32.mrb[0].mxu0
    %v6367 = vadd.f32 0.0, %v6366
    %6368 = vdwg.mxu0
    %6369 = vmatprep.subr.mxu0 %v5541
    %6370 = vmatpush1.msra.mxu0 %v5540
    %6371 = vmatprep.subr.mxu0 %v5545
    %6372 = vmatpush1.msra.mxu0 %v5544
    %6373 = vmatprep.subr.mxu0 %v5549
    %6374 = vmatpush1.msra.mxu0 %v5548
    %6375 = vmatprep.subr.mxu0 %v5553
    %6376 = vmatpush1.msra.mxu0 %v5552
    %6377 = vmatprep.subr.mxu0 %v5557
    %6378 = vmatpush1.msra.mxu0 %v5556
    %6379 = vmatprep.subr.mxu0 %v5561
    %6380 = vmatpush1.msra.mxu0 %v5560
    %6381 = vmatprep.subr.mxu0 %v5565
    %6382 = vmatpush1.msra.mxu0 %v5564
    %6383 = vmatprep.subr.mxu0 %v5569
    %6384 = vmatpush1.msra.mxu0 %v5568
    %6385 = vmatprep.subr.mxu0 %v5573
    %6386 = vmatpush1.msra.mxu0 %v5572
    %6387 = vmatprep.subr.mxu0 %v5577
    %6388 = vmatpush1.msra.mxu0 %v5576
    %6389 = vmatprep.subr.mxu0 %v5581
    %6390 = vmatpush1.msra.mxu0 %v5580
    %6391 = vmatprep.subr.mxu0 %v5585
    %6392 = vmatpush1.msra.mxu0 %v5584
    %6393 = vmatprep.subr.mxu0 %v5589
    %6394 = vmatpush1.msra.mxu0 %v5588
    %6395 = vmatprep.subr.mxu0 %v5593
    %6396 = vmatpush1.msra.mxu0 %v5592
    %6397 = vmatprep.subr.mxu0 %v5597
    %6398 = vmatpush1.msra.mxu0 %v5596
    %6399 = vmatprep.subr.mxu0 %v5601
    %6400 = vmatpush1.msra.mxu0 %v5600
    %6401 = vmatprep.subr.mxu0 0.0
    %6402 = vmatpush1.msra.mxu0 0.0
    %6403 = vmatprep.subr.mxu0 0.0
    %6404 = vmatpush1.msra.mxu0 0.0
    %6405 = vmatprep.subr.mxu0 0.0
    %6406 = vmatpush1.msra.mxu0 0.0
    %6407 = vmatprep.subr.mxu0 0.0
    %6408 = vmatpush1.msra.mxu0 0.0
    %6409 = vmatprep.subr.mxu0 0.0
    %6410 = vmatpush1.msra.mxu0 0.0
    %6411 = vmatprep.subr.mxu0 0.0
    %6412 = vmatpush1.msra.mxu0 0.0
    %6413 = vmatprep.subr.mxu0 0.0
    %6414 = vmatpush1.msra.mxu0 0.0
    %6415 = vmatprep.subr.mxu0 0.0
    %6416 = vmatpush1.msra.mxu0 0.0
    %6417 = vmatprep.subr.mxu0 0.0
    %6418 = vmatpush1.msra.mxu0 0.0
    %6419 = vmatprep.subr.mxu0 0.0
    %6420 = vmatpush1.msra.mxu0 0.0
    %6421 = vmatprep.subr.mxu0 0.0
    %6422 = vmatpush1.msra.mxu0 0.0
    %6423 = vmatprep.subr.mxu0 0.0
    %6424 = vmatpush1.msra.mxu0 0.0
    %6425 = vmatprep.subr.mxu0 0.0
    %6426 = vmatpush1.msra.mxu0 0.0
    %6427 = vmatprep.subr.mxu0 0.0
    %6428 = vmatpush1.msra.mxu0 0.0
    %6429 = vmatprep.subr.mxu0 0.0
    %6430 = vmatpush1.msra.mxu0 0.0
    %6431 = vmatprep.subr.mxu0 0.0
    %6432 = vmatpush1.msra.mxu0 0.0
    %6433 = vmatprep.mubr.f32.mxu0 0.0
    %6434 = vmatmul.mubr.f32.gmra.mrb[0].mxu0 %v6293
    %v6435 = vpop.f32.mrb[0].mxu0
    %v6436 = vadd.f32 0.0, %v6435
    %v6437 = vpop.f32.mrb[0].mxu0
    %v6438 = vadd.f32 0.0, %v6437
    %6439 = vdwg.mxu0
    %v6440 = vadd.f32 %v6294, %v6365
    %v6441 = vadd.f32 %v6295, %v6367
    %v6442 = vadd.f32 %v6296, %v6436
    %v6443 = vadd.f32 %v6297, %v6438
    %v6444 = vxor.u32 %v6440, 2147483648
    %v6445 = vmul.f32 %v6444, 1.442695
    %v6446 = vpow.pop %v6445
    %v6447 = vadd.f32 %v6446, 1.0
    %v6448 = vrcp.pop %v6447
    %v6449 = vmul.f32 1.0, %v6448
    %v6450 = vxor.u32 %v6441, 2147483648
    %v6451 = vmul.f32 %v6450, 1.442695
    %v6452 = vpow.pop %v6451
    %v6453 = vadd.f32 %v6452, 1.0
    %v6454 = vrcp.pop %v6453
    %v6455 = vmul.f32 1.0, %v6454
    %v6456 = vtanh.pop %v6442
    %v6457 = vxor.u32 %v6443, 2147483648
    %v6458 = vmul.f32 %v6457, 1.442695
    %v6459 = vpow.pop %v6458
    %v6460 = vadd.f32 %v6459, 1.0
    %v6461 = vrcp.pop %v6460
    %v6462 = vmul.f32 1.0, %v6461
    %v6463 = vmul.f32 %v6455, %v6291
    %v6464 = vmul.f32 %v6449, %v6456
    %v6465 = vadd.f32 %v6463, %v6464
    %v6466 = vtanh.pop %v6465
    %v6467 = vmul.f32 %v6462, %v6466
    %v6468 = vld [vmem:[#allocation2 + $0xa0] sm:$0xff]
    %v6469 = vld [vmem:[#allocation2 + $0xa8] sm:$0xff]
    %v6470 = vld [vmem:[#allocation2 + $0xb0] sm:$0xff]
    %v6471 = vld [vmem:[#allocation2 + $0xb8] sm:$0xff]
    %6472 = vmatprep.subr.mxu0 %v5539
    %6473 = vmatpush1.msra.mxu0 %v5538
    %6474 = vmatprep.subr.mxu0 %v5543
    %6475 = vmatpush1.msra.mxu0 %v5542
    %6476 = vmatprep.subr.mxu0 %v5547
    %6477 = vmatpush1.msra.mxu0 %v5546
    %6478 = vmatprep.subr.mxu0 %v5551
    %6479 = vmatpush1.msra.mxu0 %v5550
    %6480 = vmatprep.subr.mxu0 %v5555
    %6481 = vmatpush1.msra.mxu0 %v5554
    %6482 = vmatprep.subr.mxu0 %v5559
    %6483 = vmatpush1.msra.mxu0 %v5558
    %6484 = vmatprep.subr.mxu0 %v5563
    %6485 = vmatpush1.msra.mxu0 %v5562
    %6486 = vmatprep.subr.mxu0 %v5567
    %6487 = vmatpush1.msra.mxu0 %v5566
    %6488 = vmatprep.subr.mxu0 %v5571
    %6489 = vmatpush1.msra.mxu0 %v5570
    %6490 = vmatprep.subr.mxu0 %v5575
    %6491 = vmatpush1.msra.mxu0 %v5574
    %6492 = vmatprep.subr.mxu0 %v5579
    %6493 = vmatpush1.msra.mxu0 %v5578
    %6494 = vmatprep.subr.mxu0 %v5583
    %6495 = vmatpush1.msra.mxu0 %v5582
    %6496 = vmatprep.subr.mxu0 %v5587
    %6497 = vmatpush1.msra.mxu0 %v5586
    %6498 = vmatprep.subr.mxu0 %v5591
    %6499 = vmatpush1.msra.mxu0 %v5590
    %6500 = vmatprep.subr.mxu0 %v5595
    %6501 = vmatpush1.msra.mxu0 %v5594
    %6502 = vmatprep.subr.mxu0 %v5599
    %6503 = vmatpush1.msra.mxu0 %v5598
    %6504 = vmatprep.subr.mxu0 0.0
    %6505 = vmatpush1.msra.mxu0 0.0
    %6506 = vmatprep.subr.mxu0 0.0
    %6507 = vmatpush1.msra.mxu0 0.0
    %6508 = vmatprep.subr.mxu0 0.0
    %6509 = vmatpush1.msra.mxu0 0.0
    %6510 = vmatprep.subr.mxu0 0.0
    %6511 = vmatpush1.msra.mxu0 0.0
    %6512 = vmatprep.subr.mxu0 0.0
    %6513 = vmatpush1.msra.mxu0 0.0
    %6514 = vmatprep.subr.mxu0 0.0
    %6515 = vmatpush1.msra.mxu0 0.0
    %6516 = vmatprep.subr.mxu0 0.0
    %6517 = vmatpush1.msra.mxu0 0.0
    %6518 = vmatprep.subr.mxu0 0.0
    %6519 = vmatpush1.msra.mxu0 0.0
    %6520 = vmatprep.subr.mxu0 0.0
    %6521 = vmatpush1.msra.mxu0 0.0
    %6522 = vmatprep.subr.mxu0 0.0
    %6523 = vmatpush1.msra.mxu0 0.0
    %6524 = vmatprep.subr.mxu0 0.0
    %6525 = vmatpush1.msra.mxu0 0.0
    %6526 = vmatprep.subr.mxu0 0.0
    %6527 = vmatpush1.msra.mxu0 0.0
    %6528 = vmatprep.subr.mxu0 0.0
    %6529 = vmatpush1.msra.mxu0 0.0
    %6530 = vmatprep.subr.mxu0 0.0
    %6531 = vmatpush1.msra.mxu0 0.0
    %6532 = vmatprep.subr.mxu0 0.0
    %6533 = vmatpush1.msra.mxu0 0.0
    %6534 = vmatprep.subr.mxu0 0.0
    %6535 = vmatpush1.msra.mxu0 0.0
    %6536 = vmatprep.mubr.f32.mxu0 0.0
    %6537 = vmatmul.mubr.f32.gmra.mrb[0].mxu0 %v6467
    %v6538 = vpop.f32.mrb[0].mxu0
    %v6539 = vadd.f32 0.0, %v6538
    %v6540 = vpop.f32.mrb[0].mxu0
    %v6541 = vadd.f32 0.0, %v6540
    %6542 = vdwg.mxu0
    %6543 = vmatprep.subr.mxu0 %v5541
    %6544 = vmatpush1.msra.mxu0 %v5540
    %6545 = vmatprep.subr.mxu0 %v5545
    %6546 = vmatpush1.msra.mxu0 %v5544
    %6547 = vmatprep.subr.mxu0 %v5549
    %6548 = vmatpush1.msra.mxu0 %v5548
    %6549 = vmatprep.subr.mxu0 %v5553
    %6550 = vmatpush1.msra.mxu0 %v5552
    %6551 = vmatprep.subr.mxu0 %v5557
    %6552 = vmatpush1.msra.mxu0 %v5556
    %6553 = vmatprep.subr.mxu0 %v5561
    %6554 = vmatpush1.msra.mxu0 %v5560
    %6555 = vmatprep.subr.mxu0 %v5565
    %6556 = vmatpush1.msra.mxu0 %v5564
    %6557 = vmatprep.subr.mxu0 %v5569
    %6558 = vmatpush1.msra.mxu0 %v5568
    %6559 = vmatprep.subr.mxu0 %v5573
    %6560 = vmatpush1.msra.mxu0 %v5572
    %6561 = vmatprep.subr.mxu0 %v5577
    %6562 = vmatpush1.msra.mxu0 %v5576
    %6563 = vmatprep.subr.mxu0 %v5581
    %6564 = vmatpush1.msra.mxu0 %v5580
    %6565 = vmatprep.subr.mxu0 %v5585
    %6566 = vmatpush1.msra.mxu0 %v5584
    %6567 = vmatprep.subr.mxu0 %v5589
    %6568 = vmatpush1.msra.mxu0 %v5588
    %6569 = vmatprep.subr.mxu0 %v5593
    %6570 = vmatpush1.msra.mxu0 %v5592
    %6571 = vmatprep.subr.mxu0 %v5597
    %6572 = vmatpush1.msra.mxu0 %v5596
    %6573 = vmatprep.subr.mxu0 %v5601
    %6574 = vmatpush1.msra.mxu0 %v5600
    %6575 = vmatprep.subr.mxu0 0.0
    %6576 = vmatpush1.msra.mxu0 0.0
    %6577 = vmatprep.subr.mxu0 0.0
    %6578 = vmatpush1.msra.mxu0 0.0
    %6579 = vmatprep.subr.mxu0 0.0
    %6580 = vmatpush1.msra.mxu0 0.0
    %6581 = vmatprep.subr.mxu0 0.0
    %6582 = vmatpush1.msra.mxu0 0.0
    %6583 = vmatprep.subr.mxu0 0.0
    %6584 = vmatpush1.msra.mxu0 0.0
    %6585 = vmatprep.subr.mxu0 0.0
    %6586 = vmatpush1.msra.mxu0 0.0
    %6587 = vmatprep.subr.mxu0 0.0
    %6588 = vmatpush1.msra.mxu0 0.0
    %6589 = vmatprep.subr.mxu0 0.0
    %6590 = vmatpush1.msra.mxu0 0.0
    %6591 = vmatprep.subr.mxu0 0.0
    %6592 = vmatpush1.msra.mxu0 0.0
    %6593 = vmatprep.subr.mxu0 0.0
    %6594 = vmatpush1.msra.mxu0 0.0
    %6595 = vmatprep.subr.mxu0 0.0
    %6596 = vmatpush1.msra.mxu0 0.0
    %6597 = vmatprep.subr.mxu0 0.0
    %6598 = vmatpush1.msra.mxu0 0.0
    %6599 = vmatprep.subr.mxu0 0.0
    %6600 = vmatpush1.msra.mxu0 0.0
    %6601 = vmatprep.subr.mxu0 0.0
    %6602 = vmatpush1.msra.mxu0 0.0
    %6603 = vmatprep.subr.mxu0 0.0
    %6604 = vmatpush1.msra.mxu0 0.0
    %6605 = vmatprep.subr.mxu0 0.0
    %6606 = vmatpush1.msra.mxu0 0.0
    %6607 = vmatprep.mubr.f32.mxu0 0.0
    %6608 = vmatmul.mubr.f32.gmra.mrb[0].mxu0 %v6467
    %v6609 = vpop.f32.mrb[0].mxu0
    %v6610 = vadd.f32 0.0, %v6609
    %v6611 = vpop.f32.mrb[0].mxu0
    %v6612 = vadd.f32 0.0, %v6611
    %6613 = vdwg.mxu0
    %v6614 = vadd.f32 %v6468, %v6539
    %v6615 = vadd.f32 %v6469, %v6541
    %v6616 = vadd.f32 %v6470, %v6610
    %v6617 = vadd.f32 %v6471, %v6612
    %v6618 = vxor.u32 %v6614, 2147483648
    %v6619 = vmul.f32 %v6618, 1.442695
    %v6620 = vpow.pop %v6619
    %v6621 = vadd.f32 %v6620, 1.0
    %v6622 = vrcp.pop %v6621
    %v6623 = vmul.f32 1.0, %v6622
    %v6624 = vxor.u32 %v6615, 2147483648
    %v6625 = vmul.f32 %v6624, 1.442695
    %v6626 = vpow.pop %v6625
    %v6627 = vadd.f32 %v6626, 1.0
    %v6628 = vrcp.pop %v6627
    %v6629 = vmul.f32 1.0, %v6628
    %v6630 = vtanh.pop %v6616
    %v6631 = vxor.u32 %v6617, 2147483648
    %v6632 = vmul.f32 %v6631, 1.442695
    %v6633 = vpow.pop %v6632
    %v6634 = vadd.f32 %v6633, 1.0
    %v6635 = vrcp.pop %v6634
    %v6636 = vmul.f32 1.0, %v6635
    %v6637 = vmul.f32 %v6629, %v6465
    %v6638 = vmul.f32 %v6623, %v6630
    %v6639 = vadd.f32 %v6637, %v6638
    %v6640 = vtanh.pop %v6639
    %v6641 = vmul.f32 %v6636, %v6640
    %v6642 = vld [vmem:[#allocation2 + $0xc0] sm:$0xff]
    %v6643 = vld [vmem:[#allocation2 + $0xc8] sm:$0xff]
    %v6644 = vld [vmem:[#allocation2 + $0xd0] sm:$0xff]
    %v6645 = vld [vmem:[#allocation2 + $0xd8] sm:$0xff]
    %6646 = vmatprep.subr.mxu0 %v5539
    %6647 = vmatpush1.msra.mxu0 %v5538
    %6648 = vmatprep.subr.mxu0 %v5543
    %6649 = vmatpush1.msra.mxu0 %v5542
    %6650 = vmatprep.subr.mxu0 %v5547
    %6651 = vmatpush1.msra.mxu0 %v5546
    %6652 = vmatprep.subr.mxu0 %v5551
    %6653 = vmatpush1.msra.mxu0 %v5550
    %6654 = vmatprep.subr.mxu0 %v5555
    %6655 = vmatpush1.msra.mxu0 %v5554
    %6656 = vmatprep.subr.mxu0 %v5559
    %6657 = vmatpush1.msra.mxu0 %v5558
    %6658 = vmatprep.subr.mxu0 %v5563
    %6659 = vmatpush1.msra.mxu0 %v5562
    %6660 = vmatprep.subr.mxu0 %v5567
    %6661 = vmatpush1.msra.mxu0 %v5566
    %6662 = vmatprep.subr.mxu0 %v5571
    %6663 = vmatpush1.msra.mxu0 %v5570
    %6664 = vmatprep.subr.mxu0 %v5575
    %6665 = vmatpush1.msra.mxu0 %v5574
    %6666 = vmatprep.subr.mxu0 %v5579
    %6667 = vmatpush1.msra.mxu0 %v5578
    %6668 = vmatprep.subr.mxu0 %v5583
    %6669 = vmatpush1.msra.mxu0 %v5582
    %6670 = vmatprep.subr.mxu0 %v5587
    %6671 = vmatpush1.msra.mxu0 %v5586
    %6672 = vmatprep.subr.mxu0 %v5591
    %6673 = vmatpush1.msra.mxu0 %v5590
    %6674 = vmatprep.subr.mxu0 %v5595
    %6675 = vmatpush1.msra.mxu0 %v5594
    %6676 = vmatprep.subr.mxu0 %v5599
    %6677 = vmatpush1.msra.mxu0 %v5598
    %6678 = vmatprep.subr.mxu0 0.0
    %6679 = vmatpush1.msra.mxu0 0.0
    %6680 = vmatprep.subr.mxu0 0.0
    %6681 = vmatpush1.msra.mxu0 0.0
    %6682 = vmatprep.subr.mxu0 0.0
    %6683 = vmatpush1.msra.mxu0 0.0
    %6684 = vmatprep.subr.mxu0 0.0
    %6685 = vmatpush1.msra.mxu0 0.0
    %6686 = vmatprep.subr.mxu0 0.0
    %6687 = vmatpush1.msra.mxu0 0.0
    %6688 = vmatprep.subr.mxu0 0.0
    %6689 = vmatpush1.msra.mxu0 0.0
    %6690 = vmatprep.subr.mxu0 0.0
    %6691 = vmatpush1.msra.mxu0 0.0
    %6692 = vmatprep.subr.mxu0 0.0
    %6693 = vmatpush1.msra.mxu0 0.0
    %6694 = vmatprep.subr.mxu0 0.0
    %6695 = vmatpush1.msra.mxu0 0.0
    %6696 = vmatprep.subr.mxu0 0.0
    %6697 = vmatpush1.msra.mxu0 0.0
    %6698 = vmatprep.subr.mxu0 0.0
    %6699 = vmatpush1.msra.mxu0 0.0
    %6700 = vmatprep.subr.mxu0 0.0
    %6701 = vmatpush1.msra.mxu0 0.0
    %6702 = vmatprep.subr.mxu0 0.0
    %6703 = vmatpush1.msra.mxu0 0.0
    %6704 = vmatprep.subr.mxu0 0.0
    %6705 = vmatpush1.msra.mxu0 0.0
    %6706 = vmatprep.subr.mxu0 0.0
    %6707 = vmatpush1.msra.mxu0 0.0
    %6708 = vmatprep.subr.mxu0 0.0
    %6709 = vmatpush1.msra.mxu0 0.0
    %6710 = vmatprep.mubr.f32.mxu0 0.0
    %6711 = vmatmul.mubr.f32.gmra.mrb[0].mxu0 %v6641
    %v6712 = vpop.f32.mrb[0].mxu0
    %v6713 = vadd.f32 0.0, %v6712
    %v6714 = vpop.f32.mrb[0].mxu0
    %v6715 = vadd.f32 0.0, %v6714
    %6716 = vdwg.mxu0
    %6717 = vmatprep.subr.mxu0 %v5541
    %6718 = vmatpush1.msra.mxu0 %v5540
    %6719 = vmatprep.subr.mxu0 %v5545
    %6720 = vmatpush1.msra.mxu0 %v5544
    %6721 = vmatprep.subr.mxu0 %v5549
    %6722 = vmatpush1.msra.mxu0 %v5548
    %6723 = vmatprep.subr.mxu0 %v5553
    %6724 = vmatpush1.msra.mxu0 %v5552
    %6725 = vmatprep.subr.mxu0 %v5557
    %6726 = vmatpush1.msra.mxu0 %v5556
    %6727 = vmatprep.subr.mxu0 %v5561
    %6728 = vmatpush1.msra.mxu0 %v5560
    %6729 = vmatprep.subr.mxu0 %v5565
    %6730 = vmatpush1.msra.mxu0 %v5564
    %6731 = vmatprep.subr.mxu0 %v5569
    %6732 = vmatpush1.msra.mxu0 %v5568
    %6733 = vmatprep.subr.mxu0 %v5573
    %6734 = vmatpush1.msra.mxu0 %v5572
    %6735 = vmatprep.subr.mxu0 %v5577
    %6736 = vmatpush1.msra.mxu0 %v5576
    %6737 = vmatprep.subr.mxu0 %v5581
    %6738 = vmatpush1.msra.mxu0 %v5580
    %6739 = vmatprep.subr.mxu0 %v5585
    %6740 = vmatpush1.msra.mxu0 %v5584
    %6741 = vmatprep.subr.mxu0 %v5589
    %6742 = vmatpush1.msra.mxu0 %v5588
    %6743 = vmatprep.subr.mxu0 %v5593
    %6744 = vmatpush1.msra.mxu0 %v5592
    %6745 = vmatprep.subr.mxu0 %v5597
    %6746 = vmatpush1.msra.mxu0 %v5596
    %6747 = vmatprep.subr.mxu0 %v5601
    %6748 = vmatpush1.msra.mxu0 %v5600
    %6749 = vmatprep.subr.mxu0 0.0
    %6750 = vmatpush1.msra.mxu0 0.0
    %6751 = vmatprep.subr.mxu0 0.0
    %6752 = vmatpush1.msra.mxu0 0.0
    %6753 = vmatprep.subr.mxu0 0.0
    %6754 = vmatpush1.msra.mxu0 0.0
    %6755 = vmatprep.subr.mxu0 0.0
    %6756 = vmatpush1.msra.mxu0 0.0
    %6757 = vmatprep.subr.mxu0 0.0
    %6758 = vmatpush1.msra.mxu0 0.0
    %6759 = vmatprep.subr.mxu0 0.0
    %6760 = vmatpush1.msra.mxu0 0.0
    %6761 = vmatprep.subr.mxu0 0.0
    %6762 = vmatpush1.msra.mxu0 0.0
    %6763 = vmatprep.subr.mxu0 0.0
    %6764 = vmatpush1.msra.mxu0 0.0
    %6765 = vmatprep.subr.mxu0 0.0
    %6766 = vmatpush1.msra.mxu0 0.0
    %6767 = vmatprep.subr.mxu0 0.0
    %6768 = vmatpush1.msra.mxu0 0.0
    %6769 = vmatprep.subr.mxu0 0.0
    %6770 = vmatpush1.msra.mxu0 0.0
    %6771 = vmatprep.subr.mxu0 0.0
    %6772 = vmatpush1.msra.mxu0 0.0
    %6773 = vmatprep.subr.mxu0 0.0
    %6774 = vmatpush1.msra.mxu0 0.0
    %6775 = vmatprep.subr.mxu0 0.0
    %6776 = vmatpush1.msra.mxu0 0.0
    %6777 = vmatprep.subr.mxu0 0.0
    %6778 = vmatpush1.msra.mxu0 0.0
    %6779 = vmatprep.subr.mxu0 0.0
    %6780 = vmatpush1.msra.mxu0 0.0
    %6781 = vmatprep.mubr.f32.mxu0 0.0
    %6782 = vmatmul.mubr.f32.gmra.mrb[0].mxu0 %v6641
    %v6783 = vpop.f32.mrb[0].mxu0
    %v6784 = vadd.f32 0.0, %v6783
    %v6785 = vpop.f32.mrb[0].mxu0
    %v6786 = vadd.f32 0.0, %v6785
    %6787 = vdwg.mxu0
    %v6788 = vadd.f32 %v6642, %v6713
    %v6789 = vadd.f32 %v6643, %v6715
    %v6790 = vadd.f32 %v6644, %v6784
    %v6791 = vadd.f32 %v6645, %v6786
    %v6792 = vxor.u32 %v6788, 2147483648
    %v6793 = vmul.f32 %v6792, 1.442695
    %v6794 = vpow.pop %v6793
    %v6795 = vadd.f32 %v6794, 1.0
    %v6796 = vrcp.pop %v6795
    %v6797 = vmul.f32 1.0, %v6796
    %v6798 = vxor.u32 %v6789, 2147483648
    %v6799 = vmul.f32 %v6798, 1.442695
    %v6800 = vpow.pop %v6799
    %v6801 = vadd.f32 %v6800, 1.0
    %v6802 = vrcp.pop %v6801
    %v6803 = vmul.f32 1.0, %v6802
    %v6804 = vtanh.pop %v6790
    %v6805 = vxor.u32 %v6791, 2147483648
    %v6806 = vmul.f32 %v6805, 1.442695
    %v6807 = vpow.pop %v6806
    %v6808 = vadd.f32 %v6807, 1.0
    %v6809 = vrcp.pop %v6808
    %v6810 = vmul.f32 1.0, %v6809
    %v6811 = vmul.f32 %v6803, %v6639
    %v6812 = vmul.f32 %v6797, %v6804
    %v6813 = vadd.f32 %v6811, %v6812
    %v6814 = vtanh.pop %v6813
    %v6815 = vmul.f32 %v6810, %v6814
    %v6816 = vld [vmem:[#allocation2 + $0xe0] sm:$0xff]
    %v6817 = vld [vmem:[#allocation2 + $0xe8] sm:$0xff]
    %v6818 = vld [vmem:[#allocation2 + $0xf0] sm:$0xff]
    %v6819 = vld [vmem:[#allocation2 + $0xf8] sm:$0xff]
    %6820 = vmatprep.subr.mxu0 %v5539
    %6821 = vmatpush1.msra.mxu0 %v5538
    %6822 = vmatprep.subr.mxu0 %v5543
    %6823 = vmatpush1.msra.mxu0 %v5542
    %6824 = vmatprep.subr.mxu0 %v5547
    %6825 = vmatpush1.msra.mxu0 %v5546
    %6826 = vmatprep.subr.mxu0 %v5551
    %6827 = vmatpush1.msra.mxu0 %v5550
    %6828 = vmatprep.subr.mxu0 %v5555
    %6829 = vmatpush1.msra.mxu0 %v5554
    %6830 = vmatprep.subr.mxu0 %v5559
    %6831 = vmatpush1.msra.mxu0 %v5558
    %6832 = vmatprep.subr.mxu0 %v5563
    %6833 = vmatpush1.msra.mxu0 %v5562
    %6834 = vmatprep.subr.mxu0 %v5567
    %6835 = vmatpush1.msra.mxu0 %v5566
    %6836 = vmatprep.subr.mxu0 %v5571
    %6837 = vmatpush1.msra.mxu0 %v5570
    %6838 = vmatprep.subr.mxu0 %v5575
    %6839 = vmatpush1.msra.mxu0 %v5574
    %6840 = vmatprep.subr.mxu0 %v5579
    %6841 = vmatpush1.msra.mxu0 %v5578
    %6842 = vmatprep.subr.mxu0 %v5583
    %6843 = vmatpush1.msra.mxu0 %v5582
    %6844 = vmatprep.subr.mxu0 %v5587
    %6845 = vmatpush1.msra.mxu0 %v5586
    %6846 = vmatprep.subr.mxu0 %v5591
    %6847 = vmatpush1.msra.mxu0 %v5590
    %6848 = vmatprep.subr.mxu0 %v5595
    %6849 = vmatpush1.msra.mxu0 %v5594
    %6850 = vmatprep.subr.mxu0 %v5599
    %6851 = vmatpush1.msra.mxu0 %v5598
    %6852 = vmatprep.subr.mxu0 0.0
    %6853 = vmatpush1.msra.mxu0 0.0
    %6854 = vmatprep.subr.mxu0 0.0
    %6855 = vmatpush1.msra.mxu0 0.0
    %6856 = vmatprep.subr.mxu0 0.0
    %6857 = vmatpush1.msra.mxu0 0.0
    %6858 = vmatprep.subr.mxu0 0.0
    %6859 = vmatpush1.msra.mxu0 0.0
    %6860 = vmatprep.subr.mxu0 0.0
    %6861 = vmatpush1.msra.mxu0 0.0
    %6862 = vmatprep.subr.mxu0 0.0
    %6863 = vmatpush1.msra.mxu0 0.0
    %6864 = vmatprep.subr.mxu0 0.0
    %6865 = vmatpush1.msra.mxu0 0.0
    %6866 = vmatprep.subr.mxu0 0.0
    %6867 = vmatpush1.msra.mxu0 0.0
    %6868 = vmatprep.subr.mxu0 0.0
    %6869 = vmatpush1.msra.mxu0 0.0
    %6870 = vmatprep.subr.mxu0 0.0
    %6871 = vmatpush1.msra.mxu0 0.0
    %6872 = vmatprep.subr.mxu0 0.0
    %6873 = vmatpush1.msra.mxu0 0.0
    %6874 = vmatprep.subr.mxu0 0.0
    %6875 = vmatpush1.msra.mxu0 0.0
    %6876 = vmatprep.subr.mxu0 0.0
    %6877 = vmatpush1.msra.mxu0 0.0
    %6878 = vmatprep.subr.mxu0 0.0
    %6879 = vmatpush1.msra.mxu0 0.0
    %6880 = vmatprep.subr.mxu0 0.0
    %6881 = vmatpush1.msra.mxu0 0.0
    %6882 = vmatprep.subr.mxu0 0.0
    %6883 = vmatpush1.msra.mxu0 0.0
    %6884 = vmatprep.mubr.f32.mxu0 0.0
    %6885 = vmatmul.mubr.f32.gmra.mrb[0].mxu0 %v6815
    %v6886 = vpop.f32.mrb[0].mxu0
    %v6887 = vadd.f32 0.0, %v6886
    %v6888 = vpop.f32.mrb[0].mxu0
    %v6889 = vadd.f32 0.0, %v6888
    %6890 = vdwg.mxu0
    %6891 = vmatprep.subr.mxu0 %v5541
    %6892 = vmatpush1.msra.mxu0 %v5540
    %6893 = vmatprep.subr.mxu0 %v5545
    %6894 = vmatpush1.msra.mxu0 %v5544
    %6895 = vmatprep.subr.mxu0 %v5549
    %6896 = vmatpush1.msra.mxu0 %v5548
    %6897 = vmatprep.subr.mxu0 %v5553
    %6898 = vmatpush1.msra.mxu0 %v5552
    %6899 = vmatprep.subr.mxu0 %v5557
    %6900 = vmatpush1.msra.mxu0 %v5556
    %6901 = vmatprep.subr.mxu0 %v5561
    %6902 = vmatpush1.msra.mxu0 %v5560
    %6903 = vmatprep.subr.mxu0 %v5565
    %6904 = vmatpush1.msra.mxu0 %v5564
    %6905 = vmatprep.subr.mxu0 %v5569
    %6906 = vmatpush1.msra.mxu0 %v5568
    %6907 = vmatprep.subr.mxu0 %v5573
    %6908 = vmatpush1.msra.mxu0 %v5572
    %6909 = vmatprep.subr.mxu0 %v5577
    %6910 = vmatpush1.msra.mxu0 %v5576
    %6911 = vmatprep.subr.mxu0 %v5581
    %6912 = vmatpush1.msra.mxu0 %v5580
    %6913 = vmatprep.subr.mxu0 %v5585
    %6914 = vmatpush1.msra.mxu0 %v5584
    %6915 = vmatprep.subr.mxu0 %v5589
    %6916 = vmatpush1.msra.mxu0 %v5588
    %6917 = vmatprep.subr.mxu0 %v5593
    %6918 = vmatpush1.msra.mxu0 %v5592
    %6919 = vmatprep.subr.mxu0 %v5597
    %6920 = vmatpush1.msra.mxu0 %v5596
    %6921 = vmatprep.subr.mxu0 %v5601
    %6922 = vmatpush1.msra.mxu0 %v5600
    %6923 = vmatprep.subr.mxu0 0.0
    %6924 = vmatpush1.msra.mxu0 0.0
    %6925 = vmatprep.subr.mxu0 0.0
    %6926 = vmatpush1.msra.mxu0 0.0
    %6927 = vmatprep.subr.mxu0 0.0
    %6928 = vmatpush1.msra.mxu0 0.0
    %6929 = vmatprep.subr.mxu0 0.0
    %6930 = vmatpush1.msra.mxu0 0.0
    %6931 = vmatprep.subr.mxu0 0.0
    %6932 = vmatpush1.msra.mxu0 0.0
    %6933 = vmatprep.subr.mxu0 0.0
    %6934 = vmatpush1.msra.mxu0 0.0
    %6935 = vmatprep.subr.mxu0 0.0
    %6936 = vmatpush1.msra.mxu0 0.0
    %6937 = vmatprep.subr.mxu0 0.0
    %6938 = vmatpush1.msra.mxu0 0.0
    %6939 = vmatprep.subr.mxu0 0.0
    %6940 = vmatpush1.msra.mxu0 0.0
    %6941 = vmatprep.subr.mxu0 0.0
    %6942 = vmatpush1.msra.mxu0 0.0
    %6943 = vmatprep.subr.mxu0 0.0
    %6944 = vmatpush1.msra.mxu0 0.0
    %6945 = vmatprep.subr.mxu0 0.0
    %6946 = vmatpush1.msra.mxu0 0.0
    %6947 = vmatprep.subr.mxu0 0.0
    %6948 = vmatpush1.msra.mxu0 0.0
    %6949 = vmatprep.subr.mxu0 0.0
    %6950 = vmatpush1.msra.mxu0 0.0
    %6951 = vmatprep.subr.mxu0 0.0
    %6952 = vmatpush1.msra.mxu0 0.0
    %6953 = vmatprep.subr.mxu0 0.0
    %6954 = vmatpush1.msra.mxu0 0.0
    %6955 = vmatprep.mubr.f32.mxu0 0.0
    %6956 = vmatmul.mubr.f32.gmra.mrb[0].mxu0 %v6815
    %v6957 = vpop.f32.mrb[0].mxu0
    %v6958 = vadd.f32 0.0, %v6957
    %v6959 = vpop.f32.mrb[0].mxu0
    %v6960 = vadd.f32 0.0, %v6959
    %6961 = vdwg.mxu0
    %v6962 = vadd.f32 %v6816, %v6887
    %v6963 = vadd.f32 %v6817, %v6889
    %v6964 = vadd.f32 %v6818, %v6958
    %v6965 = vadd.f32 %v6819, %v6960
    %v6966 = vxor.u32 %v6962, 2147483648
    %v6967 = vmul.f32 %v6966, 1.442695
    %v6968 = vpow.pop %v6967
    %v6969 = vadd.f32 %v6968, 1.0
    %v6970 = vrcp.pop %v6969
    %v6971 = vmul.f32 1.0, %v6970
    %v6972 = vxor.u32 %v6963, 2147483648
    %v6973 = vmul.f32 %v6972, 1.442695
    %v6974 = vpow.pop %v6973
    %v6975 = vadd.f32 %v6974, 1.0
    %v6976 = vrcp.pop %v6975
    %v6977 = vmul.f32 1.0, %v6976
    %v6978 = vtanh.pop %v6964
    %v6979 = vxor.u32 %v6965, 2147483648
    %v6980 = vmul.f32 %v6979, 1.442695
    %v6981 = vpow.pop %v6980
    %v6982 = vadd.f32 %v6981, 1.0
    %v6983 = vrcp.pop %v6982
    %v6984 = vmul.f32 1.0, %v6983
    %v6985 = vmul.f32 %v6977, %v6813
    %v6986 = vmul.f32 %v6971, %v6978
    %v6987 = vadd.f32 %v6985, %v6986
    %v6988 = vtanh.pop %v6987
    %v6989 = vmul.f32 %v6984, %v6988
    %v6990 = vld [vmem:[#allocation2 + $0x100] sm:$0xff]
    %v6991 = vld [vmem:[#allocation2 + $0x108] sm:$0xff]
    %v6992 = vld [vmem:[#allocation2 + $0x110] sm:$0xff]
    %v6993 = vld [vmem:[#allocation2 + $0x118] sm:$0xff]
    %6994 = vmatprep.subr.mxu0 %v5539
    %6995 = vmatpush1.msra.mxu0 %v5538
    %6996 = vmatprep.subr.mxu0 %v5543
    %6997 = vmatpush1.msra.mxu0 %v5542
    %6998 = vmatprep.subr.mxu0 %v5547
    %6999 = vmatpush1.msra.mxu0 %v5546
    %7000 = vmatprep.subr.mxu0 %v5551
    %7001 = vmatpush1.msra.mxu0 %v5550
    %7002 = vmatprep.subr.mxu0 %v5555
    %7003 = vmatpush1.msra.mxu0 %v5554
    %7004 = vmatprep.subr.mxu0 %v5559
    %7005 = vmatpush1.msra.mxu0 %v5558
    %7006 = vmatprep.subr.mxu0 %v5563
    %7007 = vmatpush1.msra.mxu0 %v5562
    %7008 = vmatprep.subr.mxu0 %v5567
    %7009 = vmatpush1.msra.mxu0 %v5566
    %7010 = vmatprep.subr.mxu0 %v5571
    %7011 = vmatpush1.msra.mxu0 %v5570
    %7012 = vmatprep.subr.mxu0 %v5575
    %7013 = vmatpush1.msra.mxu0 %v5574
    %7014 = vmatprep.subr.mxu0 %v5579
    %7015 = vmatpush1.msra.mxu0 %v5578
    %7016 = vmatprep.subr.mxu0 %v5583
    %7017 = vmatpush1.msra.mxu0 %v5582
    %7018 = vmatprep.subr.mxu0 %v5587
    %7019 = vmatpush1.msra.mxu0 %v5586
    %7020 = vmatprep.subr.mxu0 %v5591
    %7021 = vmatpush1.msra.mxu0 %v5590
    %7022 = vmatprep.subr.mxu0 %v5595
    %7023 = vmatpush1.msra.mxu0 %v5594
    %7024 = vmatprep.subr.mxu0 %v5599
    %7025 = vmatpush1.msra.mxu0 %v5598
    %7026 = vmatprep.subr.mxu0 0.0
    %7027 = vmatpush1.msra.mxu0 0.0
    %7028 = vmatprep.subr.mxu0 0.0
    %7029 = vmatpush1.msra.mxu0 0.0
    %7030 = vmatprep.subr.mxu0 0.0
    %7031 = vmatpush1.msra.mxu0 0.0
    %7032 = vmatprep.subr.mxu0 0.0
    %7033 = vmatpush1.msra.mxu0 0.0
    %7034 = vmatprep.subr.mxu0 0.0
    %7035 = vmatpush1.msra.mxu0 0.0
    %7036 = vmatprep.subr.mxu0 0.0
    %7037 = vmatpush1.msra.mxu0 0.0
    %7038 = vmatprep.subr.mxu0 0.0
    %7039 = vmatpush1.msra.mxu0 0.0
    %7040 = vmatprep.subr.mxu0 0.0
    %7041 = vmatpush1.msra.mxu0 0.0
    %7042 = vmatprep.subr.mxu0 0.0
    %7043 = vmatpush1.msra.mxu0 0.0
    %7044 = vmatprep.subr.mxu0 0.0
    %7045 = vmatpush1.msra.mxu0 0.0
    %7046 = vmatprep.subr.mxu0 0.0
    %7047 = vmatpush1.msra.mxu0 0.0
    %7048 = vmatprep.subr.mxu0 0.0
    %7049 = vmatpush1.msra.mxu0 0.0
    %7050 = vmatprep.subr.mxu0 0.0
    %7051 = vmatpush1.msra.mxu0 0.0
    %7052 = vmatprep.subr.mxu0 0.0
    %7053 = vmatpush1.msra.mxu0 0.0
    %7054 = vmatprep.subr.mxu0 0.0
    %7055 = vmatpush1.msra.mxu0 0.0
    %7056 = vmatprep.subr.mxu0 0.0
    %7057 = vmatpush1.msra.mxu0 0.0
    %7058 = vmatprep.mubr.f32.mxu0 0.0
    %7059 = vmatmul.mubr.f32.gmra.mrb[0].mxu0 %v6989
    %v7060 = vpop.f32.mrb[0].mxu0
    %v7061 = vadd.f32 0.0, %v7060
    %v7062 = vpop.f32.mrb[0].mxu0
    %v7063 = vadd.f32 0.0, %v7062
    %7064 = vdwg.mxu0
    %7065 = vmatprep.subr.mxu0 %v5541
    %7066 = vmatpush1.msra.mxu0 %v5540
    %7067 = vmatprep.subr.mxu0 %v5545
    %7068 = vmatpush1.msra.mxu0 %v5544
    %7069 = vmatprep.subr.mxu0 %v5549
    %7070 = vmatpush1.msra.mxu0 %v5548
    %7071 = vmatprep.subr.mxu0 %v5553
    %7072 = vmatpush1.msra.mxu0 %v5552
    %7073 = vmatprep.subr.mxu0 %v5557
    %7074 = vmatpush1.msra.mxu0 %v5556
    %7075 = vmatprep.subr.mxu0 %v5561
    %7076 = vmatpush1.msra.mxu0 %v5560
    %7077 = vmatprep.subr.mxu0 %v5565
    %7078 = vmatpush1.msra.mxu0 %v5564
    %7079 = vmatprep.subr.mxu0 %v5569
    %7080 = vmatpush1.msra.mxu0 %v5568
    %7081 = vmatprep.subr.mxu0 %v5573
    %7082 = vmatpush1.msra.mxu0 %v5572
    %7083 = vmatprep.subr.mxu0 %v5577
    %7084 = vmatpush1.msra.mxu0 %v5576
    %7085 = vmatprep.subr.mxu0 %v5581
    %7086 = vmatpush1.msra.mxu0 %v5580
    %7087 = vmatprep.subr.mxu0 %v5585
    %7088 = vmatpush1.msra.mxu0 %v5584
    %7089 = vmatprep.subr.mxu0 %v5589
    %7090 = vmatpush1.msra.mxu0 %v5588
    %7091 = vmatprep.subr.mxu0 %v5593
    %7092 = vmatpush1.msra.mxu0 %v5592
    %7093 = vmatprep.subr.mxu0 %v5597
    %7094 = vmatpush1.msra.mxu0 %v5596
    %7095 = vmatprep.subr.mxu0 %v5601
    %7096 = vmatpush1.msra.mxu0 %v5600
    %7097 = vmatprep.subr.mxu0 0.0
    %7098 = vmatpush1.msra.mxu0 0.0
    %7099 = vmatprep.subr.mxu0 0.0
    %7100 = vmatpush1.msra.mxu0 0.0
    %7101 = vmatprep.subr.mxu0 0.0
    %7102 = vmatpush1.msra.mxu0 0.0
    %7103 = vmatprep.subr.mxu0 0.0
    %7104 = vmatpush1.msra.mxu0 0.0
    %7105 = vmatprep.subr.mxu0 0.0
    %7106 = vmatpush1.msra.mxu0 0.0
    %7107 = vmatprep.subr.mxu0 0.0
    %7108 = vmatpush1.msra.mxu0 0.0
    %7109 = vmatprep.subr.mxu0 0.0
    %7110 = vmatpush1.msra.mxu0 0.0
    %7111 = vmatprep.subr.mxu0 0.0
    %7112 = vmatpush1.msra.mxu0 0.0
    %7113 = vmatprep.subr.mxu0 0.0
    %7114 = vmatpush1.msra.mxu0 0.0
    %7115 = vmatprep.subr.mxu0 0.0
    %7116 = vmatpush1.msra.mxu0 0.0
    %7117 = vmatprep.subr.mxu0 0.0
    %7118 = vmatpush1.msra.mxu0 0.0
    %7119 = vmatprep.subr.mxu0 0.0
    %7120 = vmatpush1.msra.mxu0 0.0
    %7121 = vmatprep.subr.mxu0 0.0
    %7122 = vmatpush1.msra.mxu0 0.0
    %7123 = vmatprep.subr.mxu0 0.0
    %7124 = vmatpush1.msra.mxu0 0.0
    %7125 = vmatprep.subr.mxu0 0.0
    %7126 = vmatpush1.msra.mxu0 0.0
    %7127 = vmatprep.subr.mxu0 0.0
    %7128 = vmatpush1.msra.mxu0 0.0
    %7129 = vmatprep.mubr.f32.mxu0 0.0
    %7130 = vmatmul.mubr.f32.gmra.mrb[0].mxu0 %v6989
    %v7131 = vpop.f32.mrb[0].mxu0
    %v7132 = vadd.f32 0.0, %v7131
    %v7133 = vpop.f32.mrb[0].mxu0
    %v7134 = vadd.f32 0.0, %v7133
    %7135 = vdwg.mxu0
    %v7136 = vadd.f32 %v6990, %v7061
    %v7137 = vadd.f32 %v6991, %v7063
    %v7138 = vadd.f32 %v6992, %v7132
    %v7139 = vadd.f32 %v6993, %v7134
    %v7140 = vxor.u32 %v7136, 2147483648
    %v7141 = vmul.f32 %v7140, 1.442695
    %v7142 = vpow.pop %v7141
    %v7143 = vadd.f32 %v7142, 1.0
    %v7144 = vrcp.pop %v7143
    %v7145 = vmul.f32 1.0, %v7144
    %v7146 = vxor.u32 %v7137, 2147483648
    %v7147 = vmul.f32 %v7146, 1.442695
    %v7148 = vpow.pop %v7147
    %v7149 = vadd.f32 %v7148, 1.0
    %v7150 = vrcp.pop %v7149
    %v7151 = vmul.f32 1.0, %v7150
    %v7152 = vtanh.pop %v7138
    %v7153 = vxor.u32 %v7139, 2147483648
    %v7154 = vmul.f32 %v7153, 1.442695
    %v7155 = vpow.pop %v7154
    %v7156 = vadd.f32 %v7155, 1.0
    %v7157 = vrcp.pop %v7156
    %v7158 = vmul.f32 1.0, %v7157
    %v7159 = vmul.f32 %v7151, %v6987
    %v7160 = vmul.f32 %v7145, %v7152
    %v7161 = vadd.f32 %v7159, %v7160
    %v7162 = vtanh.pop %v7161
    %v7163 = vmul.f32 %v7158, %v7162
    %v7164 = vld [vmem:[%s10] sm:$0xff]
    %v7165 = vld [vmem:[%s10 + $0x8] sm:$0xff]
    %v7166 = vld [vmem:[%s10 + $0x10] sm:$0xff]
    %v7167 = vld [vmem:[%s10 + $0x18] sm:$0xff]
    %v7168 = vld [vmem:[%s10 + $0x20] sm:$0xff]
    %v7169 = vld [vmem:[%s10 + $0x28] sm:$0xff]
    %v7170 = vld [vmem:[%s10 + $0x30] sm:$0xff]
    %v7171 = vld [vmem:[%s10 + $0x38] sm:$0xff]
    %v7172 = vld [vmem:[%s10 + $0x40] sm:$0xff]
    %v7173 = vld [vmem:[%s10 + $0x48] sm:$0xff]
    %v7174 = vld [vmem:[%s10 + $0x50] sm:$0xff]
    %v7175 = vld [vmem:[%s10 + $0x58] sm:$0xff]
    %v7176 = vld [vmem:[%s10 + $0x60] sm:$0xff]
    %v7177 = vld [vmem:[%s10 + $0x68] sm:$0xff]
    %v7178 = vld [vmem:[%s10 + $0x70] sm:$0xff]
    %v7179 = vld [vmem:[%s10 + $0x78] sm:$0xff]
    %v7180 = vld [vmem:[#allocation4] sm:$0x1]
    %v7182 = vlaneseq
    %v7183 = vshrl.u32 %v7182, 7
    %v7184 = vsub.s32 0, %v7183
    %v7185 = vrot.slane %v7180, %v7184
    %7187 = vmatprep.subr.mxu0 0.0
    %7188 = vmatpush1.msra.mxu0 %v7164
    %7189 = vmatprep.subr.mxu0 0.0
    %7190 = vmatpush1.msra.mxu0 %v7165
    %7191 = vmatprep.subr.mxu0 0.0
    %7192 = vmatpush1.msra.mxu0 %v7166
    %7193 = vmatprep.subr.mxu0 0.0
    %7194 = vmatpush1.msra.mxu0 %v7167
    %7195 = vmatprep.subr.mxu0 0.0
    %7196 = vmatpush1.msra.mxu0 %v7168
    %7197 = vmatprep.subr.mxu0 0.0
    %7198 = vmatpush1.msra.mxu0 %v7169
    %7199 = vmatprep.subr.mxu0 0.0
    %7200 = vmatpush1.msra.mxu0 %v7170
    %7201 = vmatprep.subr.mxu0 0.0
    %7202 = vmatpush1.msra.mxu0 %v7171
    %7203 = vmatprep.subr.mxu0 0.0
    %7204 = vmatpush1.msra.mxu0 %v7172
    %7205 = vmatprep.subr.mxu0 0.0
    %7206 = vmatpush1.msra.mxu0 %v7173
    %7207 = vmatprep.subr.mxu0 0.0
    %7208 = vmatpush1.msra.mxu0 %v7174
    %7209 = vmatprep.subr.mxu0 0.0
    %7210 = vmatpush1.msra.mxu0 %v7175
    %7211 = vmatprep.subr.mxu0 0.0
    %7212 = vmatpush1.msra.mxu0 %v7176
    %7213 = vmatprep.subr.mxu0 0.0
    %7214 = vmatpush1.msra.mxu0 %v7177
    %7215 = vmatprep.subr.mxu0 0.0
    %7216 = vmatpush1.msra.mxu0 %v7178
    %7217 = vmatprep.subr.mxu0 0.0
    %7218 = vmatpush1.msra.mxu0 %v7179
    %7219 = vmatprep.subr.mxu0 0.0
    %7220 = vmatpush1.msra.mxu0 0.0
    %7221 = vmatprep.subr.mxu0 0.0
    %7222 = vmatpush1.msra.mxu0 0.0
    %7223 = vmatprep.subr.mxu0 0.0
    %7224 = vmatpush1.msra.mxu0 0.0
    %7225 = vmatprep.subr.mxu0 0.0
    %7226 = vmatpush1.msra.mxu0 0.0
    %7227 = vmatprep.subr.mxu0 0.0
    %7228 = vmatpush1.msra.mxu0 0.0
    %7229 = vmatprep.subr.mxu0 0.0
    %7230 = vmatpush1.msra.mxu0 0.0
    %7231 = vmatprep.subr.mxu0 0.0
    %7232 = vmatpush1.msra.mxu0 0.0
    %7233 = vmatprep.subr.mxu0 0.0
    %7234 = vmatpush1.msra.mxu0 0.0
    %7235 = vmatprep.subr.mxu0 0.0
    %7236 = vmatpush1.msra.mxu0 0.0
    %7237 = vmatprep.subr.mxu0 0.0
    %7238 = vmatpush1.msra.mxu0 0.0
    %7239 = vmatprep.subr.mxu0 0.0
    %7240 = vmatpush1.msra.mxu0 0.0
    %7241 = vmatprep.subr.mxu0 0.0
    %7242 = vmatpush1.msra.mxu0 0.0
    %7243 = vmatprep.subr.mxu0 0.0
    %7244 = vmatpush1.msra.mxu0 0.0
    %7245 = vmatprep.subr.mxu0 0.0
    %7246 = vmatpush1.msra.mxu0 0.0
    %7247 = vmatprep.subr.mxu0 0.0
    %7248 = vmatpush1.msra.mxu0 0.0
    %7249 = vmatprep.subr.mxu0 0.0
    %7250 = vmatpush1.msra.mxu0 0.0
    %7251 = vmatprep.mubr.f32.mxu0 0.0
    %7252 = vmatmul.mubr.f32.gmra.mrb[0].mxu0 %v7163
    %v7253 = vpop.f32.mrb[0].mxu0
    %v7254 = vadd.f32 %v7185, %v7253
    %v7255 = vpop.f32.mrb[0].mxu0
    %7256 = vdwg.mxu0
    %vm7257 = vcmask 7168
    %7258 = vst.msk [vmem:[%s12] sm:$0xff] %vm7257, %v7254
    // Predicated region
    $region74: #{tpu_custom_call.1} parent=1 // pred_check
      _
    $region75: #{tpu_custom_call.1} parent=1 // pred_check_branch
      %7260 = sbr.rel (0) target = $region77
    $region76: #{tpu_custom_call.1} parent=1 // pred_region
      _
    $region77: #{tpu_custom_call.1} parent=1 // pred_fallthru
      _
    // Predicated region
    $region78: #{tpu_custom_call.1} parent=1 // pred_check
      _
    $region79: #{tpu_custom_call.1} parent=1 // pred_check_branch
      %7262 = sbr.rel (0) target = $region81
    $region80: #{tpu_custom_call.1} parent=1 // pred_region
      _
    $region81: #{tpu_custom_call.1} parent=1 // pred_fallthru
      _
    %7263 = vsyncpa [#allocation6], 1
    %7264 = vsyncpa [#allocation8], 1
    %7265 = vsyncpa [#allocation11], 1
    %7266 = vsyncpa [#allocation14], 1

</llo_original>
